<compile_context>
chip_gen: v7x
topology: tpu7x:2x2x1
jax: 0.10.0
libtpu: 0.0.40
codegen_flags: <defaults>
</compile_context>

<pallas_src>
import jax
import jax.numpy as jnp
from jax.experimental import pallas as pl
from jax.experimental.pallas import tpu as pltpu

# Shapes implied by the module (view(-1, 9*9*64) fixes the 84x84 input).
IN_H = IN_W = 84
IN_C = 3
K1, S1, OC1 = 8, 4, 32          # conv1
K2, S2, OC2 = 4, 2, 64          # conv2
OH1 = (IN_H - K1) // S1 + 1     # 20
OH2 = (OH1 - K2) // S2 + 1      # 9
HIDDEN = 512
FLAT = OH2 * OH2 * OC2          # 5184
CHUNK = OH2 * OC2               # 576 fc1 features per K-chunk (one conv2 row)
PATCH1 = K1 * K1 * IN_C         # 192
NTAPS = K2 * K2                 # 16 conv2 kernel taps


# ----------------------------------------------------------------------------
# Pallas kernels
# ----------------------------------------------------------------------------
def _fused_conv_kernel(p1g_ref, w1_ref, b1_ref, w2_ref, b2_ref, o_ref):
    """Fused conv1+ReLU+conv2+ReLU for one image.

    p1g_ref: (16, 81, 192) bf16 — conv1 patches grouped by conv2 kernel tap.
    w1_ref : (192, 32) bf16, b1_ref: (1, 32) f32
    w2_ref : (16, 32, 64) bf16, b2_ref: (1, 64) f32
    o_ref  : (81, 64) bf16 — conv2 activations, rows ordered (oh, ow).
    """
    acc = jnp.zeros((OH2 * OH2, OC2), jnp.float32)
    for g in range(NTAPS):                       # static unroll, 16 taps
        y1 = jnp.dot(p1g_ref[g], w1_ref[...],
                     preferred_element_type=jnp.float32)        # (81, 32)
        y1 = jnp.maximum(y1 + b1_ref[...], 0.0)
        acc = acc + jnp.dot(y1.astype(jnp.bfloat16), w2_ref[g],
                            preferred_element_type=jnp.float32)  # (81, 64)
    o_ref[...] = jnp.maximum(acc + b2_ref[...], 0.0).astype(o_ref.dtype)


def _head_kernel(x_ref, w1_ref, b1_ref, w2_ref, b2_ref, o_ref, acc_ref):
    """fc1 (K-chunked) + ReLU + fc2 + log_softmax.

    Grid axis 0 iterates the 9 fc1 K-chunks; acc_ref (N, 512) f32 accumulates.
    x_ref: (N, 576) bf16, w1_ref: (576, 512) bf16, w2_ref: (512, O) bf16.
    """
    r = pl.program_id(0)

    @pl.when(r == 0)
    def _init():
        acc_ref[...] = jnp.zeros_like(acc_ref)

    acc_ref[...] += jnp.dot(x_ref[...], w1_ref[...],
                            preferred_element_type=jnp.float32)

    @pl.when(r == pl.num_programs(0) - 1)
    def _finalize():
        h = jnp.maximum(acc_ref[...] + b1_ref[...], 0.0)
        logits = jnp.dot(h.astype(w2_ref.dtype), w2_ref[...],
                         preferred_element_type=jnp.float32) + b2_ref[...]
        m = jnp.max(logits, axis=-1, keepdims=True)
        s = logits - m
        o_ref[...] = s - jnp.log(jnp.sum(jnp.exp(s), axis=-1, keepdims=True))


# ----------------------------------------------------------------------------
# Pallas wrappers
# ----------------------------------------------------------------------------
def pallas_fused_convs(p1g, w1m, b1, w2g, b2):
    """p1g: (N, 16, 81, 192) bf16 -> conv2 activations (N, 81, 64) bf16."""
    N = p1g.shape[0]
    return pl.pallas_call(
        _fused_conv_kernel,
        out_shape=jax.ShapeDtypeStruct((N, OH2 * OH2, OC2), jnp.bfloat16),
        grid=(N,),
        in_specs=[
            pl.BlockSpec((None, NTAPS, OH2 * OH2, PATCH1),
                         lambda n: (n, 0, 0, 0)),              # per-image patches
            pl.BlockSpec((PATCH1, OC1), lambda n: (0, 0)),     # resident weights
            pl.BlockSpec((1, OC1), lambda n: (0, 0)),
            pl.BlockSpec((NTAPS, OC1, OC2), lambda n: (0, 0, 0)),
            pl.BlockSpec((1, OC2), lambda n: (0, 0)),
        ],
        out_specs=pl.BlockSpec((None, OH2 * OH2, OC2), lambda n: (n, 0, 0)),
        compiler_params=pltpu.CompilerParams(
            dimension_semantics=("parallel",)),                # v7x megacore
    )(p1g, w1m, b1, w2g, b2)


def pallas_mlp_head(x3, w1, b1, w2, b2):
    """x3: (9, N, 576) bf16, w1: (9, 576, 512) bf16 -> (N, O) f32 log-probs."""
    R, N, Kc = x3.shape
    O = w2.shape[1]
    return pl.pallas_call(
        _head_kernel,
        out_shape=jax.ShapeDtypeStruct((N, O), jnp.float32),
        grid=(R,),
        in_specs=[
            pl.BlockSpec((None, N, Kc), lambda r: (r, 0, 0)),        # act chunk
            pl.BlockSpec((None, Kc, HIDDEN), lambda r: (r, 0, 0)),   # fc1 chunk
            pl.BlockSpec((1, HIDDEN), lambda r: (0, 0)),             # resident
            pl.BlockSpec((HIDDEN, O), lambda r: (0, 0)),
            pl.BlockSpec((1, O), lambda r: (0, 0)),
        ],
        out_specs=pl.BlockSpec((N, O), lambda r: (0, 0)),            # resident out
        scratch_shapes=[pltpu.VMEM((N, HIDDEN), jnp.float32)],
        compiler_params=pltpu.CompilerParams(
            dimension_semantics=("arbitrary",)),
    )(x3, w1, b1, w2, b2)


# ----------------------------------------------------------------------------
# Patch staging (thin XLA glue: contiguous strided slices only)
# ----------------------------------------------------------------------------
def conv1_grouped_patches(x_nhwc):
    """(N, 84, 84, 3) -> (N, 16, 81, 192).

    For conv2 tap g = kh2*4 + kw2, p1g[n, g, oh*9+ow, :] is the 8x8x3 conv1
    patch feeding conv1 output position (2*oh+kh2, 2*ow+kw2), features ordered
    (kh1, kw1, c).
    """
    N = x_nhwc.shape[0]
    slabs = []
    for kh in range(K1):
        for kw in range(K1):
            slabs.append(jax.lax.slice(
                x_nhwc,
                (0, kh, kw, 0),
                (N, kh + (OH1 - 1) * S1 + 1, kw + (OH1 - 1) * S1 + 1, IN_C),
                (1, S1, S1, 1)))                         # (N, 20, 20, 3)
    grid_p = jnp.stack(slabs, axis=3).reshape(N, OH1, OH1, PATCH1)
    groups = []
    for kh2 in range(K2):
        for kw2 in range(K2):
            g = jax.lax.slice(
                grid_p,
                (0, kh2, kw2, 0),
                (N, kh2 + (OH2 - 1) * S2 + 1, kw2 + (OH2 - 1) * S2 + 1, PATCH1),
                (1, S2, S2, 1))                          # (N, 9, 9, 192)
            groups.append(g.reshape(N, OH2 * OH2, PATCH1))
    return jnp.stack(groups, axis=1)                     # (N, 16, 81, 192)


# ----------------------------------------------------------------------------
# Parameters
# ----------------------------------------------------------------------------
def init_params(key, output_size):
    """f32 master params in PyTorch layout."""
    ks = jax.random.split(key, 10)
    scale = 0.05
    return {
        "conv1_w": scale * jax.random.normal(ks[0], (32, 3, 8, 8), jnp.float32),
        "conv1_b": scale * jax.random.normal(ks[1], (32,), jnp.float32),
        "conv2_w": scale * jax.random.normal(ks[2], (64, 32, 4, 4), jnp.float32),
        "conv2_b": scale * jax.random.normal(ks[3], (64,), jnp.float32),
        # conv3 exists in the PyTorch __init__ but is unused in forward().
        "conv3_w": scale * jax.random.normal(ks[4], (64, 64, 3, 3), jnp.float32),
        "conv3_b": scale * jax.random.normal(ks[5], (64,), jnp.float32),
        "fc1_w": scale * jax.random.normal(ks[6], (512, FLAT), jnp.float32),
        "fc1_b": scale * jax.random.normal(ks[7], (512,), jnp.float32),
        "fc2_w": scale * jax.random.normal(ks[8], (output_size, 512), jnp.float32),
        "fc2_b": scale * jax.random.normal(ks[9], (output_size,), jnp.float32),
    }


def prepare_kernel_params(p):
    """One-time repack (outside jit): transposes, fc1 column permutation,
    fc1 K-chunking, bf16 cast."""
    # conv1: (OC, C, kh, kw) -> (kh*kw*C, OC), matching the (kh, kw, c) patches.
    w1m = p["conv1_w"].transpose(2, 3, 1, 0).reshape(PATCH1, OC1)
    # conv2: (OC, IC, kh, kw) -> per-tap (16, IC, OC).
    w2g = p["conv2_w"].transpose(2, 3, 1, 0).reshape(NTAPS, OC1, OC2)
    # PyTorch flattens conv2 output as (c, h, w); our NHWC flatten is (h, w, c).
    # Permute fc1's columns once, then split K into 9 row-chunks of 576.
    fc1_w = p["fc1_w"].reshape(HIDDEN, OC2, OH2, OH2).transpose(0, 2, 3, 1)
    fc1_w = fc1_w.reshape(HIDDEN, FLAT).T.reshape(OH2, CHUNK, HIDDEN)
    return {
        "w1m": w1m.astype(jnp.bfloat16),
        "b1": p["conv1_b"][None, :].astype(jnp.float32),
        "w2g": w2g.astype(jnp.bfloat16),
        "b2": p["conv2_b"][None, :].astype(jnp.float32),
        "w_fc1": fc1_w.astype(jnp.bfloat16),               # (9, 576, 512)
        "b_fc1": p["fc1_b"][None, :].astype(jnp.float32),
        "w_fc2": p["fc2_w"].T.astype(jnp.bfloat16),        # (512, output_size)
        "b_fc2": p["fc2_b"][None, :].astype(jnp.float32),
    }


# ----------------------------------------------------------------------------
# Model
# ----------------------------------------------------------------------------
def cnn_forward(kp, x):
    """x: (N, 3, 84, 84) f32 -> (N, output_size) f32 log-probabilities."""
    N = x.shape[0]
    x = jnp.transpose(x, (0, 2, 3, 1)).astype(jnp.bfloat16)      # NCHW -> NHWC
    p1g = conv1_grouped_patches(x)                               # (N, 16, 81, 192)
    h2 = pallas_fused_convs(p1g, kp["w1m"], kp["b1"],
                            kp["w2g"], kp["b2"])                 # (N, 81, 64)
    # Regroup conv2 activations into fc1 K-chunks (one conv2 output row each):
    # x3[r, n, ow*64 + c] == flattened (h, w, c) feature r*576 + ow*64 + c.
    x3 = h2.reshape(N, OH2, OH2, OC2).transpose(1, 0, 2, 3).reshape(OH2, N, CHUNK)
    return pallas_mlp_head(x3, kp["w_fc1"], kp["b_fc1"],
                           kp["w_fc2"], kp["b_fc2"])


def reference_forward(p, x):
    """Pure-JAX f32 reference matching the PyTorch forward exactly."""
    def conv(x, w, b, s):
        y = jax.lax.conv_general_dilated(
            x, w, window_strides=(s, s), padding="VALID",
            dimension_numbers=("NCHW", "OIHW", "NCHW"))
        return y + b[None, :, None, None]
    x = jax.nn.relu(conv(x, p["conv1_w"], p["conv1_b"], 4))
    x = jax.nn.relu(conv(x, p["conv2_w"], p["conv2_b"], 2))
    x = x.reshape(x.shape[0], -1)
    x = jax.nn.relu(x @ p["fc1_w"].T + p["fc1_b"])
    x = x @ p["fc2_w"].T + p["fc2_b"]
    return jax.nn.log_softmax(x, axis=-1)


if __name__ == "__main__":
    output_size = 10
    key = jax.random.PRNGKey(0)
    k_params, k_x = jax.random.split(key)
    params = init_params(k_params, output_size)
    kernel_params = prepare_kernel_params(params)

    x = jax.random.normal(k_x, (2, IN_C, IN_H, IN_W), jnp.float32)

    out = jax.jit(cnn_forward)(kernel_params, x)
    out = jax.block_until_ready(out)

    assert out.shape == (2, output_size) and out.dtype == jnp.float32
    # log-probabilities sum to 1 after exp
    assert bool(jnp.all(jnp.abs(jnp.sum(jnp.exp(out), axis=-1) - 1.0) < 1e-3))
    # matches the f32 XLA reference to bf16 tolerance
    ref = reference_forward(params, x)
    assert bool(jnp.max(jnp.abs(out - ref)) < 5e-2)
    print("KERNEL_OK")
</pallas_src>

<mosaic_0001>
module attributes {stable_mosaic.version = 11 : i64} {
  func.func @_fused_conv_kernel(%arg0: i32, %arg1: memref<1x16x81x192xbf16, #tpu.memory_space<vmem>>, %arg2: memref<192x32xbf16, #tpu.memory_space<vmem>>, %arg3: memref<1x32xf32, #tpu.memory_space<vmem>>, %arg4: memref<16x32x64xbf16, #tpu.memory_space<vmem>>, %arg5: memref<1x64xf32, #tpu.memory_space<vmem>>, %arg6: memref<1x81x64xbf16, #tpu.memory_space<vmem>>) attributes {dimension_semantics = [#tpu.dimension_semantics<parallel>], iteration_bounds = array<i64: 2>, scalar_prefetch = 0 : i64, scratch_operands = 0 : i64, tpu.core_type = #tpu.core_type<tc>, window_params = [{transform_indices = @transform_0, window_bounds = array<i64: 1, 16, 81, 192>}, {pipeline_mode = #tpu.pipeline_mode<synchronous>, transform_indices = @transform_1, window_bounds = array<i64: 192, 32>}, {pipeline_mode = #tpu.pipeline_mode<synchronous>, transform_indices = @transform_2, window_bounds = array<i64: 1, 32>}, {pipeline_mode = #tpu.pipeline_mode<synchronous>, transform_indices = @transform_3, window_bounds = array<i64: 16, 32, 64>}, {pipeline_mode = #tpu.pipeline_mode<synchronous>, transform_indices = @transform_4, window_bounds = array<i64: 1, 64>}, {transform_indices = @transform_5, window_bounds = array<i64: 1, 81, 64>}]} {
    %cst = arith.constant 0.000000e+00 : f32
    %0 = vector.broadcast %cst : f32 to vector<81x64xf32>
    %c0 = arith.constant 0 : index
    %c0_0 = arith.constant 0 : index
    %c0_1 = arith.constant 0 : index
    %c0_2 = arith.constant 0 : index
    %1 = vector.load %arg1[%c0, %c0_0, %c0_1, %c0_2] : memref<1x16x81x192xbf16, #tpu.memory_space<vmem>>, vector<1x1x81x192xbf16>
    %2 = vector.shape_cast %1 : vector<1x1x81x192xbf16> to vector<81x192xbf16>
    %c0_3 = arith.constant 0 : index
    %c0_4 = arith.constant 0 : index
    %3 = vector.load %arg2[%c0_3, %c0_4] : memref<192x32xbf16, #tpu.memory_space<vmem>>, vector<192x32xbf16>
    %cst_5 = arith.constant dense<0.000000e+00> : vector<81x32xf32>
    %4 = tpu.matmul %2, %3, %cst_5 {dimension_numbers = #tpu.dot_dimension_numbers<[1], [0], [0], [1], [0, 0, 1, 1], [], []>} : vector<81x192xbf16>, vector<192x32xbf16>, vector<81x32xf32> -> vector<81x32xf32>
    %c0_6 = arith.constant 0 : index
    %c0_7 = arith.constant 0 : index
    %5 = vector.load %arg3[%c0_6, %c0_7] : memref<1x32xf32, #tpu.memory_space<vmem>>, vector<1x32xf32>
    %6 = vector.broadcast %5 : vector<1x32xf32> to vector<81x32xf32>
    %7 = arith.addf %4, %6 : vector<81x32xf32>
    %cst_8 = arith.constant 0.000000e+00 : f32
    %8 = vector.broadcast %cst_8 : f32 to vector<81x32xf32>
    %9 = arith.maximumf %7, %8 : vector<81x32xf32>
    %10 = arith.truncf %9 : vector<81x32xf32> to vector<81x32xbf16>
    %c0_9 = arith.constant 0 : index
    %c0_10 = arith.constant 0 : index
    %c0_11 = arith.constant 0 : index
    %11 = vector.load %arg4[%c0_9, %c0_10, %c0_11] : memref<16x32x64xbf16, #tpu.memory_space<vmem>>, vector<1x32x64xbf16>
    %12 = vector.shape_cast %11 : vector<1x32x64xbf16> to vector<32x64xbf16>
    %cst_12 = arith.constant dense<0.000000e+00> : vector<81x64xf32>
    %13 = tpu.matmul %10, %12, %cst_12 {dimension_numbers = #tpu.dot_dimension_numbers<[1], [0], [0], [1], [0, 0, 1, 1], [], []>} : vector<81x32xbf16>, vector<32x64xbf16>, vector<81x64xf32> -> vector<81x64xf32>
    %14 = arith.addf %0, %13 : vector<81x64xf32>
    %c0_13 = arith.constant 0 : index
    %c1 = arith.constant 1 : index
    %c0_14 = arith.constant 0 : index
    %c0_15 = arith.constant 0 : index
    %15 = vector.load %arg1[%c0_13, %c1, %c0_14, %c0_15] : memref<1x16x81x192xbf16, #tpu.memory_space<vmem>>, vector<1x1x81x192xbf16>
    %16 = vector.shape_cast %15 : vector<1x1x81x192xbf16> to vector<81x192xbf16>
    %c0_16 = arith.constant 0 : index
    %c0_17 = arith.constant 0 : index
    %17 = vector.load %arg2[%c0_16, %c0_17] : memref<192x32xbf16, #tpu.memory_space<vmem>>, vector<192x32xbf16>
    %cst_18 = arith.constant dense<0.000000e+00> : vector<81x32xf32>
    %18 = tpu.matmul %16, %17, %cst_18 {dimension_numbers = #tpu.dot_dimension_numbers<[1], [0], [0], [1], [0, 0, 1, 1], [], []>} : vector<81x192xbf16>, vector<192x32xbf16>, vector<81x32xf32> -> vector<81x32xf32>
    %c0_19 = arith.constant 0 : index
    %c0_20 = arith.constant 0 : index
    %19 = vector.load %arg3[%c0_19, %c0_20] : memref<1x32xf32, #tpu.memory_space<vmem>>, vector<1x32xf32>
    %20 = vector.broadcast %19 : vector<1x32xf32> to vector<81x32xf32>
    %21 = arith.addf %18, %20 : vector<81x32xf32>
    %cst_21 = arith.constant 0.000000e+00 : f32
    %22 = vector.broadcast %cst_21 : f32 to vector<81x32xf32>
    %23 = arith.maximumf %21, %22 : vector<81x32xf32>
    %24 = arith.truncf %23 : vector<81x32xf32> to vector<81x32xbf16>
    %c1_22 = arith.constant 1 : index
    %c0_23 = arith.constant 0 : index
    %c0_24 = arith.constant 0 : index
    %25 = vector.load %arg4[%c1_22, %c0_23, %c0_24] : memref<16x32x64xbf16, #tpu.memory_space<vmem>>, vector<1x32x64xbf16>
    %26 = vector.shape_cast %25 : vector<1x32x64xbf16> to vector<32x64xbf16>
    %cst_25 = arith.constant dense<0.000000e+00> : vector<81x64xf32>
    %27 = tpu.matmul %24, %26, %cst_25 {dimension_numbers = #tpu.dot_dimension_numbers<[1], [0], [0], [1], [0, 0, 1, 1], [], []>} : vector<81x32xbf16>, vector<32x64xbf16>, vector<81x64xf32> -> vector<81x64xf32>
    %28 = arith.addf %14, %27 : vector<81x64xf32>
    %c0_26 = arith.constant 0 : index
    %c2 = arith.constant 2 : index
    %c0_27 = arith.constant 0 : index
    %c0_28 = arith.constant 0 : index
    %29 = vector.load %arg1[%c0_26, %c2, %c0_27, %c0_28] : memref<1x16x81x192xbf16, #tpu.memory_space<vmem>>, vector<1x1x81x192xbf16>
    %30 = vector.shape_cast %29 : vector<1x1x81x192xbf16> to vector<81x192xbf16>
    %c0_29 = arith.constant 0 : index
    %c0_30 = arith.constant 0 : index
    %31 = vector.load %arg2[%c0_29, %c0_30] : memref<192x32xbf16, #tpu.memory_space<vmem>>, vector<192x32xbf16>
    %cst_31 = arith.constant dense<0.000000e+00> : vector<81x32xf32>
    %32 = tpu.matmul %30, %31, %cst_31 {dimension_numbers = #tpu.dot_dimension_numbers<[1], [0], [0], [1], [0, 0, 1, 1], [], []>} : vector<81x192xbf16>, vector<192x32xbf16>, vector<81x32xf32> -> vector<81x32xf32>
    %c0_32 = arith.constant 0 : index
    %c0_33 = arith.constant 0 : index
    %33 = vector.load %arg3[%c0_32, %c0_33] : memref<1x32xf32, #tpu.memory_space<vmem>>, vector<1x32xf32>
    %34 = vector.broadcast %33 : vector<1x32xf32> to vector<81x32xf32>
    %35 = arith.addf %32, %34 : vector<81x32xf32>
    %cst_34 = arith.constant 0.000000e+00 : f32
    %36 = vector.broadcast %cst_34 : f32 to vector<81x32xf32>
    %37 = arith.maximumf %35, %36 : vector<81x32xf32>
    %38 = arith.truncf %37 : vector<81x32xf32> to vector<81x32xbf16>
    %c2_35 = arith.constant 2 : index
    %c0_36 = arith.constant 0 : index
    %c0_37 = arith.constant 0 : index
    %39 = vector.load %arg4[%c2_35, %c0_36, %c0_37] : memref<16x32x64xbf16, #tpu.memory_space<vmem>>, vector<1x32x64xbf16>
    %40 = vector.shape_cast %39 : vector<1x32x64xbf16> to vector<32x64xbf16>
    %cst_38 = arith.constant dense<0.000000e+00> : vector<81x64xf32>
    %41 = tpu.matmul %38, %40, %cst_38 {dimension_numbers = #tpu.dot_dimension_numbers<[1], [0], [0], [1], [0, 0, 1, 1], [], []>} : vector<81x32xbf16>, vector<32x64xbf16>, vector<81x64xf32> -> vector<81x64xf32>
    %42 = arith.addf %28, %41 : vector<81x64xf32>
    %c0_39 = arith.constant 0 : index
    %c3 = arith.constant 3 : index
    %c0_40 = arith.constant 0 : index
    %c0_41 = arith.constant 0 : index
    %43 = vector.load %arg1[%c0_39, %c3, %c0_40, %c0_41] : memref<1x16x81x192xbf16, #tpu.memory_space<vmem>>, vector<1x1x81x192xbf16>
    %44 = vector.shape_cast %43 : vector<1x1x81x192xbf16> to vector<81x192xbf16>
    %c0_42 = arith.constant 0 : index
    %c0_43 = arith.constant 0 : index
    %45 = vector.load %arg2[%c0_42, %c0_43] : memref<192x32xbf16, #tpu.memory_space<vmem>>, vector<192x32xbf16>
    %cst_44 = arith.constant dense<0.000000e+00> : vector<81x32xf32>
    %46 = tpu.matmul %44, %45, %cst_44 {dimension_numbers = #tpu.dot_dimension_numbers<[1], [0], [0], [1], [0, 0, 1, 1], [], []>} : vector<81x192xbf16>, vector<192x32xbf16>, vector<81x32xf32> -> vector<81x32xf32>
    %c0_45 = arith.constant 0 : index
    %c0_46 = arith.constant 0 : index
    %47 = vector.load %arg3[%c0_45, %c0_46] : memref<1x32xf32, #tpu.memory_space<vmem>>, vector<1x32xf32>
    %48 = vector.broadcast %47 : vector<1x32xf32> to vector<81x32xf32>
    %49 = arith.addf %46, %48 : vector<81x32xf32>
    %cst_47 = arith.constant 0.000000e+00 : f32
    %50 = vector.broadcast %cst_47 : f32 to vector<81x32xf32>
    %51 = arith.maximumf %49, %50 : vector<81x32xf32>
    %52 = arith.truncf %51 : vector<81x32xf32> to vector<81x32xbf16>
    %c3_48 = arith.constant 3 : index
    %c0_49 = arith.constant 0 : index
    %c0_50 = arith.constant 0 : index
    %53 = vector.load %arg4[%c3_48, %c0_49, %c0_50] : memref<16x32x64xbf16, #tpu.memory_space<vmem>>, vector<1x32x64xbf16>
    %54 = vector.shape_cast %53 : vector<1x32x64xbf16> to vector<32x64xbf16>
    %cst_51 = arith.constant dense<0.000000e+00> : vector<81x64xf32>
    %55 = tpu.matmul %52, %54, %cst_51 {dimension_numbers = #tpu.dot_dimension_numbers<[1], [0], [0], [1], [0, 0, 1, 1], [], []>} : vector<81x32xbf16>, vector<32x64xbf16>, vector<81x64xf32> -> vector<81x64xf32>
    %56 = arith.addf %42, %55 : vector<81x64xf32>
    %c0_52 = arith.constant 0 : index
    %c4 = arith.constant 4 : index
    %c0_53 = arith.constant 0 : index
    %c0_54 = arith.constant 0 : index
    %57 = vector.load %arg1[%c0_52, %c4, %c0_53, %c0_54] : memref<1x16x81x192xbf16, #tpu.memory_space<vmem>>, vector<1x1x81x192xbf16>
    %58 = vector.shape_cast %57 : vector<1x1x81x192xbf16> to vector<81x192xbf16>
    %c0_55 = arith.constant 0 : index
    %c0_56 = arith.constant 0 : index
    %59 = vector.load %arg2[%c0_55, %c0_56] : memref<192x32xbf16, #tpu.memory_space<vmem>>, vector<192x32xbf16>
    %cst_57 = arith.constant dense<0.000000e+00> : vector<81x32xf32>
    %60 = tpu.matmul %58, %59, %cst_57 {dimension_numbers = #tpu.dot_dimension_numbers<[1], [0], [0], [1], [0, 0, 1, 1], [], []>} : vector<81x192xbf16>, vector<192x32xbf16>, vector<81x32xf32> -> vector<81x32xf32>
    %c0_58 = arith.constant 0 : index
    %c0_59 = arith.constant 0 : index
    %61 = vector.load %arg3[%c0_58, %c0_59] : memref<1x32xf32, #tpu.memory_space<vmem>>, vector<1x32xf32>
    %62 = vector.broadcast %61 : vector<1x32xf32> to vector<81x32xf32>
    %63 = arith.addf %60, %62 : vector<81x32xf32>
    %cst_60 = arith.constant 0.000000e+00 : f32
    %64 = vector.broadcast %cst_60 : f32 to vector<81x32xf32>
    %65 = arith.maximumf %63, %64 : vector<81x32xf32>
    %66 = arith.truncf %65 : vector<81x32xf32> to vector<81x32xbf16>
    %c4_61 = arith.constant 4 : index
    %c0_62 = arith.constant 0 : index
    %c0_63 = arith.constant 0 : index
    %67 = vector.load %arg4[%c4_61, %c0_62, %c0_63] : memref<16x32x64xbf16, #tpu.memory_space<vmem>>, vector<1x32x64xbf16>
    %68 = vector.shape_cast %67 : vector<1x32x64xbf16> to vector<32x64xbf16>
    %cst_64 = arith.constant dense<0.000000e+00> : vector<81x64xf32>
    %69 = tpu.matmul %66, %68, %cst_64 {dimension_numbers = #tpu.dot_dimension_numbers<[1], [0], [0], [1], [0, 0, 1, 1], [], []>} : vector<81x32xbf16>, vector<32x64xbf16>, vector<81x64xf32> -> vector<81x64xf32>
    %70 = arith.addf %56, %69 : vector<81x64xf32>
    %c0_65 = arith.constant 0 : index
    %c5 = arith.constant 5 : index
    %c0_66 = arith.constant 0 : index
    %c0_67 = arith.constant 0 : index
    %71 = vector.load %arg1[%c0_65, %c5, %c0_66, %c0_67] : memref<1x16x81x192xbf16, #tpu.memory_space<vmem>>, vector<1x1x81x192xbf16>
    %72 = vector.shape_cast %71 : vector<1x1x81x192xbf16> to vector<81x192xbf16>
    %c0_68 = arith.constant 0 : index
    %c0_69 = arith.constant 0 : index
    %73 = vector.load %arg2[%c0_68, %c0_69] : memref<192x32xbf16, #tpu.memory_space<vmem>>, vector<192x32xbf16>
    %cst_70 = arith.constant dense<0.000000e+00> : vector<81x32xf32>
    %74 = tpu.matmul %72, %73, %cst_70 {dimension_numbers = #tpu.dot_dimension_numbers<[1], [0], [0], [1], [0, 0, 1, 1], [], []>} : vector<81x192xbf16>, vector<192x32xbf16>, vector<81x32xf32> -> vector<81x32xf32>
    %c0_71 = arith.constant 0 : index
    %c0_72 = arith.constant 0 : index
    %75 = vector.load %arg3[%c0_71, %c0_72] : memref<1x32xf32, #tpu.memory_space<vmem>>, vector<1x32xf32>
    %76 = vector.broadcast %75 : vector<1x32xf32> to vector<81x32xf32>
    %77 = arith.addf %74, %76 : vector<81x32xf32>
    %cst_73 = arith.constant 0.000000e+00 : f32
    %78 = vector.broadcast %cst_73 : f32 to vector<81x32xf32>
    %79 = arith.maximumf %77, %78 : vector<81x32xf32>
    %80 = arith.truncf %79 : vector<81x32xf32> to vector<81x32xbf16>
    %c5_74 = arith.constant 5 : index
    %c0_75 = arith.constant 0 : index
    %c0_76 = arith.constant 0 : index
    %81 = vector.load %arg4[%c5_74, %c0_75, %c0_76] : memref<16x32x64xbf16, #tpu.memory_space<vmem>>, vector<1x32x64xbf16>
    %82 = vector.shape_cast %81 : vector<1x32x64xbf16> to vector<32x64xbf16>
    %cst_77 = arith.constant dense<0.000000e+00> : vector<81x64xf32>
    %83 = tpu.matmul %80, %82, %cst_77 {dimension_numbers = #tpu.dot_dimension_numbers<[1], [0], [0], [1], [0, 0, 1, 1], [], []>} : vector<81x32xbf16>, vector<32x64xbf16>, vector<81x64xf32> -> vector<81x64xf32>
    %84 = arith.addf %70, %83 : vector<81x64xf32>
    %c0_78 = arith.constant 0 : index
    %c6 = arith.constant 6 : index
    %c0_79 = arith.constant 0 : index
    %c0_80 = arith.constant 0 : index
    %85 = vector.load %arg1[%c0_78, %c6, %c0_79, %c0_80] : memref<1x16x81x192xbf16, #tpu.memory_space<vmem>>, vector<1x1x81x192xbf16>
    %86 = vector.shape_cast %85 : vector<1x1x81x192xbf16> to vector<81x192xbf16>
    %c0_81 = arith.constant 0 : index
    %c0_82 = arith.constant 0 : index
    %87 = vector.load %arg2[%c0_81, %c0_82] : memref<192x32xbf16, #tpu.memory_space<vmem>>, vector<192x32xbf16>
    %cst_83 = arith.constant dense<0.000000e+00> : vector<81x32xf32>
    %88 = tpu.matmul %86, %87, %cst_83 {dimension_numbers = #tpu.dot_dimension_numbers<[1], [0], [0], [1], [0, 0, 1, 1], [], []>} : vector<81x192xbf16>, vector<192x32xbf16>, vector<81x32xf32> -> vector<81x32xf32>
    %c0_84 = arith.constant 0 : index
    %c0_85 = arith.constant 0 : index
    %89 = vector.load %arg3[%c0_84, %c0_85] : memref<1x32xf32, #tpu.memory_space<vmem>>, vector<1x32xf32>
    %90 = vector.broadcast %89 : vector<1x32xf32> to vector<81x32xf32>
    %91 = arith.addf %88, %90 : vector<81x32xf32>
    %cst_86 = arith.constant 0.000000e+00 : f32
    %92 = vector.broadcast %cst_86 : f32 to vector<81x32xf32>
    %93 = arith.maximumf %91, %92 : vector<81x32xf32>
    %94 = arith.truncf %93 : vector<81x32xf32> to vector<81x32xbf16>
    %c6_87 = arith.constant 6 : index
    %c0_88 = arith.constant 0 : index
    %c0_89 = arith.constant 0 : index
    %95 = vector.load %arg4[%c6_87, %c0_88, %c0_89] : memref<16x32x64xbf16, #tpu.memory_space<vmem>>, vector<1x32x64xbf16>
    %96 = vector.shape_cast %95 : vector<1x32x64xbf16> to vector<32x64xbf16>
    %cst_90 = arith.constant dense<0.000000e+00> : vector<81x64xf32>
    %97 = tpu.matmul %94, %96, %cst_90 {dimension_numbers = #tpu.dot_dimension_numbers<[1], [0], [0], [1], [0, 0, 1, 1], [], []>} : vector<81x32xbf16>, vector<32x64xbf16>, vector<81x64xf32> -> vector<81x64xf32>
    %98 = arith.addf %84, %97 : vector<81x64xf32>
    %c0_91 = arith.constant 0 : index
    %c7 = arith.constant 7 : index
    %c0_92 = arith.constant 0 : index
    %c0_93 = arith.constant 0 : index
    %99 = vector.load %arg1[%c0_91, %c7, %c0_92, %c0_93] : memref<1x16x81x192xbf16, #tpu.memory_space<vmem>>, vector<1x1x81x192xbf16>
    %100 = vector.shape_cast %99 : vector<1x1x81x192xbf16> to vector<81x192xbf16>
    %c0_94 = arith.constant 0 : index
    %c0_95 = arith.constant 0 : index
    %101 = vector.load %arg2[%c0_94, %c0_95] : memref<192x32xbf16, #tpu.memory_space<vmem>>, vector<192x32xbf16>
    %cst_96 = arith.constant dense<0.000000e+00> : vector<81x32xf32>
    %102 = tpu.matmul %100, %101, %cst_96 {dimension_numbers = #tpu.dot_dimension_numbers<[1], [0], [0], [1], [0, 0, 1, 1], [], []>} : vector<81x192xbf16>, vector<192x32xbf16>, vector<81x32xf32> -> vector<81x32xf32>
    %c0_97 = arith.constant 0 : index
    %c0_98 = arith.constant 0 : index
    %103 = vector.load %arg3[%c0_97, %c0_98] : memref<1x32xf32, #tpu.memory_space<vmem>>, vector<1x32xf32>
    %104 = vector.broadcast %103 : vector<1x32xf32> to vector<81x32xf32>
    %105 = arith.addf %102, %104 : vector<81x32xf32>
    %cst_99 = arith.constant 0.000000e+00 : f32
    %106 = vector.broadcast %cst_99 : f32 to vector<81x32xf32>
    %107 = arith.maximumf %105, %106 : vector<81x32xf32>
    %108 = arith.truncf %107 : vector<81x32xf32> to vector<81x32xbf16>
    %c7_100 = arith.constant 7 : index
    %c0_101 = arith.constant 0 : index
    %c0_102 = arith.constant 0 : index
    %109 = vector.load %arg4[%c7_100, %c0_101, %c0_102] : memref<16x32x64xbf16, #tpu.memory_space<vmem>>, vector<1x32x64xbf16>
    %110 = vector.shape_cast %109 : vector<1x32x64xbf16> to vector<32x64xbf16>
    %cst_103 = arith.constant dense<0.000000e+00> : vector<81x64xf32>
    %111 = tpu.matmul %108, %110, %cst_103 {dimension_numbers = #tpu.dot_dimension_numbers<[1], [0], [0], [1], [0, 0, 1, 1], [], []>} : vector<81x32xbf16>, vector<32x64xbf16>, vector<81x64xf32> -> vector<81x64xf32>
    %112 = arith.addf %98, %111 : vector<81x64xf32>
    %c0_104 = arith.constant 0 : index
    %c8 = arith.constant 8 : index
    %c0_105 = arith.constant 0 : index
    %c0_106 = arith.constant 0 : index
    %113 = vector.load %arg1[%c0_104, %c8, %c0_105, %c0_106] : memref<1x16x81x192xbf16, #tpu.memory_space<vmem>>, vector<1x1x81x192xbf16>
    %114 = vector.shape_cast %113 : vector<1x1x81x192xbf16> to vector<81x192xbf16>
    %c0_107 = arith.constant 0 : index
    %c0_108 = arith.constant 0 : index
    %115 = vector.load %arg2[%c0_107, %c0_108] : memref<192x32xbf16, #tpu.memory_space<vmem>>, vector<192x32xbf16>
    %cst_109 = arith.constant dense<0.000000e+00> : vector<81x32xf32>
    %116 = tpu.matmul %114, %115, %cst_109 {dimension_numbers = #tpu.dot_dimension_numbers<[1], [0], [0], [1], [0, 0, 1, 1], [], []>} : vector<81x192xbf16>, vector<192x32xbf16>, vector<81x32xf32> -> vector<81x32xf32>
    %c0_110 = arith.constant 0 : index
    %c0_111 = arith.constant 0 : index
    %117 = vector.load %arg3[%c0_110, %c0_111] : memref<1x32xf32, #tpu.memory_space<vmem>>, vector<1x32xf32>
    %118 = vector.broadcast %117 : vector<1x32xf32> to vector<81x32xf32>
    %119 = arith.addf %116, %118 : vector<81x32xf32>
    %cst_112 = arith.constant 0.000000e+00 : f32
    %120 = vector.broadcast %cst_112 : f32 to vector<81x32xf32>
    %121 = arith.maximumf %119, %120 : vector<81x32xf32>
    %122 = arith.truncf %121 : vector<81x32xf32> to vector<81x32xbf16>
    %c8_113 = arith.constant 8 : index
    %c0_114 = arith.constant 0 : index
    %c0_115 = arith.constant 0 : index
    %123 = vector.load %arg4[%c8_113, %c0_114, %c0_115] : memref<16x32x64xbf16, #tpu.memory_space<vmem>>, vector<1x32x64xbf16>
    %124 = vector.shape_cast %123 : vector<1x32x64xbf16> to vector<32x64xbf16>
    %cst_116 = arith.constant dense<0.000000e+00> : vector<81x64xf32>
    %125 = tpu.matmul %122, %124, %cst_116 {dimension_numbers = #tpu.dot_dimension_numbers<[1], [0], [0], [1], [0, 0, 1, 1], [], []>} : vector<81x32xbf16>, vector<32x64xbf16>, vector<81x64xf32> -> vector<81x64xf32>
    %126 = arith.addf %112, %125 : vector<81x64xf32>
    %c0_117 = arith.constant 0 : index
    %c9 = arith.constant 9 : index
    %c0_118 = arith.constant 0 : index
    %c0_119 = arith.constant 0 : index
    %127 = vector.load %arg1[%c0_117, %c9, %c0_118, %c0_119] : memref<1x16x81x192xbf16, #tpu.memory_space<vmem>>, vector<1x1x81x192xbf16>
    %128 = vector.shape_cast %127 : vector<1x1x81x192xbf16> to vector<81x192xbf16>
    %c0_120 = arith.constant 0 : index
    %c0_121 = arith.constant 0 : index
    %129 = vector.load %arg2[%c0_120, %c0_121] : memref<192x32xbf16, #tpu.memory_space<vmem>>, vector<192x32xbf16>
    %cst_122 = arith.constant dense<0.000000e+00> : vector<81x32xf32>
    %130 = tpu.matmul %128, %129, %cst_122 {dimension_numbers = #tpu.dot_dimension_numbers<[1], [0], [0], [1], [0, 0, 1, 1], [], []>} : vector<81x192xbf16>, vector<192x32xbf16>, vector<81x32xf32> -> vector<81x32xf32>
    %c0_123 = arith.constant 0 : index
    %c0_124 = arith.constant 0 : index
    %131 = vector.load %arg3[%c0_123, %c0_124] : memref<1x32xf32, #tpu.memory_space<vmem>>, vector<1x32xf32>
    %132 = vector.broadcast %131 : vector<1x32xf32> to vector<81x32xf32>
    %133 = arith.addf %130, %132 : vector<81x32xf32>
    %cst_125 = arith.constant 0.000000e+00 : f32
    %134 = vector.broadcast %cst_125 : f32 to vector<81x32xf32>
    %135 = arith.maximumf %133, %134 : vector<81x32xf32>
    %136 = arith.truncf %135 : vector<81x32xf32> to vector<81x32xbf16>
    %c9_126 = arith.constant 9 : index
    %c0_127 = arith.constant 0 : index
    %c0_128 = arith.constant 0 : index
    %137 = vector.load %arg4[%c9_126, %c0_127, %c0_128] : memref<16x32x64xbf16, #tpu.memory_space<vmem>>, vector<1x32x64xbf16>
    %138 = vector.shape_cast %137 : vector<1x32x64xbf16> to vector<32x64xbf16>
    %cst_129 = arith.constant dense<0.000000e+00> : vector<81x64xf32>
    %139 = tpu.matmul %136, %138, %cst_129 {dimension_numbers = #tpu.dot_dimension_numbers<[1], [0], [0], [1], [0, 0, 1, 1], [], []>} : vector<81x32xbf16>, vector<32x64xbf16>, vector<81x64xf32> -> vector<81x64xf32>
    %140 = arith.addf %126, %139 : vector<81x64xf32>
    %c0_130 = arith.constant 0 : index
    %c10 = arith.constant 10 : index
    %c0_131 = arith.constant 0 : index
    %c0_132 = arith.constant 0 : index
    %141 = vector.load %arg1[%c0_130, %c10, %c0_131, %c0_132] : memref<1x16x81x192xbf16, #tpu.memory_space<vmem>>, vector<1x1x81x192xbf16>
    %142 = vector.shape_cast %141 : vector<1x1x81x192xbf16> to vector<81x192xbf16>
    %c0_133 = arith.constant 0 : index
    %c0_134 = arith.constant 0 : index
    %143 = vector.load %arg2[%c0_133, %c0_134] : memref<192x32xbf16, #tpu.memory_space<vmem>>, vector<192x32xbf16>
    %cst_135 = arith.constant dense<0.000000e+00> : vector<81x32xf32>
    %144 = tpu.matmul %142, %143, %cst_135 {dimension_numbers = #tpu.dot_dimension_numbers<[1], [0], [0], [1], [0, 0, 1, 1], [], []>} : vector<81x192xbf16>, vector<192x32xbf16>, vector<81x32xf32> -> vector<81x32xf32>
    %c0_136 = arith.constant 0 : index
    %c0_137 = arith.constant 0 : index
    %145 = vector.load %arg3[%c0_136, %c0_137] : memref<1x32xf32, #tpu.memory_space<vmem>>, vector<1x32xf32>
    %146 = vector.broadcast %145 : vector<1x32xf32> to vector<81x32xf32>
    %147 = arith.addf %144, %146 : vector<81x32xf32>
    %cst_138 = arith.constant 0.000000e+00 : f32
    %148 = vector.broadcast %cst_138 : f32 to vector<81x32xf32>
    %149 = arith.maximumf %147, %148 : vector<81x32xf32>
    %150 = arith.truncf %149 : vector<81x32xf32> to vector<81x32xbf16>
    %c10_139 = arith.constant 10 : index
    %c0_140 = arith.constant 0 : index
    %c0_141 = arith.constant 0 : index
    %151 = vector.load %arg4[%c10_139, %c0_140, %c0_141] : memref<16x32x64xbf16, #tpu.memory_space<vmem>>, vector<1x32x64xbf16>
    %152 = vector.shape_cast %151 : vector<1x32x64xbf16> to vector<32x64xbf16>
    %cst_142 = arith.constant dense<0.000000e+00> : vector<81x64xf32>
    %153 = tpu.matmul %150, %152, %cst_142 {dimension_numbers = #tpu.dot_dimension_numbers<[1], [0], [0], [1], [0, 0, 1, 1], [], []>} : vector<81x32xbf16>, vector<32x64xbf16>, vector<81x64xf32> -> vector<81x64xf32>
    %154 = arith.addf %140, %153 : vector<81x64xf32>
    %c0_143 = arith.constant 0 : index
    %c11 = arith.constant 11 : index
    %c0_144 = arith.constant 0 : index
    %c0_145 = arith.constant 0 : index
    %155 = vector.load %arg1[%c0_143, %c11, %c0_144, %c0_145] : memref<1x16x81x192xbf16, #tpu.memory_space<vmem>>, vector<1x1x81x192xbf16>
    %156 = vector.shape_cast %155 : vector<1x1x81x192xbf16> to vector<81x192xbf16>
    %c0_146 = arith.constant 0 : index
    %c0_147 = arith.constant 0 : index
    %157 = vector.load %arg2[%c0_146, %c0_147] : memref<192x32xbf16, #tpu.memory_space<vmem>>, vector<192x32xbf16>
    %cst_148 = arith.constant dense<0.000000e+00> : vector<81x32xf32>
    %158 = tpu.matmul %156, %157, %cst_148 {dimension_numbers = #tpu.dot_dimension_numbers<[1], [0], [0], [1], [0, 0, 1, 1], [], []>} : vector<81x192xbf16>, vector<192x32xbf16>, vector<81x32xf32> -> vector<81x32xf32>
    %c0_149 = arith.constant 0 : index
    %c0_150 = arith.constant 0 : index
    %159 = vector.load %arg3[%c0_149, %c0_150] : memref<1x32xf32, #tpu.memory_space<vmem>>, vector<1x32xf32>
    %160 = vector.broadcast %159 : vector<1x32xf32> to vector<81x32xf32>
    %161 = arith.addf %158, %160 : vector<81x32xf32>
    %cst_151 = arith.constant 0.000000e+00 : f32
    %162 = vector.broadcast %cst_151 : f32 to vector<81x32xf32>
    %163 = arith.maximumf %161, %162 : vector<81x32xf32>
    %164 = arith.truncf %163 : vector<81x32xf32> to vector<81x32xbf16>
    %c11_152 = arith.constant 11 : index
    %c0_153 = arith.constant 0 : index
    %c0_154 = arith.constant 0 : index
    %165 = vector.load %arg4[%c11_152, %c0_153, %c0_154] : memref<16x32x64xbf16, #tpu.memory_space<vmem>>, vector<1x32x64xbf16>
    %166 = vector.shape_cast %165 : vector<1x32x64xbf16> to vector<32x64xbf16>
    %cst_155 = arith.constant dense<0.000000e+00> : vector<81x64xf32>
    %167 = tpu.matmul %164, %166, %cst_155 {dimension_numbers = #tpu.dot_dimension_numbers<[1], [0], [0], [1], [0, 0, 1, 1], [], []>} : vector<81x32xbf16>, vector<32x64xbf16>, vector<81x64xf32> -> vector<81x64xf32>
    %168 = arith.addf %154, %167 : vector<81x64xf32>
    %c0_156 = arith.constant 0 : index
    %c12 = arith.constant 12 : index
    %c0_157 = arith.constant 0 : index
    %c0_158 = arith.constant 0 : index
    %169 = vector.load %arg1[%c0_156, %c12, %c0_157, %c0_158] : memref<1x16x81x192xbf16, #tpu.memory_space<vmem>>, vector<1x1x81x192xbf16>
    %170 = vector.shape_cast %169 : vector<1x1x81x192xbf16> to vector<81x192xbf16>
    %c0_159 = arith.constant 0 : index
    %c0_160 = arith.constant 0 : index
    %171 = vector.load %arg2[%c0_159, %c0_160] : memref<192x32xbf16, #tpu.memory_space<vmem>>, vector<192x32xbf16>
    %cst_161 = arith.constant dense<0.000000e+00> : vector<81x32xf32>
    %172 = tpu.matmul %170, %171, %cst_161 {dimension_numbers = #tpu.dot_dimension_numbers<[1], [0], [0], [1], [0, 0, 1, 1], [], []>} : vector<81x192xbf16>, vector<192x32xbf16>, vector<81x32xf32> -> vector<81x32xf32>
    %c0_162 = arith.constant 0 : index
    %c0_163 = arith.constant 0 : index
    %173 = vector.load %arg3[%c0_162, %c0_163] : memref<1x32xf32, #tpu.memory_space<vmem>>, vector<1x32xf32>
    %174 = vector.broadcast %173 : vector<1x32xf32> to vector<81x32xf32>
    %175 = arith.addf %172, %174 : vector<81x32xf32>
    %cst_164 = arith.constant 0.000000e+00 : f32
    %176 = vector.broadcast %cst_164 : f32 to vector<81x32xf32>
    %177 = arith.maximumf %175, %176 : vector<81x32xf32>
    %178 = arith.truncf %177 : vector<81x32xf32> to vector<81x32xbf16>
    %c12_165 = arith.constant 12 : index
    %c0_166 = arith.constant 0 : index
    %c0_167 = arith.constant 0 : index
    %179 = vector.load %arg4[%c12_165, %c0_166, %c0_167] : memref<16x32x64xbf16, #tpu.memory_space<vmem>>, vector<1x32x64xbf16>
    %180 = vector.shape_cast %179 : vector<1x32x64xbf16> to vector<32x64xbf16>
    %cst_168 = arith.constant dense<0.000000e+00> : vector<81x64xf32>
    %181 = tpu.matmul %178, %180, %cst_168 {dimension_numbers = #tpu.dot_dimension_numbers<[1], [0], [0], [1], [0, 0, 1, 1], [], []>} : vector<81x32xbf16>, vector<32x64xbf16>, vector<81x64xf32> -> vector<81x64xf32>
    %182 = arith.addf %168, %181 : vector<81x64xf32>
    %c0_169 = arith.constant 0 : index
    %c13 = arith.constant 13 : index
    %c0_170 = arith.constant 0 : index
    %c0_171 = arith.constant 0 : index
    %183 = vector.load %arg1[%c0_169, %c13, %c0_170, %c0_171] : memref<1x16x81x192xbf16, #tpu.memory_space<vmem>>, vector<1x1x81x192xbf16>
    %184 = vector.shape_cast %183 : vector<1x1x81x192xbf16> to vector<81x192xbf16>
    %c0_172 = arith.constant 0 : index
    %c0_173 = arith.constant 0 : index
    %185 = vector.load %arg2[%c0_172, %c0_173] : memref<192x32xbf16, #tpu.memory_space<vmem>>, vector<192x32xbf16>
    %cst_174 = arith.constant dense<0.000000e+00> : vector<81x32xf32>
    %186 = tpu.matmul %184, %185, %cst_174 {dimension_numbers = #tpu.dot_dimension_numbers<[1], [0], [0], [1], [0, 0, 1, 1], [], []>} : vector<81x192xbf16>, vector<192x32xbf16>, vector<81x32xf32> -> vector<81x32xf32>
    %c0_175 = arith.constant 0 : index
    %c0_176 = arith.constant 0 : index
    %187 = vector.load %arg3[%c0_175, %c0_176] : memref<1x32xf32, #tpu.memory_space<vmem>>, vector<1x32xf32>
    %188 = vector.broadcast %187 : vector<1x32xf32> to vector<81x32xf32>
    %189 = arith.addf %186, %188 : vector<81x32xf32>
    %cst_177 = arith.constant 0.000000e+00 : f32
    %190 = vector.broadcast %cst_177 : f32 to vector<81x32xf32>
    %191 = arith.maximumf %189, %190 : vector<81x32xf32>
    %192 = arith.truncf %191 : vector<81x32xf32> to vector<81x32xbf16>
    %c13_178 = arith.constant 13 : index
    %c0_179 = arith.constant 0 : index
    %c0_180 = arith.constant 0 : index
    %193 = vector.load %arg4[%c13_178, %c0_179, %c0_180] : memref<16x32x64xbf16, #tpu.memory_space<vmem>>, vector<1x32x64xbf16>
    %194 = vector.shape_cast %193 : vector<1x32x64xbf16> to vector<32x64xbf16>
    %cst_181 = arith.constant dense<0.000000e+00> : vector<81x64xf32>
    %195 = tpu.matmul %192, %194, %cst_181 {dimension_numbers = #tpu.dot_dimension_numbers<[1], [0], [0], [1], [0, 0, 1, 1], [], []>} : vector<81x32xbf16>, vector<32x64xbf16>, vector<81x64xf32> -> vector<81x64xf32>
    %196 = arith.addf %182, %195 : vector<81x64xf32>
    %c0_182 = arith.constant 0 : index
    %c14 = arith.constant 14 : index
    %c0_183 = arith.constant 0 : index
    %c0_184 = arith.constant 0 : index
    %197 = vector.load %arg1[%c0_182, %c14, %c0_183, %c0_184] : memref<1x16x81x192xbf16, #tpu.memory_space<vmem>>, vector<1x1x81x192xbf16>
    %198 = vector.shape_cast %197 : vector<1x1x81x192xbf16> to vector<81x192xbf16>
    %c0_185 = arith.constant 0 : index
    %c0_186 = arith.constant 0 : index
    %199 = vector.load %arg2[%c0_185, %c0_186] : memref<192x32xbf16, #tpu.memory_space<vmem>>, vector<192x32xbf16>
    %cst_187 = arith.constant dense<0.000000e+00> : vector<81x32xf32>
    %200 = tpu.matmul %198, %199, %cst_187 {dimension_numbers = #tpu.dot_dimension_numbers<[1], [0], [0], [1], [0, 0, 1, 1], [], []>} : vector<81x192xbf16>, vector<192x32xbf16>, vector<81x32xf32> -> vector<81x32xf32>
    %c0_188 = arith.constant 0 : index
    %c0_189 = arith.constant 0 : index
    %201 = vector.load %arg3[%c0_188, %c0_189] : memref<1x32xf32, #tpu.memory_space<vmem>>, vector<1x32xf32>
    %202 = vector.broadcast %201 : vector<1x32xf32> to vector<81x32xf32>
    %203 = arith.addf %200, %202 : vector<81x32xf32>
    %cst_190 = arith.constant 0.000000e+00 : f32
    %204 = vector.broadcast %cst_190 : f32 to vector<81x32xf32>
    %205 = arith.maximumf %203, %204 : vector<81x32xf32>
    %206 = arith.truncf %205 : vector<81x32xf32> to vector<81x32xbf16>
    %c14_191 = arith.constant 14 : index
    %c0_192 = arith.constant 0 : index
    %c0_193 = arith.constant 0 : index
    %207 = vector.load %arg4[%c14_191, %c0_192, %c0_193] : memref<16x32x64xbf16, #tpu.memory_space<vmem>>, vector<1x32x64xbf16>
    %208 = vector.shape_cast %207 : vector<1x32x64xbf16> to vector<32x64xbf16>
    %cst_194 = arith.constant dense<0.000000e+00> : vector<81x64xf32>
    %209 = tpu.matmul %206, %208, %cst_194 {dimension_numbers = #tpu.dot_dimension_numbers<[1], [0], [0], [1], [0, 0, 1, 1], [], []>} : vector<81x32xbf16>, vector<32x64xbf16>, vector<81x64xf32> -> vector<81x64xf32>
    %210 = arith.addf %196, %209 : vector<81x64xf32>
    %c0_195 = arith.constant 0 : index
    %c15 = arith.constant 15 : index
    %c0_196 = arith.constant 0 : index
    %c0_197 = arith.constant 0 : index
    %211 = vector.load %arg1[%c0_195, %c15, %c0_196, %c0_197] : memref<1x16x81x192xbf16, #tpu.memory_space<vmem>>, vector<1x1x81x192xbf16>
    %212 = vector.shape_cast %211 : vector<1x1x81x192xbf16> to vector<81x192xbf16>
    %c0_198 = arith.constant 0 : index
    %c0_199 = arith.constant 0 : index
    %213 = vector.load %arg2[%c0_198, %c0_199] : memref<192x32xbf16, #tpu.memory_space<vmem>>, vector<192x32xbf16>
    %cst_200 = arith.constant dense<0.000000e+00> : vector<81x32xf32>
    %214 = tpu.matmul %212, %213, %cst_200 {dimension_numbers = #tpu.dot_dimension_numbers<[1], [0], [0], [1], [0, 0, 1, 1], [], []>} : vector<81x192xbf16>, vector<192x32xbf16>, vector<81x32xf32> -> vector<81x32xf32>
    %c0_201 = arith.constant 0 : index
    %c0_202 = arith.constant 0 : index
    %215 = vector.load %arg3[%c0_201, %c0_202] : memref<1x32xf32, #tpu.memory_space<vmem>>, vector<1x32xf32>
    %216 = vector.broadcast %215 : vector<1x32xf32> to vector<81x32xf32>
    %217 = arith.addf %214, %216 : vector<81x32xf32>
    %cst_203 = arith.constant 0.000000e+00 : f32
    %218 = vector.broadcast %cst_203 : f32 to vector<81x32xf32>
    %219 = arith.maximumf %217, %218 : vector<81x32xf32>
    %220 = arith.truncf %219 : vector<81x32xf32> to vector<81x32xbf16>
    %c15_204 = arith.constant 15 : index
    %c0_205 = arith.constant 0 : index
    %c0_206 = arith.constant 0 : index
    %221 = vector.load %arg4[%c15_204, %c0_205, %c0_206] : memref<16x32x64xbf16, #tpu.memory_space<vmem>>, vector<1x32x64xbf16>
    %222 = vector.shape_cast %221 : vector<1x32x64xbf16> to vector<32x64xbf16>
    %cst_207 = arith.constant dense<0.000000e+00> : vector<81x64xf32>
    %223 = tpu.matmul %220, %222, %cst_207 {dimension_numbers = #tpu.dot_dimension_numbers<[1], [0], [0], [1], [0, 0, 1, 1], [], []>} : vector<81x32xbf16>, vector<32x64xbf16>, vector<81x64xf32> -> vector<81x64xf32>
    %224 = arith.addf %210, %223 : vector<81x64xf32>
    %c0_208 = arith.constant 0 : index
    %c0_209 = arith.constant 0 : index
    %225 = vector.load %arg5[%c0_208, %c0_209] : memref<1x64xf32, #tpu.memory_space<vmem>>, vector<1x64xf32>
    %226 = vector.broadcast %225 : vector<1x64xf32> to vector<81x64xf32>
    %227 = arith.addf %224, %226 : vector<81x64xf32>
    %cst_210 = arith.constant 0.000000e+00 : f32
    %228 = vector.broadcast %cst_210 : f32 to vector<81x64xf32>
    %229 = arith.maximumf %227, %228 : vector<81x64xf32>
    %230 = arith.truncf %229 : vector<81x64xf32> to vector<81x64xbf16>
    %c0_211 = arith.constant 0 : index
    %c0_212 = arith.constant 0 : index
    %c0_213 = arith.constant 0 : index
    %231 = vector.load %arg6[%c0_211, %c0_212, %c0_213] : memref<1x81x64xbf16, #tpu.memory_space<vmem>>, vector<1x81x64xbf16>
    %232 = vector.shape_cast %231 : vector<1x81x64xbf16> to vector<81x64xbf16>
    %233 = vector.shape_cast %230 : vector<81x64xbf16> to vector<1x81x64xbf16>
    tpu.vector_store %arg6[%c0_211, %c0_212, %c0_213], %233 {strides = array<i32>} : memref<1x81x64xbf16, #tpu.memory_space<vmem>>, vector<1x81x64xbf16>,
    return
  }
  func.func @transform_0(%arg0: i32) -> (i32, i32, i32, i32) {
    %c0_i32 = arith.constant 0 : i32
    %c0_i32_0 = arith.constant 0 : i32
    %c0_i32_1 = arith.constant 0 : i32
    %c0_i32_2 = arith.constant 0 : i32
    return %arg0, %c0_i32, %c0_i32_0, %c0_i32_1 : i32, i32, i32, i32
  }
  func.func @transform_1(%arg0: i32) -> (i32, i32) {
    %c0_i32 = arith.constant 0 : i32
    %c0_i32_0 = arith.constant 0 : i32
    %c0_i32_1 = arith.constant 0 : i32
    return %c0_i32, %c0_i32_0 : i32, i32
  }
  func.func @transform_2(%arg0: i32) -> (i32, i32) {
    %c0_i32 = arith.constant 0 : i32
    %c0_i32_0 = arith.constant 0 : i32
    %c0_i32_1 = arith.constant 0 : i32
    return %c0_i32, %c0_i32_0 : i32, i32
  }
  func.func @transform_3(%arg0: i32) -> (i32, i32, i32) {
    %c0_i32 = arith.constant 0 : i32
    %c0_i32_0 = arith.constant 0 : i32
    %c0_i32_1 = arith.constant 0 : i32
    %c0_i32_2 = arith.constant 0 : i32
    return %c0_i32, %c0_i32_0, %c0_i32_1 : i32, i32, i32
  }
  func.func @transform_4(%arg0: i32) -> (i32, i32) {
    %c0_i32 = arith.constant 0 : i32
    %c0_i32_0 = arith.constant 0 : i32
    %c0_i32_1 = arith.constant 0 : i32
    return %c0_i32, %c0_i32_0 : i32, i32
  }
  func.func @transform_5(%arg0: i32) -> (i32, i32, i32) {
    %c0_i32 = arith.constant 0 : i32
    %c0_i32_0 = arith.constant 0 : i32
    %c0_i32_1 = arith.constant 0 : i32
    return %arg0, %c0_i32, %c0_i32_0 : i32, i32, i32
  }
}

module attributes {stable_mosaic.version = 11 : i64} {
  func.func @_head_kernel(%arg0: i32, %arg1: memref<1x2x576xbf16, #tpu.memory_space<vmem>>, %arg2: memref<1x576x512xbf16, #tpu.memory_space<vmem>>, %arg3: memref<1x512xf32, #tpu.memory_space<vmem>>, %arg4: memref<512x10xbf16, #tpu.memory_space<vmem>>, %arg5: memref<1x10xf32, #tpu.memory_space<vmem>>, %arg6: memref<2x10xf32, #tpu.memory_space<vmem>>, %arg7: memref<2x512xf32, #tpu.memory_space<vmem>>) attributes {dimension_semantics = [#tpu.dimension_semantics<arbitrary>], iteration_bounds = array<i64: 9>, scalar_prefetch = 0 : i64, scratch_operands = 1 : i64, tpu.core_type = #tpu.core_type<tc>, window_params = [{transform_indices = @transform_0, window_bounds = array<i64: 1, 2, 576>}, {transform_indices = @transform_1, window_bounds = array<i64: 1, 576, 512>}, {pipeline_mode = #tpu.pipeline_mode<synchronous>, transform_indices = @transform_2, window_bounds = array<i64: 1, 512>}, {pipeline_mode = #tpu.pipeline_mode<synchronous>, transform_indices = @transform_3, window_bounds = array<i64: 512, 10>}, {pipeline_mode = #tpu.pipeline_mode<synchronous>, transform_indices = @transform_4, window_bounds = array<i64: 1, 10>}, {pipeline_mode = #tpu.pipeline_mode<synchronous>, transform_indices = @transform_5, window_bounds = array<i64: 2, 10>}]} {
    %c0_i32 = arith.constant 0 : i32
    %0 = arith.cmpi eq, %arg0, %c0_i32 : i32
    %1 = arith.extui %0 : i1 to i32
    %c0_i32_0 = arith.constant 0 : i32
    %2 = arith.cmpi ne, %1, %c0_i32_0 : i32
    scf.if %2 {
      %cst_11 = arith.constant 0.000000e+00 : f32
      %14 = vector.broadcast %cst_11 : f32 to vector<2x512xf32>
      %c0_12 = arith.constant 0 : index
      %c0_13 = arith.constant 0 : index
      %15 = vector.load %arg7[%c0_12, %c0_13] : memref<2x512xf32, #tpu.memory_space<vmem>>, vector<2x512xf32>
      tpu.vector_store %arg7[%c0_12, %c0_13], %14 {strides = array<i32>} : memref<2x512xf32, #tpu.memory_space<vmem>>, vector<2x512xf32>,
    } else {
    }
    %c0 = arith.constant 0 : index
    %c0_1 = arith.constant 0 : index
    %3 = vector.load %arg7[%c0, %c0_1] : memref<2x512xf32, #tpu.memory_space<vmem>>, vector<2x512xf32>
    %c0_2 = arith.constant 0 : index
    %c0_3 = arith.constant 0 : index
    %c0_4 = arith.constant 0 : index
    %4 = vector.load %arg1[%c0_2, %c0_3, %c0_4] : memref<1x2x576xbf16, #tpu.memory_space<vmem>>, vector<1x2x576xbf16>
    %5 = vector.shape_cast %4 : vector<1x2x576xbf16> to vector<2x576xbf16>
    %c0_5 = arith.constant 0 : index
    %c0_6 = arith.constant 0 : index
    %c0_7 = arith.constant 0 : index
    %6 = vector.load %arg2[%c0_5, %c0_6, %c0_7] : memref<1x576x512xbf16, #tpu.memory_space<vmem>>, vector<1x576x512xbf16>
    %7 = vector.shape_cast %6 : vector<1x576x512xbf16> to vector<576x512xbf16>
    %cst = arith.constant dense<0.000000e+00> : vector<2x512xf32>
    %8 = tpu.matmul %5, %7, %cst {dimension_numbers = #tpu.dot_dimension_numbers<[1], [0], [0], [1], [0, 0, 1, 1], [], []>} : vector<2x576xbf16>, vector<576x512xbf16>, vector<2x512xf32> -> vector<2x512xf32>
    %9 = arith.addf %3, %8 : vector<2x512xf32>
    %c0_8 = arith.constant 0 : index
    %c0_9 = arith.constant 0 : index
    %10 = vector.load %arg7[%c0_8, %c0_9] : memref<2x512xf32, #tpu.memory_space<vmem>>, vector<2x512xf32>
    tpu.vector_store %arg7[%c0_8, %c0_9], %9 {strides = array<i32>} : memref<2x512xf32, #tpu.memory_space<vmem>>, vector<2x512xf32>,
    %c8_i32 = arith.constant 8 : i32
    %11 = arith.cmpi eq, %arg0, %c8_i32 : i32
    %12 = arith.extui %11 : i1 to i32
    %c0_i32_10 = arith.constant 0 : i32
    %13 = arith.cmpi ne, %12, %c0_i32_10 : i32
    scf.if %13 {
      %c0_11 = arith.constant 0 : index
      %c0_12 = arith.constant 0 : index
      %14 = vector.load %arg7[%c0_11, %c0_12] : memref<2x512xf32, #tpu.memory_space<vmem>>, vector<2x512xf32>
      %c0_13 = arith.constant 0 : index
      %c0_14 = arith.constant 0 : index
      %15 = vector.load %arg3[%c0_13, %c0_14] : memref<1x512xf32, #tpu.memory_space<vmem>>, vector<1x512xf32>
      %16 = vector.broadcast %15 : vector<1x512xf32> to vector<2x512xf32>
      %17 = arith.addf %14, %16 : vector<2x512xf32>
      %cst_15 = arith.constant 0.000000e+00 : f32
      %18 = vector.broadcast %cst_15 : f32 to vector<2x512xf32>
      %19 = arith.maximumf %17, %18 : vector<2x512xf32>
      %20 = arith.truncf %19 : vector<2x512xf32> to vector<2x512xbf16>
      %c0_16 = arith.constant 0 : index
      %c0_17 = arith.constant 0 : index
      %21 = vector.load %arg4[%c0_16, %c0_17] : memref<512x10xbf16, #tpu.memory_space<vmem>>, vector<512x10xbf16>
      %cst_18 = arith.constant dense<0.000000e+00> : vector<2x10xf32>
      %22 = tpu.matmul %20, %21, %cst_18 {dimension_numbers = #tpu.dot_dimension_numbers<[1], [0], [0], [1], [0, 0, 1, 1], [], []>} : vector<2x512xbf16>, vector<512x10xbf16>, vector<2x10xf32> -> vector<2x10xf32>
      %c0_19 = arith.constant 0 : index
      %c0_20 = arith.constant 0 : index
      %23 = vector.load %arg5[%c0_19, %c0_20] : memref<1x10xf32, #tpu.memory_space<vmem>>, vector<1x10xf32>
      %24 = vector.broadcast %23 : vector<1x10xf32> to vector<2x10xf32>
      %25 = arith.addf %22, %24 : vector<2x10xf32>
      %cst_21 = arith.constant dense<0xFF800000> : vector<2xf32>
      %26 = vector.multi_reduction <maximumf>, %25, %cst_21 [1] : vector<2x10xf32> to vector<2xf32>
      %27 = vector.shape_cast %26 : vector<2xf32> to vector<2x1xf32>
      %28 = vector.broadcast %27 : vector<2x1xf32> to vector<2x10xf32>
      %29 = arith.subf %25, %28 : vector<2x10xf32>
      %30 = math.exp %29 : vector<2x10xf32>
      %cst_22 = arith.constant dense<0.000000e+00> : vector<2xf32>
      %31 = vector.multi_reduction <add>, %30, %cst_22 [1] : vector<2x10xf32> to vector<2xf32>
      %32 = vector.shape_cast %31 : vector<2xf32> to vector<2x1xf32>
      %33 = math.log %32 : vector<2x1xf32>
      %34 = vector.broadcast %33 : vector<2x1xf32> to vector<2x10xf32>
      %35 = arith.subf %29, %34 : vector<2x10xf32>
      %c0_23 = arith.constant 0 : index
      %c0_24 = arith.constant 0 : index
      %36 = vector.load %arg6[%c0_23, %c0_24] : memref<2x10xf32, #tpu.memory_space<vmem>>, vector<2x10xf32>
      tpu.vector_store %arg6[%c0_23, %c0_24], %35 {strides = array<i32>} : memref<2x10xf32, #tpu.memory_space<vmem>>, vector<2x10xf32>,
    } else {
    }
    return
  }
  func.func @transform_0(%arg0: i32) -> (i32, i32, i32) {
    %c0_i32 = arith.constant 0 : i32
    %c0_i32_0 = arith.constant 0 : i32
    %c0_i32_1 = arith.constant 0 : i32
    return %arg0, %c0_i32, %c0_i32_0 : i32, i32, i32
  }
  func.func @transform_1(%arg0: i32) -> (i32, i32, i32) {
    %c0_i32 = arith.constant 0 : i32
    %c0_i32_0 = arith.constant 0 : i32
    %c0_i32_1 = arith.constant 0 : i32
    return %arg0, %c0_i32, %c0_i32_0 : i32, i32, i32
  }
  func.func @transform_2(%arg0: i32) -> (i32, i32) {
    %c0_i32 = arith.constant 0 : i32
    %c0_i32_0 = arith.constant 0 : i32
    %c0_i32_1 = arith.constant 0 : i32
    return %c0_i32, %c0_i32_0 : i32, i32
  }
  func.func @transform_3(%arg0: i32) -> (i32, i32) {
    %c0_i32 = arith.constant 0 : i32
    %c0_i32_0 = arith.constant 0 : i32
    %c0_i32_1 = arith.constant 0 : i32
    return %c0_i32, %c0_i32_0 : i32, i32
  }
  func.func @transform_4(%arg0: i32) -> (i32, i32) {
    %c0_i32 = arith.constant 0 : i32
    %c0_i32_0 = arith.constant 0 : i32
    %c0_i32_1 = arith.constant 0 : i32
    return %c0_i32, %c0_i32_0 : i32, i32
  }
  func.func @transform_5(%arg0: i32) -> (i32, i32) {
    %c0_i32 = arith.constant 0 : i32
    %c0_i32_0 = arith.constant 0 : i32
    %c0_i32_1 = arith.constant 0 : i32
    return %c0_i32, %c0_i32_0 : i32, i32
  }
}

</mosaic_0001>

<llo_original>
// kernel: cnn_forward.3
$region0: #{cnn_forward.3}
  #allocation0 [shape = 'u32[]', space=smem, size = 0x4, offset = 0x4, fixed_abs, tag = 'smem constant byte address 0x4 - core index']
  #allocation1 [shape = 'u32[144,128]{1,0:T(1,128)}', space=vmem, size = 0x12000, scoped, tag = 'internal scratch']
  #allocation2 [shape = 'f32[2,512]{1,0:T(2,128)}', space=vmem, size = 0x1000, scoped, tag = 'scratch operand']
  %s0 = inlined_call_operand.vmem [shape: bf16[9,2,576], index: 0, kind: input, shape index: {}]
  %s1 = inlined_call_operand.vmem [shape: bf16[9,576,512], index: 1, kind: input, shape index: {}]
  %s2 = inlined_call_operand.vmem [shape: f32[1,512], index: 2, kind: input, shape index: {}]
  %s3 = inlined_call_operand.vmem [shape: bf16[512,10], index: 3, kind: input, shape index: {}]
  %s4 = inlined_call_operand.vmem [shape: f32[1,10], index: 4, kind: input, shape index: {}]
  %s5 = inlined_call_operand.hbm [shape: f32[2,10], index: 5, kind: output, shape index: {}]
  %s6 = sld [smem:[#allocation0]]
  $region61: #{cnn_forward.3} parent=0
    _
  %s8 = ssub.s32 1, %s6
  %s9 = scalar_select 0, %s8, %s6
  $region1: #{cnn_forward.3} parent=0
    #allocation3 [shape = 'u8[1024]{0}', space=vmem, size = 0x400, scoped, tag = 'output window, operand 0, single buffered']
    #allocation4 [shape = 's32[2]{0}', space=sflag, size = 0x8, scoped, tag = 'scoped memory for cnn_forward.3']
    %10 = vsyncpa [#allocation4], 0
    loop: start=0, step=1, limit=11
    $region2: #{cnn_forward.3} parent=1 // loop_pre_header
      _
    $region3: #{cnn_forward.3} parent=1 // loop_header
      %s12 = sphi 0, %s16
      %p13 = scmp.ge.s32.totalorder %s12, 11
      %s22 = sphi 0, %s24
      %s25 = sphi 0, %s22
      %s26 = sphi 0, %s25
      %s42 = sphi 0, %s26
      %s48 = sphi 0, %s50
      %s51 = sphi 0, %s48
      %s52 = sphi 0, %s51
      %s68 = sphi 0, %s52
      %s72 = sphi 0, %s72
      %s74 = sphi 0, %s72
      %s75 = sphi 0, %s74
      %s89 = sphi 0, %s75
      %s93 = sphi 0, %s93
      %s95 = sphi 0, %s93
      %s96 = sphi 0, %s95
      %s110 = sphi 0, %s96
      %s114 = sphi 0, %s114
      %s116 = sphi 0, %s114
      %s117 = sphi 0, %s116
      %s131 = sphi 0, %s117
      %s135 = sphi 0, %s135
      %s137 = sphi 0, %s135
      %s138 = sphi 0, %s137
      %s152 = sphi 0, %s138
    $region4: #{cnn_forward.3} parent=1 // loop_header_branch
      %15 = sbr.rel (%p13) target = $region8
    $region5: #{cnn_forward.3} parent=1 // loop_body
      %s17 = ssub.s32 %s12, 1
      %s18 = ssub.s32 %s12, 2
      %s19 = sadd.s32 %s12, 1
      %s20 = ssub.s32 %s12, %s19
      %p21 = scmp.eq.s32.totalorder %s20, 0
      %s23 = sadd.s32 %s22, 1
      %s24 = scalar_select %p21, %s22, %s23
      %p27 = pneg %p21
      %p28 = scmp.eq.s32.totalorder %s12, 8
      %p29 = por %p27, %p28
      %p30 = scmp.ne.s32.totalorder %s22, %s25
      %p31 = scmp.eq.s32.totalorder %s12, 0
      %p32 = por %p30, %p31
      %p33 = scmp.ne.s32.totalorder %s22, %s25
      %p34 = scmp.eq.s32.totalorder %s17, 8
      %p35 = por %p33, %p34
      %p36 = scmp.ne.s32.totalorder %s25, %s26
      %p37 = scmp.eq.s32.totalorder %s17, 0
      %p38 = por %p36, %p37
      %p39 = scmp.ne.s32.totalorder %s25, %s26
      %p40 = scmp.eq.s32.totalorder %s18, 8
      %p41 = por %p39, %p40
      %p43 = scmp.ne.s32.totalorder %s26, %s42
      %p44 = scmp.eq.s32.totalorder %s18, 0
      %p45 = por %p43, %p44
      %s46 = ssub.s32 %s12, %s19
      %p47 = scmp.eq.s32.totalorder %s46, 0
      %s49 = sadd.s32 %s48, 1
      %s50 = scalar_select %p47, %s48, %s49
      %p53 = pneg %p47
      %p54 = scmp.eq.s32.totalorder %s12, 8
      %p55 = por %p53, %p54
      %p56 = scmp.ne.s32.totalorder %s48, %s51
      %p57 = scmp.eq.s32.totalorder %s12, 0
      %p58 = por %p56, %p57
      %p59 = scmp.ne.s32.totalorder %s48, %s51
      %p60 = scmp.eq.s32.totalorder %s17, 8
      %p61 = por %p59, %p60
      %p62 = scmp.ne.s32.totalorder %s51, %s52
      %p63 = scmp.eq.s32.totalorder %s17, 0
      %p64 = por %p62, %p63
      %p65 = scmp.ne.s32.totalorder %s51, %s52
      %p66 = scmp.eq.s32.totalorder %s18, 8
      %p67 = por %p65, %p66
      %p69 = scmp.ne.s32.totalorder %s52, %s68
      %p70 = scmp.eq.s32.totalorder %s18, 0
      %p71 = por %p69, %p70
      %s73 = sadd.s32 %s72, 1
      %p76 = scmp.eq.s32.totalorder %s12, 8
      %p77 = scmp.ne.s32.totalorder %s72, %s74
      %p78 = scmp.eq.s32.totalorder %s12, 0
      %p79 = por %p77, %p78
      %p80 = scmp.ne.s32.totalorder %s72, %s74
      %p81 = scmp.eq.s32.totalorder %s17, 8
      %p82 = por %p80, %p81
      %p83 = scmp.ne.s32.totalorder %s74, %s75
      %p84 = scmp.eq.s32.totalorder %s17, 0
      %p85 = por %p83, %p84
      %p86 = scmp.ne.s32.totalorder %s74, %s75
      %p87 = scmp.eq.s32.totalorder %s18, 8
      %p88 = por %p86, %p87
      %p90 = scmp.ne.s32.totalorder %s75, %s89
      %p91 = scmp.eq.s32.totalorder %s18, 0
      %p92 = por %p90, %p91
      %s94 = sadd.s32 %s93, 1
      %p97 = scmp.eq.s32.totalorder %s12, 8
      %p98 = scmp.ne.s32.totalorder %s93, %s95
      %p99 = scmp.eq.s32.totalorder %s12, 0
      %p100 = por %p98, %p99
      %p101 = scmp.ne.s32.totalorder %s93, %s95
      %p102 = scmp.eq.s32.totalorder %s17, 8
      %p103 = por %p101, %p102
      %p104 = scmp.ne.s32.totalorder %s95, %s96
      %p105 = scmp.eq.s32.totalorder %s17, 0
      %p106 = por %p104, %p105
      %p107 = scmp.ne.s32.totalorder %s95, %s96
      %p108 = scmp.eq.s32.totalorder %s18, 8
      %p109 = por %p107, %p108
      %p111 = scmp.ne.s32.totalorder %s96, %s110
      %p112 = scmp.eq.s32.totalorder %s18, 0
      %p113 = por %p111, %p112
      %s115 = sadd.s32 %s114, 1
      %p118 = scmp.eq.s32.totalorder %s12, 8
      %p119 = scmp.ne.s32.totalorder %s114, %s116
      %p120 = scmp.eq.s32.totalorder %s12, 0
      %p121 = por %p119, %p120
      %p122 = scmp.ne.s32.totalorder %s114, %s116
      %p123 = scmp.eq.s32.totalorder %s17, 8
      %p124 = por %p122, %p123
      %p125 = scmp.ne.s32.totalorder %s116, %s117
      %p126 = scmp.eq.s32.totalorder %s17, 0
      %p127 = por %p125, %p126
      %p128 = scmp.ne.s32.totalorder %s116, %s117
      %p129 = scmp.eq.s32.totalorder %s18, 8
      %p130 = por %p128, %p129
      %p132 = scmp.ne.s32.totalorder %s117, %s131
      %p133 = scmp.eq.s32.totalorder %s18, 0
      %p134 = por %p132, %p133
      %s136 = sadd.s32 %s135, 1
      %p139 = scmp.eq.s32.totalorder %s12, 8
      %p140 = scmp.ne.s32.totalorder %s135, %s137
      %p141 = scmp.eq.s32.totalorder %s12, 0
      %p142 = por %p140, %p141
      %p143 = scmp.ne.s32.totalorder %s135, %s137
      %p144 = scmp.eq.s32.totalorder %s17, 8
      %p145 = por %p143, %p144
      %p146 = scmp.ne.s32.totalorder %s137, %s138
      %p147 = scmp.eq.s32.totalorder %s17, 0
      %p148 = por %p146, %p147
      %p149 = scmp.ne.s32.totalorder %s137, %s138
      %p150 = scmp.eq.s32.totalorder %s18, 8
      %p151 = por %p149, %p150
      %p153 = scmp.ne.s32.totalorder %s138, %s152
      %p154 = scmp.eq.s32.totalorder %s18, 0
      %p155 = por %p153, %p154
      %p156 = scmp.le.s32.totalorder 1, %s12
      %p157 = scmp.lt.s32.totalorder %s12, 10
      %p158 = pnand %p156, %p157
      %p159 = pneg %p158
      // Predicated region
      $region9: #{cnn_forward.3} parent=5 // pred_check
        _
      $region10: #{cnn_forward.3} parent=5 // pred_check_branch
        %161 = sbr.rel (%p158) target = $region12
      $region11: #{cnn_forward.3} parent=5 // pred_region
        %s162 = ssub.s32 %s12, 1
        // Predicated region
        $region13: #{cnn_forward.3} parent=11 // pred_check
          %p163 = pneg %p85
        $region14: #{cnn_forward.3} parent=11 // pred_check_branch
          %165 = sbr.rel (%p163) target = $region16
        $region15: #{cnn_forward.3} parent=11 // pred_region
          _
        $region16: #{cnn_forward.3} parent=11 // pred_fallthru
          _
        // Predicated region
        $region17: #{cnn_forward.3} parent=11 // pred_check
          %p166 = pneg %p106
        $region18: #{cnn_forward.3} parent=11 // pred_check_branch
          %168 = sbr.rel (%p166) target = $region20
        $region19: #{cnn_forward.3} parent=11 // pred_region
          _
        $region20: #{cnn_forward.3} parent=11 // pred_fallthru
          _
        // Predicated region
        $region21: #{cnn_forward.3} parent=11 // pred_check
          %p169 = pneg %p127
        $region22: #{cnn_forward.3} parent=11 // pred_check_branch
          %171 = sbr.rel (%p169) target = $region24
        $region23: #{cnn_forward.3} parent=11 // pred_region
          _
        $region24: #{cnn_forward.3} parent=11 // pred_fallthru
          _
      $region12: #{cnn_forward.3} parent=5 // pred_fallthru
        _
      %p172 = scmp.lt.s32.totalorder %s12, 9
      // Predicated region
      $region25: #{cnn_forward.3} parent=5 // pred_check
        %p173 = pneg %p172
      $region26: #{cnn_forward.3} parent=5 // pred_check_branch
        %175 = sbr.rel (%p173) target = $region28
      $region27: #{cnn_forward.3} parent=5 // pred_region
        // Predicated region
        $region29: #{cnn_forward.3} parent=27 // pred_check
          %p176 = pneg %p32
        $region30: #{cnn_forward.3} parent=27 // pred_check_branch
          %178 = sbr.rel (%p176) target = $region32
        $region31: #{cnn_forward.3} parent=27 // pred_region
          %p179 = scmp.lt.s32.totalorder %s12, 8
          %s180 = scalar_select %p179, %s12, 8
          %s181 = smul.addr %s180, 5
          %s182 = scalar_lea.vmem %s0, %s181
        $region32: #{cnn_forward.3} parent=27 // pred_fallthru
          _
        // Predicated region
        $region33: #{cnn_forward.3} parent=27 // pred_check
          %p183 = pneg %p58
        $region34: #{cnn_forward.3} parent=27 // pred_check_branch
          %185 = sbr.rel (%p183) target = $region36
        $region35: #{cnn_forward.3} parent=27 // pred_region
          %p186 = scmp.lt.s32.totalorder %s12, 8
          %s187 = scalar_select %p186, %s12, 8
          %s188 = smul.addr %s187, 288
          %s189 = smul.addr %s188, 4
          %s190 = scalar_lea.vmem %s1, %s189
        $region36: #{cnn_forward.3} parent=27 // pred_fallthru
          _
      $region28: #{cnn_forward.3} parent=5 // pred_fallthru
        _
      %p191 = scmp.le.s32.totalorder 1, %s12
      %p192 = scmp.lt.s32.totalorder %s12, 10
      %p193 = pnand %p191, %p192
      %p194 = pneg %p193
      // Predicated region
      $region37: #{cnn_forward.3} parent=5 // pred_check
        _
      $region38: #{cnn_forward.3} parent=5 // pred_check_branch
        %196 = sbr.rel (%p193) target = $region40
      $region39: #{cnn_forward.3} parent=5 // pred_region
        %s197 = ssub.s32 %s12, 1
        %p198 = scmp.lt.s32.totalorder %s17, 8
        %s199 = scalar_select %p198, %s17, 8
        %s200 = smul.addr %s199, 5
        %s201 = scalar_lea.vmem %s0, %s200
        %p202 = pneg %p38
        %p203 = pneg %p35
        %p204 = scmp.lt.s32.totalorder %s17, 8
        %s205 = scalar_select %p204, %s17, 8
        %s206 = smul.addr %s205, 288
        %s207 = smul.addr %s206, 4
        %s208 = scalar_lea.vmem %s1, %s207
        %p209 = pneg %p64
        %p210 = pneg %p61
        %p211 = pneg %p85
        %p212 = pneg %p82
        %p213 = pneg %p106
        %p214 = pneg %p103
        %p215 = pneg %p127
        %p216 = pneg %p124
        %p217 = pneg %p148
        %p218 = pneg %p145
        %p219 = scmp.lt.s32.totalorder %s17, 8
        %s220 = scalar_select %p219, %s17, 8
        %s221 = smul.addr %s220, 5
        %s222 = scalar_lea.vmem %s0, %s221
        %p223 = scmp.lt.s32.totalorder %s17, 8
        %s224 = scalar_select %p223, %s17, 8
        %s225 = smul.addr %s224, 288
        %s226 = smul.addr %s225, 4
        %s227 = scalar_lea.vmem %s1, %s226
        %p229 = scmp.eq.s32.totalorder %s17, 0
        // Predicated region
        $region41: #{cnn_forward.3} parent=39 // pred_check
          %p230 = pneg %p229
        $region42: #{cnn_forward.3} parent=39 // pred_check_branch
          %232 = sbr.rel (%p230) target = $region44
        $region43: #{cnn_forward.3} parent=39 // pred_region
          %233 = vst [vmem:[#allocation2] sm:$0xff] 0.0
        $region44: #{cnn_forward.3} parent=39 // pred_fallthru
          _
        %v234 = vld [vmem:[#allocation2] sm:$0xff]
        %v235 = vld [vmem:[%s222] sm:$0x1f]
        %v236 = vld [vmem:[%s227] sm:$0xff]
        %v237 = vld [vmem:[%s227 + $0x8] sm:$0xff]
        %v238 = vld [vmem:[%s227 + $0x10] sm:$0xff]
        %v239 = vld [vmem:[%s227 + $0x18] sm:$0xff]
        %v240 = vld [vmem:[%s227 + $0x20] sm:$0xff]
        %v241 = vld [vmem:[%s227 + $0x28] sm:$0xff]
        %v242 = vld [vmem:[%s227 + $0x30] sm:$0xff]
        %v243 = vld [vmem:[%s227 + $0x38] sm:$0xff]
        %v244 = vld [vmem:[%s227 + $0x40] sm:$0xff]
        %v245 = vld [vmem:[%s227 + $0x48] sm:$0xff]
        %v246 = vld [vmem:[%s227 + $0x50] sm:$0xff]
        %v247 = vld [vmem:[%s227 + $0x58] sm:$0xff]
        %v248 = vld [vmem:[%s227 + $0x60] sm:$0xff]
        %v249 = vld [vmem:[%s227 + $0x68] sm:$0xff]
        %v250 = vld [vmem:[%s227 + $0x70] sm:$0xff]
        %v251 = vld [vmem:[%s227 + $0x78] sm:$0xff]
        %v252 = vld [vmem:[%s227 + $0x80] sm:$0xff]
        %v253 = vld [vmem:[%s227 + $0x88] sm:$0xff]
        %v254 = vld [vmem:[%s227 + $0x90] sm:$0xff]
        %v255 = vld [vmem:[%s227 + $0x98] sm:$0xff]
        %v256 = vld [vmem:[%s227 + $0xa0] sm:$0xff]
        %v257 = vld [vmem:[%s227 + $0xa8] sm:$0xff]
        %v258 = vld [vmem:[%s227 + $0xb0] sm:$0xff]
        %v259 = vld [vmem:[%s227 + $0xb8] sm:$0xff]
        %v260 = vld [vmem:[%s227 + $0xc0] sm:$0xff]
        %v261 = vld [vmem:[%s227 + $0xc8] sm:$0xff]
        %v262 = vld [vmem:[%s227 + $0xd0] sm:$0xff]
        %v263 = vld [vmem:[%s227 + $0xd8] sm:$0xff]
        %v264 = vld [vmem:[%s227 + $0xe0] sm:$0xff]
        %v265 = vld [vmem:[%s227 + $0xe8] sm:$0xff]
        %v266 = vld [vmem:[%s227 + $0xf0] sm:$0xff]
        %v267 = vld [vmem:[%s227 + $0xf8] sm:$0xff]
        %v268 = vld [vmem:[%s227 + $0x100] sm:$0xff]
        %v269 = vld [vmem:[%s227 + $0x108] sm:$0xff]
        %v270 = vld [vmem:[%s227 + $0x110] sm:$0xff]
        %v271 = vld [vmem:[%s227 + $0x118] sm:$0xff]
        %v272 = vld [vmem:[%s227 + $0x120] sm:$0xff]
        %v273 = vld [vmem:[%s227 + $0x128] sm:$0xff]
        %v274 = vld [vmem:[%s227 + $0x130] sm:$0xff]
        %v275 = vld [vmem:[%s227 + $0x138] sm:$0xff]
        %v276 = vld [vmem:[%s227 + $0x140] sm:$0xff]
        %v277 = vld [vmem:[%s227 + $0x148] sm:$0xff]
        %v278 = vld [vmem:[%s227 + $0x150] sm:$0xff]
        %v279 = vld [vmem:[%s227 + $0x158] sm:$0xff]
        %v280 = vld [vmem:[%s227 + $0x160] sm:$0xff]
        %v281 = vld [vmem:[%s227 + $0x168] sm:$0xff]
        %v282 = vld [vmem:[%s227 + $0x170] sm:$0xff]
        %v283 = vld [vmem:[%s227 + $0x178] sm:$0xff]
        %v284 = vld [vmem:[%s227 + $0x180] sm:$0xff]
        %v285 = vld [vmem:[%s227 + $0x188] sm:$0xff]
        %v286 = vld [vmem:[%s227 + $0x190] sm:$0xff]
        %v287 = vld [vmem:[%s227 + $0x198] sm:$0xff]
        %v288 = vld [vmem:[%s227 + $0x1a0] sm:$0xff]
        %v289 = vld [vmem:[%s227 + $0x1a8] sm:$0xff]
        %v290 = vld [vmem:[%s227 + $0x1b0] sm:$0xff]
        %v291 = vld [vmem:[%s227 + $0x1b8] sm:$0xff]
        %v292 = vld [vmem:[%s227 + $0x1c0] sm:$0xff]
        %v293 = vld [vmem:[%s227 + $0x1c8] sm:$0xff]
        %v294 = vld [vmem:[%s227 + $0x1d0] sm:$0xff]
        %v295 = vld [vmem:[%s227 + $0x1d8] sm:$0xff]
        %v296 = vld [vmem:[%s227 + $0x1e0] sm:$0xff]
        %v297 = vld [vmem:[%s227 + $0x1e8] sm:$0xff]
        %v298 = vld [vmem:[%s227 + $0x1f0] sm:$0xff]
        %v299 = vld [vmem:[%s227 + $0x1f8] sm:$0xff]
        %v300 = vld [vmem:[%s227 + $0x200] sm:$0xff]
        %v301 = vld [vmem:[%s227 + $0x208] sm:$0xff]
        %v302 = vld [vmem:[%s227 + $0x210] sm:$0xff]
        %v303 = vld [vmem:[%s227 + $0x218] sm:$0xff]
        %v304 = vld [vmem:[%s227 + $0x220] sm:$0xff]
        %v305 = vld [vmem:[%s227 + $0x228] sm:$0xff]
        %v306 = vld [vmem:[%s227 + $0x230] sm:$0xff]
        %v307 = vld [vmem:[%s227 + $0x238] sm:$0xff]
        %v308 = vld [vmem:[%s227 + $0x240] sm:$0xff]
        %v309 = vld [vmem:[%s227 + $0x248] sm:$0xff]
        %v310 = vld [vmem:[%s227 + $0x250] sm:$0xff]
        %v311 = vld [vmem:[%s227 + $0x258] sm:$0xff]
        %v312 = vld [vmem:[%s227 + $0x260] sm:$0xff]
        %v313 = vld [vmem:[%s227 + $0x268] sm:$0xff]
        %v314 = vld [vmem:[%s227 + $0x270] sm:$0xff]
        %v315 = vld [vmem:[%s227 + $0x278] sm:$0xff]
        %v316 = vld [vmem:[%s227 + $0x280] sm:$0xff]
        %v317 = vld [vmem:[%s227 + $0x288] sm:$0xff]
        %v318 = vld [vmem:[%s227 + $0x290] sm:$0xff]
        %v319 = vld [vmem:[%s227 + $0x298] sm:$0xff]
        %v320 = vld [vmem:[%s227 + $0x2a0] sm:$0xff]
        %v321 = vld [vmem:[%s227 + $0x2a8] sm:$0xff]
        %v322 = vld [vmem:[%s227 + $0x2b0] sm:$0xff]
        %v323 = vld [vmem:[%s227 + $0x2b8] sm:$0xff]
        %v324 = vld [vmem:[%s227 + $0x2c0] sm:$0xff]
        %v325 = vld [vmem:[%s227 + $0x2c8] sm:$0xff]
        %v326 = vld [vmem:[%s227 + $0x2d0] sm:$0xff]
        %v327 = vld [vmem:[%s227 + $0x2d8] sm:$0xff]
        %v328 = vld [vmem:[%s227 + $0x2e0] sm:$0xff]
        %v329 = vld [vmem:[%s227 + $0x2e8] sm:$0xff]
        %v330 = vld [vmem:[%s227 + $0x2f0] sm:$0xff]
        %v331 = vld [vmem:[%s227 + $0x2f8] sm:$0xff]
        %v332 = vld [vmem:[%s227 + $0x300] sm:$0xff]
        %v333 = vld [vmem:[%s227 + $0x308] sm:$0xff]
        %v334 = vld [vmem:[%s227 + $0x310] sm:$0xff]
        %v335 = vld [vmem:[%s227 + $0x318] sm:$0xff]
        %v336 = vld [vmem:[%s227 + $0x320] sm:$0xff]
        %v337 = vld [vmem:[%s227 + $0x328] sm:$0xff]
        %v338 = vld [vmem:[%s227 + $0x330] sm:$0xff]
        %v339 = vld [vmem:[%s227 + $0x338] sm:$0xff]
        %v340 = vld [vmem:[%s227 + $0x340] sm:$0xff]
        %v341 = vld [vmem:[%s227 + $0x348] sm:$0xff]
        %v342 = vld [vmem:[%s227 + $0x350] sm:$0xff]
        %v343 = vld [vmem:[%s227 + $0x358] sm:$0xff]
        %v344 = vld [vmem:[%s227 + $0x360] sm:$0xff]
        %v345 = vld [vmem:[%s227 + $0x368] sm:$0xff]
        %v346 = vld [vmem:[%s227 + $0x370] sm:$0xff]
        %v347 = vld [vmem:[%s227 + $0x378] sm:$0xff]
        %v348 = vld [vmem:[%s227 + $0x380] sm:$0xff]
        %v349 = vld [vmem:[%s227 + $0x388] sm:$0xff]
        %v350 = vld [vmem:[%s227 + $0x390] sm:$0xff]
        %v351 = vld [vmem:[%s227 + $0x398] sm:$0xff]
        %v352 = vld [vmem:[%s227 + $0x3a0] sm:$0xff]
        %v353 = vld [vmem:[%s227 + $0x3a8] sm:$0xff]
        %v354 = vld [vmem:[%s227 + $0x3b0] sm:$0xff]
        %v355 = vld [vmem:[%s227 + $0x3b8] sm:$0xff]
        %v356 = vld [vmem:[%s227 + $0x3c0] sm:$0xff]
        %v357 = vld [vmem:[%s227 + $0x3c8] sm:$0xff]
        %v358 = vld [vmem:[%s227 + $0x3d0] sm:$0xff]
        %v359 = vld [vmem:[%s227 + $0x3d8] sm:$0xff]
        %v360 = vld [vmem:[%s227 + $0x3e0] sm:$0xff]
        %v361 = vld [vmem:[%s227 + $0x3e8] sm:$0xff]
        %v362 = vld [vmem:[%s227 + $0x3f0] sm:$0xff]
        %v363 = vld [vmem:[%s227 + $0x3f8] sm:$0xff]
        %v364 = vld [vmem:[%s227 + $0x400] sm:$0xff]
        %v365 = vld [vmem:[%s227 + $0x408] sm:$0xff]
        %v366 = vld [vmem:[%s227 + $0x410] sm:$0xff]
        %v367 = vld [vmem:[%s227 + $0x418] sm:$0xff]
        %v368 = vld [vmem:[%s227 + $0x420] sm:$0xff]
        %v369 = vld [vmem:[%s227 + $0x428] sm:$0xff]
        %v370 = vld [vmem:[%s227 + $0x430] sm:$0xff]
        %v371 = vld [vmem:[%s227 + $0x438] sm:$0xff]
        %v372 = vld [vmem:[%s227 + $0x440] sm:$0xff]
        %v373 = vld [vmem:[%s227 + $0x448] sm:$0xff]
        %v374 = vld [vmem:[%s227 + $0x450] sm:$0xff]
        %v375 = vld [vmem:[%s227 + $0x458] sm:$0xff]
        %v376 = vld [vmem:[%s227 + $0x460] sm:$0xff]
        %v377 = vld [vmem:[%s227 + $0x468] sm:$0xff]
        %v378 = vld [vmem:[%s227 + $0x470] sm:$0xff]
        %v379 = vld [vmem:[%s227 + $0x478] sm:$0xff]
        %v381 = vcombine.high %v235, %v235
        %v383 = vunpack.c.l.s4 1966171168
        %v384 = vunpack.c.0.s8 %v383
        %v385 = vlaneseq
        %v386 = vshrl.u32 %v385, 7
        %v387 = vsub.s32 %v384, %v386
        %v388 = vrot.slane %v235, %v387
        %v390 = vunpack.c.l.s4 1966171168
        %v391 = vunpack.c.0.s8 %v390
        %v392 = vlaneseq
        %v393 = vshrl.u32 %v392, 7
        %v394 = vsub.s32 %v391, %v393
        %v395 = vrot.slane %v381, %v394
        %v396 = vcombine.high %v388, %v388
        %v398 = vunpack.c.l.s4 1966171168
        %v399 = vunpack.c.0.s8 %v398
        %v400 = vlaneseq
        %v401 = vshrl.u32 %v400, 7
        %v402 = vsub.s32 %v399, %v401
        %v403 = vrot.slane %v388, %v402
        %v405 = vunpack.c.l.s4 1966171168
        %v406 = vunpack.c.0.s8 %v405
        %v407 = vlaneseq
        %v408 = vshrl.u32 %v407, 7
        %v409 = vsub.s32 %v406, %v408
        %v410 = vrot.slane %v395, %v409
        %v412 = vunpack.c.l.s4 1966171168
        %v413 = vunpack.c.0.s8 %v412
        %v414 = vlaneseq
        %v415 = vshrl.u32 %v414, 7
        %v416 = vsub.s32 %v413, %v415
        %v417 = vrot.slane %v396, %v416
        %v418 = vcombine.high %v403, %v403
        %v419 = vcombine.high %v417, %v417
        %v568 = vunpack.c.l.b16 %v236
        %v569 = vunpack.c.h.b16 %v236
        %v570 = vunpack.c.l.b16 %v237
        %v571 = vunpack.c.h.b16 %v237
        %v572 = vunpack.c.l.b16 %v238
        %v573 = vunpack.c.h.b16 %v238
        %v574 = vunpack.c.l.b16 %v239
        %v575 = vunpack.c.h.b16 %v239
        %v576 = vunpack.c.l.b16 %v240
        %v577 = vunpack.c.h.b16 %v240
        %v578 = vunpack.c.l.b16 %v241
        %v579 = vunpack.c.h.b16 %v241
        %v580 = vunpack.c.l.b16 %v242
        %v581 = vunpack.c.h.b16 %v242
        %v582 = vunpack.c.l.b16 %v243
        %v583 = vunpack.c.h.b16 %v243
        %v584 = vunpack.c.l.b16 %v244
        %v585 = vunpack.c.h.b16 %v244
        %v586 = vunpack.c.l.b16 %v245
        %v587 = vunpack.c.h.b16 %v245
        %v588 = vunpack.c.l.b16 %v246
        %v589 = vunpack.c.h.b16 %v246
        %v590 = vunpack.c.l.b16 %v247
        %v591 = vunpack.c.h.b16 %v247
        %v592 = vunpack.c.l.b16 %v248
        %v593 = vunpack.c.h.b16 %v248
        %v594 = vunpack.c.l.b16 %v249
        %v595 = vunpack.c.h.b16 %v249
        %v596 = vunpack.c.l.b16 %v250
        %v597 = vunpack.c.h.b16 %v250
        %v598 = vunpack.c.l.b16 %v251
        %v599 = vunpack.c.h.b16 %v251
        %v600 = vunpack.c.l.b16 %v252
        %v601 = vunpack.c.h.b16 %v252
        %v602 = vunpack.c.l.b16 %v253
        %v603 = vunpack.c.h.b16 %v253
        %v604 = vunpack.c.l.b16 %v254
        %v605 = vunpack.c.h.b16 %v254
        %v606 = vunpack.c.l.b16 %v255
        %v607 = vunpack.c.h.b16 %v255
        %v608 = vunpack.c.l.b16 %v256
        %v609 = vunpack.c.h.b16 %v256
        %v610 = vunpack.c.l.b16 %v257
        %v611 = vunpack.c.h.b16 %v257
        %v612 = vunpack.c.l.b16 %v258
        %v613 = vunpack.c.h.b16 %v258
        %v614 = vunpack.c.l.b16 %v259
        %v615 = vunpack.c.h.b16 %v259
        %v616 = vunpack.c.l.b16 %v260
        %v617 = vunpack.c.h.b16 %v260
        %v618 = vunpack.c.l.b16 %v261
        %v619 = vunpack.c.h.b16 %v261
        %v620 = vunpack.c.l.b16 %v262
        %v621 = vunpack.c.h.b16 %v262
        %v622 = vunpack.c.l.b16 %v263
        %v623 = vunpack.c.h.b16 %v263
        %v624 = vunpack.c.l.b16 %v264
        %v625 = vunpack.c.h.b16 %v264
        %v626 = vunpack.c.l.b16 %v265
        %v627 = vunpack.c.h.b16 %v265
        %v628 = vunpack.c.l.b16 %v266
        %v629 = vunpack.c.h.b16 %v266
        %v630 = vunpack.c.l.b16 %v267
        %v631 = vunpack.c.h.b16 %v267
        %v632 = vunpack.c.l.b16 %v268
        %v633 = vunpack.c.h.b16 %v268
        %v634 = vunpack.c.l.b16 %v269
        %v635 = vunpack.c.h.b16 %v269
        %v636 = vunpack.c.l.b16 %v270
        %v637 = vunpack.c.h.b16 %v270
        %v638 = vunpack.c.l.b16 %v271
        %v639 = vunpack.c.h.b16 %v271
        %v640 = vunpack.c.l.b16 %v272
        %v641 = vunpack.c.h.b16 %v272
        %v642 = vunpack.c.l.b16 %v273
        %v643 = vunpack.c.h.b16 %v273
        %v644 = vunpack.c.l.b16 %v274
        %v645 = vunpack.c.h.b16 %v274
        %v646 = vunpack.c.l.b16 %v275
        %v647 = vunpack.c.h.b16 %v275
        %v648 = vunpack.c.l.b16 %v276
        %v649 = vunpack.c.h.b16 %v276
        %v650 = vunpack.c.l.b16 %v277
        %v651 = vunpack.c.h.b16 %v277
        %v652 = vunpack.c.l.b16 %v278
        %v653 = vunpack.c.h.b16 %v278
        %v654 = vunpack.c.l.b16 %v279
        %v655 = vunpack.c.h.b16 %v279
        %v656 = vunpack.c.l.b16 %v280
        %v657 = vunpack.c.h.b16 %v280
        %v658 = vunpack.c.l.b16 %v281
        %v659 = vunpack.c.h.b16 %v281
        %v660 = vunpack.c.l.b16 %v282
        %v661 = vunpack.c.h.b16 %v282
        %v662 = vunpack.c.l.b16 %v283
        %v663 = vunpack.c.h.b16 %v283
        %v664 = vunpack.c.l.b16 %v284
        %v665 = vunpack.c.h.b16 %v284
        %v666 = vunpack.c.l.b16 %v285
        %v667 = vunpack.c.h.b16 %v285
        %v668 = vunpack.c.l.b16 %v286
        %v669 = vunpack.c.h.b16 %v286
        %v670 = vunpack.c.l.b16 %v287
        %v671 = vunpack.c.h.b16 %v287
        %v672 = vunpack.c.l.b16 %v288
        %v673 = vunpack.c.h.b16 %v288
        %v674 = vunpack.c.l.b16 %v289
        %v675 = vunpack.c.h.b16 %v289
        %v676 = vunpack.c.l.b16 %v290
        %v677 = vunpack.c.h.b16 %v290
        %v678 = vunpack.c.l.b16 %v291
        %v679 = vunpack.c.h.b16 %v291
        %v680 = vunpack.c.l.b16 %v292
        %v681 = vunpack.c.h.b16 %v292
        %v682 = vunpack.c.l.b16 %v293
        %v683 = vunpack.c.h.b16 %v293
        %v684 = vunpack.c.l.b16 %v294
        %v685 = vunpack.c.h.b16 %v294
        %v686 = vunpack.c.l.b16 %v295
        %v687 = vunpack.c.h.b16 %v295
        %v688 = vunpack.c.l.b16 %v296
        %v689 = vunpack.c.h.b16 %v296
        %v690 = vunpack.c.l.b16 %v297
        %v691 = vunpack.c.h.b16 %v297
        %v692 = vunpack.c.l.b16 %v298
        %v693 = vunpack.c.h.b16 %v298
        %v694 = vunpack.c.l.b16 %v299
        %v695 = vunpack.c.h.b16 %v299
        %v696 = vunpack.c.l.b16 %v300
        %v697 = vunpack.c.h.b16 %v300
        %v698 = vunpack.c.l.b16 %v301
        %v699 = vunpack.c.h.b16 %v301
        %v700 = vunpack.c.l.b16 %v302
        %v701 = vunpack.c.h.b16 %v302
        %v702 = vunpack.c.l.b16 %v303
        %v703 = vunpack.c.h.b16 %v303
        %v704 = vunpack.c.l.b16 %v304
        %v705 = vunpack.c.h.b16 %v304
        %v706 = vunpack.c.l.b16 %v305
        %v707 = vunpack.c.h.b16 %v305
        %v708 = vunpack.c.l.b16 %v306
        %v709 = vunpack.c.h.b16 %v306
        %v710 = vunpack.c.l.b16 %v307
        %v711 = vunpack.c.h.b16 %v307
        %v712 = vunpack.c.l.b16 %v308
        %v713 = vunpack.c.h.b16 %v308
        %v714 = vunpack.c.l.b16 %v309
        %v715 = vunpack.c.h.b16 %v309
        %v716 = vunpack.c.l.b16 %v310
        %v717 = vunpack.c.h.b16 %v310
        %v718 = vunpack.c.l.b16 %v311
        %v719 = vunpack.c.h.b16 %v311
        %v720 = vunpack.c.l.b16 %v312
        %v721 = vunpack.c.h.b16 %v312
        %v722 = vunpack.c.l.b16 %v313
        %v723 = vunpack.c.h.b16 %v313
        %v724 = vunpack.c.l.b16 %v314
        %v725 = vunpack.c.h.b16 %v314
        %v726 = vunpack.c.l.b16 %v315
        %v727 = vunpack.c.h.b16 %v315
        %v728 = vunpack.c.l.b16 %v316
        %v729 = vunpack.c.h.b16 %v316
        %v730 = vunpack.c.l.b16 %v317
        %v731 = vunpack.c.h.b16 %v317
        %v732 = vunpack.c.l.b16 %v318
        %v733 = vunpack.c.h.b16 %v318
        %v734 = vunpack.c.l.b16 %v319
        %v735 = vunpack.c.h.b16 %v319
        %v736 = vunpack.c.l.b16 %v320
        %v737 = vunpack.c.h.b16 %v320
        %v738 = vunpack.c.l.b16 %v321
        %v739 = vunpack.c.h.b16 %v321
        %v740 = vunpack.c.l.b16 %v322
        %v741 = vunpack.c.h.b16 %v322
        %v742 = vunpack.c.l.b16 %v323
        %v743 = vunpack.c.h.b16 %v323
        %v744 = vunpack.c.l.b16 %v324
        %v745 = vunpack.c.h.b16 %v324
        %v746 = vunpack.c.l.b16 %v325
        %v747 = vunpack.c.h.b16 %v325
        %v748 = vunpack.c.l.b16 %v326
        %v749 = vunpack.c.h.b16 %v326
        %v750 = vunpack.c.l.b16 %v327
        %v751 = vunpack.c.h.b16 %v327
        %v752 = vunpack.c.l.b16 %v328
        %v753 = vunpack.c.h.b16 %v328
        %v754 = vunpack.c.l.b16 %v329
        %v755 = vunpack.c.h.b16 %v329
        %v756 = vunpack.c.l.b16 %v330
        %v757 = vunpack.c.h.b16 %v330
        %v758 = vunpack.c.l.b16 %v331
        %v759 = vunpack.c.h.b16 %v331
        %v760 = vunpack.c.l.b16 %v332
        %v761 = vunpack.c.h.b16 %v332
        %v762 = vunpack.c.l.b16 %v333
        %v763 = vunpack.c.h.b16 %v333
        %v764 = vunpack.c.l.b16 %v334
        %v765 = vunpack.c.h.b16 %v334
        %v766 = vunpack.c.l.b16 %v335
        %v767 = vunpack.c.h.b16 %v335
        %v768 = vunpack.c.l.b16 %v336
        %v769 = vunpack.c.h.b16 %v336
        %v770 = vunpack.c.l.b16 %v337
        %v771 = vunpack.c.h.b16 %v337
        %v772 = vunpack.c.l.b16 %v338
        %v773 = vunpack.c.h.b16 %v338
        %v774 = vunpack.c.l.b16 %v339
        %v775 = vunpack.c.h.b16 %v339
        %v776 = vunpack.c.l.b16 %v340
        %v777 = vunpack.c.h.b16 %v340
        %v778 = vunpack.c.l.b16 %v341
        %v779 = vunpack.c.h.b16 %v341
        %v780 = vunpack.c.l.b16 %v342
        %v781 = vunpack.c.h.b16 %v342
        %v782 = vunpack.c.l.b16 %v343
        %v783 = vunpack.c.h.b16 %v343
        %v784 = vunpack.c.l.b16 %v344
        %v785 = vunpack.c.h.b16 %v344
        %v786 = vunpack.c.l.b16 %v345
        %v787 = vunpack.c.h.b16 %v345
        %v788 = vunpack.c.l.b16 %v346
        %v789 = vunpack.c.h.b16 %v346
        %v790 = vunpack.c.l.b16 %v347
        %v791 = vunpack.c.h.b16 %v347
        %v792 = vunpack.c.l.b16 %v348
        %v793 = vunpack.c.h.b16 %v348
        %v794 = vunpack.c.l.b16 %v349
        %v795 = vunpack.c.h.b16 %v349
        %v796 = vunpack.c.l.b16 %v350
        %v797 = vunpack.c.h.b16 %v350
        %v798 = vunpack.c.l.b16 %v351
        %v799 = vunpack.c.h.b16 %v351
        %v800 = vunpack.c.l.b16 %v352
        %v801 = vunpack.c.h.b16 %v352
        %v802 = vunpack.c.l.b16 %v353
        %v803 = vunpack.c.h.b16 %v353
        %v804 = vunpack.c.l.b16 %v354
        %v805 = vunpack.c.h.b16 %v354
        %v806 = vunpack.c.l.b16 %v355
        %v807 = vunpack.c.h.b16 %v355
        %v808 = vunpack.c.l.b16 %v356
        %v809 = vunpack.c.h.b16 %v356
        %v810 = vunpack.c.l.b16 %v357
        %v811 = vunpack.c.h.b16 %v357
        %v812 = vunpack.c.l.b16 %v358
        %v813 = vunpack.c.h.b16 %v358
        %v814 = vunpack.c.l.b16 %v359
        %v815 = vunpack.c.h.b16 %v359
        %v816 = vunpack.c.l.b16 %v360
        %v817 = vunpack.c.h.b16 %v360
        %v818 = vunpack.c.l.b16 %v361
        %v819 = vunpack.c.h.b16 %v361
        %v820 = vunpack.c.l.b16 %v362
        %v821 = vunpack.c.h.b16 %v362
        %v822 = vunpack.c.l.b16 %v363
        %v823 = vunpack.c.h.b16 %v363
        %v824 = vunpack.c.l.b16 %v364
        %v825 = vunpack.c.h.b16 %v364
        %v826 = vunpack.c.l.b16 %v365
        %v827 = vunpack.c.h.b16 %v365
        %v828 = vunpack.c.l.b16 %v366
        %v829 = vunpack.c.h.b16 %v366
        %v830 = vunpack.c.l.b16 %v367
        %v831 = vunpack.c.h.b16 %v367
        %v832 = vunpack.c.l.b16 %v368
        %v833 = vunpack.c.h.b16 %v368
        %v834 = vunpack.c.l.b16 %v369
        %v835 = vunpack.c.h.b16 %v369
        %v836 = vunpack.c.l.b16 %v370
        %v837 = vunpack.c.h.b16 %v370
        %v838 = vunpack.c.l.b16 %v371
        %v839 = vunpack.c.h.b16 %v371
        %v840 = vunpack.c.l.b16 %v372
        %v841 = vunpack.c.h.b16 %v372
        %v842 = vunpack.c.l.b16 %v373
        %v843 = vunpack.c.h.b16 %v373
        %v844 = vunpack.c.l.b16 %v374
        %v845 = vunpack.c.h.b16 %v374
        %v846 = vunpack.c.l.b16 %v375
        %v847 = vunpack.c.h.b16 %v375
        %v848 = vunpack.c.l.b16 %v376
        %v849 = vunpack.c.h.b16 %v376
        %v850 = vunpack.c.l.b16 %v377
        %v851 = vunpack.c.h.b16 %v377
        %v852 = vunpack.c.l.b16 %v378
        %v853 = vunpack.c.h.b16 %v378
        %v854 = vunpack.c.l.b16 %v379
        %v855 = vunpack.c.h.b16 %v379
        %v856 = vpack.c.b16 %v572, %v568
        %v857 = vpack.c.b16 %v573, %v569
        %v858 = vpack.c.b16 %v574, %v570
        %v859 = vpack.c.b16 %v575, %v571
        %v860 = vpack.c.b16 %v580, %v576
        %v861 = vpack.c.b16 %v581, %v577
        %v862 = vpack.c.b16 %v582, %v578
        %v863 = vpack.c.b16 %v583, %v579
        %v864 = vpack.c.b16 %v588, %v584
        %v865 = vpack.c.b16 %v589, %v585
        %v866 = vpack.c.b16 %v590, %v586
        %v867 = vpack.c.b16 %v591, %v587
        %v868 = vpack.c.b16 %v596, %v592
        %v869 = vpack.c.b16 %v597, %v593
        %v870 = vpack.c.b16 %v598, %v594
        %v871 = vpack.c.b16 %v599, %v595
        %v872 = vpack.c.b16 %v604, %v600
        %v873 = vpack.c.b16 %v605, %v601
        %v874 = vpack.c.b16 %v606, %v602
        %v875 = vpack.c.b16 %v607, %v603
        %v876 = vpack.c.b16 %v612, %v608
        %v877 = vpack.c.b16 %v613, %v609
        %v878 = vpack.c.b16 %v614, %v610
        %v879 = vpack.c.b16 %v615, %v611
        %v880 = vpack.c.b16 %v620, %v616
        %v881 = vpack.c.b16 %v621, %v617
        %v882 = vpack.c.b16 %v622, %v618
        %v883 = vpack.c.b16 %v623, %v619
        %v884 = vpack.c.b16 %v628, %v624
        %v885 = vpack.c.b16 %v629, %v625
        %v886 = vpack.c.b16 %v630, %v626
        %v887 = vpack.c.b16 %v631, %v627
        %v888 = vpack.c.b16 %v636, %v632
        %v889 = vpack.c.b16 %v637, %v633
        %v890 = vpack.c.b16 %v638, %v634
        %v891 = vpack.c.b16 %v639, %v635
        %v892 = vpack.c.b16 %v644, %v640
        %v893 = vpack.c.b16 %v645, %v641
        %v894 = vpack.c.b16 %v646, %v642
        %v895 = vpack.c.b16 %v647, %v643
        %v896 = vpack.c.b16 %v652, %v648
        %v897 = vpack.c.b16 %v653, %v649
        %v898 = vpack.c.b16 %v654, %v650
        %v899 = vpack.c.b16 %v655, %v651
        %v900 = vpack.c.b16 %v660, %v656
        %v901 = vpack.c.b16 %v661, %v657
        %v902 = vpack.c.b16 %v662, %v658
        %v903 = vpack.c.b16 %v663, %v659
        %v904 = vpack.c.b16 %v668, %v664
        %v905 = vpack.c.b16 %v669, %v665
        %v906 = vpack.c.b16 %v670, %v666
        %v907 = vpack.c.b16 %v671, %v667
        %v908 = vpack.c.b16 %v676, %v672
        %v909 = vpack.c.b16 %v677, %v673
        %v910 = vpack.c.b16 %v678, %v674
        %v911 = vpack.c.b16 %v679, %v675
        %v912 = vpack.c.b16 %v684, %v680
        %v913 = vpack.c.b16 %v685, %v681
        %v914 = vpack.c.b16 %v686, %v682
        %v915 = vpack.c.b16 %v687, %v683
        %v916 = vpack.c.b16 %v692, %v688
        %v917 = vpack.c.b16 %v693, %v689
        %v918 = vpack.c.b16 %v694, %v690
        %v919 = vpack.c.b16 %v695, %v691
        %v920 = vpack.c.b16 %v700, %v696
        %v921 = vpack.c.b16 %v701, %v697
        %v922 = vpack.c.b16 %v702, %v698
        %v923 = vpack.c.b16 %v703, %v699
        %v924 = vpack.c.b16 %v708, %v704
        %v925 = vpack.c.b16 %v709, %v705
        %v926 = vpack.c.b16 %v710, %v706
        %v927 = vpack.c.b16 %v711, %v707
        %v928 = vpack.c.b16 %v716, %v712
        %v929 = vpack.c.b16 %v717, %v713
        %v930 = vpack.c.b16 %v718, %v714
        %v931 = vpack.c.b16 %v719, %v715
        %v932 = vpack.c.b16 %v724, %v720
        %v933 = vpack.c.b16 %v725, %v721
        %v934 = vpack.c.b16 %v726, %v722
        %v935 = vpack.c.b16 %v727, %v723
        %v936 = vpack.c.b16 %v732, %v728
        %v937 = vpack.c.b16 %v733, %v729
        %v938 = vpack.c.b16 %v734, %v730
        %v939 = vpack.c.b16 %v735, %v731
        %v940 = vpack.c.b16 %v740, %v736
        %v941 = vpack.c.b16 %v741, %v737
        %v942 = vpack.c.b16 %v742, %v738
        %v943 = vpack.c.b16 %v743, %v739
        %v944 = vpack.c.b16 %v748, %v744
        %v945 = vpack.c.b16 %v749, %v745
        %v946 = vpack.c.b16 %v750, %v746
        %v947 = vpack.c.b16 %v751, %v747
        %v948 = vpack.c.b16 %v756, %v752
        %v949 = vpack.c.b16 %v757, %v753
        %v950 = vpack.c.b16 %v758, %v754
        %v951 = vpack.c.b16 %v759, %v755
        %v952 = vpack.c.b16 %v764, %v760
        %v953 = vpack.c.b16 %v765, %v761
        %v954 = vpack.c.b16 %v766, %v762
        %v955 = vpack.c.b16 %v767, %v763
        %v956 = vpack.c.b16 %v772, %v768
        %v957 = vpack.c.b16 %v773, %v769
        %v958 = vpack.c.b16 %v774, %v770
        %v959 = vpack.c.b16 %v775, %v771
        %v960 = vpack.c.b16 %v780, %v776
        %v961 = vpack.c.b16 %v781, %v777
        %v962 = vpack.c.b16 %v782, %v778
        %v963 = vpack.c.b16 %v783, %v779
        %v964 = vpack.c.b16 %v788, %v784
        %v965 = vpack.c.b16 %v789, %v785
        %v966 = vpack.c.b16 %v790, %v786
        %v967 = vpack.c.b16 %v791, %v787
        %v968 = vpack.c.b16 %v796, %v792
        %v969 = vpack.c.b16 %v797, %v793
        %v970 = vpack.c.b16 %v798, %v794
        %v971 = vpack.c.b16 %v799, %v795
        %v972 = vpack.c.b16 %v804, %v800
        %v973 = vpack.c.b16 %v805, %v801
        %v974 = vpack.c.b16 %v806, %v802
        %v975 = vpack.c.b16 %v807, %v803
        %v976 = vpack.c.b16 %v812, %v808
        %v977 = vpack.c.b16 %v813, %v809
        %v978 = vpack.c.b16 %v814, %v810
        %v979 = vpack.c.b16 %v815, %v811
        %v980 = vpack.c.b16 %v820, %v816
        %v981 = vpack.c.b16 %v821, %v817
        %v982 = vpack.c.b16 %v822, %v818
        %v983 = vpack.c.b16 %v823, %v819
        %v984 = vpack.c.b16 %v828, %v824
        %v985 = vpack.c.b16 %v829, %v825
        %v986 = vpack.c.b16 %v830, %v826
        %v987 = vpack.c.b16 %v831, %v827
        %v988 = vpack.c.b16 %v836, %v832
        %v989 = vpack.c.b16 %v837, %v833
        %v990 = vpack.c.b16 %v838, %v834
        %v991 = vpack.c.b16 %v839, %v835
        %v992 = vpack.c.b16 %v844, %v840
        %v993 = vpack.c.b16 %v845, %v841
        %v994 = vpack.c.b16 %v846, %v842
        %v995 = vpack.c.b16 %v847, %v843
        %v996 = vpack.c.b16 %v852, %v848
        %v997 = vpack.c.b16 %v853, %v849
        %v998 = vpack.c.b16 %v854, %v850
        %v999 = vpack.c.b16 %v855, %v851
        %vm1144 = vcmask 523264
        %v1146 = vsel %vm1144, %v410, 0
        %1148 = vmatprep.subr.bf16.mxu0 %v857
        %1149 = vmatpush1.bf16.msra.mxu0 %v856
        %1150 = vmatprep.subr.bf16.mxu0 %v861
        %1151 = vmatpush1.bf16.msra.mxu0 %v860
        %1152 = vmatprep.subr.bf16.mxu0 %v865
        %1153 = vmatpush1.bf16.msra.mxu0 %v864
        %1154 = vmatprep.subr.bf16.mxu0 %v869
        %1155 = vmatpush1.bf16.msra.mxu0 %v868
        %1156 = vmatprep.subr.bf16.mxu0 %v873
        %1157 = vmatpush1.bf16.msra.mxu0 %v872
        %1158 = vmatprep.subr.bf16.mxu0 %v877
        %1159 = vmatpush1.bf16.msra.mxu0 %v876
        %1160 = vmatprep.subr.bf16.mxu0 %v881
        %1161 = vmatpush1.bf16.msra.mxu0 %v880
        %1162 = vmatprep.subr.bf16.mxu0 %v885
        %1163 = vmatpush1.bf16.msra.mxu0 %v884
        %1164 = vmatprep.subr.bf16.mxu0 %v889
        %1165 = vmatpush1.bf16.msra.mxu0 %v888
        %1166 = vmatprep.subr.bf16.mxu0 %v893
        %1167 = vmatpush1.bf16.msra.mxu0 %v892
        %1168 = vmatprep.subr.bf16.mxu0 %v897
        %1169 = vmatpush1.bf16.msra.mxu0 %v896
        %1170 = vmatprep.subr.bf16.mxu0 %v901
        %1171 = vmatpush1.bf16.msra.mxu0 %v900
        %1172 = vmatprep.subr.bf16.mxu0 %v905
        %1173 = vmatpush1.bf16.msra.mxu0 %v904
        %1174 = vmatprep.subr.bf16.mxu0 %v909
        %1175 = vmatpush1.bf16.msra.mxu0 %v908
        %1176 = vmatprep.subr.bf16.mxu0 %v913
        %1177 = vmatpush1.bf16.msra.mxu0 %v912
        %1178 = vmatprep.subr.bf16.mxu0 %v917
        %1179 = vmatpush1.bf16.msra.mxu0 %v916
        %1180 = vmatprep.mubr.bf16.mxu0 %v417
        %1181 = vmatmul.mubr.bf16.gmra.mrb[0].mxu0 %v403
        %v1182 = vpop.f32.mrb[0].mxu0
        %v1183 = vadd.f32 0.0, %v1182
        %v1184 = vpop.f32.mrb[0].mxu0
        %v1185 = vadd.f32 0.0, %v1184
        %v1186 = vpop.f32.mrb[0].mxu0
        %v1187 = vpop.f32.mrb[0].mxu0
        %1188 = vdwg.mxu0
        %1189 = vmatprep.subr.bf16.mxu0 %v921
        %1190 = vmatpush1.bf16.msra.mxu0 %v920
        %1191 = vmatprep.subr.bf16.mxu0 %v925
        %1192 = vmatpush1.bf16.msra.mxu0 %v924
        %1193 = vmatprep.subr.bf16.mxu0 %v929
        %1194 = vmatpush1.bf16.msra.mxu0 %v928
        %1195 = vmatprep.subr.bf16.mxu0 %v933
        %1196 = vmatpush1.bf16.msra.mxu0 %v932
        %1197 = vmatprep.subr.bf16.mxu0 %v937
        %1198 = vmatpush1.bf16.msra.mxu0 %v936
        %1199 = vmatprep.subr.bf16.mxu0 %v941
        %1200 = vmatpush1.bf16.msra.mxu0 %v940
        %1201 = vmatprep.subr.bf16.mxu0 %v945
        %1202 = vmatpush1.bf16.msra.mxu0 %v944
        %1203 = vmatprep.subr.bf16.mxu0 %v949
        %1204 = vmatpush1.bf16.msra.mxu0 %v948
        %1205 = vmatprep.subr.bf16.mxu0 %v953
        %1206 = vmatpush1.bf16.msra.mxu0 %v952
        %1207 = vmatprep.subr.bf16.mxu0 %v957
        %1208 = vmatpush1.bf16.msra.mxu0 %v956
        %1209 = vmatprep.subr.bf16.mxu0 %v961
        %1210 = vmatpush1.bf16.msra.mxu0 %v960
        %1211 = vmatprep.subr.bf16.mxu0 %v965
        %1212 = vmatpush1.bf16.msra.mxu0 %v964
        %1213 = vmatprep.subr.bf16.mxu0 %v969
        %1214 = vmatpush1.bf16.msra.mxu0 %v968
        %1215 = vmatprep.subr.bf16.mxu0 %v973
        %1216 = vmatpush1.bf16.msra.mxu0 %v972
        %1217 = vmatprep.subr.bf16.mxu0 %v977
        %1218 = vmatpush1.bf16.msra.mxu0 %v976
        %1219 = vmatprep.subr.bf16.mxu0 %v981
        %1220 = vmatpush1.bf16.msra.mxu0 %v980
        %1221 = vmatprep.mubr.bf16.mxu0 %v419
        %1222 = vmatmul.mubr.bf16.gmra.mrb[0].mxu0 %v418
        %v1223 = vpop.f32.mrb[0].mxu0
        %v1224 = vadd.f32 %v1183, %v1223
        %v1225 = vpop.f32.mrb[0].mxu0
        %v1226 = vadd.f32 %v1185, %v1225
        %v1227 = vpop.f32.mrb[0].mxu0
        %v1228 = vpop.f32.mrb[0].mxu0
        %1229 = vdwg.mxu0
        %1230 = vmatprep.subr.bf16.mxu0 %v985
        %1231 = vmatpush1.bf16.msra.mxu0 %v984
        %1232 = vmatprep.subr.bf16.mxu0 %v989
        %1233 = vmatpush1.bf16.msra.mxu0 %v988
        %1234 = vmatprep.subr.bf16.mxu0 %v993
        %1235 = vmatpush1.bf16.msra.mxu0 %v992
        %1236 = vmatprep.subr.bf16.mxu0 %v997
        %1237 = vmatpush1.bf16.msra.mxu0 %v996
        %1238 = vmatprep.subr.bf16.mxu0 0
        %1239 = vmatpush1.bf16.msra.mxu0 0
        %1240 = vmatprep.subr.bf16.mxu0 0
        %1241 = vmatpush1.bf16.msra.mxu0 0
        %1242 = vmatprep.subr.bf16.mxu0 0
        %1243 = vmatpush1.bf16.msra.mxu0 0
        %1244 = vmatprep.subr.bf16.mxu0 0
        %1245 = vmatpush1.bf16.msra.mxu0 0
        %1246 = vmatprep.subr.bf16.mxu0 0
        %1247 = vmatpush1.bf16.msra.mxu0 0
        %1248 = vmatprep.subr.bf16.mxu0 0
        %1249 = vmatpush1.bf16.msra.mxu0 0
        %1250 = vmatprep.subr.bf16.mxu0 0
        %1251 = vmatpush1.bf16.msra.mxu0 0
        %1252 = vmatprep.subr.bf16.mxu0 0
        %1253 = vmatpush1.bf16.msra.mxu0 0
        %1254 = vmatprep.subr.bf16.mxu0 0
        %1255 = vmatpush1.bf16.msra.mxu0 0
        %1256 = vmatprep.subr.bf16.mxu0 0
        %1257 = vmatpush1.bf16.msra.mxu0 0
        %1258 = vmatprep.subr.bf16.mxu0 0
        %1259 = vmatpush1.bf16.msra.mxu0 0
        %1260 = vmatprep.subr.bf16.mxu0 0
        %1261 = vmatpush1.bf16.msra.mxu0 0
        %1262 = vmatprep.mubr.bf16.mxu0 0
        %1263 = vmatmul.mubr.bf16.gmra.mrb[0].mxu0 %v1146
        %v1264 = vpop.f32.mrb[0].mxu0
        %v1265 = vadd.f32 %v1224, %v1264
        %v1266 = vpop.f32.mrb[0].mxu0
        %v1267 = vadd.f32 %v1226, %v1266
        %v1268 = vpop.f32.mrb[0].mxu0
        %v1269 = vpop.f32.mrb[0].mxu0
        %1270 = vdwg.mxu0
        %1271 = vmatprep.subr.bf16.mxu0 %v859
        %1272 = vmatpush1.bf16.msra.mxu0 %v858
        %1273 = vmatprep.subr.bf16.mxu0 %v863
        %1274 = vmatpush1.bf16.msra.mxu0 %v862
        %1275 = vmatprep.subr.bf16.mxu0 %v867
        %1276 = vmatpush1.bf16.msra.mxu0 %v866
        %1277 = vmatprep.subr.bf16.mxu0 %v871
        %1278 = vmatpush1.bf16.msra.mxu0 %v870
        %1279 = vmatprep.subr.bf16.mxu0 %v875
        %1280 = vmatpush1.bf16.msra.mxu0 %v874
        %1281 = vmatprep.subr.bf16.mxu0 %v879
        %1282 = vmatpush1.bf16.msra.mxu0 %v878
        %1283 = vmatprep.subr.bf16.mxu0 %v883
        %1284 = vmatpush1.bf16.msra.mxu0 %v882
        %1285 = vmatprep.subr.bf16.mxu0 %v887
        %1286 = vmatpush1.bf16.msra.mxu0 %v886
        %1287 = vmatprep.subr.bf16.mxu0 %v891
        %1288 = vmatpush1.bf16.msra.mxu0 %v890
        %1289 = vmatprep.subr.bf16.mxu0 %v895
        %1290 = vmatpush1.bf16.msra.mxu0 %v894
        %1291 = vmatprep.subr.bf16.mxu0 %v899
        %1292 = vmatpush1.bf16.msra.mxu0 %v898
        %1293 = vmatprep.subr.bf16.mxu0 %v903
        %1294 = vmatpush1.bf16.msra.mxu0 %v902
        %1295 = vmatprep.subr.bf16.mxu0 %v907
        %1296 = vmatpush1.bf16.msra.mxu0 %v906
        %1297 = vmatprep.subr.bf16.mxu0 %v911
        %1298 = vmatpush1.bf16.msra.mxu0 %v910
        %1299 = vmatprep.subr.bf16.mxu0 %v915
        %1300 = vmatpush1.bf16.msra.mxu0 %v914
        %1301 = vmatprep.subr.bf16.mxu0 %v919
        %1302 = vmatpush1.bf16.msra.mxu0 %v918
        %1303 = vmatprep.mubr.bf16.mxu0 %v417
        %1304 = vmatmul.mubr.bf16.gmra.mrb[0].mxu0 %v403
        %v1305 = vpop.f32.mrb[0].mxu0
        %v1306 = vadd.f32 0.0, %v1305
        %v1307 = vpop.f32.mrb[0].mxu0
        %v1308 = vadd.f32 0.0, %v1307
        %v1309 = vpop.f32.mrb[0].mxu0
        %v1310 = vpop.f32.mrb[0].mxu0
        %1311 = vdwg.mxu0
        %1312 = vmatprep.subr.bf16.mxu0 %v923
        %1313 = vmatpush1.bf16.msra.mxu0 %v922
        %1314 = vmatprep.subr.bf16.mxu0 %v927
        %1315 = vmatpush1.bf16.msra.mxu0 %v926
        %1316 = vmatprep.subr.bf16.mxu0 %v931
        %1317 = vmatpush1.bf16.msra.mxu0 %v930
        %1318 = vmatprep.subr.bf16.mxu0 %v935
        %1319 = vmatpush1.bf16.msra.mxu0 %v934
        %1320 = vmatprep.subr.bf16.mxu0 %v939
        %1321 = vmatpush1.bf16.msra.mxu0 %v938
        %1322 = vmatprep.subr.bf16.mxu0 %v943
        %1323 = vmatpush1.bf16.msra.mxu0 %v942
        %1324 = vmatprep.subr.bf16.mxu0 %v947
        %1325 = vmatpush1.bf16.msra.mxu0 %v946
        %1326 = vmatprep.subr.bf16.mxu0 %v951
        %1327 = vmatpush1.bf16.msra.mxu0 %v950
        %1328 = vmatprep.subr.bf16.mxu0 %v955
        %1329 = vmatpush1.bf16.msra.mxu0 %v954
        %1330 = vmatprep.subr.bf16.mxu0 %v959
        %1331 = vmatpush1.bf16.msra.mxu0 %v958
        %1332 = vmatprep.subr.bf16.mxu0 %v963
        %1333 = vmatpush1.bf16.msra.mxu0 %v962
        %1334 = vmatprep.subr.bf16.mxu0 %v967
        %1335 = vmatpush1.bf16.msra.mxu0 %v966
        %1336 = vmatprep.subr.bf16.mxu0 %v971
        %1337 = vmatpush1.bf16.msra.mxu0 %v970
        %1338 = vmatprep.subr.bf16.mxu0 %v975
        %1339 = vmatpush1.bf16.msra.mxu0 %v974
        %1340 = vmatprep.subr.bf16.mxu0 %v979
        %1341 = vmatpush1.bf16.msra.mxu0 %v978
        %1342 = vmatprep.subr.bf16.mxu0 %v983
        %1343 = vmatpush1.bf16.msra.mxu0 %v982
        %1344 = vmatprep.mubr.bf16.mxu0 %v419
        %1345 = vmatmul.mubr.bf16.gmra.mrb[0].mxu0 %v418
        %v1346 = vpop.f32.mrb[0].mxu0
        %v1347 = vadd.f32 %v1306, %v1346
        %v1348 = vpop.f32.mrb[0].mxu0
        %v1349 = vadd.f32 %v1308, %v1348
        %v1350 = vpop.f32.mrb[0].mxu0
        %v1351 = vpop.f32.mrb[0].mxu0
        %1352 = vdwg.mxu0
        %1353 = vmatprep.subr.bf16.mxu0 %v987
        %1354 = vmatpush1.bf16.msra.mxu0 %v986
        %1355 = vmatprep.subr.bf16.mxu0 %v991
        %1356 = vmatpush1.bf16.msra.mxu0 %v990
        %1357 = vmatprep.subr.bf16.mxu0 %v995
        %1358 = vmatpush1.bf16.msra.mxu0 %v994
        %1359 = vmatprep.subr.bf16.mxu0 %v999
        %1360 = vmatpush1.bf16.msra.mxu0 %v998
        %1361 = vmatprep.subr.bf16.mxu0 0
        %1362 = vmatpush1.bf16.msra.mxu0 0
        %1363 = vmatprep.subr.bf16.mxu0 0
        %1364 = vmatpush1.bf16.msra.mxu0 0
        %1365 = vmatprep.subr.bf16.mxu0 0
        %1366 = vmatpush1.bf16.msra.mxu0 0
        %1367 = vmatprep.subr.bf16.mxu0 0
        %1368 = vmatpush1.bf16.msra.mxu0 0
        %1369 = vmatprep.subr.bf16.mxu0 0
        %1370 = vmatpush1.bf16.msra.mxu0 0
        %1371 = vmatprep.subr.bf16.mxu0 0
        %1372 = vmatpush1.bf16.msra.mxu0 0
        %1373 = vmatprep.subr.bf16.mxu0 0
        %1374 = vmatpush1.bf16.msra.mxu0 0
        %1375 = vmatprep.subr.bf16.mxu0 0
        %1376 = vmatpush1.bf16.msra.mxu0 0
        %1377 = vmatprep.subr.bf16.mxu0 0
        %1378 = vmatpush1.bf16.msra.mxu0 0
        %1379 = vmatprep.subr.bf16.mxu0 0
        %1380 = vmatpush1.bf16.msra.mxu0 0
        %1381 = vmatprep.subr.bf16.mxu0 0
        %1382 = vmatpush1.bf16.msra.mxu0 0
        %1383 = vmatprep.subr.bf16.mxu0 0
        %1384 = vmatpush1.bf16.msra.mxu0 0
        %1385 = vmatprep.mubr.bf16.mxu0 0
        %1386 = vmatmul.mubr.bf16.gmra.mrb[0].mxu0 %v1146
        %v1387 = vpop.f32.mrb[0].mxu0
        %v1388 = vadd.f32 %v1347, %v1387
        %v1389 = vpop.f32.mrb[0].mxu0
        %v1390 = vadd.f32 %v1349, %v1389
        %v1391 = vpop.f32.mrb[0].mxu0
        %v1392 = vpop.f32.mrb[0].mxu0
        %1393 = vdwg.mxu0
        %v1398 = vcombine.low %v1265, %v1267
        %v1399 = vcombine.low %v1388, %v1390
        %v1401 = vunpack.c.l.s4 1983009808
        %v1402 = vunpack.c.0.s8 %v1401
        %v1403 = vlaneseq
        %v1404 = vshrl.u32 %v1403, 7
        %v1405 = vsub.s32 %v1402, %v1404
        %v1406 = vrot.slane %v1398, %v1405
        %v1408 = vunpack.c.l.s4 1983009808
        %v1409 = vunpack.c.0.s8 %v1408
        %v1410 = vlaneseq
        %v1411 = vshrl.u32 %v1410, 7
        %v1412 = vsub.s32 %v1409, %v1411
        %v1413 = vrot.slane %v1399, %v1412
        %v1414 = vcombine.low %v1406, %v1413
        %v1416 = vadd.f32 %v234, %v1414
        %1417 = vst [vmem:[#allocation2] sm:$0xff] %v1416
        %p1418 = scmp.eq.s32.totalorder %s17, 8
        // Predicated region
        $region45: #{cnn_forward.3} parent=39 // pred_check
          %p1419 = pneg %p1418
        $region46: #{cnn_forward.3} parent=39 // pred_check_branch
          %1421 = sbr.rel (%p1419) target = $region48
        $region47: #{cnn_forward.3} parent=39 // pred_region
          %v1422 = vld [vmem:[#allocation2] sm:$0xff]
          %v1423 = vld [vmem:[%s2] sm:$0xf]
          %v1425 = vlaneseq
          %v1426 = vshrl.u32 %v1425, 7
          %v1427 = vsub.s32 0, %v1426
          %v1428 = vrot.slane %v1423, %v1427
          %v1429 = vlaneseq
          %v1430 = vshrl.u32 %v1429, 7
          %v1431 = vsub.s32 1, %v1430
          %v1432 = vrot.slane %v1423, %v1431
          %v1433 = vlaneseq
          %v1434 = vshrl.u32 %v1433, 7
          %v1435 = vsub.s32 2, %v1434
          %v1436 = vrot.slane %v1423, %v1435
          %v1437 = vlaneseq
          %v1438 = vshrl.u32 %v1437, 7
          %v1439 = vsub.s32 3, %v1438
          %v1440 = vrot.slane %v1423, %v1439
          %v1441 = vcombine.low %v1428, %v1432
          %v1442 = vcombine.low %v1436, %v1440
          %v1444 = vunpack.c.l.s4 1983009808
          %v1445 = vunpack.c.0.s8 %v1444
          %v1446 = vlaneseq
          %v1447 = vshrl.u32 %v1446, 7
          %v1448 = vsub.s32 %v1445, %v1447
          %v1449 = vrot.slane %v1441, %v1448
          %v1451 = vunpack.c.l.s4 1983009808
          %v1452 = vunpack.c.0.s8 %v1451
          %v1453 = vlaneseq
          %v1454 = vshrl.u32 %v1453, 7
          %v1455 = vsub.s32 %v1452, %v1454
          %v1456 = vrot.slane %v1442, %v1455
          %v1457 = vcombine.low %v1449, %v1456
          %v1459 = vadd.f32 %v1422, %v1457
          %v1460 = vmax.f32 %v1459, 0.0
          %v1462 = vcombine.high %v1460, %v1460
          %v1464 = vunpack.c.l.s4 1983009808
          %v1465 = vunpack.c.0.s8 %v1464
          %v1466 = vlaneseq
          %v1467 = vshrl.u32 %v1466, 7
          %v1468 = vsub.s32 %v1465, %v1467
          %v1469 = vrot.slane %v1460, %v1468
          %v1471 = vunpack.c.l.s4 1983009808
          %v1472 = vunpack.c.0.s8 %v1471
          %v1473 = vlaneseq
          %v1474 = vshrl.u32 %v1473, 7
          %v1475 = vsub.s32 %v1472, %v1474
          %v1476 = vrot.slane %v1462, %v1475
          %v1477 = vcombine.high %v1469, %v1469
          %v1478 = vcombine.high %v1476, %v1476
          %v1483 = vpack.c.bf16 %v1469, %v1469
          %v1484 = vpack.c.bf16 %v1477, %v1477
          %v1485 = vpack.c.bf16 %v1476, %v1476
          %v1486 = vpack.c.bf16 %v1478, %v1478
          %v1487 = vld [vmem:[%s3] sm:$0xf]
          %v1488 = vld [vmem:[%s3 + $0x4] sm:$0xf]
          %v1489 = vld [vmem:[%s3 + $0x8] sm:$0xf]
          %v1490 = vld [vmem:[%s3 + $0xc] sm:$0xf]
          %v1491 = vld [vmem:[%s3 + $0x10] sm:$0xf]
          %v1492 = vld [vmem:[%s3 + $0x14] sm:$0xf]
          %v1493 = vld [vmem:[%s3 + $0x18] sm:$0xf]
          %v1494 = vld [vmem:[%s3 + $0x1c] sm:$0xf]
          %v1495 = vld [vmem:[%s3 + $0x20] sm:$0xf]
          %v1496 = vld [vmem:[%s3 + $0x24] sm:$0xf]
          %v1497 = vld [vmem:[%s3 + $0x28] sm:$0xf]
          %v1498 = vld [vmem:[%s3 + $0x2c] sm:$0xf]
          %v1499 = vld [vmem:[%s3 + $0x30] sm:$0xf]
          %v1500 = vld [vmem:[%s3 + $0x34] sm:$0xf]
          %v1501 = vld [vmem:[%s3 + $0x38] sm:$0xf]
          %v1502 = vld [vmem:[%s3 + $0x3c] sm:$0xf]
          %v1503 = vld [vmem:[%s3 + $0x40] sm:$0xf]
          %v1504 = vld [vmem:[%s3 + $0x44] sm:$0xf]
          %v1505 = vld [vmem:[%s3 + $0x48] sm:$0xf]
          %v1506 = vld [vmem:[%s3 + $0x4c] sm:$0xf]
          %v1507 = vld [vmem:[%s3 + $0x50] sm:$0xf]
          %v1508 = vld [vmem:[%s3 + $0x54] sm:$0xf]
          %v1509 = vld [vmem:[%s3 + $0x58] sm:$0xf]
          %v1510 = vld [vmem:[%s3 + $0x5c] sm:$0xf]
          %v1511 = vld [vmem:[%s3 + $0x60] sm:$0xf]
          %v1512 = vld [vmem:[%s3 + $0x64] sm:$0xf]
          %v1513 = vld [vmem:[%s3 + $0x68] sm:$0xf]
          %v1514 = vld [vmem:[%s3 + $0x6c] sm:$0xf]
          %v1515 = vld [vmem:[%s3 + $0x70] sm:$0xf]
          %v1516 = vld [vmem:[%s3 + $0x74] sm:$0xf]
          %v1517 = vld [vmem:[%s3 + $0x78] sm:$0xf]
          %v1518 = vld [vmem:[%s3 + $0x7c] sm:$0xf]
          %v1519 = vld [vmem:[%s3 + $0x80] sm:$0xf]
          %v1520 = vld [vmem:[%s3 + $0x84] sm:$0xf]
          %v1521 = vld [vmem:[%s3 + $0x88] sm:$0xf]
          %v1522 = vld [vmem:[%s3 + $0x8c] sm:$0xf]
          %v1523 = vld [vmem:[%s3 + $0x90] sm:$0xf]
          %v1524 = vld [vmem:[%s3 + $0x94] sm:$0xf]
          %v1525 = vld [vmem:[%s3 + $0x98] sm:$0xf]
          %v1526 = vld [vmem:[%s3 + $0x9c] sm:$0xf]
          %v1527 = vld [vmem:[%s3 + $0xa0] sm:$0xf]
          %v1528 = vld [vmem:[%s3 + $0xa4] sm:$0xf]
          %v1529 = vld [vmem:[%s3 + $0xa8] sm:$0xf]
          %v1530 = vld [vmem:[%s3 + $0xac] sm:$0xf]
          %v1531 = vld [vmem:[%s3 + $0xb0] sm:$0xf]
          %v1532 = vld [vmem:[%s3 + $0xb4] sm:$0xf]
          %v1533 = vld [vmem:[%s3 + $0xb8] sm:$0xf]
          %v1534 = vld [vmem:[%s3 + $0xbc] sm:$0xf]
          %v1535 = vld [vmem:[%s3 + $0xc0] sm:$0xf]
          %v1536 = vld [vmem:[%s3 + $0xc4] sm:$0xf]
          %v1537 = vld [vmem:[%s3 + $0xc8] sm:$0xf]
          %v1538 = vld [vmem:[%s3 + $0xcc] sm:$0xf]
          %v1539 = vld [vmem:[%s3 + $0xd0] sm:$0xf]
          %v1540 = vld [vmem:[%s3 + $0xd4] sm:$0xf]
          %v1541 = vld [vmem:[%s3 + $0xd8] sm:$0xf]
          %v1542 = vld [vmem:[%s3 + $0xdc] sm:$0xf]
          %v1543 = vld [vmem:[%s3 + $0xe0] sm:$0xf]
          %v1544 = vld [vmem:[%s3 + $0xe4] sm:$0xf]
          %v1545 = vld [vmem:[%s3 + $0xe8] sm:$0xf]
          %v1546 = vld [vmem:[%s3 + $0xec] sm:$0xf]
          %v1547 = vld [vmem:[%s3 + $0xf0] sm:$0xf]
          %v1548 = vld [vmem:[%s3 + $0xf4] sm:$0xf]
          %v1549 = vld [vmem:[%s3 + $0xf8] sm:$0xf]
          %v1550 = vld [vmem:[%s3 + $0xfc] sm:$0xf]
          %v1551 = vld [vmem:[%s4] sm:$0x1]
          %v1553 = vlaneseq
          %v1554 = vshrl.u32 %v1553, 7
          %v1555 = vsub.s32 0, %v1554
          %v1556 = vrot.slane %v1551, %v1555
          %v1622 = vunpack.c.l.b16 %v1487
          %v1623 = vunpack.c.l.b16 %v1488
          %v1624 = vunpack.c.l.b16 %v1489
          %v1625 = vunpack.c.l.b16 %v1490
          %v1626 = vunpack.c.l.b16 %v1491
          %v1627 = vunpack.c.l.b16 %v1492
          %v1628 = vunpack.c.l.b16 %v1493
          %v1629 = vunpack.c.l.b16 %v1494
          %v1630 = vunpack.c.l.b16 %v1495
          %v1631 = vunpack.c.l.b16 %v1496
          %v1632 = vunpack.c.l.b16 %v1497
          %v1633 = vunpack.c.l.b16 %v1498
          %v1634 = vunpack.c.l.b16 %v1499
          %v1635 = vunpack.c.l.b16 %v1500
          %v1636 = vunpack.c.l.b16 %v1501
          %v1637 = vunpack.c.l.b16 %v1502
          %v1638 = vunpack.c.l.b16 %v1503
          %v1639 = vunpack.c.l.b16 %v1504
          %v1640 = vunpack.c.l.b16 %v1505
          %v1641 = vunpack.c.l.b16 %v1506
          %v1642 = vunpack.c.l.b16 %v1507
          %v1643 = vunpack.c.l.b16 %v1508
          %v1644 = vunpack.c.l.b16 %v1509
          %v1645 = vunpack.c.l.b16 %v1510
          %v1646 = vunpack.c.l.b16 %v1511
          %v1647 = vunpack.c.l.b16 %v1512
          %v1648 = vunpack.c.l.b16 %v1513
          %v1649 = vunpack.c.l.b16 %v1514
          %v1650 = vunpack.c.l.b16 %v1515
          %v1651 = vunpack.c.l.b16 %v1516
          %v1652 = vunpack.c.l.b16 %v1517
          %v1653 = vunpack.c.l.b16 %v1518
          %v1654 = vunpack.c.l.b16 %v1519
          %v1655 = vunpack.c.l.b16 %v1520
          %v1656 = vunpack.c.l.b16 %v1521
          %v1657 = vunpack.c.l.b16 %v1522
          %v1658 = vunpack.c.l.b16 %v1523
          %v1659 = vunpack.c.l.b16 %v1524
          %v1660 = vunpack.c.l.b16 %v1525
          %v1661 = vunpack.c.l.b16 %v1526
          %v1662 = vunpack.c.l.b16 %v1527
          %v1663 = vunpack.c.l.b16 %v1528
          %v1664 = vunpack.c.l.b16 %v1529
          %v1665 = vunpack.c.l.b16 %v1530
          %v1666 = vunpack.c.l.b16 %v1531
          %v1667 = vunpack.c.l.b16 %v1532
          %v1668 = vunpack.c.l.b16 %v1533
          %v1669 = vunpack.c.l.b16 %v1534
          %v1670 = vunpack.c.l.b16 %v1535
          %v1671 = vunpack.c.l.b16 %v1536
          %v1672 = vunpack.c.l.b16 %v1537
          %v1673 = vunpack.c.l.b16 %v1538
          %v1674 = vunpack.c.l.b16 %v1539
          %v1675 = vunpack.c.l.b16 %v1540
          %v1676 = vunpack.c.l.b16 %v1541
          %v1677 = vunpack.c.l.b16 %v1542
          %v1678 = vunpack.c.l.b16 %v1543
          %v1679 = vunpack.c.l.b16 %v1544
          %v1680 = vunpack.c.l.b16 %v1545
          %v1681 = vunpack.c.l.b16 %v1546
          %v1682 = vunpack.c.l.b16 %v1547
          %v1683 = vunpack.c.l.b16 %v1548
          %v1684 = vunpack.c.l.b16 %v1549
          %v1685 = vunpack.c.l.b16 %v1550
          %v1686 = vpack.c.b16 %v1623, %v1622
          %v1687 = vpack.c.b16 %v1625, %v1624
          %v1688 = vpack.c.b16 %v1627, %v1626
          %v1689 = vpack.c.b16 %v1629, %v1628
          %v1690 = vpack.c.b16 %v1631, %v1630
          %v1691 = vpack.c.b16 %v1633, %v1632
          %v1692 = vpack.c.b16 %v1635, %v1634
          %v1693 = vpack.c.b16 %v1637, %v1636
          %v1694 = vpack.c.b16 %v1639, %v1638
          %v1695 = vpack.c.b16 %v1641, %v1640
          %v1696 = vpack.c.b16 %v1643, %v1642
          %v1697 = vpack.c.b16 %v1645, %v1644
          %v1698 = vpack.c.b16 %v1647, %v1646
          %v1699 = vpack.c.b16 %v1649, %v1648
          %v1700 = vpack.c.b16 %v1651, %v1650
          %v1701 = vpack.c.b16 %v1653, %v1652
          %v1702 = vpack.c.b16 %v1655, %v1654
          %v1703 = vpack.c.b16 %v1657, %v1656
          %v1704 = vpack.c.b16 %v1659, %v1658
          %v1705 = vpack.c.b16 %v1661, %v1660
          %v1706 = vpack.c.b16 %v1663, %v1662
          %v1707 = vpack.c.b16 %v1665, %v1664
          %v1708 = vpack.c.b16 %v1667, %v1666
          %v1709 = vpack.c.b16 %v1669, %v1668
          %v1710 = vpack.c.b16 %v1671, %v1670
          %v1711 = vpack.c.b16 %v1673, %v1672
          %v1712 = vpack.c.b16 %v1675, %v1674
          %v1713 = vpack.c.b16 %v1677, %v1676
          %v1714 = vpack.c.b16 %v1679, %v1678
          %v1715 = vpack.c.b16 %v1681, %v1680
          %v1716 = vpack.c.b16 %v1683, %v1682
          %v1717 = vpack.c.b16 %v1685, %v1684
          %1750 = vmatprep.subr.bf16.mxu0 0
          %1751 = vmatpush1.bf16.msra.mxu0 %v1686
          %1752 = vmatprep.subr.bf16.mxu0 0
          %1753 = vmatpush1.bf16.msra.mxu0 %v1687
          %1754 = vmatprep.subr.bf16.mxu0 0
          %1755 = vmatpush1.bf16.msra.mxu0 %v1688
          %1756 = vmatprep.subr.bf16.mxu0 0
          %1757 = vmatpush1.bf16.msra.mxu0 %v1689
          %1758 = vmatprep.subr.bf16.mxu0 0
          %1759 = vmatpush1.bf16.msra.mxu0 %v1690
          %1760 = vmatprep.subr.bf16.mxu0 0
          %1761 = vmatpush1.bf16.msra.mxu0 %v1691
          %1762 = vmatprep.subr.bf16.mxu0 0
          %1763 = vmatpush1.bf16.msra.mxu0 %v1692
          %1764 = vmatprep.subr.bf16.mxu0 0
          %1765 = vmatpush1.bf16.msra.mxu0 %v1693
          %1766 = vmatprep.subr.bf16.mxu0 0
          %1767 = vmatpush1.bf16.msra.mxu0 %v1694
          %1768 = vmatprep.subr.bf16.mxu0 0
          %1769 = vmatpush1.bf16.msra.mxu0 %v1695
          %1770 = vmatprep.subr.bf16.mxu0 0
          %1771 = vmatpush1.bf16.msra.mxu0 %v1696
          %1772 = vmatprep.subr.bf16.mxu0 0
          %1773 = vmatpush1.bf16.msra.mxu0 %v1697
          %1774 = vmatprep.subr.bf16.mxu0 0
          %1775 = vmatpush1.bf16.msra.mxu0 %v1698
          %1776 = vmatprep.subr.bf16.mxu0 0
          %1777 = vmatpush1.bf16.msra.mxu0 %v1699
          %1778 = vmatprep.subr.bf16.mxu0 0
          %1779 = vmatpush1.bf16.msra.mxu0 %v1700
          %1780 = vmatprep.subr.bf16.mxu0 0
          %1781 = vmatpush1.bf16.msra.mxu0 %v1701
          %1782 = vmatprep.mubr.bf16.mxu0 %v1484
          %1783 = vmatmul.mubr.bf16.gmra.mrb[0].mxu0 %v1483
          %v1784 = vpop.f32.mrb[0].mxu0
          %v1785 = vadd.f32 %v1556, %v1784
          %v1786 = vpop.f32.mrb[0].mxu0
          %v1787 = vpop.f32.mrb[0].mxu0
          %v1788 = vpop.f32.mrb[0].mxu0
          %1789 = vdwg.mxu0
          %1790 = vmatprep.subr.bf16.mxu0 0
          %1791 = vmatpush1.bf16.msra.mxu0 %v1702
          %1792 = vmatprep.subr.bf16.mxu0 0
          %1793 = vmatpush1.bf16.msra.mxu0 %v1703
          %1794 = vmatprep.subr.bf16.mxu0 0
          %1795 = vmatpush1.bf16.msra.mxu0 %v1704
          %1796 = vmatprep.subr.bf16.mxu0 0
          %1797 = vmatpush1.bf16.msra.mxu0 %v1705
          %1798 = vmatprep.subr.bf16.mxu0 0
          %1799 = vmatpush1.bf16.msra.mxu0 %v1706
          %1800 = vmatprep.subr.bf16.mxu0 0
          %1801 = vmatpush1.bf16.msra.mxu0 %v1707
          %1802 = vmatprep.subr.bf16.mxu0 0
          %1803 = vmatpush1.bf16.msra.mxu0 %v1708
          %1804 = vmatprep.subr.bf16.mxu0 0
          %1805 = vmatpush1.bf16.msra.mxu0 %v1709
          %1806 = vmatprep.subr.bf16.mxu0 0
          %1807 = vmatpush1.bf16.msra.mxu0 %v1710
          %1808 = vmatprep.subr.bf16.mxu0 0
          %1809 = vmatpush1.bf16.msra.mxu0 %v1711
          %1810 = vmatprep.subr.bf16.mxu0 0
          %1811 = vmatpush1.bf16.msra.mxu0 %v1712
          %1812 = vmatprep.subr.bf16.mxu0 0
          %1813 = vmatpush1.bf16.msra.mxu0 %v1713
          %1814 = vmatprep.subr.bf16.mxu0 0
          %1815 = vmatpush1.bf16.msra.mxu0 %v1714
          %1816 = vmatprep.subr.bf16.mxu0 0
          %1817 = vmatpush1.bf16.msra.mxu0 %v1715
          %1818 = vmatprep.subr.bf16.mxu0 0
          %1819 = vmatpush1.bf16.msra.mxu0 %v1716
          %1820 = vmatprep.subr.bf16.mxu0 0
          %1821 = vmatpush1.bf16.msra.mxu0 %v1717
          %1822 = vmatprep.mubr.bf16.mxu0 %v1486
          %1823 = vmatmul.mubr.bf16.gmra.mrb[0].mxu0 %v1485
          %v1824 = vpop.f32.mrb[0].mxu0
          %v1825 = vadd.f32 %v1785, %v1824
          %v1826 = vpop.f32.mrb[0].mxu0
          %v1827 = vpop.f32.mrb[0].mxu0
          %v1828 = vpop.f32.mrb[0].mxu0
          %1829 = vdwg.mxu0
          %vm1830 = vcmask 74752
          %v1831 = vsel %vm1830, %v1825, -inf
          %1832 = vmax.xlane.f32.xlu0 %v1831
          %v1833 = vpop.xlane.xlu0 %1832
          %v1834 = vsub.f32 %v1825, %v1833
          %v1835 = vmul.f32 %v1834, 1.442695
          %v1836 = vpow.pop %v1835
          %v1837 = vsel %vm1830, %v1836, 0.0
          %1838 = vadd.xlane.f32.xlu0 %v1837
          %v1839 = vpop.xlane.xlu0 %1838
          %v1840 = vlog2.pop %v1839
          %v1841 = vmul.f32 %v1840, 0.6931472
          %v1842 = vsub.f32 %v1834, %v1841
          %1843 = vst.msk [vmem:[#allocation3] sm:$0x3] %vm1830, %v1842
        $region48: #{cnn_forward.3} parent=39 // pred_fallthru
          _
        // Predicated region
        $region49: #{cnn_forward.3} parent=39 // pred_check
          %p1844 = pneg %p145
        $region50: #{cnn_forward.3} parent=39 // pred_check_branch
          %1846 = sbr.rel (%p1844) target = $region52
        $region51: #{cnn_forward.3} parent=39 // pred_region
          %s1848 = ssub.s32 32, 32
          %1849 = vsyncadd [#allocation4], %s1848
          %s1851 = sshll.u32 [#allocation3], 4
          %s1852 = int_to_ptr.vmem [resolvable:$true] %s1851
          %1854 = dma.vmem_to_hbm [thread:$0]  %s1852, 32, %s5, [#allocation4]
        $region52: #{cnn_forward.3} parent=39 // pred_fallthru
          _
        // Predicated region
        $region53: #{cnn_forward.3} parent=39 // pred_check
          %p1855 = pneg %p145
        $region54: #{cnn_forward.3} parent=39 // pred_check_branch
          %1857 = sbr.rel (%p1855) target = $region56
        $region55: #{cnn_forward.3} parent=39 // pred_region
          %1858 = dma.done [#allocation4], 32
        $region56: #{cnn_forward.3} parent=39 // pred_fallthru
          _
      $region40: #{cnn_forward.3} parent=5 // pred_fallthru
        _
      %p1859 = scmp.le.s32.totalorder 2, %s12
      // Predicated region
      $region57: #{cnn_forward.3} parent=5 // pred_check
        %p1860 = pneg %p1859
      $region58: #{cnn_forward.3} parent=5 // pred_check_branch
        %1862 = sbr.rel (%p1860) target = $region60
      $region59: #{cnn_forward.3} parent=5 // pred_region
        %s1863 = ssub.s32 %s12, 2
      $region60: #{cnn_forward.3} parent=5 // pred_fallthru
        _
    $region6: #{cnn_forward.3} parent=1 // loop_footer
      %s16 = sadd.s32 1, %s12
    $region7: #{cnn_forward.3} parent=1 // loop_footer_branch
      %11 = sbr.rel target = $region3
    $region8: #{cnn_forward.3} parent=1 // loop_exit
      _
    %1864 = vsyncpa [#allocation4], 1
    %s1865 = scalar_lea.sflag [#allocation4], 1
    %1866 = vsyncpa %s1865, 1

// kernel: cnn_forward.2
$region0: #{cnn_forward.2}
  #allocation0 [shape = 'u32[]', space=smem, size = 0x4, offset = 0x4, fixed_abs, tag = 'smem constant byte address 0x4 - core index']
  #allocation1 [shape = 'u32[144,128]{1,0:T(1,128)}', space=vmem, size = 0x12000, scoped, tag = 'internal scratch']
  %s0 = inlined_call_operand.vmem [shape: bf16[2,16,81,192], index: 0, kind: input, shape index: {}]
  %s1 = inlined_call_operand.vmem [shape: bf16[192,32], index: 1, kind: input, shape index: {}]
  %s2 = inlined_call_operand.vmem [shape: f32[1,32], index: 2, kind: input, shape index: {}]
  %s3 = inlined_call_operand.vmem [shape: bf16[16,32,64], index: 3, kind: input, shape index: {}]
  %s4 = inlined_call_operand.vmem [shape: f32[1,64], index: 4, kind: input, shape index: {}]
  %s5 = inlined_call_operand.vmem [shape: bf16[2,81,64], index: 5, kind: output, shape index: {}]
  %s6 = sld [smem:[#allocation0]]
  $region53: #{cnn_forward.2} parent=0
    _
  %s8 = ssub.s32 1, %s6
  %s9 = scalar_select 0, %s8, %s6
  loop: start=0, step=1, limit=4
  $region2: #{cnn_forward.2} parent=0 // loop_pre_header
    _
  $region3: #{cnn_forward.2} parent=0 // loop_header
    %s11 = sphi 0, %s15
    %p12 = scmp.ge.s32.totalorder %s11, 4
    %s21 = sphi 0, %s23
    %s24 = sphi 0, %s21
    %s25 = sphi 0, %s24
    %s41 = sphi 0, %s25
    %s45 = sphi 0, %s45
    %s47 = sphi 0, %s45
    %s48 = sphi 0, %s47
    %s62 = sphi 0, %s48
    %s66 = sphi 0, %s66
    %s68 = sphi 0, %s66
    %s69 = sphi 0, %s68
    %s83 = sphi 0, %s69
    %s87 = sphi 0, %s87
    %s89 = sphi 0, %s87
    %s90 = sphi 0, %s89
    %s104 = sphi 0, %s90
    %s108 = sphi 0, %s108
    %s110 = sphi 0, %s108
    %s111 = sphi 0, %s110
    %s125 = sphi 0, %s111
    %s131 = sphi 0, %s133
    %s134 = sphi 0, %s131
    %s135 = sphi 0, %s134
    %s151 = sphi 0, %s135
  $region4: #{cnn_forward.2} parent=0 // loop_header_branch
    %14 = sbr.rel (%p12) target = $region8
  $region5: #{cnn_forward.2} parent=0 // loop_body
    %s16 = ssub.s32 %s11, 1
    %s17 = ssub.s32 %s11, 2
    %s18 = sadd.s32 %s11, 1
    %s19 = ssub.s32 %s11, %s18
    %p20 = scmp.eq.s32.totalorder %s19, 0
    %s22 = sadd.s32 %s21, 1
    %s23 = scalar_select %p20, %s21, %s22
    %p26 = pneg %p20
    %p27 = scmp.eq.s32.totalorder %s11, 1
    %p28 = por %p26, %p27
    %p29 = scmp.ne.s32.totalorder %s21, %s24
    %p30 = scmp.eq.s32.totalorder %s11, 0
    %p31 = por %p29, %p30
    %p32 = scmp.ne.s32.totalorder %s21, %s24
    %p33 = scmp.eq.s32.totalorder %s16, 1
    %p34 = por %p32, %p33
    %p35 = scmp.ne.s32.totalorder %s24, %s25
    %p36 = scmp.eq.s32.totalorder %s16, 0
    %p37 = por %p35, %p36
    %p38 = scmp.ne.s32.totalorder %s24, %s25
    %p39 = scmp.eq.s32.totalorder %s17, 1
    %p40 = por %p38, %p39
    %p42 = scmp.ne.s32.totalorder %s25, %s41
    %p43 = scmp.eq.s32.totalorder %s17, 0
    %p44 = por %p42, %p43
    %s46 = sadd.s32 %s45, 1
    %p49 = scmp.eq.s32.totalorder %s11, 1
    %p50 = scmp.ne.s32.totalorder %s45, %s47
    %p51 = scmp.eq.s32.totalorder %s11, 0
    %p52 = por %p50, %p51
    %p53 = scmp.ne.s32.totalorder %s45, %s47
    %p54 = scmp.eq.s32.totalorder %s16, 1
    %p55 = por %p53, %p54
    %p56 = scmp.ne.s32.totalorder %s47, %s48
    %p57 = scmp.eq.s32.totalorder %s16, 0
    %p58 = por %p56, %p57
    %p59 = scmp.ne.s32.totalorder %s47, %s48
    %p60 = scmp.eq.s32.totalorder %s17, 1
    %p61 = por %p59, %p60
    %p63 = scmp.ne.s32.totalorder %s48, %s62
    %p64 = scmp.eq.s32.totalorder %s17, 0
    %p65 = por %p63, %p64
    %s67 = sadd.s32 %s66, 1
    %p70 = scmp.eq.s32.totalorder %s11, 1
    %p71 = scmp.ne.s32.totalorder %s66, %s68
    %p72 = scmp.eq.s32.totalorder %s11, 0
    %p73 = por %p71, %p72
    %p74 = scmp.ne.s32.totalorder %s66, %s68
    %p75 = scmp.eq.s32.totalorder %s16, 1
    %p76 = por %p74, %p75
    %p77 = scmp.ne.s32.totalorder %s68, %s69
    %p78 = scmp.eq.s32.totalorder %s16, 0
    %p79 = por %p77, %p78
    %p80 = scmp.ne.s32.totalorder %s68, %s69
    %p81 = scmp.eq.s32.totalorder %s17, 1
    %p82 = por %p80, %p81
    %p84 = scmp.ne.s32.totalorder %s69, %s83
    %p85 = scmp.eq.s32.totalorder %s17, 0
    %p86 = por %p84, %p85
    %s88 = sadd.s32 %s87, 1
    %p91 = scmp.eq.s32.totalorder %s11, 1
    %p92 = scmp.ne.s32.totalorder %s87, %s89
    %p93 = scmp.eq.s32.totalorder %s11, 0
    %p94 = por %p92, %p93
    %p95 = scmp.ne.s32.totalorder %s87, %s89
    %p96 = scmp.eq.s32.totalorder %s16, 1
    %p97 = por %p95, %p96
    %p98 = scmp.ne.s32.totalorder %s89, %s90
    %p99 = scmp.eq.s32.totalorder %s16, 0
    %p100 = por %p98, %p99
    %p101 = scmp.ne.s32.totalorder %s89, %s90
    %p102 = scmp.eq.s32.totalorder %s17, 1
    %p103 = por %p101, %p102
    %p105 = scmp.ne.s32.totalorder %s90, %s104
    %p106 = scmp.eq.s32.totalorder %s17, 0
    %p107 = por %p105, %p106
    %s109 = sadd.s32 %s108, 1
    %p112 = scmp.eq.s32.totalorder %s11, 1
    %p113 = scmp.ne.s32.totalorder %s108, %s110
    %p114 = scmp.eq.s32.totalorder %s11, 0
    %p115 = por %p113, %p114
    %p116 = scmp.ne.s32.totalorder %s108, %s110
    %p117 = scmp.eq.s32.totalorder %s16, 1
    %p118 = por %p116, %p117
    %p119 = scmp.ne.s32.totalorder %s110, %s111
    %p120 = scmp.eq.s32.totalorder %s16, 0
    %p121 = por %p119, %p120
    %p122 = scmp.ne.s32.totalorder %s110, %s111
    %p123 = scmp.eq.s32.totalorder %s17, 1
    %p124 = por %p122, %p123
    %p126 = scmp.ne.s32.totalorder %s111, %s125
    %p127 = scmp.eq.s32.totalorder %s17, 0
    %p128 = por %p126, %p127
    %s129 = ssub.s32 %s11, %s18
    %p130 = scmp.eq.s32.totalorder %s129, 0
    %s132 = sadd.s32 %s131, 1
    %s133 = scalar_select %p130, %s131, %s132
    %p136 = pneg %p130
    %p137 = scmp.eq.s32.totalorder %s11, 1
    %p138 = por %p136, %p137
    %p139 = scmp.ne.s32.totalorder %s131, %s134
    %p140 = scmp.eq.s32.totalorder %s11, 0
    %p141 = por %p139, %p140
    %p142 = scmp.ne.s32.totalorder %s131, %s134
    %p143 = scmp.eq.s32.totalorder %s16, 1
    %p144 = por %p142, %p143
    %p145 = scmp.ne.s32.totalorder %s134, %s135
    %p146 = scmp.eq.s32.totalorder %s16, 0
    %p147 = por %p145, %p146
    %p148 = scmp.ne.s32.totalorder %s134, %s135
    %p149 = scmp.eq.s32.totalorder %s17, 1
    %p150 = por %p148, %p149
    %p152 = scmp.ne.s32.totalorder %s135, %s151
    %p153 = scmp.eq.s32.totalorder %s17, 0
    %p154 = por %p152, %p153
    %p155 = scmp.le.s32.totalorder 1, %s11
    %p156 = scmp.lt.s32.totalorder %s11, 3
    %p157 = pnand %p155, %p156
    %p158 = pneg %p157
    // Predicated region
    $region9: #{cnn_forward.2} parent=5 // pred_check
      _
    $region10: #{cnn_forward.2} parent=5 // pred_check_branch
      %160 = sbr.rel (%p157) target = $region12
    $region11: #{cnn_forward.2} parent=5 // pred_region
      %s161 = ssub.s32 %s11, 1
      // Predicated region
      $region13: #{cnn_forward.2} parent=11 // pred_check
        %p162 = pneg %p58
      $region14: #{cnn_forward.2} parent=11 // pred_check_branch
        %164 = sbr.rel (%p162) target = $region16
      $region15: #{cnn_forward.2} parent=11 // pred_region
        _
      $region16: #{cnn_forward.2} parent=11 // pred_fallthru
        _
      // Predicated region
      $region17: #{cnn_forward.2} parent=11 // pred_check
        %p165 = pneg %p79
      $region18: #{cnn_forward.2} parent=11 // pred_check_branch
        %167 = sbr.rel (%p165) target = $region20
      $region19: #{cnn_forward.2} parent=11 // pred_region
        _
      $region20: #{cnn_forward.2} parent=11 // pred_fallthru
        _
      // Predicated region
      $region21: #{cnn_forward.2} parent=11 // pred_check
        %p168 = pneg %p100
      $region22: #{cnn_forward.2} parent=11 // pred_check_branch
        %170 = sbr.rel (%p168) target = $region24
      $region23: #{cnn_forward.2} parent=11 // pred_region
        _
      $region24: #{cnn_forward.2} parent=11 // pred_fallthru
        _
      // Predicated region
      $region25: #{cnn_forward.2} parent=11 // pred_check
        %p171 = pneg %p121
      $region26: #{cnn_forward.2} parent=11 // pred_check_branch
        %173 = sbr.rel (%p171) target = $region28
      $region27: #{cnn_forward.2} parent=11 // pred_region
        _
      $region28: #{cnn_forward.2} parent=11 // pred_fallthru
        _
    $region12: #{cnn_forward.2} parent=5 // pred_fallthru
      _
    %p174 = scmp.lt.s32.totalorder %s11, 2
    // Predicated region
    $region29: #{cnn_forward.2} parent=5 // pred_check
      %p175 = pneg %p174
    $region30: #{cnn_forward.2} parent=5 // pred_check_branch
      %177 = sbr.rel (%p175) target = $region32
    $region31: #{cnn_forward.2} parent=5 // pred_region
      // Predicated region
      $region33: #{cnn_forward.2} parent=31 // pred_check
        %p178 = pneg %p31
      $region34: #{cnn_forward.2} parent=31 // pred_check_branch
        %180 = sbr.rel (%p178) target = $region36
      $region35: #{cnn_forward.2} parent=31 // pred_region
        %p181 = scmp.lt.s32.totalorder %s11, 1
        %s182 = scalar_select %p181, %s11, 1
        %s183 = smul.addr %s182, 352
        %s184 = smul.addr %s183, 4
        %s185 = scalar_lea.vmem %s0, %s184
      $region36: #{cnn_forward.2} parent=31 // pred_fallthru
        _
    $region32: #{cnn_forward.2} parent=5 // pred_fallthru
      _
    %p186 = scmp.le.s32.totalorder 1, %s11
    %p187 = scmp.lt.s32.totalorder %s11, 3
    %p188 = pnand %p186, %p187
    %p189 = pneg %p188
    // Predicated region
    $region37: #{cnn_forward.2} parent=5 // pred_check
      _
    $region38: #{cnn_forward.2} parent=5 // pred_check_branch
      %191 = sbr.rel (%p188) target = $region40
    $region39: #{cnn_forward.2} parent=5 // pred_region
      %s192 = ssub.s32 %s11, 1
      %p193 = scmp.lt.s32.totalorder %s16, 1
      %s194 = scalar_select %p193, %s16, 1
      %s195 = smul.addr %s194, 352
      %s196 = smul.addr %s195, 4
      %s197 = scalar_lea.vmem %s0, %s196
      %p198 = pneg %p37
      %p199 = pneg %p34
      %p200 = pneg %p58
      %p201 = pneg %p55
      %p202 = pneg %p79
      %p203 = pneg %p76
      %p204 = pneg %p100
      %p205 = pneg %p97
      %p206 = pneg %p121
      %p207 = pneg %p118
      %p208 = pneg %p147
      %p209 = pneg %p144
      %p210 = scmp.lt.s32.totalorder %s16, 1
      %s211 = scalar_select %p210, %s16, 1
      %s212 = smul.addr %s211, 11
      %s213 = smul.addr %s212, 4
      %s214 = scalar_lea.vmem %s5, %s213
      %p215 = scmp.lt.s32.totalorder %s16, 1
      %s216 = scalar_select %p215, %s16, 1
      %s217 = smul.addr %s216, 352
      %s218 = smul.addr %s217, 4
      %s219 = scalar_lea.vmem %s0, %s218
      %p220 = scmp.lt.s32.totalorder %s16, 1
      %s221 = scalar_select %p220, %s16, 1
      %s222 = smul.addr %s221, 11
      %s223 = smul.addr %s222, 4
      %s224 = scalar_lea.vmem %s5, %s223
      %v226 = vld [vmem:[%s219] sm:$0xff]
      %v227 = vld [vmem:[%s219 + $0x8] sm:$0xff]
      %v228 = vld [vmem:[%s219 + $0x10] sm:$0xff]
      %v229 = vld [vmem:[%s219 + $0x18] sm:$0xff]
      %v230 = vld [vmem:[%s219 + $0x20] sm:$0xff]
      %v231 = vld [vmem:[%s219 + $0x28] sm:$0xff]
      %v232 = vld [vmem:[%s219 + $0x30] sm:$0xff]
      %v233 = vld [vmem:[%s219 + $0x38] sm:$0xff]
      %v234 = vld [vmem:[%s219 + $0x40] sm:$0xff]
      %v235 = vld [vmem:[%s219 + $0x48] sm:$0xff]
      %v236 = vld [vmem:[%s219 + $0x50] sm:$0x11]
      %v237 = vld [vmem:[%s1] sm:$0xf]
      %v238 = vld [vmem:[%s1 + $0x4] sm:$0xf]
      %v239 = vld [vmem:[%s1 + $0x8] sm:$0xf]
      %v240 = vld [vmem:[%s1 + $0xc] sm:$0xf]
      %v241 = vld [vmem:[%s1 + $0x10] sm:$0xf]
      %v242 = vld [vmem:[%s1 + $0x14] sm:$0xf]
      %v243 = vld [vmem:[%s1 + $0x18] sm:$0xf]
      %v244 = vld [vmem:[%s1 + $0x1c] sm:$0xf]
      %v245 = vld [vmem:[%s1 + $0x20] sm:$0xf]
      %v246 = vld [vmem:[%s1 + $0x24] sm:$0xf]
      %v247 = vld [vmem:[%s1 + $0x28] sm:$0xf]
      %v248 = vld [vmem:[%s1 + $0x2c] sm:$0xf]
      %v249 = vld [vmem:[%s1 + $0x30] sm:$0xf]
      %v250 = vld [vmem:[%s1 + $0x34] sm:$0xf]
      %v251 = vld [vmem:[%s1 + $0x38] sm:$0xf]
      %v252 = vld [vmem:[%s1 + $0x3c] sm:$0xf]
      %v253 = vld [vmem:[%s1 + $0x40] sm:$0xf]
      %v254 = vld [vmem:[%s1 + $0x44] sm:$0xf]
      %v255 = vld [vmem:[%s1 + $0x48] sm:$0xf]
      %v256 = vld [vmem:[%s1 + $0x4c] sm:$0xf]
      %v257 = vld [vmem:[%s1 + $0x50] sm:$0xf]
      %v258 = vld [vmem:[%s1 + $0x54] sm:$0xf]
      %v259 = vld [vmem:[%s1 + $0x58] sm:$0xf]
      %v260 = vld [vmem:[%s1 + $0x5c] sm:$0xf]
      %v261 = vld [vmem:[%s2] sm:$0x1]
      %v263 = vlaneseq
      %v264 = vshrl.u32 %v263, 7
      %v265 = vsub.s32 0, %v264
      %v266 = vrot.slane %v261, %v265
      %v279 = vunpack.c.l.b16 %v226
      %v280 = vunpack.c.h.b16 %v226
      %v281 = vunpack.c.l.b16 %v227
      %v282 = vunpack.c.h.b16 %v227
      %v283 = vunpack.c.l.b16 %v228
      %v284 = vunpack.c.h.b16 %v228
      %v285 = vunpack.c.l.b16 %v229
      %v286 = vunpack.c.h.b16 %v229
      %v287 = vunpack.c.l.b16 %v230
      %v288 = vunpack.c.h.b16 %v230
      %v289 = vunpack.c.l.b16 %v231
      %v290 = vunpack.c.h.b16 %v231
      %v291 = vunpack.c.l.b16 %v232
      %v292 = vunpack.c.h.b16 %v232
      %v293 = vunpack.c.l.b16 %v233
      %v294 = vunpack.c.h.b16 %v233
      %v295 = vunpack.c.l.b16 %v234
      %v296 = vunpack.c.h.b16 %v234
      %v297 = vunpack.c.l.b16 %v235
      %v298 = vunpack.c.h.b16 %v235
      %v299 = vunpack.c.l.b16 %v236
      %v300 = vunpack.c.h.b16 %v236
      %v301 = vpack.c.b16 %v281, %v279
      %v302 = vpack.c.b16 %v282, %v280
      %v303 = vpack.c.b16 %v285, %v283
      %v304 = vpack.c.b16 %v286, %v284
      %v305 = vpack.c.b16 %v289, %v287
      %v306 = vpack.c.b16 %v290, %v288
      %v307 = vpack.c.b16 %v293, %v291
      %v308 = vpack.c.b16 %v294, %v292
      %v309 = vpack.c.b16 %v297, %v295
      %v310 = vpack.c.b16 %v298, %v296
      %v311 = vpack.c.b16 %v299, %v299
      %v312 = vpack.c.b16 %v300, %v300
      %v343 = vunpack.c.l.b16 %v237
      %v344 = vunpack.c.l.b16 %v238
      %v345 = vunpack.c.l.b16 %v239
      %v346 = vunpack.c.l.b16 %v240
      %v347 = vunpack.c.l.b16 %v241
      %v348 = vunpack.c.l.b16 %v242
      %v349 = vunpack.c.l.b16 %v243
      %v350 = vunpack.c.l.b16 %v244
      %v351 = vunpack.c.l.b16 %v245
      %v352 = vunpack.c.l.b16 %v246
      %v353 = vunpack.c.l.b16 %v247
      %v354 = vunpack.c.l.b16 %v248
      %v355 = vunpack.c.l.b16 %v249
      %v356 = vunpack.c.l.b16 %v250
      %v357 = vunpack.c.l.b16 %v251
      %v358 = vunpack.c.l.b16 %v252
      %v359 = vunpack.c.l.b16 %v253
      %v360 = vunpack.c.l.b16 %v254
      %v361 = vunpack.c.l.b16 %v255
      %v362 = vunpack.c.l.b16 %v256
      %v363 = vunpack.c.l.b16 %v257
      %v364 = vunpack.c.l.b16 %v258
      %v365 = vunpack.c.l.b16 %v259
      %v366 = vunpack.c.l.b16 %v260
      %v367 = vpack.c.b16 %v344, %v343
      %v368 = vpack.c.b16 %v346, %v345
      %v369 = vpack.c.b16 %v348, %v347
      %v370 = vpack.c.b16 %v350, %v349
      %v371 = vpack.c.b16 %v352, %v351
      %v372 = vpack.c.b16 %v354, %v353
      %v373 = vpack.c.b16 %v356, %v355
      %v374 = vpack.c.b16 %v358, %v357
      %v375 = vpack.c.b16 %v360, %v359
      %v376 = vpack.c.b16 %v362, %v361
      %v377 = vpack.c.b16 %v364, %v363
      %v378 = vpack.c.b16 %v366, %v365
      %vm391 = vcmask 523264
      %v393 = vsel %vm391, %v302, 0
      %v396 = vsel %vm391, %v304, 0
      %v399 = vsel %vm391, %v306, 0
      %v402 = vsel %vm391, %v308, 0
      %v405 = vsel %vm391, %v310, 0
      %v408 = vsel %vm391, %v312, 0
      %410 = vmatprep.subr.bf16.mxu0 0
      %411 = vmatpush1.bf16.msra.mxu0 %v367
      %412 = vmatprep.subr.bf16.mxu0 0
      %413 = vmatpush1.bf16.msra.mxu0 %v368
      %414 = vmatprep.subr.bf16.mxu0 0
      %415 = vmatpush1.bf16.msra.mxu0 %v369
      %416 = vmatprep.subr.bf16.mxu0 0
      %417 = vmatpush1.bf16.msra.mxu0 %v370
      %418 = vmatprep.subr.bf16.mxu0 0
      %419 = vmatpush1.bf16.msra.mxu0 %v371
      %420 = vmatprep.subr.bf16.mxu0 0
      %421 = vmatpush1.bf16.msra.mxu0 %v372
      %422 = vmatprep.subr.bf16.mxu0 0
      %423 = vmatpush1.bf16.msra.mxu0 %v373
      %424 = vmatprep.subr.bf16.mxu0 0
      %425 = vmatpush1.bf16.msra.mxu0 %v374
      %426 = vmatprep.subr.bf16.mxu0 0
      %427 = vmatpush1.bf16.msra.mxu0 %v375
      %428 = vmatprep.subr.bf16.mxu0 0
      %429 = vmatpush1.bf16.msra.mxu0 %v376
      %430 = vmatprep.subr.bf16.mxu0 0
      %431 = vmatpush1.bf16.msra.mxu0 %v377
      %432 = vmatprep.subr.bf16.mxu0 0
      %433 = vmatpush1.bf16.msra.mxu0 %v378
      %434 = vmatprep.subr.bf16.mxu0 0
      %435 = vmatpush1.bf16.msra.mxu0 0
      %436 = vmatprep.subr.bf16.mxu0 0
      %437 = vmatpush1.bf16.msra.mxu0 0
      %438 = vmatprep.subr.bf16.mxu0 0
      %439 = vmatpush1.bf16.msra.mxu0 0
      %440 = vmatprep.subr.bf16.mxu0 0
      %441 = vmatpush1.bf16.msra.mxu0 0
      %442 = vmatprep.mubr.bf16.mxu0 %v393
      %443 = vmatmul.mubr.bf16.gmra.mrb[0].mxu0 %v301
      %v444 = vpop.f32.mrb[0].mxu0
      %v445 = vadd.f32 %v266, %v444
      %v446 = vpop.f32.mrb[0].mxu0
      %v447 = vpop.f32.mrb[0].mxu0
      %v448 = vadd.f32 %v266, %v447
      %v449 = vpop.f32.mrb[0].mxu0
      %450 = vmatprep.mubr.bf16.mxu0 %v396
      %451 = vmatmul.mubr.bf16.gmra.mrb[0].mxu0 %v303
      %v452 = vpop.f32.mrb[0].mxu0
      %v453 = vadd.f32 %v266, %v452
      %v454 = vpop.f32.mrb[0].mxu0
      %v455 = vpop.f32.mrb[0].mxu0
      %v456 = vadd.f32 %v266, %v455
      %v457 = vpop.f32.mrb[0].mxu0
      %458 = vmatprep.mubr.bf16.mxu0 %v399
      %459 = vmatmul.mubr.bf16.gmra.mrb[0].mxu0 %v305
      %v460 = vpop.f32.mrb[0].mxu0
      %v461 = vadd.f32 %v266, %v460
      %v462 = vpop.f32.mrb[0].mxu0
      %v463 = vpop.f32.mrb[0].mxu0
      %v464 = vadd.f32 %v266, %v463
      %v465 = vpop.f32.mrb[0].mxu0
      %466 = vmatprep.mubr.bf16.mxu0 %v402
      %467 = vmatmul.mubr.bf16.gmra.mrb[0].mxu0 %v307
      %v468 = vpop.f32.mrb[0].mxu0
      %v469 = vadd.f32 %v266, %v468
      %v470 = vpop.f32.mrb[0].mxu0
      %v471 = vpop.f32.mrb[0].mxu0
      %v472 = vadd.f32 %v266, %v471
      %v473 = vpop.f32.mrb[0].mxu0
      %474 = vmatprep.mubr.bf16.mxu0 %v405
      %475 = vmatmul.mubr.bf16.gmra.mrb[0].mxu0 %v309
      %v476 = vpop.f32.mrb[0].mxu0
      %v477 = vadd.f32 %v266, %v476
      %v478 = vpop.f32.mrb[0].mxu0
      %v479 = vpop.f32.mrb[0].mxu0
      %v480 = vadd.f32 %v266, %v479
      %v481 = vpop.f32.mrb[0].mxu0
      %482 = vmatprep.mubr.bf16.mxu0 %v408
      %483 = vmatmul.mubr.bf16.gmra.mrb[0].mxu0 %v311
      %v484 = vpop.f32.mrb[0].mxu0
      %v485 = vadd.f32 %v266, %v484
      %v486 = vpop.f32.mrb[0].mxu0
      %v487 = vpop.f32.mrb[0].mxu0
      %v488 = vpop.f32.mrb[0].mxu0
      %489 = vdwg.mxu0
      %v490 = vmax.f32 %v445, 0.0
      %v491 = vmax.f32 %v448, 0.0
      %v492 = vmax.f32 %v453, 0.0
      %v493 = vmax.f32 %v456, 0.0
      %v494 = vmax.f32 %v461, 0.0
      %v495 = vmax.f32 %v464, 0.0
      %v496 = vmax.f32 %v469, 0.0
      %v497 = vmax.f32 %v472, 0.0
      %v498 = vmax.f32 %v477, 0.0
      %v499 = vmax.f32 %v480, 0.0
      %v500 = vmax.f32 %v485, 0.0
      %v501 = vpack.c.bf16 %v491, %v490
      %v502 = vpack.c.bf16 %v493, %v492
      %v503 = vpack.c.bf16 %v495, %v494
      %v504 = vpack.c.bf16 %v497, %v496
      %v505 = vpack.c.bf16 %v499, %v498
      %v506 = vpack.c.bf16 %v500, %v500
      %v507 = vld [vmem:[%s3] sm:$0xf]
      %v508 = vld [vmem:[%s3 + $0x4] sm:$0xf]
      %v509 = vld [vmem:[%s3 + $0x8] sm:$0xf]
      %v510 = vld [vmem:[%s3 + $0xc] sm:$0xf]
      %s511 = scalar_lea.vmem %s219, 88
      %v512 = vld [vmem:[%s511] sm:$0xff]
      %v513 = vld [vmem:[%s511 + $0x8] sm:$0xff]
      %v514 = vld [vmem:[%s511 + $0x10] sm:$0xff]
      %v515 = vld [vmem:[%s511 + $0x18] sm:$0xff]
      %v516 = vld [vmem:[%s511 + $0x20] sm:$0xff]
      %v517 = vld [vmem:[%s511 + $0x28] sm:$0xff]
      %v518 = vld [vmem:[%s511 + $0x30] sm:$0xff]
      %v519 = vld [vmem:[%s511 + $0x38] sm:$0xff]
      %v520 = vld [vmem:[%s511 + $0x40] sm:$0xff]
      %v521 = vld [vmem:[%s511 + $0x48] sm:$0xff]
      %v522 = vld [vmem:[%s511 + $0x50] sm:$0x11]
      %v534 = vunpack.c.l.b16 %v512
      %v535 = vunpack.c.h.b16 %v512
      %v536 = vunpack.c.l.b16 %v513
      %v537 = vunpack.c.h.b16 %v513
      %v538 = vunpack.c.l.b16 %v514
      %v539 = vunpack.c.h.b16 %v514
      %v540 = vunpack.c.l.b16 %v515
      %v541 = vunpack.c.h.b16 %v515
      %v542 = vunpack.c.l.b16 %v516
      %v543 = vunpack.c.h.b16 %v516
      %v544 = vunpack.c.l.b16 %v517
      %v545 = vunpack.c.h.b16 %v517
      %v546 = vunpack.c.l.b16 %v518
      %v547 = vunpack.c.h.b16 %v518
      %v548 = vunpack.c.l.b16 %v519
      %v549 = vunpack.c.h.b16 %v519
      %v550 = vunpack.c.l.b16 %v520
      %v551 = vunpack.c.h.b16 %v520
      %v552 = vunpack.c.l.b16 %v521
      %v553 = vunpack.c.h.b16 %v521
      %v554 = vunpack.c.l.b16 %v522
      %v555 = vunpack.c.h.b16 %v522
      %v556 = vpack.c.b16 %v536, %v534
      %v557 = vpack.c.b16 %v537, %v535
      %v558 = vpack.c.b16 %v540, %v538
      %v559 = vpack.c.b16 %v541, %v539
      %v560 = vpack.c.b16 %v544, %v542
      %v561 = vpack.c.b16 %v545, %v543
      %v562 = vpack.c.b16 %v548, %v546
      %v563 = vpack.c.b16 %v549, %v547
      %v564 = vpack.c.b16 %v552, %v550
      %v565 = vpack.c.b16 %v553, %v551
      %v566 = vpack.c.b16 %v554, %v554
      %v567 = vpack.c.b16 %v555, %v555
      %v575 = vsel %vm391, %v557, 0
      %v578 = vsel %vm391, %v559, 0
      %v581 = vsel %vm391, %v561, 0
      %v584 = vsel %vm391, %v563, 0
      %v587 = vsel %vm391, %v565, 0
      %v590 = vsel %vm391, %v567, 0
      %592 = vmatprep.subr.bf16.mxu0 0
      %593 = vmatpush1.bf16.msra.mxu0 %v367
      %594 = vmatprep.subr.bf16.mxu0 0
      %595 = vmatpush1.bf16.msra.mxu0 %v368
      %596 = vmatprep.subr.bf16.mxu0 0
      %597 = vmatpush1.bf16.msra.mxu0 %v369
      %598 = vmatprep.subr.bf16.mxu0 0
      %599 = vmatpush1.bf16.msra.mxu0 %v370
      %600 = vmatprep.subr.bf16.mxu0 0
      %601 = vmatpush1.bf16.msra.mxu0 %v371
      %602 = vmatprep.subr.bf16.mxu0 0
      %603 = vmatpush1.bf16.msra.mxu0 %v372
      %604 = vmatprep.subr.bf16.mxu0 0
      %605 = vmatpush1.bf16.msra.mxu0 %v373
      %606 = vmatprep.subr.bf16.mxu0 0
      %607 = vmatpush1.bf16.msra.mxu0 %v374
      %608 = vmatprep.subr.bf16.mxu0 0
      %609 = vmatpush1.bf16.msra.mxu0 %v375
      %610 = vmatprep.subr.bf16.mxu0 0
      %611 = vmatpush1.bf16.msra.mxu0 %v376
      %612 = vmatprep.subr.bf16.mxu0 0
      %613 = vmatpush1.bf16.msra.mxu0 %v377
      %614 = vmatprep.subr.bf16.mxu0 0
      %615 = vmatpush1.bf16.msra.mxu0 %v378
      %616 = vmatprep.subr.bf16.mxu0 0
      %617 = vmatpush1.bf16.msra.mxu0 0
      %618 = vmatprep.subr.bf16.mxu0 0
      %619 = vmatpush1.bf16.msra.mxu0 0
      %620 = vmatprep.subr.bf16.mxu0 0
      %621 = vmatpush1.bf16.msra.mxu0 0
      %622 = vmatprep.subr.bf16.mxu0 0
      %623 = vmatpush1.bf16.msra.mxu0 0
      %624 = vmatprep.mubr.bf16.mxu0 %v575
      %625 = vmatmul.mubr.bf16.gmra.mrb[0].mxu0 %v556
      %v626 = vpop.f32.mrb[0].mxu0
      %v627 = vadd.f32 %v266, %v626
      %v628 = vpop.f32.mrb[0].mxu0
      %v629 = vpop.f32.mrb[0].mxu0
      %v630 = vadd.f32 %v266, %v629
      %v631 = vpop.f32.mrb[0].mxu0
      %632 = vmatprep.mubr.bf16.mxu0 %v578
      %633 = vmatmul.mubr.bf16.gmra.mrb[0].mxu0 %v558
      %v634 = vpop.f32.mrb[0].mxu0
      %v635 = vadd.f32 %v266, %v634
      %v636 = vpop.f32.mrb[0].mxu0
      %v637 = vpop.f32.mrb[0].mxu0
      %v638 = vadd.f32 %v266, %v637
      %v639 = vpop.f32.mrb[0].mxu0
      %640 = vmatprep.mubr.bf16.mxu0 %v581
      %641 = vmatmul.mubr.bf16.gmra.mrb[0].mxu0 %v560
      %v642 = vpop.f32.mrb[0].mxu0
      %v643 = vadd.f32 %v266, %v642
      %v644 = vpop.f32.mrb[0].mxu0
      %v645 = vpop.f32.mrb[0].mxu0
      %v646 = vadd.f32 %v266, %v645
      %v647 = vpop.f32.mrb[0].mxu0
      %648 = vmatprep.mubr.bf16.mxu0 %v584
      %649 = vmatmul.mubr.bf16.gmra.mrb[0].mxu0 %v562
      %v650 = vpop.f32.mrb[0].mxu0
      %v651 = vadd.f32 %v266, %v650
      %v652 = vpop.f32.mrb[0].mxu0
      %v653 = vpop.f32.mrb[0].mxu0
      %v654 = vadd.f32 %v266, %v653
      %v655 = vpop.f32.mrb[0].mxu0
      %656 = vmatprep.mubr.bf16.mxu0 %v587
      %657 = vmatmul.mubr.bf16.gmra.mrb[0].mxu0 %v564
      %v658 = vpop.f32.mrb[0].mxu0
      %v659 = vadd.f32 %v266, %v658
      %v660 = vpop.f32.mrb[0].mxu0
      %v661 = vpop.f32.mrb[0].mxu0
      %v662 = vadd.f32 %v266, %v661
      %v663 = vpop.f32.mrb[0].mxu0
      %664 = vmatprep.mubr.bf16.mxu0 %v590
      %665 = vmatmul.mubr.bf16.gmra.mrb[0].mxu0 %v566
      %v666 = vpop.f32.mrb[0].mxu0
      %v667 = vadd.f32 %v266, %v666
      %v668 = vpop.f32.mrb[0].mxu0
      %v669 = vpop.f32.mrb[0].mxu0
      %v670 = vpop.f32.mrb[0].mxu0
      %671 = vdwg.mxu0
      %v672 = vmax.f32 %v627, 0.0
      %v673 = vmax.f32 %v630, 0.0
      %v674 = vmax.f32 %v635, 0.0
      %v675 = vmax.f32 %v638, 0.0
      %v676 = vmax.f32 %v643, 0.0
      %v677 = vmax.f32 %v646, 0.0
      %v678 = vmax.f32 %v651, 0.0
      %v679 = vmax.f32 %v654, 0.0
      %v680 = vmax.f32 %v659, 0.0
      %v681 = vmax.f32 %v662, 0.0
      %v682 = vmax.f32 %v667, 0.0
      %v683 = vpack.c.bf16 %v673, %v672
      %v684 = vpack.c.bf16 %v675, %v674
      %v685 = vpack.c.bf16 %v677, %v676
      %v686 = vpack.c.bf16 %v679, %v678
      %v687 = vpack.c.bf16 %v681, %v680
      %v688 = vpack.c.bf16 %v682, %v682
      %s689 = scalar_lea.vmem %s3, 16
      %v690 = vld [vmem:[%s689] sm:$0xf]
      %v691 = vld [vmem:[%s689 + $0x4] sm:$0xf]
      %v692 = vld [vmem:[%s689 + $0x8] sm:$0xf]
      %v693 = vld [vmem:[%s689 + $0xc] sm:$0xf]
      %v698 = vunpack.c.l.b16 %v690
      %v699 = vunpack.c.l.b16 %v691
      %v700 = vunpack.c.l.b16 %v692
      %v701 = vunpack.c.l.b16 %v693
      %v702 = vpack.c.b16 %v699, %v698
      %v703 = vpack.c.b16 %v701, %v700
      %vm706 = vcmask 261120
      %v708 = vsel %vm706, %v683, 0
      %v711 = vsel %vm706, %v684, 0
      %v714 = vsel %vm706, %v685, 0
      %v717 = vsel %vm706, %v686, 0
      %v720 = vsel %vm706, %v687, 0
      %v723 = vsel %vm706, %v688, 0
      %725 = vmatprep.subr.bf16.mxu0 0
      %726 = vmatpush1.bf16.msra.mxu0 %v702
      %727 = vmatprep.subr.bf16.mxu0 0
      %728 = vmatpush1.bf16.msra.mxu0 %v703
      %729 = vmatprep.subr.bf16.mxu0 0
      %730 = vmatpush1.bf16.msra.mxu0 0
      %731 = vmatprep.subr.bf16.mxu0 0
      %732 = vmatpush1.bf16.msra.mxu0 0
      %733 = vmatprep.subr.bf16.mxu0 0
      %734 = vmatpush1.bf16.msra.mxu0 0
      %735 = vmatprep.subr.bf16.mxu0 0
      %736 = vmatpush1.bf16.msra.mxu0 0
      %737 = vmatprep.subr.bf16.mxu0 0
      %738 = vmatpush1.bf16.msra.mxu0 0
      %739 = vmatprep.subr.bf16.mxu0 0
      %740 = vmatpush1.bf16.msra.mxu0 0
      %741 = vmatprep.subr.bf16.mxu0 0
      %742 = vmatpush1.bf16.msra.mxu0 0
      %743 = vmatprep.subr.bf16.mxu0 0
      %744 = vmatpush1.bf16.msra.mxu0 0
      %745 = vmatprep.subr.bf16.mxu0 0
      %746 = vmatpush1.bf16.msra.mxu0 0
      %747 = vmatprep.subr.bf16.mxu0 0
      %748 = vmatpush1.bf16.msra.mxu0 0
      %749 = vmatprep.subr.bf16.mxu0 0
      %750 = vmatpush1.bf16.msra.mxu0 0
      %751 = vmatprep.subr.bf16.mxu0 0
      %752 = vmatpush1.bf16.msra.mxu0 0
      %753 = vmatprep.subr.bf16.mxu0 0
      %754 = vmatpush1.bf16.msra.mxu0 0
      %755 = vmatprep.subr.bf16.mxu0 0
      %756 = vmatpush1.bf16.msra.mxu0 0
      %757 = vmatprep.mubr.bf16.mxu0 0
      %758 = vmatmul.mubr.bf16.gmra.mrb[0].mxu0 %v708
      %v759 = vpop.f32.mrb[0].mxu0
      %v760 = vadd.f32 0.0, %v759
      %v761 = vpop.f32.mrb[0].mxu0
      %v762 = vpop.f32.mrb[0].mxu0
      %v763 = vadd.f32 0.0, %v762
      %v764 = vpop.f32.mrb[0].mxu0
      %765 = vmatprep.mubr.bf16.mxu0 0
      %766 = vmatmul.mubr.bf16.gmra.mrb[0].mxu0 %v711
      %v767 = vpop.f32.mrb[0].mxu0
      %v768 = vadd.f32 0.0, %v767
      %v769 = vpop.f32.mrb[0].mxu0
      %v770 = vpop.f32.mrb[0].mxu0
      %v771 = vadd.f32 0.0, %v770
      %v772 = vpop.f32.mrb[0].mxu0
      %773 = vmatprep.mubr.bf16.mxu0 0
      %774 = vmatmul.mubr.bf16.gmra.mrb[0].mxu0 %v714
      %v775 = vpop.f32.mrb[0].mxu0
      %v776 = vadd.f32 0.0, %v775
      %v777 = vpop.f32.mrb[0].mxu0
      %v778 = vpop.f32.mrb[0].mxu0
      %v779 = vadd.f32 0.0, %v778
      %v780 = vpop.f32.mrb[0].mxu0
      %781 = vmatprep.mubr.bf16.mxu0 0
      %782 = vmatmul.mubr.bf16.gmra.mrb[0].mxu0 %v717
      %v783 = vpop.f32.mrb[0].mxu0
      %v784 = vadd.f32 0.0, %v783
      %v785 = vpop.f32.mrb[0].mxu0
      %v786 = vpop.f32.mrb[0].mxu0
      %v787 = vadd.f32 0.0, %v786
      %v788 = vpop.f32.mrb[0].mxu0
      %789 = vmatprep.mubr.bf16.mxu0 0
      %790 = vmatmul.mubr.bf16.gmra.mrb[0].mxu0 %v720
      %v791 = vpop.f32.mrb[0].mxu0
      %v792 = vadd.f32 0.0, %v791
      %v793 = vpop.f32.mrb[0].mxu0
      %v794 = vpop.f32.mrb[0].mxu0
      %v795 = vadd.f32 0.0, %v794
      %v796 = vpop.f32.mrb[0].mxu0
      %797 = vmatprep.mubr.bf16.mxu0 0
      %798 = vmatmul.mubr.bf16.gmra.mrb[0].mxu0 %v723
      %v799 = vpop.f32.mrb[0].mxu0
      %v800 = vadd.f32 0.0, %v799
      %v801 = vpop.f32.mrb[0].mxu0
      %v802 = vpop.f32.mrb[0].mxu0
      %v803 = vpop.f32.mrb[0].mxu0
      %804 = vdwg.mxu0
      %v809 = vunpack.c.l.b16 %v507
      %v810 = vunpack.c.l.b16 %v508
      %v811 = vunpack.c.l.b16 %v509
      %v812 = vunpack.c.l.b16 %v510
      %v813 = vpack.c.b16 %v810, %v809
      %v814 = vpack.c.b16 %v812, %v811
      %v818 = vsel %vm706, %v501, 0
      %v821 = vsel %vm706, %v502, 0
      %v824 = vsel %vm706, %v503, 0
      %v827 = vsel %vm706, %v504, 0
      %v830 = vsel %vm706, %v505, 0
      %v833 = vsel %vm706, %v506, 0
      %835 = vmatprep.subr.bf16.mxu0 0
      %836 = vmatpush1.bf16.msra.mxu0 %v813
      %837 = vmatprep.subr.bf16.mxu0 0
      %838 = vmatpush1.bf16.msra.mxu0 %v814
      %839 = vmatprep.subr.bf16.mxu0 0
      %840 = vmatpush1.bf16.msra.mxu0 0
      %841 = vmatprep.subr.bf16.mxu0 0
      %842 = vmatpush1.bf16.msra.mxu0 0
      %843 = vmatprep.subr.bf16.mxu0 0
      %844 = vmatpush1.bf16.msra.mxu0 0
      %845 = vmatprep.subr.bf16.mxu0 0
      %846 = vmatpush1.bf16.msra.mxu0 0
      %847 = vmatprep.subr.bf16.mxu0 0
      %848 = vmatpush1.bf16.msra.mxu0 0
      %849 = vmatprep.subr.bf16.mxu0 0
      %850 = vmatpush1.bf16.msra.mxu0 0
      %851 = vmatprep.subr.bf16.mxu0 0
      %852 = vmatpush1.bf16.msra.mxu0 0
      %853 = vmatprep.subr.bf16.mxu0 0
      %854 = vmatpush1.bf16.msra.mxu0 0
      %855 = vmatprep.subr.bf16.mxu0 0
      %856 = vmatpush1.bf16.msra.mxu0 0
      %857 = vmatprep.subr.bf16.mxu0 0
      %858 = vmatpush1.bf16.msra.mxu0 0
      %859 = vmatprep.subr.bf16.mxu0 0
      %860 = vmatpush1.bf16.msra.mxu0 0
      %861 = vmatprep.subr.bf16.mxu0 0
      %862 = vmatpush1.bf16.msra.mxu0 0
      %863 = vmatprep.subr.bf16.mxu0 0
      %864 = vmatpush1.bf16.msra.mxu0 0
      %865 = vmatprep.subr.bf16.mxu0 0
      %866 = vmatpush1.bf16.msra.mxu0 0
      %867 = vmatprep.mubr.bf16.mxu0 0
      %868 = vmatmul.mubr.bf16.gmra.mrb[0].mxu0 %v818
      %v869 = vpop.f32.mrb[0].mxu0
      %v870 = vadd.f32 %v760, %v869
      %v871 = vpop.f32.mrb[0].mxu0
      %v872 = vpop.f32.mrb[0].mxu0
      %v873 = vadd.f32 %v763, %v872
      %v874 = vpop.f32.mrb[0].mxu0
      %875 = vmatprep.mubr.bf16.mxu0 0
      %876 = vmatmul.mubr.bf16.gmra.mrb[0].mxu0 %v821
      %v877 = vpop.f32.mrb[0].mxu0
      %v878 = vadd.f32 %v768, %v877
      %v879 = vpop.f32.mrb[0].mxu0
      %v880 = vpop.f32.mrb[0].mxu0
      %v881 = vadd.f32 %v771, %v880
      %v882 = vpop.f32.mrb[0].mxu0
      %883 = vmatprep.mubr.bf16.mxu0 0
      %884 = vmatmul.mubr.bf16.gmra.mrb[0].mxu0 %v824
      %v885 = vpop.f32.mrb[0].mxu0
      %v886 = vadd.f32 %v776, %v885
      %v887 = vpop.f32.mrb[0].mxu0
      %v888 = vpop.f32.mrb[0].mxu0
      %v889 = vadd.f32 %v779, %v888
      %v890 = vpop.f32.mrb[0].mxu0
      %891 = vmatprep.mubr.bf16.mxu0 0
      %892 = vmatmul.mubr.bf16.gmra.mrb[0].mxu0 %v827
      %v893 = vpop.f32.mrb[0].mxu0
      %v894 = vadd.f32 %v784, %v893
      %v895 = vpop.f32.mrb[0].mxu0
      %v896 = vpop.f32.mrb[0].mxu0
      %v897 = vadd.f32 %v787, %v896
      %v898 = vpop.f32.mrb[0].mxu0
      %899 = vmatprep.mubr.bf16.mxu0 0
      %900 = vmatmul.mubr.bf16.gmra.mrb[0].mxu0 %v830
      %v901 = vpop.f32.mrb[0].mxu0
      %v902 = vadd.f32 %v792, %v901
      %v903 = vpop.f32.mrb[0].mxu0
      %v904 = vpop.f32.mrb[0].mxu0
      %v905 = vadd.f32 %v795, %v904
      %v906 = vpop.f32.mrb[0].mxu0
      %907 = vmatprep.mubr.bf16.mxu0 0
      %908 = vmatmul.mubr.bf16.gmra.mrb[0].mxu0 %v833
      %v909 = vpop.f32.mrb[0].mxu0
      %v910 = vadd.f32 %v800, %v909
      %v911 = vpop.f32.mrb[0].mxu0
      %v912 = vpop.f32.mrb[0].mxu0
      %v913 = vpop.f32.mrb[0].mxu0
      %914 = vdwg.mxu0
      %s915 = scalar_lea.vmem %s219, 176
      %v916 = vld [vmem:[%s915] sm:$0xff]
      %v917 = vld [vmem:[%s915 + $0x8] sm:$0xff]
      %v918 = vld [vmem:[%s915 + $0x10] sm:$0xff]
      %v919 = vld [vmem:[%s915 + $0x18] sm:$0xff]
      %v920 = vld [vmem:[%s915 + $0x20] sm:$0xff]
      %v921 = vld [vmem:[%s915 + $0x28] sm:$0xff]
      %v922 = vld [vmem:[%s915 + $0x30] sm:$0xff]
      %v923 = vld [vmem:[%s915 + $0x38] sm:$0xff]
      %v924 = vld [vmem:[%s915 + $0x40] sm:$0xff]
      %v925 = vld [vmem:[%s915 + $0x48] sm:$0xff]
      %v926 = vld [vmem:[%s915 + $0x50] sm:$0x11]
      %v938 = vunpack.c.l.b16 %v916
      %v939 = vunpack.c.h.b16 %v916
      %v940 = vunpack.c.l.b16 %v917
      %v941 = vunpack.c.h.b16 %v917
      %v942 = vunpack.c.l.b16 %v918
      %v943 = vunpack.c.h.b16 %v918
      %v944 = vunpack.c.l.b16 %v919
      %v945 = vunpack.c.h.b16 %v919
      %v946 = vunpack.c.l.b16 %v920
      %v947 = vunpack.c.h.b16 %v920
      %v948 = vunpack.c.l.b16 %v921
      %v949 = vunpack.c.h.b16 %v921
      %v950 = vunpack.c.l.b16 %v922
      %v951 = vunpack.c.h.b16 %v922
      %v952 = vunpack.c.l.b16 %v923
      %v953 = vunpack.c.h.b16 %v923
      %v954 = vunpack.c.l.b16 %v924
      %v955 = vunpack.c.h.b16 %v924
      %v956 = vunpack.c.l.b16 %v925
      %v957 = vunpack.c.h.b16 %v925
      %v958 = vunpack.c.l.b16 %v926
      %v959 = vunpack.c.h.b16 %v926
      %v960 = vpack.c.b16 %v940, %v938
      %v961 = vpack.c.b16 %v941, %v939
      %v962 = vpack.c.b16 %v944, %v942
      %v963 = vpack.c.b16 %v945, %v943
      %v964 = vpack.c.b16 %v948, %v946
      %v965 = vpack.c.b16 %v949, %v947
      %v966 = vpack.c.b16 %v952, %v950
      %v967 = vpack.c.b16 %v953, %v951
      %v968 = vpack.c.b16 %v956, %v954
      %v969 = vpack.c.b16 %v957, %v955
      %v970 = vpack.c.b16 %v958, %v958
      %v971 = vpack.c.b16 %v959, %v959
      %v979 = vsel %vm391, %v961, 0
      %v982 = vsel %vm391, %v963, 0
      %v985 = vsel %vm391, %v965, 0
      %v988 = vsel %vm391, %v967, 0
      %v991 = vsel %vm391, %v969, 0
      %v994 = vsel %vm391, %v971, 0
      %996 = vmatprep.subr.bf16.mxu0 0
      %997 = vmatpush1.bf16.msra.mxu0 %v367
      %998 = vmatprep.subr.bf16.mxu0 0
      %999 = vmatpush1.bf16.msra.mxu0 %v368
      %1000 = vmatprep.subr.bf16.mxu0 0
      %1001 = vmatpush1.bf16.msra.mxu0 %v369
      %1002 = vmatprep.subr.bf16.mxu0 0
      %1003 = vmatpush1.bf16.msra.mxu0 %v370
      %1004 = vmatprep.subr.bf16.mxu0 0
      %1005 = vmatpush1.bf16.msra.mxu0 %v371
      %1006 = vmatprep.subr.bf16.mxu0 0
      %1007 = vmatpush1.bf16.msra.mxu0 %v372
      %1008 = vmatprep.subr.bf16.mxu0 0
      %1009 = vmatpush1.bf16.msra.mxu0 %v373
      %1010 = vmatprep.subr.bf16.mxu0 0
      %1011 = vmatpush1.bf16.msra.mxu0 %v374
      %1012 = vmatprep.subr.bf16.mxu0 0
      %1013 = vmatpush1.bf16.msra.mxu0 %v375
      %1014 = vmatprep.subr.bf16.mxu0 0
      %1015 = vmatpush1.bf16.msra.mxu0 %v376
      %1016 = vmatprep.subr.bf16.mxu0 0
      %1017 = vmatpush1.bf16.msra.mxu0 %v377
      %1018 = vmatprep.subr.bf16.mxu0 0
      %1019 = vmatpush1.bf16.msra.mxu0 %v378
      %1020 = vmatprep.subr.bf16.mxu0 0
      %1021 = vmatpush1.bf16.msra.mxu0 0
      %1022 = vmatprep.subr.bf16.mxu0 0
      %1023 = vmatpush1.bf16.msra.mxu0 0
      %1024 = vmatprep.subr.bf16.mxu0 0
      %1025 = vmatpush1.bf16.msra.mxu0 0
      %1026 = vmatprep.subr.bf16.mxu0 0
      %1027 = vmatpush1.bf16.msra.mxu0 0
      %1028 = vmatprep.mubr.bf16.mxu0 %v979
      %1029 = vmatmul.mubr.bf16.gmra.mrb[0].mxu0 %v960
      %v1030 = vpop.f32.mrb[0].mxu0
      %v1031 = vadd.f32 %v266, %v1030
      %v1032 = vpop.f32.mrb[0].mxu0
      %v1033 = vpop.f32.mrb[0].mxu0
      %v1034 = vadd.f32 %v266, %v1033
      %v1035 = vpop.f32.mrb[0].mxu0
      %1036 = vmatprep.mubr.bf16.mxu0 %v982
      %1037 = vmatmul.mubr.bf16.gmra.mrb[0].mxu0 %v962
      %v1038 = vpop.f32.mrb[0].mxu0
      %v1039 = vadd.f32 %v266, %v1038
      %v1040 = vpop.f32.mrb[0].mxu0
      %v1041 = vpop.f32.mrb[0].mxu0
      %v1042 = vadd.f32 %v266, %v1041
      %v1043 = vpop.f32.mrb[0].mxu0
      %1044 = vmatprep.mubr.bf16.mxu0 %v985
      %1045 = vmatmul.mubr.bf16.gmra.mrb[0].mxu0 %v964
      %v1046 = vpop.f32.mrb[0].mxu0
      %v1047 = vadd.f32 %v266, %v1046
      %v1048 = vpop.f32.mrb[0].mxu0
      %v1049 = vpop.f32.mrb[0].mxu0
      %v1050 = vadd.f32 %v266, %v1049
      %v1051 = vpop.f32.mrb[0].mxu0
      %1052 = vmatprep.mubr.bf16.mxu0 %v988
      %1053 = vmatmul.mubr.bf16.gmra.mrb[0].mxu0 %v966
      %v1054 = vpop.f32.mrb[0].mxu0
      %v1055 = vadd.f32 %v266, %v1054
      %v1056 = vpop.f32.mrb[0].mxu0
      %v1057 = vpop.f32.mrb[0].mxu0
      %v1058 = vadd.f32 %v266, %v1057
      %v1059 = vpop.f32.mrb[0].mxu0
      %1060 = vmatprep.mubr.bf16.mxu0 %v991
      %1061 = vmatmul.mubr.bf16.gmra.mrb[0].mxu0 %v968
      %v1062 = vpop.f32.mrb[0].mxu0
      %v1063 = vadd.f32 %v266, %v1062
      %v1064 = vpop.f32.mrb[0].mxu0
      %v1065 = vpop.f32.mrb[0].mxu0
      %v1066 = vadd.f32 %v266, %v1065
      %v1067 = vpop.f32.mrb[0].mxu0
      %1068 = vmatprep.mubr.bf16.mxu0 %v994
      %1069 = vmatmul.mubr.bf16.gmra.mrb[0].mxu0 %v970
      %v1070 = vpop.f32.mrb[0].mxu0
      %v1071 = vadd.f32 %v266, %v1070
      %v1072 = vpop.f32.mrb[0].mxu0
      %v1073 = vpop.f32.mrb[0].mxu0
      %v1074 = vpop.f32.mrb[0].mxu0
      %1075 = vdwg.mxu0
      %v1076 = vmax.f32 %v1031, 0.0
      %v1077 = vmax.f32 %v1034, 0.0
      %v1078 = vmax.f32 %v1039, 0.0
      %v1079 = vmax.f32 %v1042, 0.0
      %v1080 = vmax.f32 %v1047, 0.0
      %v1081 = vmax.f32 %v1050, 0.0
      %v1082 = vmax.f32 %v1055, 0.0
      %v1083 = vmax.f32 %v1058, 0.0
      %v1084 = vmax.f32 %v1063, 0.0
      %v1085 = vmax.f32 %v1066, 0.0
      %v1086 = vmax.f32 %v1071, 0.0
      %v1087 = vpack.c.bf16 %v1077, %v1076
      %v1088 = vpack.c.bf16 %v1079, %v1078
      %v1089 = vpack.c.bf16 %v1081, %v1080
      %v1090 = vpack.c.bf16 %v1083, %v1082
      %v1091 = vpack.c.bf16 %v1085, %v1084
      %v1092 = vpack.c.bf16 %v1086, %v1086
      %s1093 = scalar_lea.vmem %s3, 32
      %v1094 = vld [vmem:[%s1093] sm:$0xf]
      %v1095 = vld [vmem:[%s1093 + $0x4] sm:$0xf]
      %v1096 = vld [vmem:[%s1093 + $0x8] sm:$0xf]
      %v1097 = vld [vmem:[%s1093 + $0xc] sm:$0xf]
      %v1102 = vunpack.c.l.b16 %v1094
      %v1103 = vunpack.c.l.b16 %v1095
      %v1104 = vunpack.c.l.b16 %v1096
      %v1105 = vunpack.c.l.b16 %v1097
      %v1106 = vpack.c.b16 %v1103, %v1102
      %v1107 = vpack.c.b16 %v1105, %v1104
      %v1111 = vsel %vm706, %v1087, 0
      %v1114 = vsel %vm706, %v1088, 0
      %v1117 = vsel %vm706, %v1089, 0
      %v1120 = vsel %vm706, %v1090, 0
      %v1123 = vsel %vm706, %v1091, 0
      %v1126 = vsel %vm706, %v1092, 0
      %1128 = vmatprep.subr.bf16.mxu0 0
      %1129 = vmatpush1.bf16.msra.mxu0 %v1106
      %1130 = vmatprep.subr.bf16.mxu0 0
      %1131 = vmatpush1.bf16.msra.mxu0 %v1107
      %1132 = vmatprep.subr.bf16.mxu0 0
      %1133 = vmatpush1.bf16.msra.mxu0 0
      %1134 = vmatprep.subr.bf16.mxu0 0
      %1135 = vmatpush1.bf16.msra.mxu0 0
      %1136 = vmatprep.subr.bf16.mxu0 0
      %1137 = vmatpush1.bf16.msra.mxu0 0
      %1138 = vmatprep.subr.bf16.mxu0 0
      %1139 = vmatpush1.bf16.msra.mxu0 0
      %1140 = vmatprep.subr.bf16.mxu0 0
      %1141 = vmatpush1.bf16.msra.mxu0 0
      %1142 = vmatprep.subr.bf16.mxu0 0
      %1143 = vmatpush1.bf16.msra.mxu0 0
      %1144 = vmatprep.subr.bf16.mxu0 0
      %1145 = vmatpush1.bf16.msra.mxu0 0
      %1146 = vmatprep.subr.bf16.mxu0 0
      %1147 = vmatpush1.bf16.msra.mxu0 0
      %1148 = vmatprep.subr.bf16.mxu0 0
      %1149 = vmatpush1.bf16.msra.mxu0 0
      %1150 = vmatprep.subr.bf16.mxu0 0
      %1151 = vmatpush1.bf16.msra.mxu0 0
      %1152 = vmatprep.subr.bf16.mxu0 0
      %1153 = vmatpush1.bf16.msra.mxu0 0
      %1154 = vmatprep.subr.bf16.mxu0 0
      %1155 = vmatpush1.bf16.msra.mxu0 0
      %1156 = vmatprep.subr.bf16.mxu0 0
      %1157 = vmatpush1.bf16.msra.mxu0 0
      %1158 = vmatprep.subr.bf16.mxu0 0
      %1159 = vmatpush1.bf16.msra.mxu0 0
      %1160 = vmatprep.mubr.bf16.mxu0 0
      %1161 = vmatmul.mubr.bf16.gmra.mrb[0].mxu0 %v1111
      %v1162 = vpop.f32.mrb[0].mxu0
      %v1163 = vadd.f32 0.0, %v1162
      %v1164 = vpop.f32.mrb[0].mxu0
      %v1165 = vpop.f32.mrb[0].mxu0
      %v1166 = vadd.f32 0.0, %v1165
      %v1167 = vpop.f32.mrb[0].mxu0
      %1168 = vmatprep.mubr.bf16.mxu0 0
      %1169 = vmatmul.mubr.bf16.gmra.mrb[0].mxu0 %v1114
      %v1170 = vpop.f32.mrb[0].mxu0
      %v1171 = vadd.f32 0.0, %v1170
      %v1172 = vpop.f32.mrb[0].mxu0
      %v1173 = vpop.f32.mrb[0].mxu0
      %v1174 = vadd.f32 0.0, %v1173
      %v1175 = vpop.f32.mrb[0].mxu0
      %1176 = vmatprep.mubr.bf16.mxu0 0
      %1177 = vmatmul.mubr.bf16.gmra.mrb[0].mxu0 %v1117
      %v1178 = vpop.f32.mrb[0].mxu0
      %v1179 = vadd.f32 0.0, %v1178
      %v1180 = vpop.f32.mrb[0].mxu0
      %v1181 = vpop.f32.mrb[0].mxu0
      %v1182 = vadd.f32 0.0, %v1181
      %v1183 = vpop.f32.mrb[0].mxu0
      %1184 = vmatprep.mubr.bf16.mxu0 0
      %1185 = vmatmul.mubr.bf16.gmra.mrb[0].mxu0 %v1120
      %v1186 = vpop.f32.mrb[0].mxu0
      %v1187 = vadd.f32 0.0, %v1186
      %v1188 = vpop.f32.mrb[0].mxu0
      %v1189 = vpop.f32.mrb[0].mxu0
      %v1190 = vadd.f32 0.0, %v1189
      %v1191 = vpop.f32.mrb[0].mxu0
      %1192 = vmatprep.mubr.bf16.mxu0 0
      %1193 = vmatmul.mubr.bf16.gmra.mrb[0].mxu0 %v1123
      %v1194 = vpop.f32.mrb[0].mxu0
      %v1195 = vadd.f32 0.0, %v1194
      %v1196 = vpop.f32.mrb[0].mxu0
      %v1197 = vpop.f32.mrb[0].mxu0
      %v1198 = vadd.f32 0.0, %v1197
      %v1199 = vpop.f32.mrb[0].mxu0
      %1200 = vmatprep.mubr.bf16.mxu0 0
      %1201 = vmatmul.mubr.bf16.gmra.mrb[0].mxu0 %v1126
      %v1202 = vpop.f32.mrb[0].mxu0
      %v1203 = vadd.f32 0.0, %v1202
      %v1204 = vpop.f32.mrb[0].mxu0
      %v1205 = vpop.f32.mrb[0].mxu0
      %v1206 = vpop.f32.mrb[0].mxu0
      %1207 = vdwg.mxu0
      %v1208 = vadd.f32 %v870, %v1163
      %v1209 = vadd.f32 %v873, %v1166
      %v1210 = vadd.f32 %v878, %v1171
      %v1211 = vadd.f32 %v881, %v1174
      %v1212 = vadd.f32 %v886, %v1179
      %v1213 = vadd.f32 %v889, %v1182
      %v1214 = vadd.f32 %v894, %v1187
      %v1215 = vadd.f32 %v897, %v1190
      %v1216 = vadd.f32 %v902, %v1195
      %v1217 = vadd.f32 %v905, %v1198
      %v1218 = vadd.f32 %v910, %v1203
      %s1219 = scalar_lea.vmem %s219, 264
      %v1220 = vld [vmem:[%s1219] sm:$0xff]
      %v1221 = vld [vmem:[%s1219 + $0x8] sm:$0xff]
      %v1222 = vld [vmem:[%s1219 + $0x10] sm:$0xff]
      %v1223 = vld [vmem:[%s1219 + $0x18] sm:$0xff]
      %v1224 = vld [vmem:[%s1219 + $0x20] sm:$0xff]
      %v1225 = vld [vmem:[%s1219 + $0x28] sm:$0xff]
      %v1226 = vld [vmem:[%s1219 + $0x30] sm:$0xff]
      %v1227 = vld [vmem:[%s1219 + $0x38] sm:$0xff]
      %v1228 = vld [vmem:[%s1219 + $0x40] sm:$0xff]
      %v1229 = vld [vmem:[%s1219 + $0x48] sm:$0xff]
      %v1230 = vld [vmem:[%s1219 + $0x50] sm:$0x11]
      %v1242 = vunpack.c.l.b16 %v1220
      %v1243 = vunpack.c.h.b16 %v1220
      %v1244 = vunpack.c.l.b16 %v1221
      %v1245 = vunpack.c.h.b16 %v1221
      %v1246 = vunpack.c.l.b16 %v1222
      %v1247 = vunpack.c.h.b16 %v1222
      %v1248 = vunpack.c.l.b16 %v1223
      %v1249 = vunpack.c.h.b16 %v1223
      %v1250 = vunpack.c.l.b16 %v1224
      %v1251 = vunpack.c.h.b16 %v1224
      %v1252 = vunpack.c.l.b16 %v1225
      %v1253 = vunpack.c.h.b16 %v1225
      %v1254 = vunpack.c.l.b16 %v1226
      %v1255 = vunpack.c.h.b16 %v1226
      %v1256 = vunpack.c.l.b16 %v1227
      %v1257 = vunpack.c.h.b16 %v1227
      %v1258 = vunpack.c.l.b16 %v1228
      %v1259 = vunpack.c.h.b16 %v1228
      %v1260 = vunpack.c.l.b16 %v1229
      %v1261 = vunpack.c.h.b16 %v1229
      %v1262 = vunpack.c.l.b16 %v1230
      %v1263 = vunpack.c.h.b16 %v1230
      %v1264 = vpack.c.b16 %v1244, %v1242
      %v1265 = vpack.c.b16 %v1245, %v1243
      %v1266 = vpack.c.b16 %v1248, %v1246
      %v1267 = vpack.c.b16 %v1249, %v1247
      %v1268 = vpack.c.b16 %v1252, %v1250
      %v1269 = vpack.c.b16 %v1253, %v1251
      %v1270 = vpack.c.b16 %v1256, %v1254
      %v1271 = vpack.c.b16 %v1257, %v1255
      %v1272 = vpack.c.b16 %v1260, %v1258
      %v1273 = vpack.c.b16 %v1261, %v1259
      %v1274 = vpack.c.b16 %v1262, %v1262
      %v1275 = vpack.c.b16 %v1263, %v1263
      %v1283 = vsel %vm391, %v1265, 0
      %v1286 = vsel %vm391, %v1267, 0
      %v1289 = vsel %vm391, %v1269, 0
      %v1292 = vsel %vm391, %v1271, 0
      %v1295 = vsel %vm391, %v1273, 0
      %v1298 = vsel %vm391, %v1275, 0
      %1300 = vmatprep.subr.bf16.mxu0 0
      %1301 = vmatpush1.bf16.msra.mxu0 %v367
      %1302 = vmatprep.subr.bf16.mxu0 0
      %1303 = vmatpush1.bf16.msra.mxu0 %v368
      %1304 = vmatprep.subr.bf16.mxu0 0
      %1305 = vmatpush1.bf16.msra.mxu0 %v369
      %1306 = vmatprep.subr.bf16.mxu0 0
      %1307 = vmatpush1.bf16.msra.mxu0 %v370
      %1308 = vmatprep.subr.bf16.mxu0 0
      %1309 = vmatpush1.bf16.msra.mxu0 %v371
      %1310 = vmatprep.subr.bf16.mxu0 0
      %1311 = vmatpush1.bf16.msra.mxu0 %v372
      %1312 = vmatprep.subr.bf16.mxu0 0
      %1313 = vmatpush1.bf16.msra.mxu0 %v373
      %1314 = vmatprep.subr.bf16.mxu0 0
      %1315 = vmatpush1.bf16.msra.mxu0 %v374
      %1316 = vmatprep.subr.bf16.mxu0 0
      %1317 = vmatpush1.bf16.msra.mxu0 %v375
      %1318 = vmatprep.subr.bf16.mxu0 0
      %1319 = vmatpush1.bf16.msra.mxu0 %v376
      %1320 = vmatprep.subr.bf16.mxu0 0
      %1321 = vmatpush1.bf16.msra.mxu0 %v377
      %1322 = vmatprep.subr.bf16.mxu0 0
      %1323 = vmatpush1.bf16.msra.mxu0 %v378
      %1324 = vmatprep.subr.bf16.mxu0 0
      %1325 = vmatpush1.bf16.msra.mxu0 0
      %1326 = vmatprep.subr.bf16.mxu0 0
      %1327 = vmatpush1.bf16.msra.mxu0 0
      %1328 = vmatprep.subr.bf16.mxu0 0
      %1329 = vmatpush1.bf16.msra.mxu0 0
      %1330 = vmatprep.subr.bf16.mxu0 0
      %1331 = vmatpush1.bf16.msra.mxu0 0
      %1332 = vmatprep.mubr.bf16.mxu0 %v1283
      %1333 = vmatmul.mubr.bf16.gmra.mrb[0].mxu0 %v1264
      %v1334 = vpop.f32.mrb[0].mxu0
      %v1335 = vadd.f32 %v266, %v1334
      %v1336 = vpop.f32.mrb[0].mxu0
      %v1337 = vpop.f32.mrb[0].mxu0
      %v1338 = vadd.f32 %v266, %v1337
      %v1339 = vpop.f32.mrb[0].mxu0
      %1340 = vmatprep.mubr.bf16.mxu0 %v1286
      %1341 = vmatmul.mubr.bf16.gmra.mrb[0].mxu0 %v1266
      %v1342 = vpop.f32.mrb[0].mxu0
      %v1343 = vadd.f32 %v266, %v1342
      %v1344 = vpop.f32.mrb[0].mxu0
      %v1345 = vpop.f32.mrb[0].mxu0
      %v1346 = vadd.f32 %v266, %v1345
      %v1347 = vpop.f32.mrb[0].mxu0
      %1348 = vmatprep.mubr.bf16.mxu0 %v1289
      %1349 = vmatmul.mubr.bf16.gmra.mrb[0].mxu0 %v1268
      %v1350 = vpop.f32.mrb[0].mxu0
      %v1351 = vadd.f32 %v266, %v1350
      %v1352 = vpop.f32.mrb[0].mxu0
      %v1353 = vpop.f32.mrb[0].mxu0
      %v1354 = vadd.f32 %v266, %v1353
      %v1355 = vpop.f32.mrb[0].mxu0
      %1356 = vmatprep.mubr.bf16.mxu0 %v1292
      %1357 = vmatmul.mubr.bf16.gmra.mrb[0].mxu0 %v1270
      %v1358 = vpop.f32.mrb[0].mxu0
      %v1359 = vadd.f32 %v266, %v1358
      %v1360 = vpop.f32.mrb[0].mxu0
      %v1361 = vpop.f32.mrb[0].mxu0
      %v1362 = vadd.f32 %v266, %v1361
      %v1363 = vpop.f32.mrb[0].mxu0
      %1364 = vmatprep.mubr.bf16.mxu0 %v1295
      %1365 = vmatmul.mubr.bf16.gmra.mrb[0].mxu0 %v1272
      %v1366 = vpop.f32.mrb[0].mxu0
      %v1367 = vadd.f32 %v266, %v1366
      %v1368 = vpop.f32.mrb[0].mxu0
      %v1369 = vpop.f32.mrb[0].mxu0
      %v1370 = vadd.f32 %v266, %v1369
      %v1371 = vpop.f32.mrb[0].mxu0
      %1372 = vmatprep.mubr.bf16.mxu0 %v1298
      %1373 = vmatmul.mubr.bf16.gmra.mrb[0].mxu0 %v1274
      %v1374 = vpop.f32.mrb[0].mxu0
      %v1375 = vadd.f32 %v266, %v1374
      %v1376 = vpop.f32.mrb[0].mxu0
      %v1377 = vpop.f32.mrb[0].mxu0
      %v1378 = vpop.f32.mrb[0].mxu0
      %1379 = vdwg.mxu0
      %v1380 = vmax.f32 %v1335, 0.0
      %v1381 = vmax.f32 %v1338, 0.0
      %v1382 = vmax.f32 %v1343, 0.0
      %v1383 = vmax.f32 %v1346, 0.0
      %v1384 = vmax.f32 %v1351, 0.0
      %v1385 = vmax.f32 %v1354, 0.0
      %v1386 = vmax.f32 %v1359, 0.0
      %v1387 = vmax.f32 %v1362, 0.0
      %v1388 = vmax.f32 %v1367, 0.0
      %v1389 = vmax.f32 %v1370, 0.0
      %v1390 = vmax.f32 %v1375, 0.0
      %v1391 = vpack.c.bf16 %v1381, %v1380
      %v1392 = vpack.c.bf16 %v1383, %v1382
      %v1393 = vpack.c.bf16 %v1385, %v1384
      %v1394 = vpack.c.bf16 %v1387, %v1386
      %v1395 = vpack.c.bf16 %v1389, %v1388
      %v1396 = vpack.c.bf16 %v1390, %v1390
      %s1397 = scalar_lea.vmem %s3, 48
      %v1398 = vld [vmem:[%s1397] sm:$0xf]
      %v1399 = vld [vmem:[%s1397 + $0x4] sm:$0xf]
      %v1400 = vld [vmem:[%s1397 + $0x8] sm:$0xf]
      %v1401 = vld [vmem:[%s1397 + $0xc] sm:$0xf]
      %v1406 = vunpack.c.l.b16 %v1398
      %v1407 = vunpack.c.l.b16 %v1399
      %v1408 = vunpack.c.l.b16 %v1400
      %v1409 = vunpack.c.l.b16 %v1401
      %v1410 = vpack.c.b16 %v1407, %v1406
      %v1411 = vpack.c.b16 %v1409, %v1408
      %v1415 = vsel %vm706, %v1391, 0
      %v1418 = vsel %vm706, %v1392, 0
      %v1421 = vsel %vm706, %v1393, 0
      %v1424 = vsel %vm706, %v1394, 0
      %v1427 = vsel %vm706, %v1395, 0
      %v1430 = vsel %vm706, %v1396, 0
      %1432 = vmatprep.subr.bf16.mxu0 0
      %1433 = vmatpush1.bf16.msra.mxu0 %v1410
      %1434 = vmatprep.subr.bf16.mxu0 0
      %1435 = vmatpush1.bf16.msra.mxu0 %v1411
      %1436 = vmatprep.subr.bf16.mxu0 0
      %1437 = vmatpush1.bf16.msra.mxu0 0
      %1438 = vmatprep.subr.bf16.mxu0 0
      %1439 = vmatpush1.bf16.msra.mxu0 0
      %1440 = vmatprep.subr.bf16.mxu0 0
      %1441 = vmatpush1.bf16.msra.mxu0 0
      %1442 = vmatprep.subr.bf16.mxu0 0
      %1443 = vmatpush1.bf16.msra.mxu0 0
      %1444 = vmatprep.subr.bf16.mxu0 0
      %1445 = vmatpush1.bf16.msra.mxu0 0
      %1446 = vmatprep.subr.bf16.mxu0 0
      %1447 = vmatpush1.bf16.msra.mxu0 0
      %1448 = vmatprep.subr.bf16.mxu0 0
      %1449 = vmatpush1.bf16.msra.mxu0 0
      %1450 = vmatprep.subr.bf16.mxu0 0
      %1451 = vmatpush1.bf16.msra.mxu0 0
      %1452 = vmatprep.subr.bf16.mxu0 0
      %1453 = vmatpush1.bf16.msra.mxu0 0
      %1454 = vmatprep.subr.bf16.mxu0 0
      %1455 = vmatpush1.bf16.msra.mxu0 0
      %1456 = vmatprep.subr.bf16.mxu0 0
      %1457 = vmatpush1.bf16.msra.mxu0 0
      %1458 = vmatprep.subr.bf16.mxu0 0
      %1459 = vmatpush1.bf16.msra.mxu0 0
      %1460 = vmatprep.subr.bf16.mxu0 0
      %1461 = vmatpush1.bf16.msra.mxu0 0
      %1462 = vmatprep.subr.bf16.mxu0 0
      %1463 = vmatpush1.bf16.msra.mxu0 0
      %1464 = vmatprep.mubr.bf16.mxu0 0
      %1465 = vmatmul.mubr.bf16.gmra.mrb[0].mxu0 %v1415
      %v1466 = vpop.f32.mrb[0].mxu0
      %v1467 = vadd.f32 0.0, %v1466
      %v1468 = vpop.f32.mrb[0].mxu0
      %v1469 = vpop.f32.mrb[0].mxu0
      %v1470 = vadd.f32 0.0, %v1469
      %v1471 = vpop.f32.mrb[0].mxu0
      %1472 = vmatprep.mubr.bf16.mxu0 0
      %1473 = vmatmul.mubr.bf16.gmra.mrb[0].mxu0 %v1418
      %v1474 = vpop.f32.mrb[0].mxu0
      %v1475 = vadd.f32 0.0, %v1474
      %v1476 = vpop.f32.mrb[0].mxu0
      %v1477 = vpop.f32.mrb[0].mxu0
      %v1478 = vadd.f32 0.0, %v1477
      %v1479 = vpop.f32.mrb[0].mxu0
      %1480 = vmatprep.mubr.bf16.mxu0 0
      %1481 = vmatmul.mubr.bf16.gmra.mrb[0].mxu0 %v1421
      %v1482 = vpop.f32.mrb[0].mxu0
      %v1483 = vadd.f32 0.0, %v1482
      %v1484 = vpop.f32.mrb[0].mxu0
      %v1485 = vpop.f32.mrb[0].mxu0
      %v1486 = vadd.f32 0.0, %v1485
      %v1487 = vpop.f32.mrb[0].mxu0
      %1488 = vmatprep.mubr.bf16.mxu0 0
      %1489 = vmatmul.mubr.bf16.gmra.mrb[0].mxu0 %v1424
      %v1490 = vpop.f32.mrb[0].mxu0
      %v1491 = vadd.f32 0.0, %v1490
      %v1492 = vpop.f32.mrb[0].mxu0
      %v1493 = vpop.f32.mrb[0].mxu0
      %v1494 = vadd.f32 0.0, %v1493
      %v1495 = vpop.f32.mrb[0].mxu0
      %1496 = vmatprep.mubr.bf16.mxu0 0
      %1497 = vmatmul.mubr.bf16.gmra.mrb[0].mxu0 %v1427
      %v1498 = vpop.f32.mrb[0].mxu0
      %v1499 = vadd.f32 0.0, %v1498
      %v1500 = vpop.f32.mrb[0].mxu0
      %v1501 = vpop.f32.mrb[0].mxu0
      %v1502 = vadd.f32 0.0, %v1501
      %v1503 = vpop.f32.mrb[0].mxu0
      %1504 = vmatprep.mubr.bf16.mxu0 0
      %1505 = vmatmul.mubr.bf16.gmra.mrb[0].mxu0 %v1430
      %v1506 = vpop.f32.mrb[0].mxu0
      %v1507 = vadd.f32 0.0, %v1506
      %v1508 = vpop.f32.mrb[0].mxu0
      %v1509 = vpop.f32.mrb[0].mxu0
      %v1510 = vpop.f32.mrb[0].mxu0
      %1511 = vdwg.mxu0
      %v1512 = vadd.f32 %v1208, %v1467
      %v1513 = vadd.f32 %v1209, %v1470
      %v1514 = vadd.f32 %v1210, %v1475
      %v1515 = vadd.f32 %v1211, %v1478
      %v1516 = vadd.f32 %v1212, %v1483
      %v1517 = vadd.f32 %v1213, %v1486
      %v1518 = vadd.f32 %v1214, %v1491
      %v1519 = vadd.f32 %v1215, %v1494
      %v1520 = vadd.f32 %v1216, %v1499
      %v1521 = vadd.f32 %v1217, %v1502
      %v1522 = vadd.f32 %v1218, %v1507
      %s1523 = scalar_lea.vmem %s219, 352
      %v1524 = vld [vmem:[%s1523] sm:$0xff]
      %v1525 = vld [vmem:[%s1523 + $0x8] sm:$0xff]
      %v1526 = vld [vmem:[%s1523 + $0x10] sm:$0xff]
      %v1527 = vld [vmem:[%s1523 + $0x18] sm:$0xff]
      %v1528 = vld [vmem:[%s1523 + $0x20] sm:$0xff]
      %v1529 = vld [vmem:[%s1523 + $0x28] sm:$0xff]
      %v1530 = vld [vmem:[%s1523 + $0x30] sm:$0xff]
      %v1531 = vld [vmem:[%s1523 + $0x38] sm:$0xff]
      %v1532 = vld [vmem:[%s1523 + $0x40] sm:$0xff]
      %v1533 = vld [vmem:[%s1523 + $0x48] sm:$0xff]
      %v1534 = vld [vmem:[%s1523 + $0x50] sm:$0x11]
      %v1546 = vunpack.c.l.b16 %v1524
      %v1547 = vunpack.c.h.b16 %v1524
      %v1548 = vunpack.c.l.b16 %v1525
      %v1549 = vunpack.c.h.b16 %v1525
      %v1550 = vunpack.c.l.b16 %v1526
      %v1551 = vunpack.c.h.b16 %v1526
      %v1552 = vunpack.c.l.b16 %v1527
      %v1553 = vunpack.c.h.b16 %v1527
      %v1554 = vunpack.c.l.b16 %v1528
      %v1555 = vunpack.c.h.b16 %v1528
      %v1556 = vunpack.c.l.b16 %v1529
      %v1557 = vunpack.c.h.b16 %v1529
      %v1558 = vunpack.c.l.b16 %v1530
      %v1559 = vunpack.c.h.b16 %v1530
      %v1560 = vunpack.c.l.b16 %v1531
      %v1561 = vunpack.c.h.b16 %v1531
      %v1562 = vunpack.c.l.b16 %v1532
      %v1563 = vunpack.c.h.b16 %v1532
      %v1564 = vunpack.c.l.b16 %v1533
      %v1565 = vunpack.c.h.b16 %v1533
      %v1566 = vunpack.c.l.b16 %v1534
      %v1567 = vunpack.c.h.b16 %v1534
      %v1568 = vpack.c.b16 %v1548, %v1546
      %v1569 = vpack.c.b16 %v1549, %v1547
      %v1570 = vpack.c.b16 %v1552, %v1550
      %v1571 = vpack.c.b16 %v1553, %v1551
      %v1572 = vpack.c.b16 %v1556, %v1554
      %v1573 = vpack.c.b16 %v1557, %v1555
      %v1574 = vpack.c.b16 %v1560, %v1558
      %v1575 = vpack.c.b16 %v1561, %v1559
      %v1576 = vpack.c.b16 %v1564, %v1562
      %v1577 = vpack.c.b16 %v1565, %v1563
      %v1578 = vpack.c.b16 %v1566, %v1566
      %v1579 = vpack.c.b16 %v1567, %v1567
      %v1587 = vsel %vm391, %v1569, 0
      %v1590 = vsel %vm391, %v1571, 0
      %v1593 = vsel %vm391, %v1573, 0
      %v1596 = vsel %vm391, %v1575, 0
      %v1599 = vsel %vm391, %v1577, 0
      %v1602 = vsel %vm391, %v1579, 0
      %1604 = vmatprep.subr.bf16.mxu0 0
      %1605 = vmatpush1.bf16.msra.mxu0 %v367
      %1606 = vmatprep.subr.bf16.mxu0 0
      %1607 = vmatpush1.bf16.msra.mxu0 %v368
      %1608 = vmatprep.subr.bf16.mxu0 0
      %1609 = vmatpush1.bf16.msra.mxu0 %v369
      %1610 = vmatprep.subr.bf16.mxu0 0
      %1611 = vmatpush1.bf16.msra.mxu0 %v370
      %1612 = vmatprep.subr.bf16.mxu0 0
      %1613 = vmatpush1.bf16.msra.mxu0 %v371
      %1614 = vmatprep.subr.bf16.mxu0 0
      %1615 = vmatpush1.bf16.msra.mxu0 %v372
      %1616 = vmatprep.subr.bf16.mxu0 0
      %1617 = vmatpush1.bf16.msra.mxu0 %v373
      %1618 = vmatprep.subr.bf16.mxu0 0
      %1619 = vmatpush1.bf16.msra.mxu0 %v374
      %1620 = vmatprep.subr.bf16.mxu0 0
      %1621 = vmatpush1.bf16.msra.mxu0 %v375
      %1622 = vmatprep.subr.bf16.mxu0 0
      %1623 = vmatpush1.bf16.msra.mxu0 %v376
      %1624 = vmatprep.subr.bf16.mxu0 0
      %1625 = vmatpush1.bf16.msra.mxu0 %v377
      %1626 = vmatprep.subr.bf16.mxu0 0
      %1627 = vmatpush1.bf16.msra.mxu0 %v378
      %1628 = vmatprep.subr.bf16.mxu0 0
      %1629 = vmatpush1.bf16.msra.mxu0 0
      %1630 = vmatprep.subr.bf16.mxu0 0
      %1631 = vmatpush1.bf16.msra.mxu0 0
      %1632 = vmatprep.subr.bf16.mxu0 0
      %1633 = vmatpush1.bf16.msra.mxu0 0
      %1634 = vmatprep.subr.bf16.mxu0 0
      %1635 = vmatpush1.bf16.msra.mxu0 0
      %1636 = vmatprep.mubr.bf16.mxu0 %v1587
      %1637 = vmatmul.mubr.bf16.gmra.mrb[0].mxu0 %v1568
      %v1638 = vpop.f32.mrb[0].mxu0
      %v1639 = vadd.f32 %v266, %v1638
      %v1640 = vpop.f32.mrb[0].mxu0
      %v1641 = vpop.f32.mrb[0].mxu0
      %v1642 = vadd.f32 %v266, %v1641
      %v1643 = vpop.f32.mrb[0].mxu0
      %1644 = vmatprep.mubr.bf16.mxu0 %v1590
      %1645 = vmatmul.mubr.bf16.gmra.mrb[0].mxu0 %v1570
      %v1646 = vpop.f32.mrb[0].mxu0
      %v1647 = vadd.f32 %v266, %v1646
      %v1648 = vpop.f32.mrb[0].mxu0
      %v1649 = vpop.f32.mrb[0].mxu0
      %v1650 = vadd.f32 %v266, %v1649
      %v1651 = vpop.f32.mrb[0].mxu0
      %1652 = vmatprep.mubr.bf16.mxu0 %v1593
      %1653 = vmatmul.mubr.bf16.gmra.mrb[0].mxu0 %v1572
      %v1654 = vpop.f32.mrb[0].mxu0
      %v1655 = vadd.f32 %v266, %v1654
      %v1656 = vpop.f32.mrb[0].mxu0
      %v1657 = vpop.f32.mrb[0].mxu0
      %v1658 = vadd.f32 %v266, %v1657
      %v1659 = vpop.f32.mrb[0].mxu0
      %1660 = vmatprep.mubr.bf16.mxu0 %v1596
      %1661 = vmatmul.mubr.bf16.gmra.mrb[0].mxu0 %v1574
      %v1662 = vpop.f32.mrb[0].mxu0
      %v1663 = vadd.f32 %v266, %v1662
      %v1664 = vpop.f32.mrb[0].mxu0
      %v1665 = vpop.f32.mrb[0].mxu0
      %v1666 = vadd.f32 %v266, %v1665
      %v1667 = vpop.f32.mrb[0].mxu0
      %1668 = vmatprep.mubr.bf16.mxu0 %v1599
      %1669 = vmatmul.mubr.bf16.gmra.mrb[0].mxu0 %v1576
      %v1670 = vpop.f32.mrb[0].mxu0
      %v1671 = vadd.f32 %v266, %v1670
      %v1672 = vpop.f32.mrb[0].mxu0
      %v1673 = vpop.f32.mrb[0].mxu0
      %v1674 = vadd.f32 %v266, %v1673
      %v1675 = vpop.f32.mrb[0].mxu0
      %1676 = vmatprep.mubr.bf16.mxu0 %v1602
      %1677 = vmatmul.mubr.bf16.gmra.mrb[0].mxu0 %v1578
      %v1678 = vpop.f32.mrb[0].mxu0
      %v1679 = vadd.f32 %v266, %v1678
      %v1680 = vpop.f32.mrb[0].mxu0
      %v1681 = vpop.f32.mrb[0].mxu0
      %v1682 = vpop.f32.mrb[0].mxu0
      %1683 = vdwg.mxu0
      %v1684 = vmax.f32 %v1639, 0.0
      %v1685 = vmax.f32 %v1642, 0.0
      %v1686 = vmax.f32 %v1647, 0.0
      %v1687 = vmax.f32 %v1650, 0.0
      %v1688 = vmax.f32 %v1655, 0.0
      %v1689 = vmax.f32 %v1658, 0.0
      %v1690 = vmax.f32 %v1663, 0.0
      %v1691 = vmax.f32 %v1666, 0.0
      %v1692 = vmax.f32 %v1671, 0.0
      %v1693 = vmax.f32 %v1674, 0.0
      %v1694 = vmax.f32 %v1679, 0.0
      %v1695 = vpack.c.bf16 %v1685, %v1684
      %v1696 = vpack.c.bf16 %v1687, %v1686
      %v1697 = vpack.c.bf16 %v1689, %v1688
      %v1698 = vpack.c.bf16 %v1691, %v1690
      %v1699 = vpack.c.bf16 %v1693, %v1692
      %v1700 = vpack.c.bf16 %v1694, %v1694
      %s1701 = scalar_lea.vmem %s3, 64
      %v1702 = vld [vmem:[%s1701] sm:$0xf]
      %v1703 = vld [vmem:[%s1701 + $0x4] sm:$0xf]
      %v1704 = vld [vmem:[%s1701 + $0x8] sm:$0xf]
      %v1705 = vld [vmem:[%s1701 + $0xc] sm:$0xf]
      %v1710 = vunpack.c.l.b16 %v1702
      %v1711 = vunpack.c.l.b16 %v1703
      %v1712 = vunpack.c.l.b16 %v1704
      %v1713 = vunpack.c.l.b16 %v1705
      %v1714 = vpack.c.b16 %v1711, %v1710
      %v1715 = vpack.c.b16 %v1713, %v1712
      %v1719 = vsel %vm706, %v1695, 0
      %v1722 = vsel %vm706, %v1696, 0
      %v1725 = vsel %vm706, %v1697, 0
      %v1728 = vsel %vm706, %v1698, 0
      %v1731 = vsel %vm706, %v1699, 0
      %v1734 = vsel %vm706, %v1700, 0
      %1736 = vmatprep.subr.bf16.mxu0 0
      %1737 = vmatpush1.bf16.msra.mxu0 %v1714
      %1738 = vmatprep.subr.bf16.mxu0 0
      %1739 = vmatpush1.bf16.msra.mxu0 %v1715
      %1740 = vmatprep.subr.bf16.mxu0 0
      %1741 = vmatpush1.bf16.msra.mxu0 0
      %1742 = vmatprep.subr.bf16.mxu0 0
      %1743 = vmatpush1.bf16.msra.mxu0 0
      %1744 = vmatprep.subr.bf16.mxu0 0
      %1745 = vmatpush1.bf16.msra.mxu0 0
      %1746 = vmatprep.subr.bf16.mxu0 0
      %1747 = vmatpush1.bf16.msra.mxu0 0
      %1748 = vmatprep.subr.bf16.mxu0 0
      %1749 = vmatpush1.bf16.msra.mxu0 0
      %1750 = vmatprep.subr.bf16.mxu0 0
      %1751 = vmatpush1.bf16.msra.mxu0 0
      %1752 = vmatprep.subr.bf16.mxu0 0
      %1753 = vmatpush1.bf16.msra.mxu0 0
      %1754 = vmatprep.subr.bf16.mxu0 0
      %1755 = vmatpush1.bf16.msra.mxu0 0
      %1756 = vmatprep.subr.bf16.mxu0 0
      %1757 = vmatpush1.bf16.msra.mxu0 0
      %1758 = vmatprep.subr.bf16.mxu0 0
      %1759 = vmatpush1.bf16.msra.mxu0 0
      %1760 = vmatprep.subr.bf16.mxu0 0
      %1761 = vmatpush1.bf16.msra.mxu0 0
      %1762 = vmatprep.subr.bf16.mxu0 0
      %1763 = vmatpush1.bf16.msra.mxu0 0
      %1764 = vmatprep.subr.bf16.mxu0 0
      %1765 = vmatpush1.bf16.msra.mxu0 0
      %1766 = vmatprep.subr.bf16.mxu0 0
      %1767 = vmatpush1.bf16.msra.mxu0 0
      %1768 = vmatprep.mubr.bf16.mxu0 0
      %1769 = vmatmul.mubr.bf16.gmra.mrb[0].mxu0 %v1719
      %v1770 = vpop.f32.mrb[0].mxu0
      %v1771 = vadd.f32 0.0, %v1770
      %v1772 = vpop.f32.mrb[0].mxu0
      %v1773 = vpop.f32.mrb[0].mxu0
      %v1774 = vadd.f32 0.0, %v1773
      %v1775 = vpop.f32.mrb[0].mxu0
      %1776 = vmatprep.mubr.bf16.mxu0 0
      %1777 = vmatmul.mubr.bf16.gmra.mrb[0].mxu0 %v1722
      %v1778 = vpop.f32.mrb[0].mxu0
      %v1779 = vadd.f32 0.0, %v1778
      %v1780 = vpop.f32.mrb[0].mxu0
      %v1781 = vpop.f32.mrb[0].mxu0
      %v1782 = vadd.f32 0.0, %v1781
      %v1783 = vpop.f32.mrb[0].mxu0
      %1784 = vmatprep.mubr.bf16.mxu0 0
      %1785 = vmatmul.mubr.bf16.gmra.mrb[0].mxu0 %v1725
      %v1786 = vpop.f32.mrb[0].mxu0
      %v1787 = vadd.f32 0.0, %v1786
      %v1788 = vpop.f32.mrb[0].mxu0
      %v1789 = vpop.f32.mrb[0].mxu0
      %v1790 = vadd.f32 0.0, %v1789
      %v1791 = vpop.f32.mrb[0].mxu0
      %1792 = vmatprep.mubr.bf16.mxu0 0
      %1793 = vmatmul.mubr.bf16.gmra.mrb[0].mxu0 %v1728
      %v1794 = vpop.f32.mrb[0].mxu0
      %v1795 = vadd.f32 0.0, %v1794
      %v1796 = vpop.f32.mrb[0].mxu0
      %v1797 = vpop.f32.mrb[0].mxu0
      %v1798 = vadd.f32 0.0, %v1797
      %v1799 = vpop.f32.mrb[0].mxu0
      %1800 = vmatprep.mubr.bf16.mxu0 0
      %1801 = vmatmul.mubr.bf16.gmra.mrb[0].mxu0 %v1731
      %v1802 = vpop.f32.mrb[0].mxu0
      %v1803 = vadd.f32 0.0, %v1802
      %v1804 = vpop.f32.mrb[0].mxu0
      %v1805 = vpop.f32.mrb[0].mxu0
      %v1806 = vadd.f32 0.0, %v1805
      %v1807 = vpop.f32.mrb[0].mxu0
      %1808 = vmatprep.mubr.bf16.mxu0 0
      %1809 = vmatmul.mubr.bf16.gmra.mrb[0].mxu0 %v1734
      %v1810 = vpop.f32.mrb[0].mxu0
      %v1811 = vadd.f32 0.0, %v1810
      %v1812 = vpop.f32.mrb[0].mxu0
      %v1813 = vpop.f32.mrb[0].mxu0
      %v1814 = vpop.f32.mrb[0].mxu0
      %1815 = vdwg.mxu0
      %v1816 = vadd.f32 %v1512, %v1771
      %v1817 = vadd.f32 %v1513, %v1774
      %v1818 = vadd.f32 %v1514, %v1779
      %v1819 = vadd.f32 %v1515, %v1782
      %v1820 = vadd.f32 %v1516, %v1787
      %v1821 = vadd.f32 %v1517, %v1790
      %v1822 = vadd.f32 %v1518, %v1795
      %v1823 = vadd.f32 %v1519, %v1798
      %v1824 = vadd.f32 %v1520, %v1803
      %v1825 = vadd.f32 %v1521, %v1806
      %v1826 = vadd.f32 %v1522, %v1811
      %s1827 = scalar_lea.vmem %s219, 440
      %v1828 = vld [vmem:[%s1827] sm:$0xff]
      %v1829 = vld [vmem:[%s1827 + $0x8] sm:$0xff]
      %v1830 = vld [vmem:[%s1827 + $0x10] sm:$0xff]
      %v1831 = vld [vmem:[%s1827 + $0x18] sm:$0xff]
      %v1832 = vld [vmem:[%s1827 + $0x20] sm:$0xff]
      %v1833 = vld [vmem:[%s1827 + $0x28] sm:$0xff]
      %v1834 = vld [vmem:[%s1827 + $0x30] sm:$0xff]
      %v1835 = vld [vmem:[%s1827 + $0x38] sm:$0xff]
      %v1836 = vld [vmem:[%s1827 + $0x40] sm:$0xff]
      %v1837 = vld [vmem:[%s1827 + $0x48] sm:$0xff]
      %v1838 = vld [vmem:[%s1827 + $0x50] sm:$0x11]
      %v1850 = vunpack.c.l.b16 %v1828
      %v1851 = vunpack.c.h.b16 %v1828
      %v1852 = vunpack.c.l.b16 %v1829
      %v1853 = vunpack.c.h.b16 %v1829
      %v1854 = vunpack.c.l.b16 %v1830
      %v1855 = vunpack.c.h.b16 %v1830
      %v1856 = vunpack.c.l.b16 %v1831
      %v1857 = vunpack.c.h.b16 %v1831
      %v1858 = vunpack.c.l.b16 %v1832
      %v1859 = vunpack.c.h.b16 %v1832
      %v1860 = vunpack.c.l.b16 %v1833
      %v1861 = vunpack.c.h.b16 %v1833
      %v1862 = vunpack.c.l.b16 %v1834
      %v1863 = vunpack.c.h.b16 %v1834
      %v1864 = vunpack.c.l.b16 %v1835
      %v1865 = vunpack.c.h.b16 %v1835
      %v1866 = vunpack.c.l.b16 %v1836
      %v1867 = vunpack.c.h.b16 %v1836
      %v1868 = vunpack.c.l.b16 %v1837
      %v1869 = vunpack.c.h.b16 %v1837
      %v1870 = vunpack.c.l.b16 %v1838
      %v1871 = vunpack.c.h.b16 %v1838
      %v1872 = vpack.c.b16 %v1852, %v1850
      %v1873 = vpack.c.b16 %v1853, %v1851
      %v1874 = vpack.c.b16 %v1856, %v1854
      %v1875 = vpack.c.b16 %v1857, %v1855
      %v1876 = vpack.c.b16 %v1860, %v1858
      %v1877 = vpack.c.b16 %v1861, %v1859
      %v1878 = vpack.c.b16 %v1864, %v1862
      %v1879 = vpack.c.b16 %v1865, %v1863
      %v1880 = vpack.c.b16 %v1868, %v1866
      %v1881 = vpack.c.b16 %v1869, %v1867
      %v1882 = vpack.c.b16 %v1870, %v1870
      %v1883 = vpack.c.b16 %v1871, %v1871
      %v1891 = vsel %vm391, %v1873, 0
      %v1894 = vsel %vm391, %v1875, 0
      %v1897 = vsel %vm391, %v1877, 0
      %v1900 = vsel %vm391, %v1879, 0
      %v1903 = vsel %vm391, %v1881, 0
      %v1906 = vsel %vm391, %v1883, 0
      %1908 = vmatprep.subr.bf16.mxu0 0
      %1909 = vmatpush1.bf16.msra.mxu0 %v367
      %1910 = vmatprep.subr.bf16.mxu0 0
      %1911 = vmatpush1.bf16.msra.mxu0 %v368
      %1912 = vmatprep.subr.bf16.mxu0 0
      %1913 = vmatpush1.bf16.msra.mxu0 %v369
      %1914 = vmatprep.subr.bf16.mxu0 0
      %1915 = vmatpush1.bf16.msra.mxu0 %v370
      %1916 = vmatprep.subr.bf16.mxu0 0
      %1917 = vmatpush1.bf16.msra.mxu0 %v371
      %1918 = vmatprep.subr.bf16.mxu0 0
      %1919 = vmatpush1.bf16.msra.mxu0 %v372
      %1920 = vmatprep.subr.bf16.mxu0 0
      %1921 = vmatpush1.bf16.msra.mxu0 %v373
      %1922 = vmatprep.subr.bf16.mxu0 0
      %1923 = vmatpush1.bf16.msra.mxu0 %v374
      %1924 = vmatprep.subr.bf16.mxu0 0
      %1925 = vmatpush1.bf16.msra.mxu0 %v375
      %1926 = vmatprep.subr.bf16.mxu0 0
      %1927 = vmatpush1.bf16.msra.mxu0 %v376
      %1928 = vmatprep.subr.bf16.mxu0 0
      %1929 = vmatpush1.bf16.msra.mxu0 %v377
      %1930 = vmatprep.subr.bf16.mxu0 0
      %1931 = vmatpush1.bf16.msra.mxu0 %v378
      %1932 = vmatprep.subr.bf16.mxu0 0
      %1933 = vmatpush1.bf16.msra.mxu0 0
      %1934 = vmatprep.subr.bf16.mxu0 0
      %1935 = vmatpush1.bf16.msra.mxu0 0
      %1936 = vmatprep.subr.bf16.mxu0 0
      %1937 = vmatpush1.bf16.msra.mxu0 0
      %1938 = vmatprep.subr.bf16.mxu0 0
      %1939 = vmatpush1.bf16.msra.mxu0 0
      %1940 = vmatprep.mubr.bf16.mxu0 %v1891
      %1941 = vmatmul.mubr.bf16.gmra.mrb[0].mxu0 %v1872
      %v1942 = vpop.f32.mrb[0].mxu0
      %v1943 = vadd.f32 %v266, %v1942
      %v1944 = vpop.f32.mrb[0].mxu0
      %v1945 = vpop.f32.mrb[0].mxu0
      %v1946 = vadd.f32 %v266, %v1945
      %v1947 = vpop.f32.mrb[0].mxu0
      %1948 = vmatprep.mubr.bf16.mxu0 %v1894
      %1949 = vmatmul.mubr.bf16.gmra.mrb[0].mxu0 %v1874
      %v1950 = vpop.f32.mrb[0].mxu0
      %v1951 = vadd.f32 %v266, %v1950
      %v1952 = vpop.f32.mrb[0].mxu0
      %v1953 = vpop.f32.mrb[0].mxu0
      %v1954 = vadd.f32 %v266, %v1953
      %v1955 = vpop.f32.mrb[0].mxu0
      %1956 = vmatprep.mubr.bf16.mxu0 %v1897
      %1957 = vmatmul.mubr.bf16.gmra.mrb[0].mxu0 %v1876
      %v1958 = vpop.f32.mrb[0].mxu0
      %v1959 = vadd.f32 %v266, %v1958
      %v1960 = vpop.f32.mrb[0].mxu0
      %v1961 = vpop.f32.mrb[0].mxu0
      %v1962 = vadd.f32 %v266, %v1961
      %v1963 = vpop.f32.mrb[0].mxu0
      %1964 = vmatprep.mubr.bf16.mxu0 %v1900
      %1965 = vmatmul.mubr.bf16.gmra.mrb[0].mxu0 %v1878
      %v1966 = vpop.f32.mrb[0].mxu0
      %v1967 = vadd.f32 %v266, %v1966
      %v1968 = vpop.f32.mrb[0].mxu0
      %v1969 = vpop.f32.mrb[0].mxu0
      %v1970 = vadd.f32 %v266, %v1969
      %v1971 = vpop.f32.mrb[0].mxu0
      %1972 = vmatprep.mubr.bf16.mxu0 %v1903
      %1973 = vmatmul.mubr.bf16.gmra.mrb[0].mxu0 %v1880
      %v1974 = vpop.f32.mrb[0].mxu0
      %v1975 = vadd.f32 %v266, %v1974
      %v1976 = vpop.f32.mrb[0].mxu0
      %v1977 = vpop.f32.mrb[0].mxu0
      %v1978 = vadd.f32 %v266, %v1977
      %v1979 = vpop.f32.mrb[0].mxu0
      %1980 = vmatprep.mubr.bf16.mxu0 %v1906
      %1981 = vmatmul.mubr.bf16.gmra.mrb[0].mxu0 %v1882
      %v1982 = vpop.f32.mrb[0].mxu0
      %v1983 = vadd.f32 %v266, %v1982
      %v1984 = vpop.f32.mrb[0].mxu0
      %v1985 = vpop.f32.mrb[0].mxu0
      %v1986 = vpop.f32.mrb[0].mxu0
      %1987 = vdwg.mxu0
      %v1988 = vmax.f32 %v1943, 0.0
      %v1989 = vmax.f32 %v1946, 0.0
      %v1990 = vmax.f32 %v1951, 0.0
      %v1991 = vmax.f32 %v1954, 0.0
      %v1992 = vmax.f32 %v1959, 0.0
      %v1993 = vmax.f32 %v1962, 0.0
      %v1994 = vmax.f32 %v1967, 0.0
      %v1995 = vmax.f32 %v1970, 0.0
      %v1996 = vmax.f32 %v1975, 0.0
      %v1997 = vmax.f32 %v1978, 0.0
      %v1998 = vmax.f32 %v1983, 0.0
      %v1999 = vpack.c.bf16 %v1989, %v1988
      %v2000 = vpack.c.bf16 %v1991, %v1990
      %v2001 = vpack.c.bf16 %v1993, %v1992
      %v2002 = vpack.c.bf16 %v1995, %v1994
      %v2003 = vpack.c.bf16 %v1997, %v1996
      %v2004 = vpack.c.bf16 %v1998, %v1998
      %s2005 = scalar_lea.vmem %s3, 80
      %v2006 = vld [vmem:[%s2005] sm:$0xf]
      %v2007 = vld [vmem:[%s2005 + $0x4] sm:$0xf]
      %v2008 = vld [vmem:[%s2005 + $0x8] sm:$0xf]
      %v2009 = vld [vmem:[%s2005 + $0xc] sm:$0xf]
      %v2014 = vunpack.c.l.b16 %v2006
      %v2015 = vunpack.c.l.b16 %v2007
      %v2016 = vunpack.c.l.b16 %v2008
      %v2017 = vunpack.c.l.b16 %v2009
      %v2018 = vpack.c.b16 %v2015, %v2014
      %v2019 = vpack.c.b16 %v2017, %v2016
      %v2023 = vsel %vm706, %v1999, 0
      %v2026 = vsel %vm706, %v2000, 0
      %v2029 = vsel %vm706, %v2001, 0
      %v2032 = vsel %vm706, %v2002, 0
      %v2035 = vsel %vm706, %v2003, 0
      %v2038 = vsel %vm706, %v2004, 0
      %2040 = vmatprep.subr.bf16.mxu0 0
      %2041 = vmatpush1.bf16.msra.mxu0 %v2018
      %2042 = vmatprep.subr.bf16.mxu0 0
      %2043 = vmatpush1.bf16.msra.mxu0 %v2019
      %2044 = vmatprep.subr.bf16.mxu0 0
      %2045 = vmatpush1.bf16.msra.mxu0 0
      %2046 = vmatprep.subr.bf16.mxu0 0
      %2047 = vmatpush1.bf16.msra.mxu0 0
      %2048 = vmatprep.subr.bf16.mxu0 0
      %2049 = vmatpush1.bf16.msra.mxu0 0
      %2050 = vmatprep.subr.bf16.mxu0 0
      %2051 = vmatpush1.bf16.msra.mxu0 0
      %2052 = vmatprep.subr.bf16.mxu0 0
      %2053 = vmatpush1.bf16.msra.mxu0 0
      %2054 = vmatprep.subr.bf16.mxu0 0
      %2055 = vmatpush1.bf16.msra.mxu0 0
      %2056 = vmatprep.subr.bf16.mxu0 0
      %2057 = vmatpush1.bf16.msra.mxu0 0
      %2058 = vmatprep.subr.bf16.mxu0 0
      %2059 = vmatpush1.bf16.msra.mxu0 0
      %2060 = vmatprep.subr.bf16.mxu0 0
      %2061 = vmatpush1.bf16.msra.mxu0 0
      %2062 = vmatprep.subr.bf16.mxu0 0
      %2063 = vmatpush1.bf16.msra.mxu0 0
      %2064 = vmatprep.subr.bf16.mxu0 0
      %2065 = vmatpush1.bf16.msra.mxu0 0
      %2066 = vmatprep.subr.bf16.mxu0 0
      %2067 = vmatpush1.bf16.msra.mxu0 0
      %2068 = vmatprep.subr.bf16.mxu0 0
      %2069 = vmatpush1.bf16.msra.mxu0 0
      %2070 = vmatprep.subr.bf16.mxu0 0
      %2071 = vmatpush1.bf16.msra.mxu0 0
      %2072 = vmatprep.mubr.bf16.mxu0 0
      %2073 = vmatmul.mubr.bf16.gmra.mrb[0].mxu0 %v2023
      %v2074 = vpop.f32.mrb[0].mxu0
      %v2075 = vadd.f32 0.0, %v2074
      %v2076 = vpop.f32.mrb[0].mxu0
      %v2077 = vpop.f32.mrb[0].mxu0
      %v2078 = vadd.f32 0.0, %v2077
      %v2079 = vpop.f32.mrb[0].mxu0
      %2080 = vmatprep.mubr.bf16.mxu0 0
      %2081 = vmatmul.mubr.bf16.gmra.mrb[0].mxu0 %v2026
      %v2082 = vpop.f32.mrb[0].mxu0
      %v2083 = vadd.f32 0.0, %v2082
      %v2084 = vpop.f32.mrb[0].mxu0
      %v2085 = vpop.f32.mrb[0].mxu0
      %v2086 = vadd.f32 0.0, %v2085
      %v2087 = vpop.f32.mrb[0].mxu0
      %2088 = vmatprep.mubr.bf16.mxu0 0
      %2089 = vmatmul.mubr.bf16.gmra.mrb[0].mxu0 %v2029
      %v2090 = vpop.f32.mrb[0].mxu0
      %v2091 = vadd.f32 0.0, %v2090
      %v2092 = vpop.f32.mrb[0].mxu0
      %v2093 = vpop.f32.mrb[0].mxu0
      %v2094 = vadd.f32 0.0, %v2093
      %v2095 = vpop.f32.mrb[0].mxu0
      %2096 = vmatprep.mubr.bf16.mxu0 0
      %2097 = vmatmul.mubr.bf16.gmra.mrb[0].mxu0 %v2032
      %v2098 = vpop.f32.mrb[0].mxu0
      %v2099 = vadd.f32 0.0, %v2098
      %v2100 = vpop.f32.mrb[0].mxu0
      %v2101 = vpop.f32.mrb[0].mxu0
      %v2102 = vadd.f32 0.0, %v2101
      %v2103 = vpop.f32.mrb[0].mxu0
      %2104 = vmatprep.mubr.bf16.mxu0 0
      %2105 = vmatmul.mubr.bf16.gmra.mrb[0].mxu0 %v2035
      %v2106 = vpop.f32.mrb[0].mxu0
      %v2107 = vadd.f32 0.0, %v2106
      %v2108 = vpop.f32.mrb[0].mxu0
      %v2109 = vpop.f32.mrb[0].mxu0
      %v2110 = vadd.f32 0.0, %v2109
      %v2111 = vpop.f32.mrb[0].mxu0
      %2112 = vmatprep.mubr.bf16.mxu0 0
      %2113 = vmatmul.mubr.bf16.gmra.mrb[0].mxu0 %v2038
      %v2114 = vpop.f32.mrb[0].mxu0
      %v2115 = vadd.f32 0.0, %v2114
      %v2116 = vpop.f32.mrb[0].mxu0
      %v2117 = vpop.f32.mrb[0].mxu0
      %v2118 = vpop.f32.mrb[0].mxu0
      %2119 = vdwg.mxu0
      %v2120 = vadd.f32 %v1816, %v2075
      %v2121 = vadd.f32 %v1817, %v2078
      %v2122 = vadd.f32 %v1818, %v2083
      %v2123 = vadd.f32 %v1819, %v2086
      %v2124 = vadd.f32 %v1820, %v2091
      %v2125 = vadd.f32 %v1821, %v2094
      %v2126 = vadd.f32 %v1822, %v2099
      %v2127 = vadd.f32 %v1823, %v2102
      %v2128 = vadd.f32 %v1824, %v2107
      %v2129 = vadd.f32 %v1825, %v2110
      %v2130 = vadd.f32 %v1826, %v2115
      %s2131 = scalar_lea.vmem %s219, 528
      %v2132 = vld [vmem:[%s2131] sm:$0xff]
      %v2133 = vld [vmem:[%s2131 + $0x8] sm:$0xff]
      %v2134 = vld [vmem:[%s2131 + $0x10] sm:$0xff]
      %v2135 = vld [vmem:[%s2131 + $0x18] sm:$0xff]
      %v2136 = vld [vmem:[%s2131 + $0x20] sm:$0xff]
      %v2137 = vld [vmem:[%s2131 + $0x28] sm:$0xff]
      %v2138 = vld [vmem:[%s2131 + $0x30] sm:$0xff]
      %v2139 = vld [vmem:[%s2131 + $0x38] sm:$0xff]
      %v2140 = vld [vmem:[%s2131 + $0x40] sm:$0xff]
      %v2141 = vld [vmem:[%s2131 + $0x48] sm:$0xff]
      %v2142 = vld [vmem:[%s2131 + $0x50] sm:$0x11]
      %v2154 = vunpack.c.l.b16 %v2132
      %v2155 = vunpack.c.h.b16 %v2132
      %v2156 = vunpack.c.l.b16 %v2133
      %v2157 = vunpack.c.h.b16 %v2133
      %v2158 = vunpack.c.l.b16 %v2134
      %v2159 = vunpack.c.h.b16 %v2134
      %v2160 = vunpack.c.l.b16 %v2135
      %v2161 = vunpack.c.h.b16 %v2135
      %v2162 = vunpack.c.l.b16 %v2136
      %v2163 = vunpack.c.h.b16 %v2136
      %v2164 = vunpack.c.l.b16 %v2137
      %v2165 = vunpack.c.h.b16 %v2137
      %v2166 = vunpack.c.l.b16 %v2138
      %v2167 = vunpack.c.h.b16 %v2138
      %v2168 = vunpack.c.l.b16 %v2139
      %v2169 = vunpack.c.h.b16 %v2139
      %v2170 = vunpack.c.l.b16 %v2140
      %v2171 = vunpack.c.h.b16 %v2140
      %v2172 = vunpack.c.l.b16 %v2141
      %v2173 = vunpack.c.h.b16 %v2141
      %v2174 = vunpack.c.l.b16 %v2142
      %v2175 = vunpack.c.h.b16 %v2142
      %v2176 = vpack.c.b16 %v2156, %v2154
      %v2177 = vpack.c.b16 %v2157, %v2155
      %v2178 = vpack.c.b16 %v2160, %v2158
      %v2179 = vpack.c.b16 %v2161, %v2159
      %v2180 = vpack.c.b16 %v2164, %v2162
      %v2181 = vpack.c.b16 %v2165, %v2163
      %v2182 = vpack.c.b16 %v2168, %v2166
      %v2183 = vpack.c.b16 %v2169, %v2167
      %v2184 = vpack.c.b16 %v2172, %v2170
      %v2185 = vpack.c.b16 %v2173, %v2171
      %v2186 = vpack.c.b16 %v2174, %v2174
      %v2187 = vpack.c.b16 %v2175, %v2175
      %v2195 = vsel %vm391, %v2177, 0
      %v2198 = vsel %vm391, %v2179, 0
      %v2201 = vsel %vm391, %v2181, 0
      %v2204 = vsel %vm391, %v2183, 0
      %v2207 = vsel %vm391, %v2185, 0
      %v2210 = vsel %vm391, %v2187, 0
      %2212 = vmatprep.subr.bf16.mxu0 0
      %2213 = vmatpush1.bf16.msra.mxu0 %v367
      %2214 = vmatprep.subr.bf16.mxu0 0
      %2215 = vmatpush1.bf16.msra.mxu0 %v368
      %2216 = vmatprep.subr.bf16.mxu0 0
      %2217 = vmatpush1.bf16.msra.mxu0 %v369
      %2218 = vmatprep.subr.bf16.mxu0 0
      %2219 = vmatpush1.bf16.msra.mxu0 %v370
      %2220 = vmatprep.subr.bf16.mxu0 0
      %2221 = vmatpush1.bf16.msra.mxu0 %v371
      %2222 = vmatprep.subr.bf16.mxu0 0
      %2223 = vmatpush1.bf16.msra.mxu0 %v372
      %2224 = vmatprep.subr.bf16.mxu0 0
      %2225 = vmatpush1.bf16.msra.mxu0 %v373
      %2226 = vmatprep.subr.bf16.mxu0 0
      %2227 = vmatpush1.bf16.msra.mxu0 %v374
      %2228 = vmatprep.subr.bf16.mxu0 0
      %2229 = vmatpush1.bf16.msra.mxu0 %v375
      %2230 = vmatprep.subr.bf16.mxu0 0
      %2231 = vmatpush1.bf16.msra.mxu0 %v376
      %2232 = vmatprep.subr.bf16.mxu0 0
      %2233 = vmatpush1.bf16.msra.mxu0 %v377
      %2234 = vmatprep.subr.bf16.mxu0 0
      %2235 = vmatpush1.bf16.msra.mxu0 %v378
      %2236 = vmatprep.subr.bf16.mxu0 0
      %2237 = vmatpush1.bf16.msra.mxu0 0
      %2238 = vmatprep.subr.bf16.mxu0 0
      %2239 = vmatpush1.bf16.msra.mxu0 0
      %2240 = vmatprep.subr.bf16.mxu0 0
      %2241 = vmatpush1.bf16.msra.mxu0 0
      %2242 = vmatprep.subr.bf16.mxu0 0
      %2243 = vmatpush1.bf16.msra.mxu0 0
      %2244 = vmatprep.mubr.bf16.mxu0 %v2195
      %2245 = vmatmul.mubr.bf16.gmra.mrb[0].mxu0 %v2176
      %v2246 = vpop.f32.mrb[0].mxu0
      %v2247 = vadd.f32 %v266, %v2246
      %v2248 = vpop.f32.mrb[0].mxu0
      %v2249 = vpop.f32.mrb[0].mxu0
      %v2250 = vadd.f32 %v266, %v2249
      %v2251 = vpop.f32.mrb[0].mxu0
      %2252 = vmatprep.mubr.bf16.mxu0 %v2198
      %2253 = vmatmul.mubr.bf16.gmra.mrb[0].mxu0 %v2178
      %v2254 = vpop.f32.mrb[0].mxu0
      %v2255 = vadd.f32 %v266, %v2254
      %v2256 = vpop.f32.mrb[0].mxu0
      %v2257 = vpop.f32.mrb[0].mxu0
      %v2258 = vadd.f32 %v266, %v2257
      %v2259 = vpop.f32.mrb[0].mxu0
      %2260 = vmatprep.mubr.bf16.mxu0 %v2201
      %2261 = vmatmul.mubr.bf16.gmra.mrb[0].mxu0 %v2180
      %v2262 = vpop.f32.mrb[0].mxu0
      %v2263 = vadd.f32 %v266, %v2262
      %v2264 = vpop.f32.mrb[0].mxu0
      %v2265 = vpop.f32.mrb[0].mxu0
      %v2266 = vadd.f32 %v266, %v2265
      %v2267 = vpop.f32.mrb[0].mxu0
      %2268 = vmatprep.mubr.bf16.mxu0 %v2204
      %2269 = vmatmul.mubr.bf16.gmra.mrb[0].mxu0 %v2182
      %v2270 = vpop.f32.mrb[0].mxu0
      %v2271 = vadd.f32 %v266, %v2270
      %v2272 = vpop.f32.mrb[0].mxu0
      %v2273 = vpop.f32.mrb[0].mxu0
      %v2274 = vadd.f32 %v266, %v2273
      %v2275 = vpop.f32.mrb[0].mxu0
      %2276 = vmatprep.mubr.bf16.mxu0 %v2207
      %2277 = vmatmul.mubr.bf16.gmra.mrb[0].mxu0 %v2184
      %v2278 = vpop.f32.mrb[0].mxu0
      %v2279 = vadd.f32 %v266, %v2278
      %v2280 = vpop.f32.mrb[0].mxu0
      %v2281 = vpop.f32.mrb[0].mxu0
      %v2282 = vadd.f32 %v266, %v2281
      %v2283 = vpop.f32.mrb[0].mxu0
      %2284 = vmatprep.mubr.bf16.mxu0 %v2210
      %2285 = vmatmul.mubr.bf16.gmra.mrb[0].mxu0 %v2186
      %v2286 = vpop.f32.mrb[0].mxu0
      %v2287 = vadd.f32 %v266, %v2286
      %v2288 = vpop.f32.mrb[0].mxu0
      %v2289 = vpop.f32.mrb[0].mxu0
      %v2290 = vpop.f32.mrb[0].mxu0
      %2291 = vdwg.mxu0
      %v2292 = vmax.f32 %v2247, 0.0
      %v2293 = vmax.f32 %v2250, 0.0
      %v2294 = vmax.f32 %v2255, 0.0
      %v2295 = vmax.f32 %v2258, 0.0
      %v2296 = vmax.f32 %v2263, 0.0
      %v2297 = vmax.f32 %v2266, 0.0
      %v2298 = vmax.f32 %v2271, 0.0
      %v2299 = vmax.f32 %v2274, 0.0
      %v2300 = vmax.f32 %v2279, 0.0
      %v2301 = vmax.f32 %v2282, 0.0
      %v2302 = vmax.f32 %v2287, 0.0
      %v2303 = vpack.c.bf16 %v2293, %v2292
      %v2304 = vpack.c.bf16 %v2295, %v2294
      %v2305 = vpack.c.bf16 %v2297, %v2296
      %v2306 = vpack.c.bf16 %v2299, %v2298
      %v2307 = vpack.c.bf16 %v2301, %v2300
      %v2308 = vpack.c.bf16 %v2302, %v2302
      %s2309 = scalar_lea.vmem %s3, 96
      %v2310 = vld [vmem:[%s2309] sm:$0xf]
      %v2311 = vld [vmem:[%s2309 + $0x4] sm:$0xf]
      %v2312 = vld [vmem:[%s2309 + $0x8] sm:$0xf]
      %v2313 = vld [vmem:[%s2309 + $0xc] sm:$0xf]
      %v2318 = vunpack.c.l.b16 %v2310
      %v2319 = vunpack.c.l.b16 %v2311
      %v2320 = vunpack.c.l.b16 %v2312
      %v2321 = vunpack.c.l.b16 %v2313
      %v2322 = vpack.c.b16 %v2319, %v2318
      %v2323 = vpack.c.b16 %v2321, %v2320
      %v2327 = vsel %vm706, %v2303, 0
      %v2330 = vsel %vm706, %v2304, 0
      %v2333 = vsel %vm706, %v2305, 0
      %v2336 = vsel %vm706, %v2306, 0
      %v2339 = vsel %vm706, %v2307, 0
      %v2342 = vsel %vm706, %v2308, 0
      %2344 = vmatprep.subr.bf16.mxu0 0
      %2345 = vmatpush1.bf16.msra.mxu0 %v2322
      %2346 = vmatprep.subr.bf16.mxu0 0
      %2347 = vmatpush1.bf16.msra.mxu0 %v2323
      %2348 = vmatprep.subr.bf16.mxu0 0
      %2349 = vmatpush1.bf16.msra.mxu0 0
      %2350 = vmatprep.subr.bf16.mxu0 0
      %2351 = vmatpush1.bf16.msra.mxu0 0
      %2352 = vmatprep.subr.bf16.mxu0 0
      %2353 = vmatpush1.bf16.msra.mxu0 0
      %2354 = vmatprep.subr.bf16.mxu0 0
      %2355 = vmatpush1.bf16.msra.mxu0 0
      %2356 = vmatprep.subr.bf16.mxu0 0
      %2357 = vmatpush1.bf16.msra.mxu0 0
      %2358 = vmatprep.subr.bf16.mxu0 0
      %2359 = vmatpush1.bf16.msra.mxu0 0
      %2360 = vmatprep.subr.bf16.mxu0 0
      %2361 = vmatpush1.bf16.msra.mxu0 0
      %2362 = vmatprep.subr.bf16.mxu0 0
      %2363 = vmatpush1.bf16.msra.mxu0 0
      %2364 = vmatprep.subr.bf16.mxu0 0
      %2365 = vmatpush1.bf16.msra.mxu0 0
      %2366 = vmatprep.subr.bf16.mxu0 0
      %2367 = vmatpush1.bf16.msra.mxu0 0
      %2368 = vmatprep.subr.bf16.mxu0 0
      %2369 = vmatpush1.bf16.msra.mxu0 0
      %2370 = vmatprep.subr.bf16.mxu0 0
      %2371 = vmatpush1.bf16.msra.mxu0 0
      %2372 = vmatprep.subr.bf16.mxu0 0
      %2373 = vmatpush1.bf16.msra.mxu0 0
      %2374 = vmatprep.subr.bf16.mxu0 0
      %2375 = vmatpush1.bf16.msra.mxu0 0
      %2376 = vmatprep.mubr.bf16.mxu0 0
      %2377 = vmatmul.mubr.bf16.gmra.mrb[0].mxu0 %v2327
      %v2378 = vpop.f32.mrb[0].mxu0
      %v2379 = vadd.f32 0.0, %v2378
      %v2380 = vpop.f32.mrb[0].mxu0
      %v2381 = vpop.f32.mrb[0].mxu0
      %v2382 = vadd.f32 0.0, %v2381
      %v2383 = vpop.f32.mrb[0].mxu0
      %2384 = vmatprep.mubr.bf16.mxu0 0
      %2385 = vmatmul.mubr.bf16.gmra.mrb[0].mxu0 %v2330
      %v2386 = vpop.f32.mrb[0].mxu0
      %v2387 = vadd.f32 0.0, %v2386
      %v2388 = vpop.f32.mrb[0].mxu0
      %v2389 = vpop.f32.mrb[0].mxu0
      %v2390 = vadd.f32 0.0, %v2389
      %v2391 = vpop.f32.mrb[0].mxu0
      %2392 = vmatprep.mubr.bf16.mxu0 0
      %2393 = vmatmul.mubr.bf16.gmra.mrb[0].mxu0 %v2333
      %v2394 = vpop.f32.mrb[0].mxu0
      %v2395 = vadd.f32 0.0, %v2394
      %v2396 = vpop.f32.mrb[0].mxu0
      %v2397 = vpop.f32.mrb[0].mxu0
      %v2398 = vadd.f32 0.0, %v2397
      %v2399 = vpop.f32.mrb[0].mxu0
      %2400 = vmatprep.mubr.bf16.mxu0 0
      %2401 = vmatmul.mubr.bf16.gmra.mrb[0].mxu0 %v2336
      %v2402 = vpop.f32.mrb[0].mxu0
      %v2403 = vadd.f32 0.0, %v2402
      %v2404 = vpop.f32.mrb[0].mxu0
      %v2405 = vpop.f32.mrb[0].mxu0
      %v2406 = vadd.f32 0.0, %v2405
      %v2407 = vpop.f32.mrb[0].mxu0
      %2408 = vmatprep.mubr.bf16.mxu0 0
      %2409 = vmatmul.mubr.bf16.gmra.mrb[0].mxu0 %v2339
      %v2410 = vpop.f32.mrb[0].mxu0
      %v2411 = vadd.f32 0.0, %v2410
      %v2412 = vpop.f32.mrb[0].mxu0
      %v2413 = vpop.f32.mrb[0].mxu0
      %v2414 = vadd.f32 0.0, %v2413
      %v2415 = vpop.f32.mrb[0].mxu0
      %2416 = vmatprep.mubr.bf16.mxu0 0
      %2417 = vmatmul.mubr.bf16.gmra.mrb[0].mxu0 %v2342
      %v2418 = vpop.f32.mrb[0].mxu0
      %v2419 = vadd.f32 0.0, %v2418
      %v2420 = vpop.f32.mrb[0].mxu0
      %v2421 = vpop.f32.mrb[0].mxu0
      %v2422 = vpop.f32.mrb[0].mxu0
      %2423 = vdwg.mxu0
      %v2424 = vadd.f32 %v2120, %v2379
      %v2425 = vadd.f32 %v2121, %v2382
      %v2426 = vadd.f32 %v2122, %v2387
      %v2427 = vadd.f32 %v2123, %v2390
      %v2428 = vadd.f32 %v2124, %v2395
      %v2429 = vadd.f32 %v2125, %v2398
      %v2430 = vadd.f32 %v2126, %v2403
      %v2431 = vadd.f32 %v2127, %v2406
      %v2432 = vadd.f32 %v2128, %v2411
      %v2433 = vadd.f32 %v2129, %v2414
      %v2434 = vadd.f32 %v2130, %v2419
      %s2435 = scalar_lea.vmem %s219, 616
      %v2436 = vld [vmem:[%s2435] sm:$0xff]
      %v2437 = vld [vmem:[%s2435 + $0x8] sm:$0xff]
      %v2438 = vld [vmem:[%s2435 + $0x10] sm:$0xff]
      %v2439 = vld [vmem:[%s2435 + $0x18] sm:$0xff]
      %v2440 = vld [vmem:[%s2435 + $0x20] sm:$0xff]
      %v2441 = vld [vmem:[%s2435 + $0x28] sm:$0xff]
      %v2442 = vld [vmem:[%s2435 + $0x30] sm:$0xff]
      %v2443 = vld [vmem:[%s2435 + $0x38] sm:$0xff]
      %v2444 = vld [vmem:[%s2435 + $0x40] sm:$0xff]
      %v2445 = vld [vmem:[%s2435 + $0x48] sm:$0xff]
      %v2446 = vld [vmem:[%s2435 + $0x50] sm:$0x11]
      %v2458 = vunpack.c.l.b16 %v2436
      %v2459 = vunpack.c.h.b16 %v2436
      %v2460 = vunpack.c.l.b16 %v2437
      %v2461 = vunpack.c.h.b16 %v2437
      %v2462 = vunpack.c.l.b16 %v2438
      %v2463 = vunpack.c.h.b16 %v2438
      %v2464 = vunpack.c.l.b16 %v2439
      %v2465 = vunpack.c.h.b16 %v2439
      %v2466 = vunpack.c.l.b16 %v2440
      %v2467 = vunpack.c.h.b16 %v2440
      %v2468 = vunpack.c.l.b16 %v2441
      %v2469 = vunpack.c.h.b16 %v2441
      %v2470 = vunpack.c.l.b16 %v2442
      %v2471 = vunpack.c.h.b16 %v2442
      %v2472 = vunpack.c.l.b16 %v2443
      %v2473 = vunpack.c.h.b16 %v2443
      %v2474 = vunpack.c.l.b16 %v2444
      %v2475 = vunpack.c.h.b16 %v2444
      %v2476 = vunpack.c.l.b16 %v2445
      %v2477 = vunpack.c.h.b16 %v2445
      %v2478 = vunpack.c.l.b16 %v2446
      %v2479 = vunpack.c.h.b16 %v2446
      %v2480 = vpack.c.b16 %v2460, %v2458
      %v2481 = vpack.c.b16 %v2461, %v2459
      %v2482 = vpack.c.b16 %v2464, %v2462
      %v2483 = vpack.c.b16 %v2465, %v2463
      %v2484 = vpack.c.b16 %v2468, %v2466
      %v2485 = vpack.c.b16 %v2469, %v2467
      %v2486 = vpack.c.b16 %v2472, %v2470
      %v2487 = vpack.c.b16 %v2473, %v2471
      %v2488 = vpack.c.b16 %v2476, %v2474
      %v2489 = vpack.c.b16 %v2477, %v2475
      %v2490 = vpack.c.b16 %v2478, %v2478
      %v2491 = vpack.c.b16 %v2479, %v2479
      %v2499 = vsel %vm391, %v2481, 0
      %v2502 = vsel %vm391, %v2483, 0
      %v2505 = vsel %vm391, %v2485, 0
      %v2508 = vsel %vm391, %v2487, 0
      %v2511 = vsel %vm391, %v2489, 0
      %v2514 = vsel %vm391, %v2491, 0
      %2516 = vmatprep.subr.bf16.mxu0 0
      %2517 = vmatpush1.bf16.msra.mxu0 %v367
      %2518 = vmatprep.subr.bf16.mxu0 0
      %2519 = vmatpush1.bf16.msra.mxu0 %v368
      %2520 = vmatprep.subr.bf16.mxu0 0
      %2521 = vmatpush1.bf16.msra.mxu0 %v369
      %2522 = vmatprep.subr.bf16.mxu0 0
      %2523 = vmatpush1.bf16.msra.mxu0 %v370
      %2524 = vmatprep.subr.bf16.mxu0 0
      %2525 = vmatpush1.bf16.msra.mxu0 %v371
      %2526 = vmatprep.subr.bf16.mxu0 0
      %2527 = vmatpush1.bf16.msra.mxu0 %v372
      %2528 = vmatprep.subr.bf16.mxu0 0
      %2529 = vmatpush1.bf16.msra.mxu0 %v373
      %2530 = vmatprep.subr.bf16.mxu0 0
      %2531 = vmatpush1.bf16.msra.mxu0 %v374
      %2532 = vmatprep.subr.bf16.mxu0 0
      %2533 = vmatpush1.bf16.msra.mxu0 %v375
      %2534 = vmatprep.subr.bf16.mxu0 0
      %2535 = vmatpush1.bf16.msra.mxu0 %v376
      %2536 = vmatprep.subr.bf16.mxu0 0
      %2537 = vmatpush1.bf16.msra.mxu0 %v377
      %2538 = vmatprep.subr.bf16.mxu0 0
      %2539 = vmatpush1.bf16.msra.mxu0 %v378
      %2540 = vmatprep.subr.bf16.mxu0 0
      %2541 = vmatpush1.bf16.msra.mxu0 0
      %2542 = vmatprep.subr.bf16.mxu0 0
      %2543 = vmatpush1.bf16.msra.mxu0 0
      %2544 = vmatprep.subr.bf16.mxu0 0
      %2545 = vmatpush1.bf16.msra.mxu0 0
      %2546 = vmatprep.subr.bf16.mxu0 0
      %2547 = vmatpush1.bf16.msra.mxu0 0
      %2548 = vmatprep.mubr.bf16.mxu0 %v2499
      %2549 = vmatmul.mubr.bf16.gmra.mrb[0].mxu0 %v2480
      %v2550 = vpop.f32.mrb[0].mxu0
      %v2551 = vadd.f32 %v266, %v2550
      %v2552 = vpop.f32.mrb[0].mxu0
      %v2553 = vpop.f32.mrb[0].mxu0
      %v2554 = vadd.f32 %v266, %v2553
      %v2555 = vpop.f32.mrb[0].mxu0
      %2556 = vmatprep.mubr.bf16.mxu0 %v2502
      %2557 = vmatmul.mubr.bf16.gmra.mrb[0].mxu0 %v2482
      %v2558 = vpop.f32.mrb[0].mxu0
      %v2559 = vadd.f32 %v266, %v2558
      %v2560 = vpop.f32.mrb[0].mxu0
      %v2561 = vpop.f32.mrb[0].mxu0
      %v2562 = vadd.f32 %v266, %v2561
      %v2563 = vpop.f32.mrb[0].mxu0
      %2564 = vmatprep.mubr.bf16.mxu0 %v2505
      %2565 = vmatmul.mubr.bf16.gmra.mrb[0].mxu0 %v2484
      %v2566 = vpop.f32.mrb[0].mxu0
      %v2567 = vadd.f32 %v266, %v2566
      %v2568 = vpop.f32.mrb[0].mxu0
      %v2569 = vpop.f32.mrb[0].mxu0
      %v2570 = vadd.f32 %v266, %v2569
      %v2571 = vpop.f32.mrb[0].mxu0
      %2572 = vmatprep.mubr.bf16.mxu0 %v2508
      %2573 = vmatmul.mubr.bf16.gmra.mrb[0].mxu0 %v2486
      %v2574 = vpop.f32.mrb[0].mxu0
      %v2575 = vadd.f32 %v266, %v2574
      %v2576 = vpop.f32.mrb[0].mxu0
      %v2577 = vpop.f32.mrb[0].mxu0
      %v2578 = vadd.f32 %v266, %v2577
      %v2579 = vpop.f32.mrb[0].mxu0
      %2580 = vmatprep.mubr.bf16.mxu0 %v2511
      %2581 = vmatmul.mubr.bf16.gmra.mrb[0].mxu0 %v2488
      %v2582 = vpop.f32.mrb[0].mxu0
      %v2583 = vadd.f32 %v266, %v2582
      %v2584 = vpop.f32.mrb[0].mxu0
      %v2585 = vpop.f32.mrb[0].mxu0
      %v2586 = vadd.f32 %v266, %v2585
      %v2587 = vpop.f32.mrb[0].mxu0
      %2588 = vmatprep.mubr.bf16.mxu0 %v2514
      %2589 = vmatmul.mubr.bf16.gmra.mrb[0].mxu0 %v2490
      %v2590 = vpop.f32.mrb[0].mxu0
      %v2591 = vadd.f32 %v266, %v2590
      %v2592 = vpop.f32.mrb[0].mxu0
      %v2593 = vpop.f32.mrb[0].mxu0
      %v2594 = vpop.f32.mrb[0].mxu0
      %2595 = vdwg.mxu0
      %v2596 = vmax.f32 %v2551, 0.0
      %v2597 = vmax.f32 %v2554, 0.0
      %v2598 = vmax.f32 %v2559, 0.0
      %v2599 = vmax.f32 %v2562, 0.0
      %v2600 = vmax.f32 %v2567, 0.0
      %v2601 = vmax.f32 %v2570, 0.0
      %v2602 = vmax.f32 %v2575, 0.0
      %v2603 = vmax.f32 %v2578, 0.0
      %v2604 = vmax.f32 %v2583, 0.0
      %v2605 = vmax.f32 %v2586, 0.0
      %v2606 = vmax.f32 %v2591, 0.0
      %v2607 = vpack.c.bf16 %v2597, %v2596
      %v2608 = vpack.c.bf16 %v2599, %v2598
      %v2609 = vpack.c.bf16 %v2601, %v2600
      %v2610 = vpack.c.bf16 %v2603, %v2602
      %v2611 = vpack.c.bf16 %v2605, %v2604
      %v2612 = vpack.c.bf16 %v2606, %v2606
      %s2613 = scalar_lea.vmem %s3, 112
      %v2614 = vld [vmem:[%s2613] sm:$0xf]
      %v2615 = vld [vmem:[%s2613 + $0x4] sm:$0xf]
      %v2616 = vld [vmem:[%s2613 + $0x8] sm:$0xf]
      %v2617 = vld [vmem:[%s2613 + $0xc] sm:$0xf]
      %v2622 = vunpack.c.l.b16 %v2614
      %v2623 = vunpack.c.l.b16 %v2615
      %v2624 = vunpack.c.l.b16 %v2616
      %v2625 = vunpack.c.l.b16 %v2617
      %v2626 = vpack.c.b16 %v2623, %v2622
      %v2627 = vpack.c.b16 %v2625, %v2624
      %v2631 = vsel %vm706, %v2607, 0
      %v2634 = vsel %vm706, %v2608, 0
      %v2637 = vsel %vm706, %v2609, 0
      %v2640 = vsel %vm706, %v2610, 0
      %v2643 = vsel %vm706, %v2611, 0
      %v2646 = vsel %vm706, %v2612, 0
      %2648 = vmatprep.subr.bf16.mxu0 0
      %2649 = vmatpush1.bf16.msra.mxu0 %v2626
      %2650 = vmatprep.subr.bf16.mxu0 0
      %2651 = vmatpush1.bf16.msra.mxu0 %v2627
      %2652 = vmatprep.subr.bf16.mxu0 0
      %2653 = vmatpush1.bf16.msra.mxu0 0
      %2654 = vmatprep.subr.bf16.mxu0 0
      %2655 = vmatpush1.bf16.msra.mxu0 0
      %2656 = vmatprep.subr.bf16.mxu0 0
      %2657 = vmatpush1.bf16.msra.mxu0 0
      %2658 = vmatprep.subr.bf16.mxu0 0
      %2659 = vmatpush1.bf16.msra.mxu0 0
      %2660 = vmatprep.subr.bf16.mxu0 0
      %2661 = vmatpush1.bf16.msra.mxu0 0
      %2662 = vmatprep.subr.bf16.mxu0 0
      %2663 = vmatpush1.bf16.msra.mxu0 0
      %2664 = vmatprep.subr.bf16.mxu0 0
      %2665 = vmatpush1.bf16.msra.mxu0 0
      %2666 = vmatprep.subr.bf16.mxu0 0
      %2667 = vmatpush1.bf16.msra.mxu0 0
      %2668 = vmatprep.subr.bf16.mxu0 0
      %2669 = vmatpush1.bf16.msra.mxu0 0
      %2670 = vmatprep.subr.bf16.mxu0 0
      %2671 = vmatpush1.bf16.msra.mxu0 0
      %2672 = vmatprep.subr.bf16.mxu0 0
      %2673 = vmatpush1.bf16.msra.mxu0 0
      %2674 = vmatprep.subr.bf16.mxu0 0
      %2675 = vmatpush1.bf16.msra.mxu0 0
      %2676 = vmatprep.subr.bf16.mxu0 0
      %2677 = vmatpush1.bf16.msra.mxu0 0
      %2678 = vmatprep.subr.bf16.mxu0 0
      %2679 = vmatpush1.bf16.msra.mxu0 0
      %2680 = vmatprep.mubr.bf16.mxu0 0
      %2681 = vmatmul.mubr.bf16.gmra.mrb[0].mxu0 %v2631
      %v2682 = vpop.f32.mrb[0].mxu0
      %v2683 = vadd.f32 0.0, %v2682
      %v2684 = vpop.f32.mrb[0].mxu0
      %v2685 = vpop.f32.mrb[0].mxu0
      %v2686 = vadd.f32 0.0, %v2685
      %v2687 = vpop.f32.mrb[0].mxu0
      %2688 = vmatprep.mubr.bf16.mxu0 0
      %2689 = vmatmul.mubr.bf16.gmra.mrb[0].mxu0 %v2634
      %v2690 = vpop.f32.mrb[0].mxu0
      %v2691 = vadd.f32 0.0, %v2690
      %v2692 = vpop.f32.mrb[0].mxu0
      %v2693 = vpop.f32.mrb[0].mxu0
      %v2694 = vadd.f32 0.0, %v2693
      %v2695 = vpop.f32.mrb[0].mxu0
      %2696 = vmatprep.mubr.bf16.mxu0 0
      %2697 = vmatmul.mubr.bf16.gmra.mrb[0].mxu0 %v2637
      %v2698 = vpop.f32.mrb[0].mxu0
      %v2699 = vadd.f32 0.0, %v2698
      %v2700 = vpop.f32.mrb[0].mxu0
      %v2701 = vpop.f32.mrb[0].mxu0
      %v2702 = vadd.f32 0.0, %v2701
      %v2703 = vpop.f32.mrb[0].mxu0
      %2704 = vmatprep.mubr.bf16.mxu0 0
      %2705 = vmatmul.mubr.bf16.gmra.mrb[0].mxu0 %v2640
      %v2706 = vpop.f32.mrb[0].mxu0
      %v2707 = vadd.f32 0.0, %v2706
      %v2708 = vpop.f32.mrb[0].mxu0
      %v2709 = vpop.f32.mrb[0].mxu0
      %v2710 = vadd.f32 0.0, %v2709
      %v2711 = vpop.f32.mrb[0].mxu0
      %2712 = vmatprep.mubr.bf16.mxu0 0
      %2713 = vmatmul.mubr.bf16.gmra.mrb[0].mxu0 %v2643
      %v2714 = vpop.f32.mrb[0].mxu0
      %v2715 = vadd.f32 0.0, %v2714
      %v2716 = vpop.f32.mrb[0].mxu0
      %v2717 = vpop.f32.mrb[0].mxu0
      %v2718 = vadd.f32 0.0, %v2717
      %v2719 = vpop.f32.mrb[0].mxu0
      %2720 = vmatprep.mubr.bf16.mxu0 0
      %2721 = vmatmul.mubr.bf16.gmra.mrb[0].mxu0 %v2646
      %v2722 = vpop.f32.mrb[0].mxu0
      %v2723 = vadd.f32 0.0, %v2722
      %v2724 = vpop.f32.mrb[0].mxu0
      %v2725 = vpop.f32.mrb[0].mxu0
      %v2726 = vpop.f32.mrb[0].mxu0
      %2727 = vdwg.mxu0
      %v2728 = vadd.f32 %v2424, %v2683
      %v2729 = vadd.f32 %v2425, %v2686
      %v2730 = vadd.f32 %v2426, %v2691
      %v2731 = vadd.f32 %v2427, %v2694
      %v2732 = vadd.f32 %v2428, %v2699
      %v2733 = vadd.f32 %v2429, %v2702
      %v2734 = vadd.f32 %v2430, %v2707
      %v2735 = vadd.f32 %v2431, %v2710
      %v2736 = vadd.f32 %v2432, %v2715
      %v2737 = vadd.f32 %v2433, %v2718
      %v2738 = vadd.f32 %v2434, %v2723
      %s2739 = scalar_lea.vmem %s219, 704
      %v2740 = vld [vmem:[%s2739] sm:$0xff]
      %v2741 = vld [vmem:[%s2739 + $0x8] sm:$0xff]
      %v2742 = vld [vmem:[%s2739 + $0x10] sm:$0xff]
      %v2743 = vld [vmem:[%s2739 + $0x18] sm:$0xff]
      %v2744 = vld [vmem:[%s2739 + $0x20] sm:$0xff]
      %v2745 = vld [vmem:[%s2739 + $0x28] sm:$0xff]
      %v2746 = vld [vmem:[%s2739 + $0x30] sm:$0xff]
      %v2747 = vld [vmem:[%s2739 + $0x38] sm:$0xff]
      %v2748 = vld [vmem:[%s2739 + $0x40] sm:$0xff]
      %v2749 = vld [vmem:[%s2739 + $0x48] sm:$0xff]
      %v2750 = vld [vmem:[%s2739 + $0x50] sm:$0x11]
      %v2762 = vunpack.c.l.b16 %v2740
      %v2763 = vunpack.c.h.b16 %v2740
      %v2764 = vunpack.c.l.b16 %v2741
      %v2765 = vunpack.c.h.b16 %v2741
      %v2766 = vunpack.c.l.b16 %v2742
      %v2767 = vunpack.c.h.b16 %v2742
      %v2768 = vunpack.c.l.b16 %v2743
      %v2769 = vunpack.c.h.b16 %v2743
      %v2770 = vunpack.c.l.b16 %v2744
      %v2771 = vunpack.c.h.b16 %v2744
      %v2772 = vunpack.c.l.b16 %v2745
      %v2773 = vunpack.c.h.b16 %v2745
      %v2774 = vunpack.c.l.b16 %v2746
      %v2775 = vunpack.c.h.b16 %v2746
      %v2776 = vunpack.c.l.b16 %v2747
      %v2777 = vunpack.c.h.b16 %v2747
      %v2778 = vunpack.c.l.b16 %v2748
      %v2779 = vunpack.c.h.b16 %v2748
      %v2780 = vunpack.c.l.b16 %v2749
      %v2781 = vunpack.c.h.b16 %v2749
      %v2782 = vunpack.c.l.b16 %v2750
      %v2783 = vunpack.c.h.b16 %v2750
      %v2784 = vpack.c.b16 %v2764, %v2762
      %v2785 = vpack.c.b16 %v2765, %v2763
      %v2786 = vpack.c.b16 %v2768, %v2766
      %v2787 = vpack.c.b16 %v2769, %v2767
      %v2788 = vpack.c.b16 %v2772, %v2770
      %v2789 = vpack.c.b16 %v2773, %v2771
      %v2790 = vpack.c.b16 %v2776, %v2774
      %v2791 = vpack.c.b16 %v2777, %v2775
      %v2792 = vpack.c.b16 %v2780, %v2778
      %v2793 = vpack.c.b16 %v2781, %v2779
      %v2794 = vpack.c.b16 %v2782, %v2782
      %v2795 = vpack.c.b16 %v2783, %v2783
      %v2803 = vsel %vm391, %v2785, 0
      %v2806 = vsel %vm391, %v2787, 0
      %v2809 = vsel %vm391, %v2789, 0
      %v2812 = vsel %vm391, %v2791, 0
      %v2815 = vsel %vm391, %v2793, 0
      %v2818 = vsel %vm391, %v2795, 0
      %2820 = vmatprep.subr.bf16.mxu0 0
      %2821 = vmatpush1.bf16.msra.mxu0 %v367
      %2822 = vmatprep.subr.bf16.mxu0 0
      %2823 = vmatpush1.bf16.msra.mxu0 %v368
      %2824 = vmatprep.subr.bf16.mxu0 0
      %2825 = vmatpush1.bf16.msra.mxu0 %v369
      %2826 = vmatprep.subr.bf16.mxu0 0
      %2827 = vmatpush1.bf16.msra.mxu0 %v370
      %2828 = vmatprep.subr.bf16.mxu0 0
      %2829 = vmatpush1.bf16.msra.mxu0 %v371
      %2830 = vmatprep.subr.bf16.mxu0 0
      %2831 = vmatpush1.bf16.msra.mxu0 %v372
      %2832 = vmatprep.subr.bf16.mxu0 0
      %2833 = vmatpush1.bf16.msra.mxu0 %v373
      %2834 = vmatprep.subr.bf16.mxu0 0
      %2835 = vmatpush1.bf16.msra.mxu0 %v374
      %2836 = vmatprep.subr.bf16.mxu0 0
      %2837 = vmatpush1.bf16.msra.mxu0 %v375
      %2838 = vmatprep.subr.bf16.mxu0 0
      %2839 = vmatpush1.bf16.msra.mxu0 %v376
      %2840 = vmatprep.subr.bf16.mxu0 0
      %2841 = vmatpush1.bf16.msra.mxu0 %v377
      %2842 = vmatprep.subr.bf16.mxu0 0
      %2843 = vmatpush1.bf16.msra.mxu0 %v378
      %2844 = vmatprep.subr.bf16.mxu0 0
      %2845 = vmatpush1.bf16.msra.mxu0 0
      %2846 = vmatprep.subr.bf16.mxu0 0
      %2847 = vmatpush1.bf16.msra.mxu0 0
      %2848 = vmatprep.subr.bf16.mxu0 0
      %2849 = vmatpush1.bf16.msra.mxu0 0
      %2850 = vmatprep.subr.bf16.mxu0 0
      %2851 = vmatpush1.bf16.msra.mxu0 0
      %2852 = vmatprep.mubr.bf16.mxu0 %v2803
      %2853 = vmatmul.mubr.bf16.gmra.mrb[0].mxu0 %v2784
      %v2854 = vpop.f32.mrb[0].mxu0
      %v2855 = vadd.f32 %v266, %v2854
      %v2856 = vpop.f32.mrb[0].mxu0
      %v2857 = vpop.f32.mrb[0].mxu0
      %v2858 = vadd.f32 %v266, %v2857
      %v2859 = vpop.f32.mrb[0].mxu0
      %2860 = vmatprep.mubr.bf16.mxu0 %v2806
      %2861 = vmatmul.mubr.bf16.gmra.mrb[0].mxu0 %v2786
      %v2862 = vpop.f32.mrb[0].mxu0
      %v2863 = vadd.f32 %v266, %v2862
      %v2864 = vpop.f32.mrb[0].mxu0
      %v2865 = vpop.f32.mrb[0].mxu0
      %v2866 = vadd.f32 %v266, %v2865
      %v2867 = vpop.f32.mrb[0].mxu0
      %2868 = vmatprep.mubr.bf16.mxu0 %v2809
      %2869 = vmatmul.mubr.bf16.gmra.mrb[0].mxu0 %v2788
      %v2870 = vpop.f32.mrb[0].mxu0
      %v2871 = vadd.f32 %v266, %v2870
      %v2872 = vpop.f32.mrb[0].mxu0
      %v2873 = vpop.f32.mrb[0].mxu0
      %v2874 = vadd.f32 %v266, %v2873
      %v2875 = vpop.f32.mrb[0].mxu0
      %2876 = vmatprep.mubr.bf16.mxu0 %v2812
      %2877 = vmatmul.mubr.bf16.gmra.mrb[0].mxu0 %v2790
      %v2878 = vpop.f32.mrb[0].mxu0
      %v2879 = vadd.f32 %v266, %v2878
      %v2880 = vpop.f32.mrb[0].mxu0
      %v2881 = vpop.f32.mrb[0].mxu0
      %v2882 = vadd.f32 %v266, %v2881
      %v2883 = vpop.f32.mrb[0].mxu0
      %2884 = vmatprep.mubr.bf16.mxu0 %v2815
      %2885 = vmatmul.mubr.bf16.gmra.mrb[0].mxu0 %v2792
      %v2886 = vpop.f32.mrb[0].mxu0
      %v2887 = vadd.f32 %v266, %v2886
      %v2888 = vpop.f32.mrb[0].mxu0
      %v2889 = vpop.f32.mrb[0].mxu0
      %v2890 = vadd.f32 %v266, %v2889
      %v2891 = vpop.f32.mrb[0].mxu0
      %2892 = vmatprep.mubr.bf16.mxu0 %v2818
      %2893 = vmatmul.mubr.bf16.gmra.mrb[0].mxu0 %v2794
      %v2894 = vpop.f32.mrb[0].mxu0
      %v2895 = vadd.f32 %v266, %v2894
      %v2896 = vpop.f32.mrb[0].mxu0
      %v2897 = vpop.f32.mrb[0].mxu0
      %v2898 = vpop.f32.mrb[0].mxu0
      %2899 = vdwg.mxu0
      %v2900 = vmax.f32 %v2855, 0.0
      %v2901 = vmax.f32 %v2858, 0.0
      %v2902 = vmax.f32 %v2863, 0.0
      %v2903 = vmax.f32 %v2866, 0.0
      %v2904 = vmax.f32 %v2871, 0.0
      %v2905 = vmax.f32 %v2874, 0.0
      %v2906 = vmax.f32 %v2879, 0.0
      %v2907 = vmax.f32 %v2882, 0.0
      %v2908 = vmax.f32 %v2887, 0.0
      %v2909 = vmax.f32 %v2890, 0.0
      %v2910 = vmax.f32 %v2895, 0.0
      %v2911 = vpack.c.bf16 %v2901, %v2900
      %v2912 = vpack.c.bf16 %v2903, %v2902
      %v2913 = vpack.c.bf16 %v2905, %v2904
      %v2914 = vpack.c.bf16 %v2907, %v2906
      %v2915 = vpack.c.bf16 %v2909, %v2908
      %v2916 = vpack.c.bf16 %v2910, %v2910
      %s2917 = scalar_lea.vmem %s3, 128
      %v2918 = vld [vmem:[%s2917] sm:$0xf]
      %v2919 = vld [vmem:[%s2917 + $0x4] sm:$0xf]
      %v2920 = vld [vmem:[%s2917 + $0x8] sm:$0xf]
      %v2921 = vld [vmem:[%s2917 + $0xc] sm:$0xf]
      %v2926 = vunpack.c.l.b16 %v2918
      %v2927 = vunpack.c.l.b16 %v2919
      %v2928 = vunpack.c.l.b16 %v2920
      %v2929 = vunpack.c.l.b16 %v2921
      %v2930 = vpack.c.b16 %v2927, %v2926
      %v2931 = vpack.c.b16 %v2929, %v2928
      %v2935 = vsel %vm706, %v2911, 0
      %v2938 = vsel %vm706, %v2912, 0
      %v2941 = vsel %vm706, %v2913, 0
      %v2944 = vsel %vm706, %v2914, 0
      %v2947 = vsel %vm706, %v2915, 0
      %v2950 = vsel %vm706, %v2916, 0
      %2952 = vmatprep.subr.bf16.mxu0 0
      %2953 = vmatpush1.bf16.msra.mxu0 %v2930
      %2954 = vmatprep.subr.bf16.mxu0 0
      %2955 = vmatpush1.bf16.msra.mxu0 %v2931
      %2956 = vmatprep.subr.bf16.mxu0 0
      %2957 = vmatpush1.bf16.msra.mxu0 0
      %2958 = vmatprep.subr.bf16.mxu0 0
      %2959 = vmatpush1.bf16.msra.mxu0 0
      %2960 = vmatprep.subr.bf16.mxu0 0
      %2961 = vmatpush1.bf16.msra.mxu0 0
      %2962 = vmatprep.subr.bf16.mxu0 0
      %2963 = vmatpush1.bf16.msra.mxu0 0
      %2964 = vmatprep.subr.bf16.mxu0 0
      %2965 = vmatpush1.bf16.msra.mxu0 0
      %2966 = vmatprep.subr.bf16.mxu0 0
      %2967 = vmatpush1.bf16.msra.mxu0 0
      %2968 = vmatprep.subr.bf16.mxu0 0
      %2969 = vmatpush1.bf16.msra.mxu0 0
      %2970 = vmatprep.subr.bf16.mxu0 0
      %2971 = vmatpush1.bf16.msra.mxu0 0
      %2972 = vmatprep.subr.bf16.mxu0 0
      %2973 = vmatpush1.bf16.msra.mxu0 0
      %2974 = vmatprep.subr.bf16.mxu0 0
      %2975 = vmatpush1.bf16.msra.mxu0 0
      %2976 = vmatprep.subr.bf16.mxu0 0
      %2977 = vmatpush1.bf16.msra.mxu0 0
      %2978 = vmatprep.subr.bf16.mxu0 0
      %2979 = vmatpush1.bf16.msra.mxu0 0
      %2980 = vmatprep.subr.bf16.mxu0 0
      %2981 = vmatpush1.bf16.msra.mxu0 0
      %2982 = vmatprep.subr.bf16.mxu0 0
      %2983 = vmatpush1.bf16.msra.mxu0 0
      %2984 = vmatprep.mubr.bf16.mxu0 0
      %2985 = vmatmul.mubr.bf16.gmra.mrb[0].mxu0 %v2935
      %v2986 = vpop.f32.mrb[0].mxu0
      %v2987 = vadd.f32 0.0, %v2986
      %v2988 = vpop.f32.mrb[0].mxu0
      %v2989 = vpop.f32.mrb[0].mxu0
      %v2990 = vadd.f32 0.0, %v2989
      %v2991 = vpop.f32.mrb[0].mxu0
      %2992 = vmatprep.mubr.bf16.mxu0 0
      %2993 = vmatmul.mubr.bf16.gmra.mrb[0].mxu0 %v2938
      %v2994 = vpop.f32.mrb[0].mxu0
      %v2995 = vadd.f32 0.0, %v2994
      %v2996 = vpop.f32.mrb[0].mxu0
      %v2997 = vpop.f32.mrb[0].mxu0
      %v2998 = vadd.f32 0.0, %v2997
      %v2999 = vpop.f32.mrb[0].mxu0
      %3000 = vmatprep.mubr.bf16.mxu0 0
      %3001 = vmatmul.mubr.bf16.gmra.mrb[0].mxu0 %v2941
      %v3002 = vpop.f32.mrb[0].mxu0
      %v3003 = vadd.f32 0.0, %v3002
      %v3004 = vpop.f32.mrb[0].mxu0
      %v3005 = vpop.f32.mrb[0].mxu0
      %v3006 = vadd.f32 0.0, %v3005
      %v3007 = vpop.f32.mrb[0].mxu0
      %3008 = vmatprep.mubr.bf16.mxu0 0
      %3009 = vmatmul.mubr.bf16.gmra.mrb[0].mxu0 %v2944
      %v3010 = vpop.f32.mrb[0].mxu0
      %v3011 = vadd.f32 0.0, %v3010
      %v3012 = vpop.f32.mrb[0].mxu0
      %v3013 = vpop.f32.mrb[0].mxu0
      %v3014 = vadd.f32 0.0, %v3013
      %v3015 = vpop.f32.mrb[0].mxu0
      %3016 = vmatprep.mubr.bf16.mxu0 0
      %3017 = vmatmul.mubr.bf16.gmra.mrb[0].mxu0 %v2947
      %v3018 = vpop.f32.mrb[0].mxu0
      %v3019 = vadd.f32 0.0, %v3018
      %v3020 = vpop.f32.mrb[0].mxu0
      %v3021 = vpop.f32.mrb[0].mxu0
      %v3022 = vadd.f32 0.0, %v3021
      %v3023 = vpop.f32.mrb[0].mxu0
      %3024 = vmatprep.mubr.bf16.mxu0 0
      %3025 = vmatmul.mubr.bf16.gmra.mrb[0].mxu0 %v2950
      %v3026 = vpop.f32.mrb[0].mxu0
      %v3027 = vadd.f32 0.0, %v3026
      %v3028 = vpop.f32.mrb[0].mxu0
      %v3029 = vpop.f32.mrb[0].mxu0
      %v3030 = vpop.f32.mrb[0].mxu0
      %3031 = vdwg.mxu0
      %v3032 = vadd.f32 %v2728, %v2987
      %v3033 = vadd.f32 %v2729, %v2990
      %v3034 = vadd.f32 %v2730, %v2995
      %v3035 = vadd.f32 %v2731, %v2998
      %v3036 = vadd.f32 %v2732, %v3003
      %v3037 = vadd.f32 %v2733, %v3006
      %v3038 = vadd.f32 %v2734, %v3011
      %v3039 = vadd.f32 %v2735, %v3014
      %v3040 = vadd.f32 %v2736, %v3019
      %v3041 = vadd.f32 %v2737, %v3022
      %v3042 = vadd.f32 %v2738, %v3027
      %s3043 = scalar_lea.vmem %s219, 792
      %v3044 = vld [vmem:[%s3043] sm:$0xff]
      %v3045 = vld [vmem:[%s3043 + $0x8] sm:$0xff]
      %v3046 = vld [vmem:[%s3043 + $0x10] sm:$0xff]
      %v3047 = vld [vmem:[%s3043 + $0x18] sm:$0xff]
      %v3048 = vld [vmem:[%s3043 + $0x20] sm:$0xff]
      %v3049 = vld [vmem:[%s3043 + $0x28] sm:$0xff]
      %v3050 = vld [vmem:[%s3043 + $0x30] sm:$0xff]
      %v3051 = vld [vmem:[%s3043 + $0x38] sm:$0xff]
      %v3052 = vld [vmem:[%s3043 + $0x40] sm:$0xff]
      %v3053 = vld [vmem:[%s3043 + $0x48] sm:$0xff]
      %v3054 = vld [vmem:[%s3043 + $0x50] sm:$0x11]
      %v3066 = vunpack.c.l.b16 %v3044
      %v3067 = vunpack.c.h.b16 %v3044
      %v3068 = vunpack.c.l.b16 %v3045
      %v3069 = vunpack.c.h.b16 %v3045
      %v3070 = vunpack.c.l.b16 %v3046
      %v3071 = vunpack.c.h.b16 %v3046
      %v3072 = vunpack.c.l.b16 %v3047
      %v3073 = vunpack.c.h.b16 %v3047
      %v3074 = vunpack.c.l.b16 %v3048
      %v3075 = vunpack.c.h.b16 %v3048
      %v3076 = vunpack.c.l.b16 %v3049
      %v3077 = vunpack.c.h.b16 %v3049
      %v3078 = vunpack.c.l.b16 %v3050
      %v3079 = vunpack.c.h.b16 %v3050
      %v3080 = vunpack.c.l.b16 %v3051
      %v3081 = vunpack.c.h.b16 %v3051
      %v3082 = vunpack.c.l.b16 %v3052
      %v3083 = vunpack.c.h.b16 %v3052
      %v3084 = vunpack.c.l.b16 %v3053
      %v3085 = vunpack.c.h.b16 %v3053
      %v3086 = vunpack.c.l.b16 %v3054
      %v3087 = vunpack.c.h.b16 %v3054
      %v3088 = vpack.c.b16 %v3068, %v3066
      %v3089 = vpack.c.b16 %v3069, %v3067
      %v3090 = vpack.c.b16 %v3072, %v3070
      %v3091 = vpack.c.b16 %v3073, %v3071
      %v3092 = vpack.c.b16 %v3076, %v3074
      %v3093 = vpack.c.b16 %v3077, %v3075
      %v3094 = vpack.c.b16 %v3080, %v3078
      %v3095 = vpack.c.b16 %v3081, %v3079
      %v3096 = vpack.c.b16 %v3084, %v3082
      %v3097 = vpack.c.b16 %v3085, %v3083
      %v3098 = vpack.c.b16 %v3086, %v3086
      %v3099 = vpack.c.b16 %v3087, %v3087
      %v3107 = vsel %vm391, %v3089, 0
      %v3110 = vsel %vm391, %v3091, 0
      %v3113 = vsel %vm391, %v3093, 0
      %v3116 = vsel %vm391, %v3095, 0
      %v3119 = vsel %vm391, %v3097, 0
      %v3122 = vsel %vm391, %v3099, 0
      %3124 = vmatprep.subr.bf16.mxu0 0
      %3125 = vmatpush1.bf16.msra.mxu0 %v367
      %3126 = vmatprep.subr.bf16.mxu0 0
      %3127 = vmatpush1.bf16.msra.mxu0 %v368
      %3128 = vmatprep.subr.bf16.mxu0 0
      %3129 = vmatpush1.bf16.msra.mxu0 %v369
      %3130 = vmatprep.subr.bf16.mxu0 0
      %3131 = vmatpush1.bf16.msra.mxu0 %v370
      %3132 = vmatprep.subr.bf16.mxu0 0
      %3133 = vmatpush1.bf16.msra.mxu0 %v371
      %3134 = vmatprep.subr.bf16.mxu0 0
      %3135 = vmatpush1.bf16.msra.mxu0 %v372
      %3136 = vmatprep.subr.bf16.mxu0 0
      %3137 = vmatpush1.bf16.msra.mxu0 %v373
      %3138 = vmatprep.subr.bf16.mxu0 0
      %3139 = vmatpush1.bf16.msra.mxu0 %v374
      %3140 = vmatprep.subr.bf16.mxu0 0
      %3141 = vmatpush1.bf16.msra.mxu0 %v375
      %3142 = vmatprep.subr.bf16.mxu0 0
      %3143 = vmatpush1.bf16.msra.mxu0 %v376
      %3144 = vmatprep.subr.bf16.mxu0 0
      %3145 = vmatpush1.bf16.msra.mxu0 %v377
      %3146 = vmatprep.subr.bf16.mxu0 0
      %3147 = vmatpush1.bf16.msra.mxu0 %v378
      %3148 = vmatprep.subr.bf16.mxu0 0
      %3149 = vmatpush1.bf16.msra.mxu0 0
      %3150 = vmatprep.subr.bf16.mxu0 0
      %3151 = vmatpush1.bf16.msra.mxu0 0
      %3152 = vmatprep.subr.bf16.mxu0 0
      %3153 = vmatpush1.bf16.msra.mxu0 0
      %3154 = vmatprep.subr.bf16.mxu0 0
      %3155 = vmatpush1.bf16.msra.mxu0 0
      %3156 = vmatprep.mubr.bf16.mxu0 %v3107
      %3157 = vmatmul.mubr.bf16.gmra.mrb[0].mxu0 %v3088
      %v3158 = vpop.f32.mrb[0].mxu0
      %v3159 = vadd.f32 %v266, %v3158
      %v3160 = vpop.f32.mrb[0].mxu0
      %v3161 = vpop.f32.mrb[0].mxu0
      %v3162 = vadd.f32 %v266, %v3161
      %v3163 = vpop.f32.mrb[0].mxu0
      %3164 = vmatprep.mubr.bf16.mxu0 %v3110
      %3165 = vmatmul.mubr.bf16.gmra.mrb[0].mxu0 %v3090
      %v3166 = vpop.f32.mrb[0].mxu0
      %v3167 = vadd.f32 %v266, %v3166
      %v3168 = vpop.f32.mrb[0].mxu0
      %v3169 = vpop.f32.mrb[0].mxu0
      %v3170 = vadd.f32 %v266, %v3169
      %v3171 = vpop.f32.mrb[0].mxu0
      %3172 = vmatprep.mubr.bf16.mxu0 %v3113
      %3173 = vmatmul.mubr.bf16.gmra.mrb[0].mxu0 %v3092
      %v3174 = vpop.f32.mrb[0].mxu0
      %v3175 = vadd.f32 %v266, %v3174
      %v3176 = vpop.f32.mrb[0].mxu0
      %v3177 = vpop.f32.mrb[0].mxu0
      %v3178 = vadd.f32 %v266, %v3177
      %v3179 = vpop.f32.mrb[0].mxu0
      %3180 = vmatprep.mubr.bf16.mxu0 %v3116
      %3181 = vmatmul.mubr.bf16.gmra.mrb[0].mxu0 %v3094
      %v3182 = vpop.f32.mrb[0].mxu0
      %v3183 = vadd.f32 %v266, %v3182
      %v3184 = vpop.f32.mrb[0].mxu0
      %v3185 = vpop.f32.mrb[0].mxu0
      %v3186 = vadd.f32 %v266, %v3185
      %v3187 = vpop.f32.mrb[0].mxu0
      %3188 = vmatprep.mubr.bf16.mxu0 %v3119
      %3189 = vmatmul.mubr.bf16.gmra.mrb[0].mxu0 %v3096
      %v3190 = vpop.f32.mrb[0].mxu0
      %v3191 = vadd.f32 %v266, %v3190
      %v3192 = vpop.f32.mrb[0].mxu0
      %v3193 = vpop.f32.mrb[0].mxu0
      %v3194 = vadd.f32 %v266, %v3193
      %v3195 = vpop.f32.mrb[0].mxu0
      %3196 = vmatprep.mubr.bf16.mxu0 %v3122
      %3197 = vmatmul.mubr.bf16.gmra.mrb[0].mxu0 %v3098
      %v3198 = vpop.f32.mrb[0].mxu0
      %v3199 = vadd.f32 %v266, %v3198
      %v3200 = vpop.f32.mrb[0].mxu0
      %v3201 = vpop.f32.mrb[0].mxu0
      %v3202 = vpop.f32.mrb[0].mxu0
      %3203 = vdwg.mxu0
      %v3204 = vmax.f32 %v3159, 0.0
      %v3205 = vmax.f32 %v3162, 0.0
      %v3206 = vmax.f32 %v3167, 0.0
      %v3207 = vmax.f32 %v3170, 0.0
      %v3208 = vmax.f32 %v3175, 0.0
      %v3209 = vmax.f32 %v3178, 0.0
      %v3210 = vmax.f32 %v3183, 0.0
      %v3211 = vmax.f32 %v3186, 0.0
      %v3212 = vmax.f32 %v3191, 0.0
      %v3213 = vmax.f32 %v3194, 0.0
      %v3214 = vmax.f32 %v3199, 0.0
      %v3215 = vpack.c.bf16 %v3205, %v3204
      %v3216 = vpack.c.bf16 %v3207, %v3206
      %v3217 = vpack.c.bf16 %v3209, %v3208
      %v3218 = vpack.c.bf16 %v3211, %v3210
      %v3219 = vpack.c.bf16 %v3213, %v3212
      %v3220 = vpack.c.bf16 %v3214, %v3214
      %s3221 = scalar_lea.vmem %s3, 144
      %v3222 = vld [vmem:[%s3221] sm:$0xf]
      %v3223 = vld [vmem:[%s3221 + $0x4] sm:$0xf]
      %v3224 = vld [vmem:[%s3221 + $0x8] sm:$0xf]
      %v3225 = vld [vmem:[%s3221 + $0xc] sm:$0xf]
      %v3230 = vunpack.c.l.b16 %v3222
      %v3231 = vunpack.c.l.b16 %v3223
      %v3232 = vunpack.c.l.b16 %v3224
      %v3233 = vunpack.c.l.b16 %v3225
      %v3234 = vpack.c.b16 %v3231, %v3230
      %v3235 = vpack.c.b16 %v3233, %v3232
      %v3239 = vsel %vm706, %v3215, 0
      %v3242 = vsel %vm706, %v3216, 0
      %v3245 = vsel %vm706, %v3217, 0
      %v3248 = vsel %vm706, %v3218, 0
      %v3251 = vsel %vm706, %v3219, 0
      %v3254 = vsel %vm706, %v3220, 0
      %3256 = vmatprep.subr.bf16.mxu0 0
      %3257 = vmatpush1.bf16.msra.mxu0 %v3234
      %3258 = vmatprep.subr.bf16.mxu0 0
      %3259 = vmatpush1.bf16.msra.mxu0 %v3235
      %3260 = vmatprep.subr.bf16.mxu0 0
      %3261 = vmatpush1.bf16.msra.mxu0 0
      %3262 = vmatprep.subr.bf16.mxu0 0
      %3263 = vmatpush1.bf16.msra.mxu0 0
      %3264 = vmatprep.subr.bf16.mxu0 0
      %3265 = vmatpush1.bf16.msra.mxu0 0
      %3266 = vmatprep.subr.bf16.mxu0 0
      %3267 = vmatpush1.bf16.msra.mxu0 0
      %3268 = vmatprep.subr.bf16.mxu0 0
      %3269 = vmatpush1.bf16.msra.mxu0 0
      %3270 = vmatprep.subr.bf16.mxu0 0
      %3271 = vmatpush1.bf16.msra.mxu0 0
      %3272 = vmatprep.subr.bf16.mxu0 0
      %3273 = vmatpush1.bf16.msra.mxu0 0
      %3274 = vmatprep.subr.bf16.mxu0 0
      %3275 = vmatpush1.bf16.msra.mxu0 0
      %3276 = vmatprep.subr.bf16.mxu0 0
      %3277 = vmatpush1.bf16.msra.mxu0 0
      %3278 = vmatprep.subr.bf16.mxu0 0
      %3279 = vmatpush1.bf16.msra.mxu0 0
      %3280 = vmatprep.subr.bf16.mxu0 0
      %3281 = vmatpush1.bf16.msra.mxu0 0
      %3282 = vmatprep.subr.bf16.mxu0 0
      %3283 = vmatpush1.bf16.msra.mxu0 0
      %3284 = vmatprep.subr.bf16.mxu0 0
      %3285 = vmatpush1.bf16.msra.mxu0 0
      %3286 = vmatprep.subr.bf16.mxu0 0
      %3287 = vmatpush1.bf16.msra.mxu0 0
      %3288 = vmatprep.mubr.bf16.mxu0 0
      %3289 = vmatmul.mubr.bf16.gmra.mrb[0].mxu0 %v3239
      %v3290 = vpop.f32.mrb[0].mxu0
      %v3291 = vadd.f32 0.0, %v3290
      %v3292 = vpop.f32.mrb[0].mxu0
      %v3293 = vpop.f32.mrb[0].mxu0
      %v3294 = vadd.f32 0.0, %v3293
      %v3295 = vpop.f32.mrb[0].mxu0
      %3296 = vmatprep.mubr.bf16.mxu0 0
      %3297 = vmatmul.mubr.bf16.gmra.mrb[0].mxu0 %v3242
      %v3298 = vpop.f32.mrb[0].mxu0
      %v3299 = vadd.f32 0.0, %v3298
      %v3300 = vpop.f32.mrb[0].mxu0
      %v3301 = vpop.f32.mrb[0].mxu0
      %v3302 = vadd.f32 0.0, %v3301
      %v3303 = vpop.f32.mrb[0].mxu0
      %3304 = vmatprep.mubr.bf16.mxu0 0
      %3305 = vmatmul.mubr.bf16.gmra.mrb[0].mxu0 %v3245
      %v3306 = vpop.f32.mrb[0].mxu0
      %v3307 = vadd.f32 0.0, %v3306
      %v3308 = vpop.f32.mrb[0].mxu0
      %v3309 = vpop.f32.mrb[0].mxu0
      %v3310 = vadd.f32 0.0, %v3309
      %v3311 = vpop.f32.mrb[0].mxu0
      %3312 = vmatprep.mubr.bf16.mxu0 0
      %3313 = vmatmul.mubr.bf16.gmra.mrb[0].mxu0 %v3248
      %v3314 = vpop.f32.mrb[0].mxu0
      %v3315 = vadd.f32 0.0, %v3314
      %v3316 = vpop.f32.mrb[0].mxu0
      %v3317 = vpop.f32.mrb[0].mxu0
      %v3318 = vadd.f32 0.0, %v3317
      %v3319 = vpop.f32.mrb[0].mxu0
      %3320 = vmatprep.mubr.bf16.mxu0 0
      %3321 = vmatmul.mubr.bf16.gmra.mrb[0].mxu0 %v3251
      %v3322 = vpop.f32.mrb[0].mxu0
      %v3323 = vadd.f32 0.0, %v3322
      %v3324 = vpop.f32.mrb[0].mxu0
      %v3325 = vpop.f32.mrb[0].mxu0
      %v3326 = vadd.f32 0.0, %v3325
      %v3327 = vpop.f32.mrb[0].mxu0
      %3328 = vmatprep.mubr.bf16.mxu0 0
      %3329 = vmatmul.mubr.bf16.gmra.mrb[0].mxu0 %v3254
      %v3330 = vpop.f32.mrb[0].mxu0
      %v3331 = vadd.f32 0.0, %v3330
      %v3332 = vpop.f32.mrb[0].mxu0
      %v3333 = vpop.f32.mrb[0].mxu0
      %v3334 = vpop.f32.mrb[0].mxu0
      %3335 = vdwg.mxu0
      %v3336 = vadd.f32 %v3032, %v3291
      %v3337 = vadd.f32 %v3033, %v3294
      %v3338 = vadd.f32 %v3034, %v3299
      %v3339 = vadd.f32 %v3035, %v3302
      %v3340 = vadd.f32 %v3036, %v3307
      %v3341 = vadd.f32 %v3037, %v3310
      %v3342 = vadd.f32 %v3038, %v3315
      %v3343 = vadd.f32 %v3039, %v3318
      %v3344 = vadd.f32 %v3040, %v3323
      %v3345 = vadd.f32 %v3041, %v3326
      %v3346 = vadd.f32 %v3042, %v3331
      %s3347 = scalar_lea.vmem %s219, 880
      %v3348 = vld [vmem:[%s3347] sm:$0xff]
      %v3349 = vld [vmem:[%s3347 + $0x8] sm:$0xff]
      %v3350 = vld [vmem:[%s3347 + $0x10] sm:$0xff]
      %v3351 = vld [vmem:[%s3347 + $0x18] sm:$0xff]
      %v3352 = vld [vmem:[%s3347 + $0x20] sm:$0xff]
      %v3353 = vld [vmem:[%s3347 + $0x28] sm:$0xff]
      %v3354 = vld [vmem:[%s3347 + $0x30] sm:$0xff]
      %v3355 = vld [vmem:[%s3347 + $0x38] sm:$0xff]
      %v3356 = vld [vmem:[%s3347 + $0x40] sm:$0xff]
      %v3357 = vld [vmem:[%s3347 + $0x48] sm:$0xff]
      %v3358 = vld [vmem:[%s3347 + $0x50] sm:$0x11]
      %v3370 = vunpack.c.l.b16 %v3348
      %v3371 = vunpack.c.h.b16 %v3348
      %v3372 = vunpack.c.l.b16 %v3349
      %v3373 = vunpack.c.h.b16 %v3349
      %v3374 = vunpack.c.l.b16 %v3350
      %v3375 = vunpack.c.h.b16 %v3350
      %v3376 = vunpack.c.l.b16 %v3351
      %v3377 = vunpack.c.h.b16 %v3351
      %v3378 = vunpack.c.l.b16 %v3352
      %v3379 = vunpack.c.h.b16 %v3352
      %v3380 = vunpack.c.l.b16 %v3353
      %v3381 = vunpack.c.h.b16 %v3353
      %v3382 = vunpack.c.l.b16 %v3354
      %v3383 = vunpack.c.h.b16 %v3354
      %v3384 = vunpack.c.l.b16 %v3355
      %v3385 = vunpack.c.h.b16 %v3355
      %v3386 = vunpack.c.l.b16 %v3356
      %v3387 = vunpack.c.h.b16 %v3356
      %v3388 = vunpack.c.l.b16 %v3357
      %v3389 = vunpack.c.h.b16 %v3357
      %v3390 = vunpack.c.l.b16 %v3358
      %v3391 = vunpack.c.h.b16 %v3358
      %v3392 = vpack.c.b16 %v3372, %v3370
      %v3393 = vpack.c.b16 %v3373, %v3371
      %v3394 = vpack.c.b16 %v3376, %v3374
      %v3395 = vpack.c.b16 %v3377, %v3375
      %v3396 = vpack.c.b16 %v3380, %v3378
      %v3397 = vpack.c.b16 %v3381, %v3379
      %v3398 = vpack.c.b16 %v3384, %v3382
      %v3399 = vpack.c.b16 %v3385, %v3383
      %v3400 = vpack.c.b16 %v3388, %v3386
      %v3401 = vpack.c.b16 %v3389, %v3387
      %v3402 = vpack.c.b16 %v3390, %v3390
      %v3403 = vpack.c.b16 %v3391, %v3391
      %v3411 = vsel %vm391, %v3393, 0
      %v3414 = vsel %vm391, %v3395, 0
      %v3417 = vsel %vm391, %v3397, 0
      %v3420 = vsel %vm391, %v3399, 0
      %v3423 = vsel %vm391, %v3401, 0
      %v3426 = vsel %vm391, %v3403, 0
      %3428 = vmatprep.subr.bf16.mxu0 0
      %3429 = vmatpush1.bf16.msra.mxu0 %v367
      %3430 = vmatprep.subr.bf16.mxu0 0
      %3431 = vmatpush1.bf16.msra.mxu0 %v368
      %3432 = vmatprep.subr.bf16.mxu0 0
      %3433 = vmatpush1.bf16.msra.mxu0 %v369
      %3434 = vmatprep.subr.bf16.mxu0 0
      %3435 = vmatpush1.bf16.msra.mxu0 %v370
      %3436 = vmatprep.subr.bf16.mxu0 0
      %3437 = vmatpush1.bf16.msra.mxu0 %v371
      %3438 = vmatprep.subr.bf16.mxu0 0
      %3439 = vmatpush1.bf16.msra.mxu0 %v372
      %3440 = vmatprep.subr.bf16.mxu0 0
      %3441 = vmatpush1.bf16.msra.mxu0 %v373
      %3442 = vmatprep.subr.bf16.mxu0 0
      %3443 = vmatpush1.bf16.msra.mxu0 %v374
      %3444 = vmatprep.subr.bf16.mxu0 0
      %3445 = vmatpush1.bf16.msra.mxu0 %v375
      %3446 = vmatprep.subr.bf16.mxu0 0
      %3447 = vmatpush1.bf16.msra.mxu0 %v376
      %3448 = vmatprep.subr.bf16.mxu0 0
      %3449 = vmatpush1.bf16.msra.mxu0 %v377
      %3450 = vmatprep.subr.bf16.mxu0 0
      %3451 = vmatpush1.bf16.msra.mxu0 %v378
      %3452 = vmatprep.subr.bf16.mxu0 0
      %3453 = vmatpush1.bf16.msra.mxu0 0
      %3454 = vmatprep.subr.bf16.mxu0 0
      %3455 = vmatpush1.bf16.msra.mxu0 0
      %3456 = vmatprep.subr.bf16.mxu0 0
      %3457 = vmatpush1.bf16.msra.mxu0 0
      %3458 = vmatprep.subr.bf16.mxu0 0
      %3459 = vmatpush1.bf16.msra.mxu0 0
      %3460 = vmatprep.mubr.bf16.mxu0 %v3411
      %3461 = vmatmul.mubr.bf16.gmra.mrb[0].mxu0 %v3392
      %v3462 = vpop.f32.mrb[0].mxu0
      %v3463 = vadd.f32 %v266, %v3462
      %v3464 = vpop.f32.mrb[0].mxu0
      %v3465 = vpop.f32.mrb[0].mxu0
      %v3466 = vadd.f32 %v266, %v3465
      %v3467 = vpop.f32.mrb[0].mxu0
      %3468 = vmatprep.mubr.bf16.mxu0 %v3414
      %3469 = vmatmul.mubr.bf16.gmra.mrb[0].mxu0 %v3394
      %v3470 = vpop.f32.mrb[0].mxu0
      %v3471 = vadd.f32 %v266, %v3470
      %v3472 = vpop.f32.mrb[0].mxu0
      %v3473 = vpop.f32.mrb[0].mxu0
      %v3474 = vadd.f32 %v266, %v3473
      %v3475 = vpop.f32.mrb[0].mxu0
      %3476 = vmatprep.mubr.bf16.mxu0 %v3417
      %3477 = vmatmul.mubr.bf16.gmra.mrb[0].mxu0 %v3396
      %v3478 = vpop.f32.mrb[0].mxu0
      %v3479 = vadd.f32 %v266, %v3478
      %v3480 = vpop.f32.mrb[0].mxu0
      %v3481 = vpop.f32.mrb[0].mxu0
      %v3482 = vadd.f32 %v266, %v3481
      %v3483 = vpop.f32.mrb[0].mxu0
      %3484 = vmatprep.mubr.bf16.mxu0 %v3420
      %3485 = vmatmul.mubr.bf16.gmra.mrb[0].mxu0 %v3398
      %v3486 = vpop.f32.mrb[0].mxu0
      %v3487 = vadd.f32 %v266, %v3486
      %v3488 = vpop.f32.mrb[0].mxu0
      %v3489 = vpop.f32.mrb[0].mxu0
      %v3490 = vadd.f32 %v266, %v3489
      %v3491 = vpop.f32.mrb[0].mxu0
      %3492 = vmatprep.mubr.bf16.mxu0 %v3423
      %3493 = vmatmul.mubr.bf16.gmra.mrb[0].mxu0 %v3400
      %v3494 = vpop.f32.mrb[0].mxu0
      %v3495 = vadd.f32 %v266, %v3494
      %v3496 = vpop.f32.mrb[0].mxu0
      %v3497 = vpop.f32.mrb[0].mxu0
      %v3498 = vadd.f32 %v266, %v3497
      %v3499 = vpop.f32.mrb[0].mxu0
      %3500 = vmatprep.mubr.bf16.mxu0 %v3426
      %3501 = vmatmul.mubr.bf16.gmra.mrb[0].mxu0 %v3402
      %v3502 = vpop.f32.mrb[0].mxu0
      %v3503 = vadd.f32 %v266, %v3502
      %v3504 = vpop.f32.mrb[0].mxu0
      %v3505 = vpop.f32.mrb[0].mxu0
      %v3506 = vpop.f32.mrb[0].mxu0
      %3507 = vdwg.mxu0
      %v3508 = vmax.f32 %v3463, 0.0
      %v3509 = vmax.f32 %v3466, 0.0
      %v3510 = vmax.f32 %v3471, 0.0
      %v3511 = vmax.f32 %v3474, 0.0
      %v3512 = vmax.f32 %v3479, 0.0
      %v3513 = vmax.f32 %v3482, 0.0
      %v3514 = vmax.f32 %v3487, 0.0
      %v3515 = vmax.f32 %v3490, 0.0
      %v3516 = vmax.f32 %v3495, 0.0
      %v3517 = vmax.f32 %v3498, 0.0
      %v3518 = vmax.f32 %v3503, 0.0
      %v3519 = vpack.c.bf16 %v3509, %v3508
      %v3520 = vpack.c.bf16 %v3511, %v3510
      %v3521 = vpack.c.bf16 %v3513, %v3512
      %v3522 = vpack.c.bf16 %v3515, %v3514
      %v3523 = vpack.c.bf16 %v3517, %v3516
      %v3524 = vpack.c.bf16 %v3518, %v3518
      %s3525 = scalar_lea.vmem %s3, 160
      %v3526 = vld [vmem:[%s3525] sm:$0xf]
      %v3527 = vld [vmem:[%s3525 + $0x4] sm:$0xf]
      %v3528 = vld [vmem:[%s3525 + $0x8] sm:$0xf]
      %v3529 = vld [vmem:[%s3525 + $0xc] sm:$0xf]
      %v3534 = vunpack.c.l.b16 %v3526
      %v3535 = vunpack.c.l.b16 %v3527
      %v3536 = vunpack.c.l.b16 %v3528
      %v3537 = vunpack.c.l.b16 %v3529
      %v3538 = vpack.c.b16 %v3535, %v3534
      %v3539 = vpack.c.b16 %v3537, %v3536
      %v3543 = vsel %vm706, %v3519, 0
      %v3546 = vsel %vm706, %v3520, 0
      %v3549 = vsel %vm706, %v3521, 0
      %v3552 = vsel %vm706, %v3522, 0
      %v3555 = vsel %vm706, %v3523, 0
      %v3558 = vsel %vm706, %v3524, 0
      %3560 = vmatprep.subr.bf16.mxu0 0
      %3561 = vmatpush1.bf16.msra.mxu0 %v3538
      %3562 = vmatprep.subr.bf16.mxu0 0
      %3563 = vmatpush1.bf16.msra.mxu0 %v3539
      %3564 = vmatprep.subr.bf16.mxu0 0
      %3565 = vmatpush1.bf16.msra.mxu0 0
      %3566 = vmatprep.subr.bf16.mxu0 0
      %3567 = vmatpush1.bf16.msra.mxu0 0
      %3568 = vmatprep.subr.bf16.mxu0 0
      %3569 = vmatpush1.bf16.msra.mxu0 0
      %3570 = vmatprep.subr.bf16.mxu0 0
      %3571 = vmatpush1.bf16.msra.mxu0 0
      %3572 = vmatprep.subr.bf16.mxu0 0
      %3573 = vmatpush1.bf16.msra.mxu0 0
      %3574 = vmatprep.subr.bf16.mxu0 0
      %3575 = vmatpush1.bf16.msra.mxu0 0
      %3576 = vmatprep.subr.bf16.mxu0 0
      %3577 = vmatpush1.bf16.msra.mxu0 0
      %3578 = vmatprep.subr.bf16.mxu0 0
      %3579 = vmatpush1.bf16.msra.mxu0 0
      %3580 = vmatprep.subr.bf16.mxu0 0
      %3581 = vmatpush1.bf16.msra.mxu0 0
      %3582 = vmatprep.subr.bf16.mxu0 0
      %3583 = vmatpush1.bf16.msra.mxu0 0
      %3584 = vmatprep.subr.bf16.mxu0 0
      %3585 = vmatpush1.bf16.msra.mxu0 0
      %3586 = vmatprep.subr.bf16.mxu0 0
      %3587 = vmatpush1.bf16.msra.mxu0 0
      %3588 = vmatprep.subr.bf16.mxu0 0
      %3589 = vmatpush1.bf16.msra.mxu0 0
      %3590 = vmatprep.subr.bf16.mxu0 0
      %3591 = vmatpush1.bf16.msra.mxu0 0
      %3592 = vmatprep.mubr.bf16.mxu0 0
      %3593 = vmatmul.mubr.bf16.gmra.mrb[0].mxu0 %v3543
      %v3594 = vpop.f32.mrb[0].mxu0
      %v3595 = vadd.f32 0.0, %v3594
      %v3596 = vpop.f32.mrb[0].mxu0
      %v3597 = vpop.f32.mrb[0].mxu0
      %v3598 = vadd.f32 0.0, %v3597
      %v3599 = vpop.f32.mrb[0].mxu0
      %3600 = vmatprep.mubr.bf16.mxu0 0
      %3601 = vmatmul.mubr.bf16.gmra.mrb[0].mxu0 %v3546
      %v3602 = vpop.f32.mrb[0].mxu0
      %v3603 = vadd.f32 0.0, %v3602
      %v3604 = vpop.f32.mrb[0].mxu0
      %v3605 = vpop.f32.mrb[0].mxu0
      %v3606 = vadd.f32 0.0, %v3605
      %v3607 = vpop.f32.mrb[0].mxu0
      %3608 = vmatprep.mubr.bf16.mxu0 0
      %3609 = vmatmul.mubr.bf16.gmra.mrb[0].mxu0 %v3549
      %v3610 = vpop.f32.mrb[0].mxu0
      %v3611 = vadd.f32 0.0, %v3610
      %v3612 = vpop.f32.mrb[0].mxu0
      %v3613 = vpop.f32.mrb[0].mxu0
      %v3614 = vadd.f32 0.0, %v3613
      %v3615 = vpop.f32.mrb[0].mxu0
      %3616 = vmatprep.mubr.bf16.mxu0 0
      %3617 = vmatmul.mubr.bf16.gmra.mrb[0].mxu0 %v3552
      %v3618 = vpop.f32.mrb[0].mxu0
      %v3619 = vadd.f32 0.0, %v3618
      %v3620 = vpop.f32.mrb[0].mxu0
      %v3621 = vpop.f32.mrb[0].mxu0
      %v3622 = vadd.f32 0.0, %v3621
      %v3623 = vpop.f32.mrb[0].mxu0
      %3624 = vmatprep.mubr.bf16.mxu0 0
      %3625 = vmatmul.mubr.bf16.gmra.mrb[0].mxu0 %v3555
      %v3626 = vpop.f32.mrb[0].mxu0
      %v3627 = vadd.f32 0.0, %v3626
      %v3628 = vpop.f32.mrb[0].mxu0
      %v3629 = vpop.f32.mrb[0].mxu0
      %v3630 = vadd.f32 0.0, %v3629
      %v3631 = vpop.f32.mrb[0].mxu0
      %3632 = vmatprep.mubr.bf16.mxu0 0
      %3633 = vmatmul.mubr.bf16.gmra.mrb[0].mxu0 %v3558
      %v3634 = vpop.f32.mrb[0].mxu0
      %v3635 = vadd.f32 0.0, %v3634
      %v3636 = vpop.f32.mrb[0].mxu0
      %v3637 = vpop.f32.mrb[0].mxu0
      %v3638 = vpop.f32.mrb[0].mxu0
      %3639 = vdwg.mxu0
      %v3640 = vadd.f32 %v3336, %v3595
      %v3641 = vadd.f32 %v3337, %v3598
      %v3642 = vadd.f32 %v3338, %v3603
      %v3643 = vadd.f32 %v3339, %v3606
      %v3644 = vadd.f32 %v3340, %v3611
      %v3645 = vadd.f32 %v3341, %v3614
      %v3646 = vadd.f32 %v3342, %v3619
      %v3647 = vadd.f32 %v3343, %v3622
      %v3648 = vadd.f32 %v3344, %v3627
      %v3649 = vadd.f32 %v3345, %v3630
      %v3650 = vadd.f32 %v3346, %v3635
      %s3651 = scalar_lea.vmem %s219, 968
      %v3652 = vld [vmem:[%s3651] sm:$0xff]
      %v3653 = vld [vmem:[%s3651 + $0x8] sm:$0xff]
      %v3654 = vld [vmem:[%s3651 + $0x10] sm:$0xff]
      %v3655 = vld [vmem:[%s3651 + $0x18] sm:$0xff]
      %v3656 = vld [vmem:[%s3651 + $0x20] sm:$0xff]
      %v3657 = vld [vmem:[%s3651 + $0x28] sm:$0xff]
      %v3658 = vld [vmem:[%s3651 + $0x30] sm:$0xff]
      %v3659 = vld [vmem:[%s3651 + $0x38] sm:$0xff]
      %v3660 = vld [vmem:[%s3651 + $0x40] sm:$0xff]
      %v3661 = vld [vmem:[%s3651 + $0x48] sm:$0xff]
      %v3662 = vld [vmem:[%s3651 + $0x50] sm:$0x11]
      %v3674 = vunpack.c.l.b16 %v3652
      %v3675 = vunpack.c.h.b16 %v3652
      %v3676 = vunpack.c.l.b16 %v3653
      %v3677 = vunpack.c.h.b16 %v3653
      %v3678 = vunpack.c.l.b16 %v3654
      %v3679 = vunpack.c.h.b16 %v3654
      %v3680 = vunpack.c.l.b16 %v3655
      %v3681 = vunpack.c.h.b16 %v3655
      %v3682 = vunpack.c.l.b16 %v3656
      %v3683 = vunpack.c.h.b16 %v3656
      %v3684 = vunpack.c.l.b16 %v3657
      %v3685 = vunpack.c.h.b16 %v3657
      %v3686 = vunpack.c.l.b16 %v3658
      %v3687 = vunpack.c.h.b16 %v3658
      %v3688 = vunpack.c.l.b16 %v3659
      %v3689 = vunpack.c.h.b16 %v3659
      %v3690 = vunpack.c.l.b16 %v3660
      %v3691 = vunpack.c.h.b16 %v3660
      %v3692 = vunpack.c.l.b16 %v3661
      %v3693 = vunpack.c.h.b16 %v3661
      %v3694 = vunpack.c.l.b16 %v3662
      %v3695 = vunpack.c.h.b16 %v3662
      %v3696 = vpack.c.b16 %v3676, %v3674
      %v3697 = vpack.c.b16 %v3677, %v3675
      %v3698 = vpack.c.b16 %v3680, %v3678
      %v3699 = vpack.c.b16 %v3681, %v3679
      %v3700 = vpack.c.b16 %v3684, %v3682
      %v3701 = vpack.c.b16 %v3685, %v3683
      %v3702 = vpack.c.b16 %v3688, %v3686
      %v3703 = vpack.c.b16 %v3689, %v3687
      %v3704 = vpack.c.b16 %v3692, %v3690
      %v3705 = vpack.c.b16 %v3693, %v3691
      %v3706 = vpack.c.b16 %v3694, %v3694
      %v3707 = vpack.c.b16 %v3695, %v3695
      %v3715 = vsel %vm391, %v3697, 0
      %v3718 = vsel %vm391, %v3699, 0
      %v3721 = vsel %vm391, %v3701, 0
      %v3724 = vsel %vm391, %v3703, 0
      %v3727 = vsel %vm391, %v3705, 0
      %v3730 = vsel %vm391, %v3707, 0
      %3732 = vmatprep.subr.bf16.mxu0 0
      %3733 = vmatpush1.bf16.msra.mxu0 %v367
      %3734 = vmatprep.subr.bf16.mxu0 0
      %3735 = vmatpush1.bf16.msra.mxu0 %v368
      %3736 = vmatprep.subr.bf16.mxu0 0
      %3737 = vmatpush1.bf16.msra.mxu0 %v369
      %3738 = vmatprep.subr.bf16.mxu0 0
      %3739 = vmatpush1.bf16.msra.mxu0 %v370
      %3740 = vmatprep.subr.bf16.mxu0 0
      %3741 = vmatpush1.bf16.msra.mxu0 %v371
      %3742 = vmatprep.subr.bf16.mxu0 0
      %3743 = vmatpush1.bf16.msra.mxu0 %v372
      %3744 = vmatprep.subr.bf16.mxu0 0
      %3745 = vmatpush1.bf16.msra.mxu0 %v373
      %3746 = vmatprep.subr.bf16.mxu0 0
      %3747 = vmatpush1.bf16.msra.mxu0 %v374
      %3748 = vmatprep.subr.bf16.mxu0 0
      %3749 = vmatpush1.bf16.msra.mxu0 %v375
      %3750 = vmatprep.subr.bf16.mxu0 0
      %3751 = vmatpush1.bf16.msra.mxu0 %v376
      %3752 = vmatprep.subr.bf16.mxu0 0
      %3753 = vmatpush1.bf16.msra.mxu0 %v377
      %3754 = vmatprep.subr.bf16.mxu0 0
      %3755 = vmatpush1.bf16.msra.mxu0 %v378
      %3756 = vmatprep.subr.bf16.mxu0 0
      %3757 = vmatpush1.bf16.msra.mxu0 0
      %3758 = vmatprep.subr.bf16.mxu0 0
      %3759 = vmatpush1.bf16.msra.mxu0 0
      %3760 = vmatprep.subr.bf16.mxu0 0
      %3761 = vmatpush1.bf16.msra.mxu0 0
      %3762 = vmatprep.subr.bf16.mxu0 0
      %3763 = vmatpush1.bf16.msra.mxu0 0
      %3764 = vmatprep.mubr.bf16.mxu0 %v3715
      %3765 = vmatmul.mubr.bf16.gmra.mrb[0].mxu0 %v3696
      %v3766 = vpop.f32.mrb[0].mxu0
      %v3767 = vadd.f32 %v266, %v3766
      %v3768 = vpop.f32.mrb[0].mxu0
      %v3769 = vpop.f32.mrb[0].mxu0
      %v3770 = vadd.f32 %v266, %v3769
      %v3771 = vpop.f32.mrb[0].mxu0
      %3772 = vmatprep.mubr.bf16.mxu0 %v3718
      %3773 = vmatmul.mubr.bf16.gmra.mrb[0].mxu0 %v3698
      %v3774 = vpop.f32.mrb[0].mxu0
      %v3775 = vadd.f32 %v266, %v3774
      %v3776 = vpop.f32.mrb[0].mxu0
      %v3777 = vpop.f32.mrb[0].mxu0
      %v3778 = vadd.f32 %v266, %v3777
      %v3779 = vpop.f32.mrb[0].mxu0
      %3780 = vmatprep.mubr.bf16.mxu0 %v3721
      %3781 = vmatmul.mubr.bf16.gmra.mrb[0].mxu0 %v3700
      %v3782 = vpop.f32.mrb[0].mxu0
      %v3783 = vadd.f32 %v266, %v3782
      %v3784 = vpop.f32.mrb[0].mxu0
      %v3785 = vpop.f32.mrb[0].mxu0
      %v3786 = vadd.f32 %v266, %v3785
      %v3787 = vpop.f32.mrb[0].mxu0
      %3788 = vmatprep.mubr.bf16.mxu0 %v3724
      %3789 = vmatmul.mubr.bf16.gmra.mrb[0].mxu0 %v3702
      %v3790 = vpop.f32.mrb[0].mxu0
      %v3791 = vadd.f32 %v266, %v3790
      %v3792 = vpop.f32.mrb[0].mxu0
      %v3793 = vpop.f32.mrb[0].mxu0
      %v3794 = vadd.f32 %v266, %v3793
      %v3795 = vpop.f32.mrb[0].mxu0
      %3796 = vmatprep.mubr.bf16.mxu0 %v3727
      %3797 = vmatmul.mubr.bf16.gmra.mrb[0].mxu0 %v3704
      %v3798 = vpop.f32.mrb[0].mxu0
      %v3799 = vadd.f32 %v266, %v3798
      %v3800 = vpop.f32.mrb[0].mxu0
      %v3801 = vpop.f32.mrb[0].mxu0
      %v3802 = vadd.f32 %v266, %v3801
      %v3803 = vpop.f32.mrb[0].mxu0
      %3804 = vmatprep.mubr.bf16.mxu0 %v3730
      %3805 = vmatmul.mubr.bf16.gmra.mrb[0].mxu0 %v3706
      %v3806 = vpop.f32.mrb[0].mxu0
      %v3807 = vadd.f32 %v266, %v3806
      %v3808 = vpop.f32.mrb[0].mxu0
      %v3809 = vpop.f32.mrb[0].mxu0
      %v3810 = vpop.f32.mrb[0].mxu0
      %3811 = vdwg.mxu0
      %v3812 = vmax.f32 %v3767, 0.0
      %v3813 = vmax.f32 %v3770, 0.0
      %v3814 = vmax.f32 %v3775, 0.0
      %v3815 = vmax.f32 %v3778, 0.0
      %v3816 = vmax.f32 %v3783, 0.0
      %v3817 = vmax.f32 %v3786, 0.0
      %v3818 = vmax.f32 %v3791, 0.0
      %v3819 = vmax.f32 %v3794, 0.0
      %v3820 = vmax.f32 %v3799, 0.0
      %v3821 = vmax.f32 %v3802, 0.0
      %v3822 = vmax.f32 %v3807, 0.0
      %v3823 = vpack.c.bf16 %v3813, %v3812
      %v3824 = vpack.c.bf16 %v3815, %v3814
      %v3825 = vpack.c.bf16 %v3817, %v3816
      %v3826 = vpack.c.bf16 %v3819, %v3818
      %v3827 = vpack.c.bf16 %v3821, %v3820
      %v3828 = vpack.c.bf16 %v3822, %v3822
      %s3829 = scalar_lea.vmem %s3, 176
      %v3830 = vld [vmem:[%s3829] sm:$0xf]
      %v3831 = vld [vmem:[%s3829 + $0x4] sm:$0xf]
      %v3832 = vld [vmem:[%s3829 + $0x8] sm:$0xf]
      %v3833 = vld [vmem:[%s3829 + $0xc] sm:$0xf]
      %v3838 = vunpack.c.l.b16 %v3830
      %v3839 = vunpack.c.l.b16 %v3831
      %v3840 = vunpack.c.l.b16 %v3832
      %v3841 = vunpack.c.l.b16 %v3833
      %v3842 = vpack.c.b16 %v3839, %v3838
      %v3843 = vpack.c.b16 %v3841, %v3840
      %v3847 = vsel %vm706, %v3823, 0
      %v3850 = vsel %vm706, %v3824, 0
      %v3853 = vsel %vm706, %v3825, 0
      %v3856 = vsel %vm706, %v3826, 0
      %v3859 = vsel %vm706, %v3827, 0
      %v3862 = vsel %vm706, %v3828, 0
      %3864 = vmatprep.subr.bf16.mxu0 0
      %3865 = vmatpush1.bf16.msra.mxu0 %v3842
      %3866 = vmatprep.subr.bf16.mxu0 0
      %3867 = vmatpush1.bf16.msra.mxu0 %v3843
      %3868 = vmatprep.subr.bf16.mxu0 0
      %3869 = vmatpush1.bf16.msra.mxu0 0
      %3870 = vmatprep.subr.bf16.mxu0 0
      %3871 = vmatpush1.bf16.msra.mxu0 0
      %3872 = vmatprep.subr.bf16.mxu0 0
      %3873 = vmatpush1.bf16.msra.mxu0 0
      %3874 = vmatprep.subr.bf16.mxu0 0
      %3875 = vmatpush1.bf16.msra.mxu0 0
      %3876 = vmatprep.subr.bf16.mxu0 0
      %3877 = vmatpush1.bf16.msra.mxu0 0
      %3878 = vmatprep.subr.bf16.mxu0 0
      %3879 = vmatpush1.bf16.msra.mxu0 0
      %3880 = vmatprep.subr.bf16.mxu0 0
      %3881 = vmatpush1.bf16.msra.mxu0 0
      %3882 = vmatprep.subr.bf16.mxu0 0
      %3883 = vmatpush1.bf16.msra.mxu0 0
      %3884 = vmatprep.subr.bf16.mxu0 0
      %3885 = vmatpush1.bf16.msra.mxu0 0
      %3886 = vmatprep.subr.bf16.mxu0 0
      %3887 = vmatpush1.bf16.msra.mxu0 0
      %3888 = vmatprep.subr.bf16.mxu0 0
      %3889 = vmatpush1.bf16.msra.mxu0 0
      %3890 = vmatprep.subr.bf16.mxu0 0
      %3891 = vmatpush1.bf16.msra.mxu0 0
      %3892 = vmatprep.subr.bf16.mxu0 0
      %3893 = vmatpush1.bf16.msra.mxu0 0
      %3894 = vmatprep.subr.bf16.mxu0 0
      %3895 = vmatpush1.bf16.msra.mxu0 0
      %3896 = vmatprep.mubr.bf16.mxu0 0
      %3897 = vmatmul.mubr.bf16.gmra.mrb[0].mxu0 %v3847
      %v3898 = vpop.f32.mrb[0].mxu0
      %v3899 = vadd.f32 0.0, %v3898
      %v3900 = vpop.f32.mrb[0].mxu0
      %v3901 = vpop.f32.mrb[0].mxu0
      %v3902 = vadd.f32 0.0, %v3901
      %v3903 = vpop.f32.mrb[0].mxu0
      %3904 = vmatprep.mubr.bf16.mxu0 0
      %3905 = vmatmul.mubr.bf16.gmra.mrb[0].mxu0 %v3850
      %v3906 = vpop.f32.mrb[0].mxu0
      %v3907 = vadd.f32 0.0, %v3906
      %v3908 = vpop.f32.mrb[0].mxu0
      %v3909 = vpop.f32.mrb[0].mxu0
      %v3910 = vadd.f32 0.0, %v3909
      %v3911 = vpop.f32.mrb[0].mxu0
      %3912 = vmatprep.mubr.bf16.mxu0 0
      %3913 = vmatmul.mubr.bf16.gmra.mrb[0].mxu0 %v3853
      %v3914 = vpop.f32.mrb[0].mxu0
      %v3915 = vadd.f32 0.0, %v3914
      %v3916 = vpop.f32.mrb[0].mxu0
      %v3917 = vpop.f32.mrb[0].mxu0
      %v3918 = vadd.f32 0.0, %v3917
      %v3919 = vpop.f32.mrb[0].mxu0
      %3920 = vmatprep.mubr.bf16.mxu0 0
      %3921 = vmatmul.mubr.bf16.gmra.mrb[0].mxu0 %v3856
      %v3922 = vpop.f32.mrb[0].mxu0
      %v3923 = vadd.f32 0.0, %v3922
      %v3924 = vpop.f32.mrb[0].mxu0
      %v3925 = vpop.f32.mrb[0].mxu0
      %v3926 = vadd.f32 0.0, %v3925
      %v3927 = vpop.f32.mrb[0].mxu0
      %3928 = vmatprep.mubr.bf16.mxu0 0
      %3929 = vmatmul.mubr.bf16.gmra.mrb[0].mxu0 %v3859
      %v3930 = vpop.f32.mrb[0].mxu0
      %v3931 = vadd.f32 0.0, %v3930
      %v3932 = vpop.f32.mrb[0].mxu0
      %v3933 = vpop.f32.mrb[0].mxu0
      %v3934 = vadd.f32 0.0, %v3933
      %v3935 = vpop.f32.mrb[0].mxu0
      %3936 = vmatprep.mubr.bf16.mxu0 0
      %3937 = vmatmul.mubr.bf16.gmra.mrb[0].mxu0 %v3862
      %v3938 = vpop.f32.mrb[0].mxu0
      %v3939 = vadd.f32 0.0, %v3938
      %v3940 = vpop.f32.mrb[0].mxu0
      %v3941 = vpop.f32.mrb[0].mxu0
      %v3942 = vpop.f32.mrb[0].mxu0
      %3943 = vdwg.mxu0
      %v3944 = vadd.f32 %v3640, %v3899
      %v3945 = vadd.f32 %v3641, %v3902
      %v3946 = vadd.f32 %v3642, %v3907
      %v3947 = vadd.f32 %v3643, %v3910
      %v3948 = vadd.f32 %v3644, %v3915
      %v3949 = vadd.f32 %v3645, %v3918
      %v3950 = vadd.f32 %v3646, %v3923
      %v3951 = vadd.f32 %v3647, %v3926
      %v3952 = vadd.f32 %v3648, %v3931
      %v3953 = vadd.f32 %v3649, %v3934
      %v3954 = vadd.f32 %v3650, %v3939
      %s3955 = scalar_lea.vmem %s219, 1056
      %v3956 = vld [vmem:[%s3955] sm:$0xff]
      %v3957 = vld [vmem:[%s3955 + $0x8] sm:$0xff]
      %v3958 = vld [vmem:[%s3955 + $0x10] sm:$0xff]
      %v3959 = vld [vmem:[%s3955 + $0x18] sm:$0xff]
      %v3960 = vld [vmem:[%s3955 + $0x20] sm:$0xff]
      %v3961 = vld [vmem:[%s3955 + $0x28] sm:$0xff]
      %v3962 = vld [vmem:[%s3955 + $0x30] sm:$0xff]
      %v3963 = vld [vmem:[%s3955 + $0x38] sm:$0xff]
      %v3964 = vld [vmem:[%s3955 + $0x40] sm:$0xff]
      %v3965 = vld [vmem:[%s3955 + $0x48] sm:$0xff]
      %v3966 = vld [vmem:[%s3955 + $0x50] sm:$0x11]
      %v3978 = vunpack.c.l.b16 %v3956
      %v3979 = vunpack.c.h.b16 %v3956
      %v3980 = vunpack.c.l.b16 %v3957
      %v3981 = vunpack.c.h.b16 %v3957
      %v3982 = vunpack.c.l.b16 %v3958
      %v3983 = vunpack.c.h.b16 %v3958
      %v3984 = vunpack.c.l.b16 %v3959
      %v3985 = vunpack.c.h.b16 %v3959
      %v3986 = vunpack.c.l.b16 %v3960
      %v3987 = vunpack.c.h.b16 %v3960
      %v3988 = vunpack.c.l.b16 %v3961
      %v3989 = vunpack.c.h.b16 %v3961
      %v3990 = vunpack.c.l.b16 %v3962
      %v3991 = vunpack.c.h.b16 %v3962
      %v3992 = vunpack.c.l.b16 %v3963
      %v3993 = vunpack.c.h.b16 %v3963
      %v3994 = vunpack.c.l.b16 %v3964
      %v3995 = vunpack.c.h.b16 %v3964
      %v3996 = vunpack.c.l.b16 %v3965
      %v3997 = vunpack.c.h.b16 %v3965
      %v3998 = vunpack.c.l.b16 %v3966
      %v3999 = vunpack.c.h.b16 %v3966
      %v4000 = vpack.c.b16 %v3980, %v3978
      %v4001 = vpack.c.b16 %v3981, %v3979
      %v4002 = vpack.c.b16 %v3984, %v3982
      %v4003 = vpack.c.b16 %v3985, %v3983
      %v4004 = vpack.c.b16 %v3988, %v3986
      %v4005 = vpack.c.b16 %v3989, %v3987
      %v4006 = vpack.c.b16 %v3992, %v3990
      %v4007 = vpack.c.b16 %v3993, %v3991
      %v4008 = vpack.c.b16 %v3996, %v3994
      %v4009 = vpack.c.b16 %v3997, %v3995
      %v4010 = vpack.c.b16 %v3998, %v3998
      %v4011 = vpack.c.b16 %v3999, %v3999
      %v4019 = vsel %vm391, %v4001, 0
      %v4022 = vsel %vm391, %v4003, 0
      %v4025 = vsel %vm391, %v4005, 0
      %v4028 = vsel %vm391, %v4007, 0
      %v4031 = vsel %vm391, %v4009, 0
      %v4034 = vsel %vm391, %v4011, 0
      %4036 = vmatprep.subr.bf16.mxu0 0
      %4037 = vmatpush1.bf16.msra.mxu0 %v367
      %4038 = vmatprep.subr.bf16.mxu0 0
      %4039 = vmatpush1.bf16.msra.mxu0 %v368
      %4040 = vmatprep.subr.bf16.mxu0 0
      %4041 = vmatpush1.bf16.msra.mxu0 %v369
      %4042 = vmatprep.subr.bf16.mxu0 0
      %4043 = vmatpush1.bf16.msra.mxu0 %v370
      %4044 = vmatprep.subr.bf16.mxu0 0
      %4045 = vmatpush1.bf16.msra.mxu0 %v371
      %4046 = vmatprep.subr.bf16.mxu0 0
      %4047 = vmatpush1.bf16.msra.mxu0 %v372
      %4048 = vmatprep.subr.bf16.mxu0 0
      %4049 = vmatpush1.bf16.msra.mxu0 %v373
      %4050 = vmatprep.subr.bf16.mxu0 0
      %4051 = vmatpush1.bf16.msra.mxu0 %v374
      %4052 = vmatprep.subr.bf16.mxu0 0
      %4053 = vmatpush1.bf16.msra.mxu0 %v375
      %4054 = vmatprep.subr.bf16.mxu0 0
      %4055 = vmatpush1.bf16.msra.mxu0 %v376
      %4056 = vmatprep.subr.bf16.mxu0 0
      %4057 = vmatpush1.bf16.msra.mxu0 %v377
      %4058 = vmatprep.subr.bf16.mxu0 0
      %4059 = vmatpush1.bf16.msra.mxu0 %v378
      %4060 = vmatprep.subr.bf16.mxu0 0
      %4061 = vmatpush1.bf16.msra.mxu0 0
      %4062 = vmatprep.subr.bf16.mxu0 0
      %4063 = vmatpush1.bf16.msra.mxu0 0
      %4064 = vmatprep.subr.bf16.mxu0 0
      %4065 = vmatpush1.bf16.msra.mxu0 0
      %4066 = vmatprep.subr.bf16.mxu0 0
      %4067 = vmatpush1.bf16.msra.mxu0 0
      %4068 = vmatprep.mubr.bf16.mxu0 %v4019
      %4069 = vmatmul.mubr.bf16.gmra.mrb[0].mxu0 %v4000
      %v4070 = vpop.f32.mrb[0].mxu0
      %v4071 = vadd.f32 %v266, %v4070
      %v4072 = vpop.f32.mrb[0].mxu0
      %v4073 = vpop.f32.mrb[0].mxu0
      %v4074 = vadd.f32 %v266, %v4073
      %v4075 = vpop.f32.mrb[0].mxu0
      %4076 = vmatprep.mubr.bf16.mxu0 %v4022
      %4077 = vmatmul.mubr.bf16.gmra.mrb[0].mxu0 %v4002
      %v4078 = vpop.f32.mrb[0].mxu0
      %v4079 = vadd.f32 %v266, %v4078
      %v4080 = vpop.f32.mrb[0].mxu0
      %v4081 = vpop.f32.mrb[0].mxu0
      %v4082 = vadd.f32 %v266, %v4081
      %v4083 = vpop.f32.mrb[0].mxu0
      %4084 = vmatprep.mubr.bf16.mxu0 %v4025
      %4085 = vmatmul.mubr.bf16.gmra.mrb[0].mxu0 %v4004
      %v4086 = vpop.f32.mrb[0].mxu0
      %v4087 = vadd.f32 %v266, %v4086
      %v4088 = vpop.f32.mrb[0].mxu0
      %v4089 = vpop.f32.mrb[0].mxu0
      %v4090 = vadd.f32 %v266, %v4089
      %v4091 = vpop.f32.mrb[0].mxu0
      %4092 = vmatprep.mubr.bf16.mxu0 %v4028
      %4093 = vmatmul.mubr.bf16.gmra.mrb[0].mxu0 %v4006
      %v4094 = vpop.f32.mrb[0].mxu0
      %v4095 = vadd.f32 %v266, %v4094
      %v4096 = vpop.f32.mrb[0].mxu0
      %v4097 = vpop.f32.mrb[0].mxu0
      %v4098 = vadd.f32 %v266, %v4097
      %v4099 = vpop.f32.mrb[0].mxu0
      %4100 = vmatprep.mubr.bf16.mxu0 %v4031
      %4101 = vmatmul.mubr.bf16.gmra.mrb[0].mxu0 %v4008
      %v4102 = vpop.f32.mrb[0].mxu0
      %v4103 = vadd.f32 %v266, %v4102
      %v4104 = vpop.f32.mrb[0].mxu0
      %v4105 = vpop.f32.mrb[0].mxu0
      %v4106 = vadd.f32 %v266, %v4105
      %v4107 = vpop.f32.mrb[0].mxu0
      %4108 = vmatprep.mubr.bf16.mxu0 %v4034
      %4109 = vmatmul.mubr.bf16.gmra.mrb[0].mxu0 %v4010
      %v4110 = vpop.f32.mrb[0].mxu0
      %v4111 = vadd.f32 %v266, %v4110
      %v4112 = vpop.f32.mrb[0].mxu0
      %v4113 = vpop.f32.mrb[0].mxu0
      %v4114 = vpop.f32.mrb[0].mxu0
      %4115 = vdwg.mxu0
      %v4116 = vmax.f32 %v4071, 0.0
      %v4117 = vmax.f32 %v4074, 0.0
      %v4118 = vmax.f32 %v4079, 0.0
      %v4119 = vmax.f32 %v4082, 0.0
      %v4120 = vmax.f32 %v4087, 0.0
      %v4121 = vmax.f32 %v4090, 0.0
      %v4122 = vmax.f32 %v4095, 0.0
      %v4123 = vmax.f32 %v4098, 0.0
      %v4124 = vmax.f32 %v4103, 0.0
      %v4125 = vmax.f32 %v4106, 0.0
      %v4126 = vmax.f32 %v4111, 0.0
      %v4127 = vpack.c.bf16 %v4117, %v4116
      %v4128 = vpack.c.bf16 %v4119, %v4118
      %v4129 = vpack.c.bf16 %v4121, %v4120
      %v4130 = vpack.c.bf16 %v4123, %v4122
      %v4131 = vpack.c.bf16 %v4125, %v4124
      %v4132 = vpack.c.bf16 %v4126, %v4126
      %s4133 = scalar_lea.vmem %s3, 192
      %v4134 = vld [vmem:[%s4133] sm:$0xf]
      %v4135 = vld [vmem:[%s4133 + $0x4] sm:$0xf]
      %v4136 = vld [vmem:[%s4133 + $0x8] sm:$0xf]
      %v4137 = vld [vmem:[%s4133 + $0xc] sm:$0xf]
      %v4142 = vunpack.c.l.b16 %v4134
      %v4143 = vunpack.c.l.b16 %v4135
      %v4144 = vunpack.c.l.b16 %v4136
      %v4145 = vunpack.c.l.b16 %v4137
      %v4146 = vpack.c.b16 %v4143, %v4142
      %v4147 = vpack.c.b16 %v4145, %v4144
      %v4151 = vsel %vm706, %v4127, 0
      %v4154 = vsel %vm706, %v4128, 0
      %v4157 = vsel %vm706, %v4129, 0
      %v4160 = vsel %vm706, %v4130, 0
      %v4163 = vsel %vm706, %v4131, 0
      %v4166 = vsel %vm706, %v4132, 0
      %4168 = vmatprep.subr.bf16.mxu0 0
      %4169 = vmatpush1.bf16.msra.mxu0 %v4146
      %4170 = vmatprep.subr.bf16.mxu0 0
      %4171 = vmatpush1.bf16.msra.mxu0 %v4147
      %4172 = vmatprep.subr.bf16.mxu0 0
      %4173 = vmatpush1.bf16.msra.mxu0 0
      %4174 = vmatprep.subr.bf16.mxu0 0
      %4175 = vmatpush1.bf16.msra.mxu0 0
      %4176 = vmatprep.subr.bf16.mxu0 0
      %4177 = vmatpush1.bf16.msra.mxu0 0
      %4178 = vmatprep.subr.bf16.mxu0 0
      %4179 = vmatpush1.bf16.msra.mxu0 0
      %4180 = vmatprep.subr.bf16.mxu0 0
      %4181 = vmatpush1.bf16.msra.mxu0 0
      %4182 = vmatprep.subr.bf16.mxu0 0
      %4183 = vmatpush1.bf16.msra.mxu0 0
      %4184 = vmatprep.subr.bf16.mxu0 0
      %4185 = vmatpush1.bf16.msra.mxu0 0
      %4186 = vmatprep.subr.bf16.mxu0 0
      %4187 = vmatpush1.bf16.msra.mxu0 0
      %4188 = vmatprep.subr.bf16.mxu0 0
      %4189 = vmatpush1.bf16.msra.mxu0 0
      %4190 = vmatprep.subr.bf16.mxu0 0
      %4191 = vmatpush1.bf16.msra.mxu0 0
      %4192 = vmatprep.subr.bf16.mxu0 0
      %4193 = vmatpush1.bf16.msra.mxu0 0
      %4194 = vmatprep.subr.bf16.mxu0 0
      %4195 = vmatpush1.bf16.msra.mxu0 0
      %4196 = vmatprep.subr.bf16.mxu0 0
      %4197 = vmatpush1.bf16.msra.mxu0 0
      %4198 = vmatprep.subr.bf16.mxu0 0
      %4199 = vmatpush1.bf16.msra.mxu0 0
      %4200 = vmatprep.mubr.bf16.mxu0 0
      %4201 = vmatmul.mubr.bf16.gmra.mrb[0].mxu0 %v4151
      %v4202 = vpop.f32.mrb[0].mxu0
      %v4203 = vadd.f32 0.0, %v4202
      %v4204 = vpop.f32.mrb[0].mxu0
      %v4205 = vpop.f32.mrb[0].mxu0
      %v4206 = vadd.f32 0.0, %v4205
      %v4207 = vpop.f32.mrb[0].mxu0
      %4208 = vmatprep.mubr.bf16.mxu0 0
      %4209 = vmatmul.mubr.bf16.gmra.mrb[0].mxu0 %v4154
      %v4210 = vpop.f32.mrb[0].mxu0
      %v4211 = vadd.f32 0.0, %v4210
      %v4212 = vpop.f32.mrb[0].mxu0
      %v4213 = vpop.f32.mrb[0].mxu0
      %v4214 = vadd.f32 0.0, %v4213
      %v4215 = vpop.f32.mrb[0].mxu0
      %4216 = vmatprep.mubr.bf16.mxu0 0
      %4217 = vmatmul.mubr.bf16.gmra.mrb[0].mxu0 %v4157
      %v4218 = vpop.f32.mrb[0].mxu0
      %v4219 = vadd.f32 0.0, %v4218
      %v4220 = vpop.f32.mrb[0].mxu0
      %v4221 = vpop.f32.mrb[0].mxu0
      %v4222 = vadd.f32 0.0, %v4221
      %v4223 = vpop.f32.mrb[0].mxu0
      %4224 = vmatprep.mubr.bf16.mxu0 0
      %4225 = vmatmul.mubr.bf16.gmra.mrb[0].mxu0 %v4160
      %v4226 = vpop.f32.mrb[0].mxu0
      %v4227 = vadd.f32 0.0, %v4226
      %v4228 = vpop.f32.mrb[0].mxu0
      %v4229 = vpop.f32.mrb[0].mxu0
      %v4230 = vadd.f32 0.0, %v4229
      %v4231 = vpop.f32.mrb[0].mxu0
      %4232 = vmatprep.mubr.bf16.mxu0 0
      %4233 = vmatmul.mubr.bf16.gmra.mrb[0].mxu0 %v4163
      %v4234 = vpop.f32.mrb[0].mxu0
      %v4235 = vadd.f32 0.0, %v4234
      %v4236 = vpop.f32.mrb[0].mxu0
      %v4237 = vpop.f32.mrb[0].mxu0
      %v4238 = vadd.f32 0.0, %v4237
      %v4239 = vpop.f32.mrb[0].mxu0
      %4240 = vmatprep.mubr.bf16.mxu0 0
      %4241 = vmatmul.mubr.bf16.gmra.mrb[0].mxu0 %v4166
      %v4242 = vpop.f32.mrb[0].mxu0
      %v4243 = vadd.f32 0.0, %v4242
      %v4244 = vpop.f32.mrb[0].mxu0
      %v4245 = vpop.f32.mrb[0].mxu0
      %v4246 = vpop.f32.mrb[0].mxu0
      %4247 = vdwg.mxu0
      %v4248 = vadd.f32 %v3944, %v4203
      %v4249 = vadd.f32 %v3945, %v4206
      %v4250 = vadd.f32 %v3946, %v4211
      %v4251 = vadd.f32 %v3947, %v4214
      %v4252 = vadd.f32 %v3948, %v4219
      %v4253 = vadd.f32 %v3949, %v4222
      %v4254 = vadd.f32 %v3950, %v4227
      %v4255 = vadd.f32 %v3951, %v4230
      %v4256 = vadd.f32 %v3952, %v4235
      %v4257 = vadd.f32 %v3953, %v4238
      %v4258 = vadd.f32 %v3954, %v4243
      %s4259 = scalar_lea.vmem %s219, 1144
      %v4260 = vld [vmem:[%s4259] sm:$0xff]
      %v4261 = vld [vmem:[%s4259 + $0x8] sm:$0xff]
      %v4262 = vld [vmem:[%s4259 + $0x10] sm:$0xff]
      %v4263 = vld [vmem:[%s4259 + $0x18] sm:$0xff]
      %v4264 = vld [vmem:[%s4259 + $0x20] sm:$0xff]
      %v4265 = vld [vmem:[%s4259 + $0x28] sm:$0xff]
      %v4266 = vld [vmem:[%s4259 + $0x30] sm:$0xff]
      %v4267 = vld [vmem:[%s4259 + $0x38] sm:$0xff]
      %v4268 = vld [vmem:[%s4259 + $0x40] sm:$0xff]
      %v4269 = vld [vmem:[%s4259 + $0x48] sm:$0xff]
      %v4270 = vld [vmem:[%s4259 + $0x50] sm:$0x11]
      %v4282 = vunpack.c.l.b16 %v4260
      %v4283 = vunpack.c.h.b16 %v4260
      %v4284 = vunpack.c.l.b16 %v4261
      %v4285 = vunpack.c.h.b16 %v4261
      %v4286 = vunpack.c.l.b16 %v4262
      %v4287 = vunpack.c.h.b16 %v4262
      %v4288 = vunpack.c.l.b16 %v4263
      %v4289 = vunpack.c.h.b16 %v4263
      %v4290 = vunpack.c.l.b16 %v4264
      %v4291 = vunpack.c.h.b16 %v4264
      %v4292 = vunpack.c.l.b16 %v4265
      %v4293 = vunpack.c.h.b16 %v4265
      %v4294 = vunpack.c.l.b16 %v4266
      %v4295 = vunpack.c.h.b16 %v4266
      %v4296 = vunpack.c.l.b16 %v4267
      %v4297 = vunpack.c.h.b16 %v4267
      %v4298 = vunpack.c.l.b16 %v4268
      %v4299 = vunpack.c.h.b16 %v4268
      %v4300 = vunpack.c.l.b16 %v4269
      %v4301 = vunpack.c.h.b16 %v4269
      %v4302 = vunpack.c.l.b16 %v4270
      %v4303 = vunpack.c.h.b16 %v4270
      %v4304 = vpack.c.b16 %v4284, %v4282
      %v4305 = vpack.c.b16 %v4285, %v4283
      %v4306 = vpack.c.b16 %v4288, %v4286
      %v4307 = vpack.c.b16 %v4289, %v4287
      %v4308 = vpack.c.b16 %v4292, %v4290
      %v4309 = vpack.c.b16 %v4293, %v4291
      %v4310 = vpack.c.b16 %v4296, %v4294
      %v4311 = vpack.c.b16 %v4297, %v4295
      %v4312 = vpack.c.b16 %v4300, %v4298
      %v4313 = vpack.c.b16 %v4301, %v4299
      %v4314 = vpack.c.b16 %v4302, %v4302
      %v4315 = vpack.c.b16 %v4303, %v4303
      %v4323 = vsel %vm391, %v4305, 0
      %v4326 = vsel %vm391, %v4307, 0
      %v4329 = vsel %vm391, %v4309, 0
      %v4332 = vsel %vm391, %v4311, 0
      %v4335 = vsel %vm391, %v4313, 0
      %v4338 = vsel %vm391, %v4315, 0
      %4340 = vmatprep.subr.bf16.mxu0 0
      %4341 = vmatpush1.bf16.msra.mxu0 %v367
      %4342 = vmatprep.subr.bf16.mxu0 0
      %4343 = vmatpush1.bf16.msra.mxu0 %v368
      %4344 = vmatprep.subr.bf16.mxu0 0
      %4345 = vmatpush1.bf16.msra.mxu0 %v369
      %4346 = vmatprep.subr.bf16.mxu0 0
      %4347 = vmatpush1.bf16.msra.mxu0 %v370
      %4348 = vmatprep.subr.bf16.mxu0 0
      %4349 = vmatpush1.bf16.msra.mxu0 %v371
      %4350 = vmatprep.subr.bf16.mxu0 0
      %4351 = vmatpush1.bf16.msra.mxu0 %v372
      %4352 = vmatprep.subr.bf16.mxu0 0
      %4353 = vmatpush1.bf16.msra.mxu0 %v373
      %4354 = vmatprep.subr.bf16.mxu0 0
      %4355 = vmatpush1.bf16.msra.mxu0 %v374
      %4356 = vmatprep.subr.bf16.mxu0 0
      %4357 = vmatpush1.bf16.msra.mxu0 %v375
      %4358 = vmatprep.subr.bf16.mxu0 0
      %4359 = vmatpush1.bf16.msra.mxu0 %v376
      %4360 = vmatprep.subr.bf16.mxu0 0
      %4361 = vmatpush1.bf16.msra.mxu0 %v377
      %4362 = vmatprep.subr.bf16.mxu0 0
      %4363 = vmatpush1.bf16.msra.mxu0 %v378
      %4364 = vmatprep.subr.bf16.mxu0 0
      %4365 = vmatpush1.bf16.msra.mxu0 0
      %4366 = vmatprep.subr.bf16.mxu0 0
      %4367 = vmatpush1.bf16.msra.mxu0 0
      %4368 = vmatprep.subr.bf16.mxu0 0
      %4369 = vmatpush1.bf16.msra.mxu0 0
      %4370 = vmatprep.subr.bf16.mxu0 0
      %4371 = vmatpush1.bf16.msra.mxu0 0
      %4372 = vmatprep.mubr.bf16.mxu0 %v4323
      %4373 = vmatmul.mubr.bf16.gmra.mrb[0].mxu0 %v4304
      %v4374 = vpop.f32.mrb[0].mxu0
      %v4375 = vadd.f32 %v266, %v4374
      %v4376 = vpop.f32.mrb[0].mxu0
      %v4377 = vpop.f32.mrb[0].mxu0
      %v4378 = vadd.f32 %v266, %v4377
      %v4379 = vpop.f32.mrb[0].mxu0
      %4380 = vmatprep.mubr.bf16.mxu0 %v4326
      %4381 = vmatmul.mubr.bf16.gmra.mrb[0].mxu0 %v4306
      %v4382 = vpop.f32.mrb[0].mxu0
      %v4383 = vadd.f32 %v266, %v4382
      %v4384 = vpop.f32.mrb[0].mxu0
      %v4385 = vpop.f32.mrb[0].mxu0
      %v4386 = vadd.f32 %v266, %v4385
      %v4387 = vpop.f32.mrb[0].mxu0
      %4388 = vmatprep.mubr.bf16.mxu0 %v4329
      %4389 = vmatmul.mubr.bf16.gmra.mrb[0].mxu0 %v4308
      %v4390 = vpop.f32.mrb[0].mxu0
      %v4391 = vadd.f32 %v266, %v4390
      %v4392 = vpop.f32.mrb[0].mxu0
      %v4393 = vpop.f32.mrb[0].mxu0
      %v4394 = vadd.f32 %v266, %v4393
      %v4395 = vpop.f32.mrb[0].mxu0
      %4396 = vmatprep.mubr.bf16.mxu0 %v4332
      %4397 = vmatmul.mubr.bf16.gmra.mrb[0].mxu0 %v4310
      %v4398 = vpop.f32.mrb[0].mxu0
      %v4399 = vadd.f32 %v266, %v4398
      %v4400 = vpop.f32.mrb[0].mxu0
      %v4401 = vpop.f32.mrb[0].mxu0
      %v4402 = vadd.f32 %v266, %v4401
      %v4403 = vpop.f32.mrb[0].mxu0
      %4404 = vmatprep.mubr.bf16.mxu0 %v4335
      %4405 = vmatmul.mubr.bf16.gmra.mrb[0].mxu0 %v4312
      %v4406 = vpop.f32.mrb[0].mxu0
      %v4407 = vadd.f32 %v266, %v4406
      %v4408 = vpop.f32.mrb[0].mxu0
      %v4409 = vpop.f32.mrb[0].mxu0
      %v4410 = vadd.f32 %v266, %v4409
      %v4411 = vpop.f32.mrb[0].mxu0
      %4412 = vmatprep.mubr.bf16.mxu0 %v4338
      %4413 = vmatmul.mubr.bf16.gmra.mrb[0].mxu0 %v4314
      %v4414 = vpop.f32.mrb[0].mxu0
      %v4415 = vadd.f32 %v266, %v4414
      %v4416 = vpop.f32.mrb[0].mxu0
      %v4417 = vpop.f32.mrb[0].mxu0
      %v4418 = vpop.f32.mrb[0].mxu0
      %4419 = vdwg.mxu0
      %v4420 = vmax.f32 %v4375, 0.0
      %v4421 = vmax.f32 %v4378, 0.0
      %v4422 = vmax.f32 %v4383, 0.0
      %v4423 = vmax.f32 %v4386, 0.0
      %v4424 = vmax.f32 %v4391, 0.0
      %v4425 = vmax.f32 %v4394, 0.0
      %v4426 = vmax.f32 %v4399, 0.0
      %v4427 = vmax.f32 %v4402, 0.0
      %v4428 = vmax.f32 %v4407, 0.0
      %v4429 = vmax.f32 %v4410, 0.0
      %v4430 = vmax.f32 %v4415, 0.0
      %v4431 = vpack.c.bf16 %v4421, %v4420
      %v4432 = vpack.c.bf16 %v4423, %v4422
      %v4433 = vpack.c.bf16 %v4425, %v4424
      %v4434 = vpack.c.bf16 %v4427, %v4426
      %v4435 = vpack.c.bf16 %v4429, %v4428
      %v4436 = vpack.c.bf16 %v4430, %v4430
      %s4437 = scalar_lea.vmem %s3, 208
      %v4438 = vld [vmem:[%s4437] sm:$0xf]
      %v4439 = vld [vmem:[%s4437 + $0x4] sm:$0xf]
      %v4440 = vld [vmem:[%s4437 + $0x8] sm:$0xf]
      %v4441 = vld [vmem:[%s4437 + $0xc] sm:$0xf]
      %v4446 = vunpack.c.l.b16 %v4438
      %v4447 = vunpack.c.l.b16 %v4439
      %v4448 = vunpack.c.l.b16 %v4440
      %v4449 = vunpack.c.l.b16 %v4441
      %v4450 = vpack.c.b16 %v4447, %v4446
      %v4451 = vpack.c.b16 %v4449, %v4448
      %v4455 = vsel %vm706, %v4431, 0
      %v4458 = vsel %vm706, %v4432, 0
      %v4461 = vsel %vm706, %v4433, 0
      %v4464 = vsel %vm706, %v4434, 0
      %v4467 = vsel %vm706, %v4435, 0
      %v4470 = vsel %vm706, %v4436, 0
      %4472 = vmatprep.subr.bf16.mxu0 0
      %4473 = vmatpush1.bf16.msra.mxu0 %v4450
      %4474 = vmatprep.subr.bf16.mxu0 0
      %4475 = vmatpush1.bf16.msra.mxu0 %v4451
      %4476 = vmatprep.subr.bf16.mxu0 0
      %4477 = vmatpush1.bf16.msra.mxu0 0
      %4478 = vmatprep.subr.bf16.mxu0 0
      %4479 = vmatpush1.bf16.msra.mxu0 0
      %4480 = vmatprep.subr.bf16.mxu0 0
      %4481 = vmatpush1.bf16.msra.mxu0 0
      %4482 = vmatprep.subr.bf16.mxu0 0
      %4483 = vmatpush1.bf16.msra.mxu0 0
      %4484 = vmatprep.subr.bf16.mxu0 0
      %4485 = vmatpush1.bf16.msra.mxu0 0
      %4486 = vmatprep.subr.bf16.mxu0 0
      %4487 = vmatpush1.bf16.msra.mxu0 0
      %4488 = vmatprep.subr.bf16.mxu0 0
      %4489 = vmatpush1.bf16.msra.mxu0 0
      %4490 = vmatprep.subr.bf16.mxu0 0
      %4491 = vmatpush1.bf16.msra.mxu0 0
      %4492 = vmatprep.subr.bf16.mxu0 0
      %4493 = vmatpush1.bf16.msra.mxu0 0
      %4494 = vmatprep.subr.bf16.mxu0 0
      %4495 = vmatpush1.bf16.msra.mxu0 0
      %4496 = vmatprep.subr.bf16.mxu0 0
      %4497 = vmatpush1.bf16.msra.mxu0 0
      %4498 = vmatprep.subr.bf16.mxu0 0
      %4499 = vmatpush1.bf16.msra.mxu0 0
      %4500 = vmatprep.subr.bf16.mxu0 0
      %4501 = vmatpush1.bf16.msra.mxu0 0
      %4502 = vmatprep.subr.bf16.mxu0 0
      %4503 = vmatpush1.bf16.msra.mxu0 0
      %4504 = vmatprep.mubr.bf16.mxu0 0
      %4505 = vmatmul.mubr.bf16.gmra.mrb[0].mxu0 %v4455
      %v4506 = vpop.f32.mrb[0].mxu0
      %v4507 = vadd.f32 0.0, %v4506
      %v4508 = vpop.f32.mrb[0].mxu0
      %v4509 = vpop.f32.mrb[0].mxu0
      %v4510 = vadd.f32 0.0, %v4509
      %v4511 = vpop.f32.mrb[0].mxu0
      %4512 = vmatprep.mubr.bf16.mxu0 0
      %4513 = vmatmul.mubr.bf16.gmra.mrb[0].mxu0 %v4458
      %v4514 = vpop.f32.mrb[0].mxu0
      %v4515 = vadd.f32 0.0, %v4514
      %v4516 = vpop.f32.mrb[0].mxu0
      %v4517 = vpop.f32.mrb[0].mxu0
      %v4518 = vadd.f32 0.0, %v4517
      %v4519 = vpop.f32.mrb[0].mxu0
      %4520 = vmatprep.mubr.bf16.mxu0 0
      %4521 = vmatmul.mubr.bf16.gmra.mrb[0].mxu0 %v4461
      %v4522 = vpop.f32.mrb[0].mxu0
      %v4523 = vadd.f32 0.0, %v4522
      %v4524 = vpop.f32.mrb[0].mxu0
      %v4525 = vpop.f32.mrb[0].mxu0
      %v4526 = vadd.f32 0.0, %v4525
      %v4527 = vpop.f32.mrb[0].mxu0
      %4528 = vmatprep.mubr.bf16.mxu0 0
      %4529 = vmatmul.mubr.bf16.gmra.mrb[0].mxu0 %v4464
      %v4530 = vpop.f32.mrb[0].mxu0
      %v4531 = vadd.f32 0.0, %v4530
      %v4532 = vpop.f32.mrb[0].mxu0
      %v4533 = vpop.f32.mrb[0].mxu0
      %v4534 = vadd.f32 0.0, %v4533
      %v4535 = vpop.f32.mrb[0].mxu0
      %4536 = vmatprep.mubr.bf16.mxu0 0
      %4537 = vmatmul.mubr.bf16.gmra.mrb[0].mxu0 %v4467
      %v4538 = vpop.f32.mrb[0].mxu0
      %v4539 = vadd.f32 0.0, %v4538
      %v4540 = vpop.f32.mrb[0].mxu0
      %v4541 = vpop.f32.mrb[0].mxu0
      %v4542 = vadd.f32 0.0, %v4541
      %v4543 = vpop.f32.mrb[0].mxu0
      %4544 = vmatprep.mubr.bf16.mxu0 0
      %4545 = vmatmul.mubr.bf16.gmra.mrb[0].mxu0 %v4470
      %v4546 = vpop.f32.mrb[0].mxu0
      %v4547 = vadd.f32 0.0, %v4546
      %v4548 = vpop.f32.mrb[0].mxu0
      %v4549 = vpop.f32.mrb[0].mxu0
      %v4550 = vpop.f32.mrb[0].mxu0
      %4551 = vdwg.mxu0
      %v4552 = vadd.f32 %v4248, %v4507
      %v4553 = vadd.f32 %v4249, %v4510
      %v4554 = vadd.f32 %v4250, %v4515
      %v4555 = vadd.f32 %v4251, %v4518
      %v4556 = vadd.f32 %v4252, %v4523
      %v4557 = vadd.f32 %v4253, %v4526
      %v4558 = vadd.f32 %v4254, %v4531
      %v4559 = vadd.f32 %v4255, %v4534
      %v4560 = vadd.f32 %v4256, %v4539
      %v4561 = vadd.f32 %v4257, %v4542
      %v4562 = vadd.f32 %v4258, %v4547
      %s4563 = scalar_lea.vmem %s219, 1232
      %v4564 = vld [vmem:[%s4563] sm:$0xff]
      %v4565 = vld [vmem:[%s4563 + $0x8] sm:$0xff]
      %v4566 = vld [vmem:[%s4563 + $0x10] sm:$0xff]
      %v4567 = vld [vmem:[%s4563 + $0x18] sm:$0xff]
      %v4568 = vld [vmem:[%s4563 + $0x20] sm:$0xff]
      %v4569 = vld [vmem:[%s4563 + $0x28] sm:$0xff]
      %v4570 = vld [vmem:[%s4563 + $0x30] sm:$0xff]
      %v4571 = vld [vmem:[%s4563 + $0x38] sm:$0xff]
      %v4572 = vld [vmem:[%s4563 + $0x40] sm:$0xff]
      %v4573 = vld [vmem:[%s4563 + $0x48] sm:$0xff]
      %v4574 = vld [vmem:[%s4563 + $0x50] sm:$0x11]
      %v4586 = vunpack.c.l.b16 %v4564
      %v4587 = vunpack.c.h.b16 %v4564
      %v4588 = vunpack.c.l.b16 %v4565
      %v4589 = vunpack.c.h.b16 %v4565
      %v4590 = vunpack.c.l.b16 %v4566
      %v4591 = vunpack.c.h.b16 %v4566
      %v4592 = vunpack.c.l.b16 %v4567
      %v4593 = vunpack.c.h.b16 %v4567
      %v4594 = vunpack.c.l.b16 %v4568
      %v4595 = vunpack.c.h.b16 %v4568
      %v4596 = vunpack.c.l.b16 %v4569
      %v4597 = vunpack.c.h.b16 %v4569
      %v4598 = vunpack.c.l.b16 %v4570
      %v4599 = vunpack.c.h.b16 %v4570
      %v4600 = vunpack.c.l.b16 %v4571
      %v4601 = vunpack.c.h.b16 %v4571
      %v4602 = vunpack.c.l.b16 %v4572
      %v4603 = vunpack.c.h.b16 %v4572
      %v4604 = vunpack.c.l.b16 %v4573
      %v4605 = vunpack.c.h.b16 %v4573
      %v4606 = vunpack.c.l.b16 %v4574
      %v4607 = vunpack.c.h.b16 %v4574
      %v4608 = vpack.c.b16 %v4588, %v4586
      %v4609 = vpack.c.b16 %v4589, %v4587
      %v4610 = vpack.c.b16 %v4592, %v4590
      %v4611 = vpack.c.b16 %v4593, %v4591
      %v4612 = vpack.c.b16 %v4596, %v4594
      %v4613 = vpack.c.b16 %v4597, %v4595
      %v4614 = vpack.c.b16 %v4600, %v4598
      %v4615 = vpack.c.b16 %v4601, %v4599
      %v4616 = vpack.c.b16 %v4604, %v4602
      %v4617 = vpack.c.b16 %v4605, %v4603
      %v4618 = vpack.c.b16 %v4606, %v4606
      %v4619 = vpack.c.b16 %v4607, %v4607
      %v4627 = vsel %vm391, %v4609, 0
      %v4630 = vsel %vm391, %v4611, 0
      %v4633 = vsel %vm391, %v4613, 0
      %v4636 = vsel %vm391, %v4615, 0
      %v4639 = vsel %vm391, %v4617, 0
      %v4642 = vsel %vm391, %v4619, 0
      %4644 = vmatprep.subr.bf16.mxu0 0
      %4645 = vmatpush1.bf16.msra.mxu0 %v367
      %4646 = vmatprep.subr.bf16.mxu0 0
      %4647 = vmatpush1.bf16.msra.mxu0 %v368
      %4648 = vmatprep.subr.bf16.mxu0 0
      %4649 = vmatpush1.bf16.msra.mxu0 %v369
      %4650 = vmatprep.subr.bf16.mxu0 0
      %4651 = vmatpush1.bf16.msra.mxu0 %v370
      %4652 = vmatprep.subr.bf16.mxu0 0
      %4653 = vmatpush1.bf16.msra.mxu0 %v371
      %4654 = vmatprep.subr.bf16.mxu0 0
      %4655 = vmatpush1.bf16.msra.mxu0 %v372
      %4656 = vmatprep.subr.bf16.mxu0 0
      %4657 = vmatpush1.bf16.msra.mxu0 %v373
      %4658 = vmatprep.subr.bf16.mxu0 0
      %4659 = vmatpush1.bf16.msra.mxu0 %v374
      %4660 = vmatprep.subr.bf16.mxu0 0
      %4661 = vmatpush1.bf16.msra.mxu0 %v375
      %4662 = vmatprep.subr.bf16.mxu0 0
      %4663 = vmatpush1.bf16.msra.mxu0 %v376
      %4664 = vmatprep.subr.bf16.mxu0 0
      %4665 = vmatpush1.bf16.msra.mxu0 %v377
      %4666 = vmatprep.subr.bf16.mxu0 0
      %4667 = vmatpush1.bf16.msra.mxu0 %v378
      %4668 = vmatprep.subr.bf16.mxu0 0
      %4669 = vmatpush1.bf16.msra.mxu0 0
      %4670 = vmatprep.subr.bf16.mxu0 0
      %4671 = vmatpush1.bf16.msra.mxu0 0
      %4672 = vmatprep.subr.bf16.mxu0 0
      %4673 = vmatpush1.bf16.msra.mxu0 0
      %4674 = vmatprep.subr.bf16.mxu0 0
      %4675 = vmatpush1.bf16.msra.mxu0 0
      %4676 = vmatprep.mubr.bf16.mxu0 %v4627
      %4677 = vmatmul.mubr.bf16.gmra.mrb[0].mxu0 %v4608
      %v4678 = vpop.f32.mrb[0].mxu0
      %v4679 = vadd.f32 %v266, %v4678
      %v4680 = vpop.f32.mrb[0].mxu0
      %v4681 = vpop.f32.mrb[0].mxu0
      %v4682 = vadd.f32 %v266, %v4681
      %v4683 = vpop.f32.mrb[0].mxu0
      %4684 = vmatprep.mubr.bf16.mxu0 %v4630
      %4685 = vmatmul.mubr.bf16.gmra.mrb[0].mxu0 %v4610
      %v4686 = vpop.f32.mrb[0].mxu0
      %v4687 = vadd.f32 %v266, %v4686
      %v4688 = vpop.f32.mrb[0].mxu0
      %v4689 = vpop.f32.mrb[0].mxu0
      %v4690 = vadd.f32 %v266, %v4689
      %v4691 = vpop.f32.mrb[0].mxu0
      %4692 = vmatprep.mubr.bf16.mxu0 %v4633
      %4693 = vmatmul.mubr.bf16.gmra.mrb[0].mxu0 %v4612
      %v4694 = vpop.f32.mrb[0].mxu0
      %v4695 = vadd.f32 %v266, %v4694
      %v4696 = vpop.f32.mrb[0].mxu0
      %v4697 = vpop.f32.mrb[0].mxu0
      %v4698 = vadd.f32 %v266, %v4697
      %v4699 = vpop.f32.mrb[0].mxu0
      %4700 = vmatprep.mubr.bf16.mxu0 %v4636
      %4701 = vmatmul.mubr.bf16.gmra.mrb[0].mxu0 %v4614
      %v4702 = vpop.f32.mrb[0].mxu0
      %v4703 = vadd.f32 %v266, %v4702
      %v4704 = vpop.f32.mrb[0].mxu0
      %v4705 = vpop.f32.mrb[0].mxu0
      %v4706 = vadd.f32 %v266, %v4705
      %v4707 = vpop.f32.mrb[0].mxu0
      %4708 = vmatprep.mubr.bf16.mxu0 %v4639
      %4709 = vmatmul.mubr.bf16.gmra.mrb[0].mxu0 %v4616
      %v4710 = vpop.f32.mrb[0].mxu0
      %v4711 = vadd.f32 %v266, %v4710
      %v4712 = vpop.f32.mrb[0].mxu0
      %v4713 = vpop.f32.mrb[0].mxu0
      %v4714 = vadd.f32 %v266, %v4713
      %v4715 = vpop.f32.mrb[0].mxu0
      %4716 = vmatprep.mubr.bf16.mxu0 %v4642
      %4717 = vmatmul.mubr.bf16.gmra.mrb[0].mxu0 %v4618
      %v4718 = vpop.f32.mrb[0].mxu0
      %v4719 = vadd.f32 %v266, %v4718
      %v4720 = vpop.f32.mrb[0].mxu0
      %v4721 = vpop.f32.mrb[0].mxu0
      %v4722 = vpop.f32.mrb[0].mxu0
      %4723 = vdwg.mxu0
      %v4724 = vmax.f32 %v4679, 0.0
      %v4725 = vmax.f32 %v4682, 0.0
      %v4726 = vmax.f32 %v4687, 0.0
      %v4727 = vmax.f32 %v4690, 0.0
      %v4728 = vmax.f32 %v4695, 0.0
      %v4729 = vmax.f32 %v4698, 0.0
      %v4730 = vmax.f32 %v4703, 0.0
      %v4731 = vmax.f32 %v4706, 0.0
      %v4732 = vmax.f32 %v4711, 0.0
      %v4733 = vmax.f32 %v4714, 0.0
      %v4734 = vmax.f32 %v4719, 0.0
      %v4735 = vpack.c.bf16 %v4725, %v4724
      %v4736 = vpack.c.bf16 %v4727, %v4726
      %v4737 = vpack.c.bf16 %v4729, %v4728
      %v4738 = vpack.c.bf16 %v4731, %v4730
      %v4739 = vpack.c.bf16 %v4733, %v4732
      %v4740 = vpack.c.bf16 %v4734, %v4734
      %s4741 = scalar_lea.vmem %s3, 224
      %v4742 = vld [vmem:[%s4741] sm:$0xf]
      %v4743 = vld [vmem:[%s4741 + $0x4] sm:$0xf]
      %v4744 = vld [vmem:[%s4741 + $0x8] sm:$0xf]
      %v4745 = vld [vmem:[%s4741 + $0xc] sm:$0xf]
      %v4750 = vunpack.c.l.b16 %v4742
      %v4751 = vunpack.c.l.b16 %v4743
      %v4752 = vunpack.c.l.b16 %v4744
      %v4753 = vunpack.c.l.b16 %v4745
      %v4754 = vpack.c.b16 %v4751, %v4750
      %v4755 = vpack.c.b16 %v4753, %v4752
      %v4759 = vsel %vm706, %v4735, 0
      %v4762 = vsel %vm706, %v4736, 0
      %v4765 = vsel %vm706, %v4737, 0
      %v4768 = vsel %vm706, %v4738, 0
      %v4771 = vsel %vm706, %v4739, 0
      %v4774 = vsel %vm706, %v4740, 0
      %4776 = vmatprep.subr.bf16.mxu0 0
      %4777 = vmatpush1.bf16.msra.mxu0 %v4754
      %4778 = vmatprep.subr.bf16.mxu0 0
      %4779 = vmatpush1.bf16.msra.mxu0 %v4755
      %4780 = vmatprep.subr.bf16.mxu0 0
      %4781 = vmatpush1.bf16.msra.mxu0 0
      %4782 = vmatprep.subr.bf16.mxu0 0
      %4783 = vmatpush1.bf16.msra.mxu0 0
      %4784 = vmatprep.subr.bf16.mxu0 0
      %4785 = vmatpush1.bf16.msra.mxu0 0
      %4786 = vmatprep.subr.bf16.mxu0 0
      %4787 = vmatpush1.bf16.msra.mxu0 0
      %4788 = vmatprep.subr.bf16.mxu0 0
      %4789 = vmatpush1.bf16.msra.mxu0 0
      %4790 = vmatprep.subr.bf16.mxu0 0
      %4791 = vmatpush1.bf16.msra.mxu0 0
      %4792 = vmatprep.subr.bf16.mxu0 0
      %4793 = vmatpush1.bf16.msra.mxu0 0
      %4794 = vmatprep.subr.bf16.mxu0 0
      %4795 = vmatpush1.bf16.msra.mxu0 0
      %4796 = vmatprep.subr.bf16.mxu0 0
      %4797 = vmatpush1.bf16.msra.mxu0 0
      %4798 = vmatprep.subr.bf16.mxu0 0
      %4799 = vmatpush1.bf16.msra.mxu0 0
      %4800 = vmatprep.subr.bf16.mxu0 0
      %4801 = vmatpush1.bf16.msra.mxu0 0
      %4802 = vmatprep.subr.bf16.mxu0 0
      %4803 = vmatpush1.bf16.msra.mxu0 0
      %4804 = vmatprep.subr.bf16.mxu0 0
      %4805 = vmatpush1.bf16.msra.mxu0 0
      %4806 = vmatprep.subr.bf16.mxu0 0
      %4807 = vmatpush1.bf16.msra.mxu0 0
      %4808 = vmatprep.mubr.bf16.mxu0 0
      %4809 = vmatmul.mubr.bf16.gmra.mrb[0].mxu0 %v4759
      %v4810 = vpop.f32.mrb[0].mxu0
      %v4811 = vadd.f32 0.0, %v4810
      %v4812 = vpop.f32.mrb[0].mxu0
      %v4813 = vpop.f32.mrb[0].mxu0
      %v4814 = vadd.f32 0.0, %v4813
      %v4815 = vpop.f32.mrb[0].mxu0
      %4816 = vmatprep.mubr.bf16.mxu0 0
      %4817 = vmatmul.mubr.bf16.gmra.mrb[0].mxu0 %v4762
      %v4818 = vpop.f32.mrb[0].mxu0
      %v4819 = vadd.f32 0.0, %v4818
      %v4820 = vpop.f32.mrb[0].mxu0
      %v4821 = vpop.f32.mrb[0].mxu0
      %v4822 = vadd.f32 0.0, %v4821
      %v4823 = vpop.f32.mrb[0].mxu0
      %4824 = vmatprep.mubr.bf16.mxu0 0
      %4825 = vmatmul.mubr.bf16.gmra.mrb[0].mxu0 %v4765
      %v4826 = vpop.f32.mrb[0].mxu0
      %v4827 = vadd.f32 0.0, %v4826
      %v4828 = vpop.f32.mrb[0].mxu0
      %v4829 = vpop.f32.mrb[0].mxu0
      %v4830 = vadd.f32 0.0, %v4829
      %v4831 = vpop.f32.mrb[0].mxu0
      %4832 = vmatprep.mubr.bf16.mxu0 0
      %4833 = vmatmul.mubr.bf16.gmra.mrb[0].mxu0 %v4768
      %v4834 = vpop.f32.mrb[0].mxu0
      %v4835 = vadd.f32 0.0, %v4834
      %v4836 = vpop.f32.mrb[0].mxu0
      %v4837 = vpop.f32.mrb[0].mxu0
      %v4838 = vadd.f32 0.0, %v4837
      %v4839 = vpop.f32.mrb[0].mxu0
      %4840 = vmatprep.mubr.bf16.mxu0 0
      %4841 = vmatmul.mubr.bf16.gmra.mrb[0].mxu0 %v4771
      %v4842 = vpop.f32.mrb[0].mxu0
      %v4843 = vadd.f32 0.0, %v4842
      %v4844 = vpop.f32.mrb[0].mxu0
      %v4845 = vpop.f32.mrb[0].mxu0
      %v4846 = vadd.f32 0.0, %v4845
      %v4847 = vpop.f32.mrb[0].mxu0
      %4848 = vmatprep.mubr.bf16.mxu0 0
      %4849 = vmatmul.mubr.bf16.gmra.mrb[0].mxu0 %v4774
      %v4850 = vpop.f32.mrb[0].mxu0
      %v4851 = vadd.f32 0.0, %v4850
      %v4852 = vpop.f32.mrb[0].mxu0
      %v4853 = vpop.f32.mrb[0].mxu0
      %v4854 = vpop.f32.mrb[0].mxu0
      %4855 = vdwg.mxu0
      %v4856 = vadd.f32 %v4552, %v4811
      %v4857 = vadd.f32 %v4553, %v4814
      %v4858 = vadd.f32 %v4554, %v4819
      %v4859 = vadd.f32 %v4555, %v4822
      %v4860 = vadd.f32 %v4556, %v4827
      %v4861 = vadd.f32 %v4557, %v4830
      %v4862 = vadd.f32 %v4558, %v4835
      %v4863 = vadd.f32 %v4559, %v4838
      %v4864 = vadd.f32 %v4560, %v4843
      %v4865 = vadd.f32 %v4561, %v4846
      %v4866 = vadd.f32 %v4562, %v4851
      %s4867 = scalar_lea.vmem %s219, 1320
      %v4868 = vld [vmem:[%s4867] sm:$0xff]
      %v4869 = vld [vmem:[%s4867 + $0x8] sm:$0xff]
      %v4870 = vld [vmem:[%s4867 + $0x10] sm:$0xff]
      %v4871 = vld [vmem:[%s4867 + $0x18] sm:$0xff]
      %v4872 = vld [vmem:[%s4867 + $0x20] sm:$0xff]
      %v4873 = vld [vmem:[%s4867 + $0x28] sm:$0xff]
      %v4874 = vld [vmem:[%s4867 + $0x30] sm:$0xff]
      %v4875 = vld [vmem:[%s4867 + $0x38] sm:$0xff]
      %v4876 = vld [vmem:[%s4867 + $0x40] sm:$0xff]
      %v4877 = vld [vmem:[%s4867 + $0x48] sm:$0xff]
      %v4878 = vld [vmem:[%s4867 + $0x50] sm:$0x11]
      %v4890 = vunpack.c.l.b16 %v4868
      %v4891 = vunpack.c.h.b16 %v4868
      %v4892 = vunpack.c.l.b16 %v4869
      %v4893 = vunpack.c.h.b16 %v4869
      %v4894 = vunpack.c.l.b16 %v4870
      %v4895 = vunpack.c.h.b16 %v4870
      %v4896 = vunpack.c.l.b16 %v4871
      %v4897 = vunpack.c.h.b16 %v4871
      %v4898 = vunpack.c.l.b16 %v4872
      %v4899 = vunpack.c.h.b16 %v4872
      %v4900 = vunpack.c.l.b16 %v4873
      %v4901 = vunpack.c.h.b16 %v4873
      %v4902 = vunpack.c.l.b16 %v4874
      %v4903 = vunpack.c.h.b16 %v4874
      %v4904 = vunpack.c.l.b16 %v4875
      %v4905 = vunpack.c.h.b16 %v4875
      %v4906 = vunpack.c.l.b16 %v4876
      %v4907 = vunpack.c.h.b16 %v4876
      %v4908 = vunpack.c.l.b16 %v4877
      %v4909 = vunpack.c.h.b16 %v4877
      %v4910 = vunpack.c.l.b16 %v4878
      %v4911 = vunpack.c.h.b16 %v4878
      %v4912 = vpack.c.b16 %v4892, %v4890
      %v4913 = vpack.c.b16 %v4893, %v4891
      %v4914 = vpack.c.b16 %v4896, %v4894
      %v4915 = vpack.c.b16 %v4897, %v4895
      %v4916 = vpack.c.b16 %v4900, %v4898
      %v4917 = vpack.c.b16 %v4901, %v4899
      %v4918 = vpack.c.b16 %v4904, %v4902
      %v4919 = vpack.c.b16 %v4905, %v4903
      %v4920 = vpack.c.b16 %v4908, %v4906
      %v4921 = vpack.c.b16 %v4909, %v4907
      %v4922 = vpack.c.b16 %v4910, %v4910
      %v4923 = vpack.c.b16 %v4911, %v4911
      %v4931 = vsel %vm391, %v4913, 0
      %v4934 = vsel %vm391, %v4915, 0
      %v4937 = vsel %vm391, %v4917, 0
      %v4940 = vsel %vm391, %v4919, 0
      %v4943 = vsel %vm391, %v4921, 0
      %v4946 = vsel %vm391, %v4923, 0
      %4948 = vmatprep.subr.bf16.mxu0 0
      %4949 = vmatpush1.bf16.msra.mxu0 %v367
      %4950 = vmatprep.subr.bf16.mxu0 0
      %4951 = vmatpush1.bf16.msra.mxu0 %v368
      %4952 = vmatprep.subr.bf16.mxu0 0
      %4953 = vmatpush1.bf16.msra.mxu0 %v369
      %4954 = vmatprep.subr.bf16.mxu0 0
      %4955 = vmatpush1.bf16.msra.mxu0 %v370
      %4956 = vmatprep.subr.bf16.mxu0 0
      %4957 = vmatpush1.bf16.msra.mxu0 %v371
      %4958 = vmatprep.subr.bf16.mxu0 0
      %4959 = vmatpush1.bf16.msra.mxu0 %v372
      %4960 = vmatprep.subr.bf16.mxu0 0
      %4961 = vmatpush1.bf16.msra.mxu0 %v373
      %4962 = vmatprep.subr.bf16.mxu0 0
      %4963 = vmatpush1.bf16.msra.mxu0 %v374
      %4964 = vmatprep.subr.bf16.mxu0 0
      %4965 = vmatpush1.bf16.msra.mxu0 %v375
      %4966 = vmatprep.subr.bf16.mxu0 0
      %4967 = vmatpush1.bf16.msra.mxu0 %v376
      %4968 = vmatprep.subr.bf16.mxu0 0
      %4969 = vmatpush1.bf16.msra.mxu0 %v377
      %4970 = vmatprep.subr.bf16.mxu0 0
      %4971 = vmatpush1.bf16.msra.mxu0 %v378
      %4972 = vmatprep.subr.bf16.mxu0 0
      %4973 = vmatpush1.bf16.msra.mxu0 0
      %4974 = vmatprep.subr.bf16.mxu0 0
      %4975 = vmatpush1.bf16.msra.mxu0 0
      %4976 = vmatprep.subr.bf16.mxu0 0
      %4977 = vmatpush1.bf16.msra.mxu0 0
      %4978 = vmatprep.subr.bf16.mxu0 0
      %4979 = vmatpush1.bf16.msra.mxu0 0
      %4980 = vmatprep.mubr.bf16.mxu0 %v4931
      %4981 = vmatmul.mubr.bf16.gmra.mrb[0].mxu0 %v4912
      %v4982 = vpop.f32.mrb[0].mxu0
      %v4983 = vadd.f32 %v266, %v4982
      %v4984 = vpop.f32.mrb[0].mxu0
      %v4985 = vpop.f32.mrb[0].mxu0
      %v4986 = vadd.f32 %v266, %v4985
      %v4987 = vpop.f32.mrb[0].mxu0
      %4988 = vmatprep.mubr.bf16.mxu0 %v4934
      %4989 = vmatmul.mubr.bf16.gmra.mrb[0].mxu0 %v4914
      %v4990 = vpop.f32.mrb[0].mxu0
      %v4991 = vadd.f32 %v266, %v4990
      %v4992 = vpop.f32.mrb[0].mxu0
      %v4993 = vpop.f32.mrb[0].mxu0
      %v4994 = vadd.f32 %v266, %v4993
      %v4995 = vpop.f32.mrb[0].mxu0
      %4996 = vmatprep.mubr.bf16.mxu0 %v4937
      %4997 = vmatmul.mubr.bf16.gmra.mrb[0].mxu0 %v4916
      %v4998 = vpop.f32.mrb[0].mxu0
      %v4999 = vadd.f32 %v266, %v4998
      %v5000 = vpop.f32.mrb[0].mxu0
      %v5001 = vpop.f32.mrb[0].mxu0
      %v5002 = vadd.f32 %v266, %v5001
      %v5003 = vpop.f32.mrb[0].mxu0
      %5004 = vmatprep.mubr.bf16.mxu0 %v4940
      %5005 = vmatmul.mubr.bf16.gmra.mrb[0].mxu0 %v4918
      %v5006 = vpop.f32.mrb[0].mxu0
      %v5007 = vadd.f32 %v266, %v5006
      %v5008 = vpop.f32.mrb[0].mxu0
      %v5009 = vpop.f32.mrb[0].mxu0
      %v5010 = vadd.f32 %v266, %v5009
      %v5011 = vpop.f32.mrb[0].mxu0
      %5012 = vmatprep.mubr.bf16.mxu0 %v4943
      %5013 = vmatmul.mubr.bf16.gmra.mrb[0].mxu0 %v4920
      %v5014 = vpop.f32.mrb[0].mxu0
      %v5015 = vadd.f32 %v266, %v5014
      %v5016 = vpop.f32.mrb[0].mxu0
      %v5017 = vpop.f32.mrb[0].mxu0
      %v5018 = vadd.f32 %v266, %v5017
      %v5019 = vpop.f32.mrb[0].mxu0
      %5020 = vmatprep.mubr.bf16.mxu0 %v4946
      %5021 = vmatmul.mubr.bf16.gmra.mrb[0].mxu0 %v4922
      %v5022 = vpop.f32.mrb[0].mxu0
      %v5023 = vadd.f32 %v266, %v5022
      %v5024 = vpop.f32.mrb[0].mxu0
      %v5025 = vpop.f32.mrb[0].mxu0
      %v5026 = vpop.f32.mrb[0].mxu0
      %5027 = vdwg.mxu0
      %v5028 = vmax.f32 %v4983, 0.0
      %v5029 = vmax.f32 %v4986, 0.0
      %v5030 = vmax.f32 %v4991, 0.0
      %v5031 = vmax.f32 %v4994, 0.0
      %v5032 = vmax.f32 %v4999, 0.0
      %v5033 = vmax.f32 %v5002, 0.0
      %v5034 = vmax.f32 %v5007, 0.0
      %v5035 = vmax.f32 %v5010, 0.0
      %v5036 = vmax.f32 %v5015, 0.0
      %v5037 = vmax.f32 %v5018, 0.0
      %v5038 = vmax.f32 %v5023, 0.0
      %v5039 = vpack.c.bf16 %v5029, %v5028
      %v5040 = vpack.c.bf16 %v5031, %v5030
      %v5041 = vpack.c.bf16 %v5033, %v5032
      %v5042 = vpack.c.bf16 %v5035, %v5034
      %v5043 = vpack.c.bf16 %v5037, %v5036
      %v5044 = vpack.c.bf16 %v5038, %v5038
      %s5045 = scalar_lea.vmem %s3, 240
      %v5046 = vld [vmem:[%s5045] sm:$0xf]
      %v5047 = vld [vmem:[%s5045 + $0x4] sm:$0xf]
      %v5048 = vld [vmem:[%s5045 + $0x8] sm:$0xf]
      %v5049 = vld [vmem:[%s5045 + $0xc] sm:$0xf]
      %v5054 = vunpack.c.l.b16 %v5046
      %v5055 = vunpack.c.l.b16 %v5047
      %v5056 = vunpack.c.l.b16 %v5048
      %v5057 = vunpack.c.l.b16 %v5049
      %v5058 = vpack.c.b16 %v5055, %v5054
      %v5059 = vpack.c.b16 %v5057, %v5056
      %v5063 = vsel %vm706, %v5039, 0
      %v5066 = vsel %vm706, %v5040, 0
      %v5069 = vsel %vm706, %v5041, 0
      %v5072 = vsel %vm706, %v5042, 0
      %v5075 = vsel %vm706, %v5043, 0
      %v5078 = vsel %vm706, %v5044, 0
      %5080 = vmatprep.subr.bf16.mxu0 0
      %5081 = vmatpush1.bf16.msra.mxu0 %v5058
      %5082 = vmatprep.subr.bf16.mxu0 0
      %5083 = vmatpush1.bf16.msra.mxu0 %v5059
      %5084 = vmatprep.subr.bf16.mxu0 0
      %5085 = vmatpush1.bf16.msra.mxu0 0
      %5086 = vmatprep.subr.bf16.mxu0 0
      %5087 = vmatpush1.bf16.msra.mxu0 0
      %5088 = vmatprep.subr.bf16.mxu0 0
      %5089 = vmatpush1.bf16.msra.mxu0 0
      %5090 = vmatprep.subr.bf16.mxu0 0
      %5091 = vmatpush1.bf16.msra.mxu0 0
      %5092 = vmatprep.subr.bf16.mxu0 0
      %5093 = vmatpush1.bf16.msra.mxu0 0
      %5094 = vmatprep.subr.bf16.mxu0 0
      %5095 = vmatpush1.bf16.msra.mxu0 0
      %5096 = vmatprep.subr.bf16.mxu0 0
      %5097 = vmatpush1.bf16.msra.mxu0 0
      %5098 = vmatprep.subr.bf16.mxu0 0
      %5099 = vmatpush1.bf16.msra.mxu0 0
      %5100 = vmatprep.subr.bf16.mxu0 0
      %5101 = vmatpush1.bf16.msra.mxu0 0
      %5102 = vmatprep.subr.bf16.mxu0 0
      %5103 = vmatpush1.bf16.msra.mxu0 0
      %5104 = vmatprep.subr.bf16.mxu0 0
      %5105 = vmatpush1.bf16.msra.mxu0 0
      %5106 = vmatprep.subr.bf16.mxu0 0
      %5107 = vmatpush1.bf16.msra.mxu0 0
      %5108 = vmatprep.subr.bf16.mxu0 0
      %5109 = vmatpush1.bf16.msra.mxu0 0
      %5110 = vmatprep.subr.bf16.mxu0 0
      %5111 = vmatpush1.bf16.msra.mxu0 0
      %5112 = vmatprep.mubr.bf16.mxu0 0
      %5113 = vmatmul.mubr.bf16.gmra.mrb[0].mxu0 %v5063
      %v5114 = vpop.f32.mrb[0].mxu0
      %v5115 = vadd.f32 0.0, %v5114
      %v5116 = vpop.f32.mrb[0].mxu0
      %v5117 = vpop.f32.mrb[0].mxu0
      %v5118 = vadd.f32 0.0, %v5117
      %v5119 = vpop.f32.mrb[0].mxu0
      %5120 = vmatprep.mubr.bf16.mxu0 0
      %5121 = vmatmul.mubr.bf16.gmra.mrb[0].mxu0 %v5066
      %v5122 = vpop.f32.mrb[0].mxu0
      %v5123 = vadd.f32 0.0, %v5122
      %v5124 = vpop.f32.mrb[0].mxu0
      %v5125 = vpop.f32.mrb[0].mxu0
      %v5126 = vadd.f32 0.0, %v5125
      %v5127 = vpop.f32.mrb[0].mxu0
      %5128 = vmatprep.mubr.bf16.mxu0 0
      %5129 = vmatmul.mubr.bf16.gmra.mrb[0].mxu0 %v5069
      %v5130 = vpop.f32.mrb[0].mxu0
      %v5131 = vadd.f32 0.0, %v5130
      %v5132 = vpop.f32.mrb[0].mxu0
      %v5133 = vpop.f32.mrb[0].mxu0
      %v5134 = vadd.f32 0.0, %v5133
      %v5135 = vpop.f32.mrb[0].mxu0
      %5136 = vmatprep.mubr.bf16.mxu0 0
      %5137 = vmatmul.mubr.bf16.gmra.mrb[0].mxu0 %v5072
      %v5138 = vpop.f32.mrb[0].mxu0
      %v5139 = vadd.f32 0.0, %v5138
      %v5140 = vpop.f32.mrb[0].mxu0
      %v5141 = vpop.f32.mrb[0].mxu0
      %v5142 = vadd.f32 0.0, %v5141
      %v5143 = vpop.f32.mrb[0].mxu0
      %5144 = vmatprep.mubr.bf16.mxu0 0
      %5145 = vmatmul.mubr.bf16.gmra.mrb[0].mxu0 %v5075
      %v5146 = vpop.f32.mrb[0].mxu0
      %v5147 = vadd.f32 0.0, %v5146
      %v5148 = vpop.f32.mrb[0].mxu0
      %v5149 = vpop.f32.mrb[0].mxu0
      %v5150 = vadd.f32 0.0, %v5149
      %v5151 = vpop.f32.mrb[0].mxu0
      %5152 = vmatprep.mubr.bf16.mxu0 0
      %5153 = vmatmul.mubr.bf16.gmra.mrb[0].mxu0 %v5078
      %v5154 = vpop.f32.mrb[0].mxu0
      %v5155 = vadd.f32 0.0, %v5154
      %v5156 = vpop.f32.mrb[0].mxu0
      %v5157 = vpop.f32.mrb[0].mxu0
      %v5158 = vpop.f32.mrb[0].mxu0
      %5159 = vdwg.mxu0
      %v5160 = vadd.f32 %v4856, %v5115
      %v5161 = vadd.f32 %v4857, %v5118
      %v5162 = vadd.f32 %v4858, %v5123
      %v5163 = vadd.f32 %v4859, %v5126
      %v5164 = vadd.f32 %v4860, %v5131
      %v5165 = vadd.f32 %v4861, %v5134
      %v5166 = vadd.f32 %v4862, %v5139
      %v5167 = vadd.f32 %v4863, %v5142
      %v5168 = vadd.f32 %v4864, %v5147
      %v5169 = vadd.f32 %v4865, %v5150
      %v5170 = vadd.f32 %v4866, %v5155
      %v5171 = vld [vmem:[%s4] sm:$0x1]
      %v5173 = vlaneseq
      %v5174 = vshrl.u32 %v5173, 7
      %v5175 = vsub.s32 0, %v5174
      %v5176 = vrot.slane %v5171, %v5175
      %v5178 = vadd.f32 %v5160, %v5176
      %v5179 = vadd.f32 %v5161, %v5176
      %v5180 = vadd.f32 %v5162, %v5176
      %v5181 = vadd.f32 %v5163, %v5176
      %v5182 = vadd.f32 %v5164, %v5176
      %v5183 = vadd.f32 %v5165, %v5176
      %v5184 = vadd.f32 %v5166, %v5176
      %v5185 = vadd.f32 %v5167, %v5176
      %v5186 = vadd.f32 %v5168, %v5176
      %v5187 = vadd.f32 %v5169, %v5176
      %v5188 = vadd.f32 %v5170, %v5176
      %v5189 = vmax.f32 %v5178, 0.0
      %v5190 = vmax.f32 %v5179, 0.0
      %v5191 = vmax.f32 %v5180, 0.0
      %v5192 = vmax.f32 %v5181, 0.0
      %v5193 = vmax.f32 %v5182, 0.0
      %v5194 = vmax.f32 %v5183, 0.0
      %v5195 = vmax.f32 %v5184, 0.0
      %v5196 = vmax.f32 %v5185, 0.0
      %v5197 = vmax.f32 %v5186, 0.0
      %v5198 = vmax.f32 %v5187, 0.0
      %v5199 = vmax.f32 %v5188, 0.0
      %v5200 = vpack.c.bf16 %v5190, %v5189
      %v5201 = vpack.c.bf16 %v5192, %v5191
      %v5202 = vpack.c.bf16 %v5194, %v5193
      %v5203 = vpack.c.bf16 %v5196, %v5195
      %v5204 = vpack.c.bf16 %v5198, %v5197
      %v5205 = vpack.c.bf16 %v5199, %v5199
      %v5212 = vunpack.c.l.b16 %v5200
      %v5213 = vunpack.c.h.b16 %v5200
      %v5214 = vunpack.c.l.b16 %v5201
      %v5215 = vunpack.c.h.b16 %v5201
      %v5216 = vunpack.c.l.b16 %v5202
      %v5217 = vunpack.c.h.b16 %v5202
      %v5218 = vunpack.c.l.b16 %v5203
      %v5219 = vunpack.c.h.b16 %v5203
      %v5220 = vunpack.c.l.b16 %v5204
      %v5221 = vunpack.c.h.b16 %v5204
      %v5222 = vunpack.c.l.b16 %v5205
      %v5223 = vpack.c.b16 %v5212, %v5212
      %v5224 = vpack.c.b16 %v5213, %v5213
      %v5225 = vpack.c.b16 %v5214, %v5214
      %v5226 = vpack.c.b16 %v5215, %v5215
      %v5227 = vpack.c.b16 %v5216, %v5216
      %v5228 = vpack.c.b16 %v5217, %v5217
      %v5229 = vpack.c.b16 %v5218, %v5218
      %v5230 = vpack.c.b16 %v5219, %v5219
      %v5231 = vpack.c.b16 %v5220, %v5220
      %v5232 = vpack.c.b16 %v5221, %v5221
      %v5233 = vpack.c.b16 %v5222, %v5222
      %vm5245 = vcmask 519168
      %5246 = vst.msk [vmem:[%s224] sm:$0xf] %vm5245, %v5223
      %5247 = vst.msk [vmem:[%s224 + $0x4] sm:$0xf] %vm5245, %v5224
      %5248 = vst.msk [vmem:[%s224 + $0x8] sm:$0xf] %vm5245, %v5225
      %5249 = vst.msk [vmem:[%s224 + $0xc] sm:$0xf] %vm5245, %v5226
      %5250 = vst.msk [vmem:[%s224 + $0x10] sm:$0xf] %vm5245, %v5227
      %5251 = vst.msk [vmem:[%s224 + $0x14] sm:$0xf] %vm5245, %v5228
      %5252 = vst.msk [vmem:[%s224 + $0x18] sm:$0xf] %vm5245, %v5229
      %5253 = vst.msk [vmem:[%s224 + $0x1c] sm:$0xf] %vm5245, %v5230
      %5254 = vst.msk [vmem:[%s224 + $0x20] sm:$0xf] %vm5245, %v5231
      %5255 = vst.msk [vmem:[%s224 + $0x24] sm:$0xf] %vm5245, %v5232
      %vm5256 = vcmask 516096
      %vm5257 = vsmask.f32 256
      %vm5258 = vmand %vm5256, %vm5257
      %v5259 = vld [vmem:[%s224 + $0x28] sm:$0x1]
      %v5260 = vsel %vm5258, %v5233, %v5259
      %5261 = vst [vmem:[%s224 + $0x28] sm:$0x1] %v5260
      %p5262 = scmp.lt.s32.totalorder %s16, 1
      %s5263 = scalar_select %p5262, %s16, 1
      %s5264 = smul.addr %s5263, 11
      %s5265 = smul.addr %s5264, 4
      %s5266 = scalar_lea.vmem %s5, %s5265
      // Predicated region
      $region41: #{cnn_forward.2} parent=39 // pred_check
        %p5267 = pneg %p144
      $region42: #{cnn_forward.2} parent=39 // pred_check_branch
        %5269 = sbr.rel (%p5267) target = $region44
      $region43: #{cnn_forward.2} parent=39 // pred_region
        _
      $region44: #{cnn_forward.2} parent=39 // pred_fallthru
        _
    $region40: #{cnn_forward.2} parent=5 // pred_fallthru
      _
    %p5270 = scmp.le.s32.totalorder 2, %s11
    // Predicated region
    $region45: #{cnn_forward.2} parent=5 // pred_check
      %p5271 = pneg %p5270
    $region46: #{cnn_forward.2} parent=5 // pred_check_branch
      %5273 = sbr.rel (%p5271) target = $region48
    $region47: #{cnn_forward.2} parent=5 // pred_region
      %s5274 = ssub.s32 %s11, 2
      // Predicated region
      $region49: #{cnn_forward.2} parent=47 // pred_check
        %p5275 = pneg %p150
      $region50: #{cnn_forward.2} parent=47 // pred_check_branch
        %5277 = sbr.rel (%p5275) target = $region52
      $region51: #{cnn_forward.2} parent=47 // pred_region
        %p5278 = scmp.lt.s32.totalorder %s17, 1
        %s5279 = scalar_select %p5278, %s17, 1
        %s5280 = smul.addr %s5279, 11
        %s5281 = smul.addr %s5280, 4
        %s5282 = scalar_lea.vmem %s5, %s5281
      $region52: #{cnn_forward.2} parent=47 // pred_fallthru
        _
    $region48: #{cnn_forward.2} parent=5 // pred_fallthru
      _
  $region6: #{cnn_forward.2} parent=0 // loop_footer
    %s15 = sadd.s32 1, %s11
  $region7: #{cnn_forward.2} parent=0 // loop_footer_branch
    %10 = sbr.rel target = $region3
  $region8: #{cnn_forward.2} parent=0 // loop_exit
    _

</llo_original>
